<compile_context>
chip_gen: v7x
topology: tpu7x:2x2x1
jax: 0.10.0
libtpu: 0.0.40
codegen_flags: <defaults>
</compile_context>

<pallas_src>
import functools

import jax
import jax.numpy as jnp
from jax.experimental import pallas as pl
from jax.experimental.pallas import tpu as pltpu


# ---------------------------------------------------------------------------
# helpers (in-kernel math, f32)
# ---------------------------------------------------------------------------
def _gelu_tanh(x):
    # PyTorch nn.GELU('tanh'): 0.5*x*(1+tanh(sqrt(2/pi)*(x+0.044715*x^3)))
    c = jnp.float32(0.7978845608028654)
    return 0.5 * x * (1.0 + jnp.tanh(c * (x + 0.044715 * x * x * x)))


def _layernorm(z, gamma, beta, eps=1e-5):
    mu = jnp.mean(z, axis=-1, keepdims=True)
    var = jnp.mean((z - mu) ** 2, axis=-1, keepdims=True)
    return (z - mu) * jax.lax.rsqrt(var + eps) * gamma + beta


def _attention(q_src, kv_src, wq, bq, wkv, bkv, wp, bp, no_heads):
    """Multi-head attention (self or cross) with fused full-width projections.

    q_src: (B, Tq, D) f32, kv_src: (B, Tk, D) f32
    wq: (D, D) bf16, wkv: (D, 2D) bf16, wp: (D, D) bf16; biases f32.
    """
    B, Tq, D = q_src.shape
    Tk = kv_src.shape[1]
    H = no_heads
    hd = D // H
    scale = jnp.float32(1.0 / float(hd) ** 0.5)

    q2 = q_src.reshape(B * Tq, D).astype(jnp.bfloat16)
    kv2 = kv_src.reshape(B * Tk, D).astype(jnp.bfloat16)

    # Full-width projections (one MXU matmul each), f32 accumulation + f32 bias add.
    q_all = jnp.dot(q2, wq, preferred_element_type=jnp.float32) + bq          # (B*Tq, D)
    kv_all = jnp.dot(kv2, wkv, preferred_element_type=jnp.float32) + bkv      # (B*Tk, 2D)

    q_all = q_all.reshape(B, Tq, D)
    k_all = kv_all[:, :D].reshape(B, Tk, D)
    v_all = kv_all[:, D:].reshape(B, Tk, D)

    heads = []
    for h in range(H):                      # H is small & static
        sl = slice(h * hd, (h + 1) * hd)
        q = q_all[:, :, sl].astype(jnp.bfloat16)
        k = k_all[:, :, sl].astype(jnp.bfloat16)
        v = v_all[:, :, sl].astype(jnp.bfloat16)
        s = jnp.einsum('bqe,bke->bqk', q, k,
                       preferred_element_type=jnp.float32) * scale            # f32 scores
        s = s - jnp.max(s, axis=-1, keepdims=True)
        p = jnp.exp(s)
        p = p * pl.reciprocal(jnp.sum(p, axis=-1, keepdims=True), approx=True)
        heads.append(jnp.einsum('bqk,bke->bqe', p.astype(jnp.bfloat16), v,
                                preferred_element_type=jnp.float32))
    y = jnp.concatenate(heads, axis=-1).reshape(B * Tq, D)                    # head-concat order

    out = jnp.dot(y.astype(jnp.bfloat16), wp, preferred_element_type=jnp.float32) + bp
    return out.reshape(B, Tq, D)


# ---------------------------------------------------------------------------
# kernels
# ---------------------------------------------------------------------------
def decoder_block_kernel(x_ref, enc_ref,
                         sa_wq, sa_bq, sa_wkv, sa_bkv, sa_wp, sa_bp, sa_g, sa_b,
                         ca_wq, ca_bq, ca_wkv, ca_bkv, ca_wp, ca_bp, ca_g, ca_b,
                         w1, b1, w2, b2, m_g, m_b,
                         out_ref, *, no_heads):
    """One fused decoder block (self-attn + cross-attn + MLP, residual + LayerNorm each).

    Runs per batch element (grid over B); all activations stay in VMEM.
    """
    x = x_ref[...]                          # (1, T, D) f32
    enc = enc_ref[...]                      # (1, Te, D) f32

    # --- self-attention + residual + LN1 ---
    a = _attention(x, x, sa_wq[...], sa_bq[...], sa_wkv[...], sa_bkv[...],
                   sa_wp[...], sa_bp[...], no_heads)
    x = _layernorm(a + x, sa_g[...][None], sa_b[...][None])

    # --- cross-attention (q from decoded, k/v from encoded) + residual + LN2 ---
    a = _attention(x, enc, ca_wq[...], ca_bq[...], ca_wkv[...], ca_bkv[...],
                   ca_wp[...], ca_bp[...], no_heads)
    x = _layernorm(a + x, ca_g[...][None], ca_b[...][None])

    # --- MLP (D -> 4D -> D, GELU tanh) + residual + LN3 ---
    B, T, D = x.shape
    x2 = x.reshape(B * T, D)
    h = jnp.dot(x2.astype(jnp.bfloat16), w1[...], preferred_element_type=jnp.float32) + b1[...]
    h = _gelu_tanh(h)
    y = jnp.dot(h.astype(jnp.bfloat16), w2[...], preferred_element_type=jnp.float32) + b2[...]
    x = _layernorm(y.reshape(B, T, D) + x, m_g[...][None], m_b[...][None])

    out_ref[...] = x


def lm_head_kernel(x_ref, w_ref, b_ref, out_ref):
    """Final projection to a vocab tile: (BT, D) @ (D, TN) + b."""
    x = x_ref[...].astype(jnp.bfloat16)
    out_ref[...] = (jnp.dot(x, w_ref[...], preferred_element_type=jnp.float32)
                    + b_ref[...])


# ---------------------------------------------------------------------------
# pallas_call wrappers
# ---------------------------------------------------------------------------
def _const_spec(shape):
    """Full-array block whose index does not depend on the grid (stays VMEM-resident)."""
    zeros = (0,) * len(shape)
    return pl.BlockSpec(shape, lambda *_: zeros)


def decoder_block(x, encoded, blk, *, no_heads):
    B, T, D = x.shape
    Te = encoded.shape[1]
    sa, ca, m = blk['sa'], blk['ca'], blk['mlp']
    weights = [sa['wq'], sa['bq'], sa['wkv'], sa['bkv'], sa['wp'], sa['bp'], sa['gamma'], sa['beta'],
               ca['wq'], ca['bq'], ca['wkv'], ca['bkv'], ca['wp'], ca['bp'], ca['gamma'], ca['beta'],
               m['w1'], m['b1'], m['w2'], m['b2'], m['gamma'], m['beta']]
    in_specs = ([pl.BlockSpec((1, T, D), lambda b: (b, 0, 0)),
                 pl.BlockSpec((1, Te, D), lambda b: (b, 0, 0))]
                + [_const_spec(w.shape) for w in weights])
    return pl.pallas_call(
        functools.partial(decoder_block_kernel, no_heads=no_heads),
        out_shape=jax.ShapeDtypeStruct((B, T, D), jnp.float32),
        grid=(B,),                                    # independent batch rows -> megacore
        in_specs=in_specs,
        out_specs=pl.BlockSpec((1, T, D), lambda b: (b, 0, 0)),
        compiler_params=pltpu.CompilerParams(dimension_semantics=("parallel",)),
    )(x, encoded, *weights)


def _vocab_tile(V):
    for t in (1024, 512, 256, 128):
        if V % t == 0:
            return t
    return V                                          # toy vocabularies: single full tile


def lm_head_call(x2d, w, b):
    BT, D = x2d.shape
    V = w.shape[1]
    TN = _vocab_tile(V)
    return pl.pallas_call(
        lm_head_kernel,
        out_shape=jax.ShapeDtypeStruct((BT, V), jnp.float32),
        grid=(V // TN,),                              # tile over vocab -> weight streaming
        in_specs=[pl.BlockSpec((BT, D), lambda j: (0, 0)),
                  pl.BlockSpec((D, TN), lambda j: (0, j)),
                  pl.BlockSpec((1, TN), lambda j: (0, j))],
        out_specs=pl.BlockSpec((BT, TN), lambda j: (0, j)),
        compiler_params=pltpu.CompilerParams(dimension_semantics=("parallel",)),
    )(x2d, w, b)


# ---------------------------------------------------------------------------
# parameters (deterministic synthetic init)
# ---------------------------------------------------------------------------
def init_params(key, *, vocab, context, model_dim, no_heads, no_blocks):
    D = model_dim
    n_keys = 4 + no_blocks * 16
    keys = iter(jax.random.split(key, n_keys))

    def nrm(shape, dtype=jnp.float32, scale=0.02):
        return (scale * jax.random.normal(next(keys), shape, dtype=jnp.float32)).astype(dtype)

    params = {
        'tok_emb': nrm((vocab, D)),                   # gathered, kept f32
        'pos_emb': nrm((context, D)),
        'lm_w': nrm((D, vocab), jnp.bfloat16),        # matmul weights stored bf16
        'lm_b': nrm((1, vocab)),
        'blocks': [],
    }
    for _ in range(no_blocks):
        blk = {}
        for name in ('sa', 'ca'):                     # self-attn, cross-attn
            blk[name] = {
                # (D, D): head h's qW.weight.T occupies columns h*hd:(h+1)*hd
                'wq': nrm((D, D), jnp.bfloat16), 'bq': nrm((1, D)),
                # (D, 2D): [all K heads | all V heads], same per-head column layout
                'wkv': nrm((D, 2 * D), jnp.bfloat16), 'bkv': nrm((1, 2 * D)),
                'wp': nrm((D, D), jnp.bfloat16), 'bp': nrm((1, D)),
                'gamma': jnp.ones((1, D), jnp.float32),
                'beta': jnp.zeros((1, D), jnp.float32),
            }
        blk['mlp'] = {
            'w1': nrm((D, 4 * D), jnp.bfloat16), 'b1': nrm((1, 4 * D)),
            'w2': nrm((4 * D, D), jnp.bfloat16), 'b2': nrm((1, D)),
            'gamma': jnp.ones((1, D), jnp.float32),
            'beta': jnp.zeros((1, D), jnp.float32),
        }
        params['blocks'].append(blk)
    return params


# ---------------------------------------------------------------------------
# forward
# ---------------------------------------------------------------------------
def decoder_forward(params, encoded, decoded_ids, *, no_heads):
    B, T = decoded_ids.shape
    D = encoded.shape[-1]
    V = params['lm_w'].shape[1]

    # Embedding: row gather + positional add (plain JAX; replaces the one-hot matmul).
    # TODO(synk): for a fully in-Pallas path, use PrefetchScalarGridSpec + pl.Element gather.
    x = jnp.take(params['tok_emb'], decoded_ids, axis=0) + params['pos_emb'][:T][None, :, :]

    for blk in params['blocks']:
        x = decoder_block(x, encoded, blk, no_heads=no_heads)

    logits = lm_head_call(x.reshape(B * T, D), params['lm_w'], params['lm_b'])
    return logits.reshape(B, T, V)


# ---------------------------------------------------------------------------
# main
# ---------------------------------------------------------------------------
if __name__ == "__main__":
    vocab_size, context, model_dim, no_heads, no_blocks = 64, 16, 32, 4, 2
    B, T_dec, T_enc = 2, 8, 8

    key = jax.random.PRNGKey(0)
    k_params, k_ids, k_enc = jax.random.split(key, 3)

    params = init_params(k_params, vocab=vocab_size, context=context,
                         model_dim=model_dim, no_heads=no_heads, no_blocks=no_blocks)

    decoded_ids = jax.random.randint(k_ids, (B, T_dec), 0, vocab_size, dtype=jnp.int32)
    encoded = jax.random.normal(k_enc, (B, T_enc, model_dim), dtype=jnp.float32)

    fwd = jax.jit(functools.partial(decoder_forward, no_heads=no_heads))
    logits = fwd(params, encoded, decoded_ids)
    logits = jax.block_until_ready(logits)

    assert logits.shape == (B, T_dec, vocab_size), logits.shape
    assert bool(jnp.all(jnp.isfinite(logits)))
    print("KERNEL_OK")
</pallas_src>

<mosaic_0001>
module attributes {stable_mosaic.version = 11 : i64} {
  func.func @decoder_block_kernel(%arg0: i32, %arg1: memref<1x8x32xf32, #tpu.memory_space<vmem>>, %arg2: memref<1x8x32xf32, #tpu.memory_space<vmem>>, %arg3: memref<32x32xbf16, #tpu.memory_space<vmem>>, %arg4: memref<1x32xf32, #tpu.memory_space<vmem>>, %arg5: memref<32x64xbf16, #tpu.memory_space<vmem>>, %arg6: memref<1x64xf32, #tpu.memory_space<vmem>>, %arg7: memref<32x32xbf16, #tpu.memory_space<vmem>>, %arg8: memref<1x32xf32, #tpu.memory_space<vmem>>, %arg9: memref<1x32xf32, #tpu.memory_space<vmem>>, %arg10: memref<1x32xf32, #tpu.memory_space<vmem>>, %arg11: memref<32x32xbf16, #tpu.memory_space<vmem>>, %arg12: memref<1x32xf32, #tpu.memory_space<vmem>>, %arg13: memref<32x64xbf16, #tpu.memory_space<vmem>>, %arg14: memref<1x64xf32, #tpu.memory_space<vmem>>, %arg15: memref<32x32xbf16, #tpu.memory_space<vmem>>, %arg16: memref<1x32xf32, #tpu.memory_space<vmem>>, %arg17: memref<1x32xf32, #tpu.memory_space<vmem>>, %arg18: memref<1x32xf32, #tpu.memory_space<vmem>>, %arg19: memref<32x128xbf16, #tpu.memory_space<vmem>>, %arg20: memref<1x128xf32, #tpu.memory_space<vmem>>, %arg21: memref<128x32xbf16, #tpu.memory_space<vmem>>, %arg22: memref<1x32xf32, #tpu.memory_space<vmem>>, %arg23: memref<1x32xf32, #tpu.memory_space<vmem>>, %arg24: memref<1x32xf32, #tpu.memory_space<vmem>>, %arg25: memref<1x8x32xf32, #tpu.memory_space<vmem>>) attributes {dimension_semantics = [#tpu.dimension_semantics<parallel>], iteration_bounds = array<i64: 2>, scalar_prefetch = 0 : i64, scratch_operands = 0 : i64, tpu.core_type = #tpu.core_type<tc>, window_params = [{transform_indices = @transform_0, window_bounds = array<i64: 1, 8, 32>}, {transform_indices = @transform_1, window_bounds = array<i64: 1, 8, 32>}, {pipeline_mode = #tpu.pipeline_mode<synchronous>, transform_indices = @transform_2, window_bounds = array<i64: 32, 32>}, {pipeline_mode = #tpu.pipeline_mode<synchronous>, transform_indices = @transform_3, window_bounds = array<i64: 1, 32>}, {pipeline_mode = #tpu.pipeline_mode<synchronous>, transform_indices = @transform_4, window_bounds = array<i64: 32, 64>}, {pipeline_mode = #tpu.pipeline_mode<synchronous>, transform_indices = @transform_5, window_bounds = array<i64: 1, 64>}, {pipeline_mode = #tpu.pipeline_mode<synchronous>, transform_indices = @transform_6, window_bounds = array<i64: 32, 32>}, {pipeline_mode = #tpu.pipeline_mode<synchronous>, transform_indices = @transform_7, window_bounds = array<i64: 1, 32>}, {pipeline_mode = #tpu.pipeline_mode<synchronous>, transform_indices = @transform_8, window_bounds = array<i64: 1, 32>}, {pipeline_mode = #tpu.pipeline_mode<synchronous>, transform_indices = @transform_9, window_bounds = array<i64: 1, 32>}, {pipeline_mode = #tpu.pipeline_mode<synchronous>, transform_indices = @transform_10, window_bounds = array<i64: 32, 32>}, {pipeline_mode = #tpu.pipeline_mode<synchronous>, transform_indices = @transform_11, window_bounds = array<i64: 1, 32>}, {pipeline_mode = #tpu.pipeline_mode<synchronous>, transform_indices = @transform_12, window_bounds = array<i64: 32, 64>}, {pipeline_mode = #tpu.pipeline_mode<synchronous>, transform_indices = @transform_13, window_bounds = array<i64: 1, 64>}, {pipeline_mode = #tpu.pipeline_mode<synchronous>, transform_indices = @transform_14, window_bounds = array<i64: 32, 32>}, {pipeline_mode = #tpu.pipeline_mode<synchronous>, transform_indices = @transform_15, window_bounds = array<i64: 1, 32>}, {pipeline_mode = #tpu.pipeline_mode<synchronous>, transform_indices = @transform_16, window_bounds = array<i64: 1, 32>}, {pipeline_mode = #tpu.pipeline_mode<synchronous>, transform_indices = @transform_17, window_bounds = array<i64: 1, 32>}, {pipeline_mode = #tpu.pipeline_mode<synchronous>, transform_indices = @transform_18, window_bounds = array<i64: 32, 128>}, {pipeline_mode = #tpu.pipeline_mode<synchronous>, transform_indices = @transform_19, window_bounds = array<i64: 1, 128>}, {pipeline_mode = #tpu.pipeline_mode<synchronous>, transform_indices = @transform_20, window_bounds = array<i64: 128, 32>}, {pipeline_mode = #tpu.pipeline_mode<synchronous>, transform_indices = @transform_21, window_bounds = array<i64: 1, 32>}, {pipeline_mode = #tpu.pipeline_mode<synchronous>, transform_indices = @transform_22, window_bounds = array<i64: 1, 32>}, {pipeline_mode = #tpu.pipeline_mode<synchronous>, transform_indices = @transform_23, window_bounds = array<i64: 1, 32>}, {transform_indices = @transform_24, window_bounds = array<i64: 1, 8, 32>}]} {
    %c0 = arith.constant 0 : index
    %c0_0 = arith.constant 0 : index
    %c0_1 = arith.constant 0 : index
    %0 = vector.load %arg1[%c0, %c0_0, %c0_1] : memref<1x8x32xf32, #tpu.memory_space<vmem>>, vector<1x8x32xf32>
    %c0_2 = arith.constant 0 : index
    %c0_3 = arith.constant 0 : index
    %c0_4 = arith.constant 0 : index
    %1 = vector.load %arg2[%c0_2, %c0_3, %c0_4] : memref<1x8x32xf32, #tpu.memory_space<vmem>>, vector<1x8x32xf32>
    %c0_5 = arith.constant 0 : index
    %c0_6 = arith.constant 0 : index
    %2 = vector.load %arg3[%c0_5, %c0_6] : memref<32x32xbf16, #tpu.memory_space<vmem>>, vector<32x32xbf16>
    %c0_7 = arith.constant 0 : index
    %c0_8 = arith.constant 0 : index
    %3 = vector.load %arg4[%c0_7, %c0_8] : memref<1x32xf32, #tpu.memory_space<vmem>>, vector<1x32xf32>
    %c0_9 = arith.constant 0 : index
    %c0_10 = arith.constant 0 : index
    %4 = vector.load %arg5[%c0_9, %c0_10] : memref<32x64xbf16, #tpu.memory_space<vmem>>, vector<32x64xbf16>
    %c0_11 = arith.constant 0 : index
    %c0_12 = arith.constant 0 : index
    %5 = vector.load %arg6[%c0_11, %c0_12] : memref<1x64xf32, #tpu.memory_space<vmem>>, vector<1x64xf32>
    %c0_13 = arith.constant 0 : index
    %c0_14 = arith.constant 0 : index
    %6 = vector.load %arg7[%c0_13, %c0_14] : memref<32x32xbf16, #tpu.memory_space<vmem>>, vector<32x32xbf16>
    %c0_15 = arith.constant 0 : index
    %c0_16 = arith.constant 0 : index
    %7 = vector.load %arg8[%c0_15, %c0_16] : memref<1x32xf32, #tpu.memory_space<vmem>>, vector<1x32xf32>
    %8 = vector.shape_cast %0 : vector<1x8x32xf32> to vector<8x32xf32>
    %9 = arith.truncf %8 : vector<8x32xf32> to vector<8x32xbf16>
    %10 = vector.shape_cast %0 : vector<1x8x32xf32> to vector<8x32xf32>
    %11 = arith.truncf %10 : vector<8x32xf32> to vector<8x32xbf16>
    %cst = arith.constant dense<0.000000e+00> : vector<8x32xf32>
    %12 = tpu.matmul %9, %2, %cst {dimension_numbers = #tpu.dot_dimension_numbers<[1], [0], [0], [1], [0, 0, 1, 1], [], []>} : vector<8x32xbf16>, vector<32x32xbf16>, vector<8x32xf32> -> vector<8x32xf32>
    %13 = vector.broadcast %3 : vector<1x32xf32> to vector<8x32xf32>
    %14 = arith.addf %12, %13 : vector<8x32xf32>
    %cst_17 = arith.constant dense<0.000000e+00> : vector<8x64xf32>
    %15 = tpu.matmul %11, %4, %cst_17 {dimension_numbers = #tpu.dot_dimension_numbers<[1], [0], [0], [1], [0, 0, 1, 1], [], []>} : vector<8x32xbf16>, vector<32x64xbf16>, vector<8x64xf32> -> vector<8x64xf32>
    %16 = vector.broadcast %5 : vector<1x64xf32> to vector<8x64xf32>
    %17 = arith.addf %15, %16 : vector<8x64xf32>
    %18 = vector.shape_cast %14 : vector<8x32xf32> to vector<1x8x32xf32>
    %19 = vector.extract_strided_slice %17 {offsets = [0, 0], sizes = [8, 32], strides = [1, 1]} : vector<8x64xf32> to vector<8x32xf32>
    %20 = vector.shape_cast %19 : vector<8x32xf32> to vector<1x8x32xf32>
    %21 = vector.extract_strided_slice %17 {offsets = [0, 32], sizes = [8, 32], strides = [1, 1]} : vector<8x64xf32> to vector<8x32xf32>
    %22 = vector.shape_cast %21 : vector<8x32xf32> to vector<1x8x32xf32>
    %23 = vector.extract_strided_slice %18 {offsets = [0, 0, 0], sizes = [1, 8, 8], strides = [1, 1, 1]} : vector<1x8x32xf32> to vector<1x8x8xf32>
    %24 = arith.truncf %23 : vector<1x8x8xf32> to vector<1x8x8xbf16>
    %25 = vector.extract_strided_slice %20 {offsets = [0, 0, 0], sizes = [1, 8, 8], strides = [1, 1, 1]} : vector<1x8x32xf32> to vector<1x8x8xf32>
    %26 = arith.truncf %25 : vector<1x8x8xf32> to vector<1x8x8xbf16>
    %27 = vector.extract_strided_slice %22 {offsets = [0, 0, 0], sizes = [1, 8, 8], strides = [1, 1, 1]} : vector<1x8x32xf32> to vector<1x8x8xf32>
    %28 = arith.truncf %27 : vector<1x8x8xf32> to vector<1x8x8xbf16>
    "tpu.trace_start"() <{level = 10 : i32, message = "bqe,bke->bqk"}> : () -> ()
    %cst_18 = arith.constant dense<0.000000e+00> : vector<1x8x8xf32>
    %29 = tpu.matmul %24, %26, %cst_18 {dimension_numbers = #tpu.dot_dimension_numbers<[2], [2], [1], [1], [0, 0, 0, 1, 1, 1], [0], [0]>} : vector<1x8x8xbf16>, vector<1x8x8xbf16>, vector<1x8x8xf32> -> vector<1x8x8xf32>
    "tpu.trace_stop"() : () -> ()
    %cst_19 = arith.constant 0.353553385 : f32
    %30 = vector.broadcast %cst_19 : f32 to vector<1x8x8xf32>
    %31 = arith.mulf %29, %30 : vector<1x8x8xf32>
    %cst_20 = arith.constant dense<0xFF800000> : vector<1x8xf32>
    %32 = vector.multi_reduction <maximumf>, %31, %cst_20 [2] : vector<1x8x8xf32> to vector<1x8xf32>
    %33 = vector.shape_cast %32 : vector<1x8xf32> to vector<1x8x1xf32>
    %34 = vector.broadcast %33 : vector<1x8x1xf32> to vector<1x8x8xf32>
    %35 = arith.subf %31, %34 : vector<1x8x8xf32>
    %36 = math.exp %35 : vector<1x8x8xf32>
    %cst_21 = arith.constant dense<0.000000e+00> : vector<1x8xf32>
    %37 = vector.multi_reduction <add>, %36, %cst_21 [2] : vector<1x8x8xf32> to vector<1x8xf32>
    %38 = vector.shape_cast %37 : vector<1x8xf32> to vector<1x8x1xf32>
    %39 = tpu.reciprocal %38 {approx = true} : vector<1x8x1xf32> -> vector<1x8x1xf32>
    %40 = vector.broadcast %39 : vector<1x8x1xf32> to vector<1x8x8xf32>
    %41 = arith.mulf %36, %40 : vector<1x8x8xf32>
    %42 = arith.truncf %41 : vector<1x8x8xf32> to vector<1x8x8xbf16>
    "tpu.trace_start"() <{level = 10 : i32, message = "bqk,bke->bqe"}> : () -> ()
    %cst_22 = arith.constant dense<0.000000e+00> : vector<1x8x8xf32>
    %43 = tpu.matmul %42, %28, %cst_22 {dimension_numbers = #tpu.dot_dimension_numbers<[2], [1], [1], [2], [0, 0, 0, 1, 1, 2], [0], [0]>} : vector<1x8x8xbf16>, vector<1x8x8xbf16>, vector<1x8x8xf32> -> vector<1x8x8xf32>
    "tpu.trace_stop"() : () -> ()
    %44 = vector.extract_strided_slice %18 {offsets = [0, 0, 8], sizes = [1, 8, 8], strides = [1, 1, 1]} : vector<1x8x32xf32> to vector<1x8x8xf32>
    %45 = arith.truncf %44 : vector<1x8x8xf32> to vector<1x8x8xbf16>
    %46 = vector.extract_strided_slice %20 {offsets = [0, 0, 8], sizes = [1, 8, 8], strides = [1, 1, 1]} : vector<1x8x32xf32> to vector<1x8x8xf32>
    %47 = arith.truncf %46 : vector<1x8x8xf32> to vector<1x8x8xbf16>
    %48 = vector.extract_strided_slice %22 {offsets = [0, 0, 8], sizes = [1, 8, 8], strides = [1, 1, 1]} : vector<1x8x32xf32> to vector<1x8x8xf32>
    %49 = arith.truncf %48 : vector<1x8x8xf32> to vector<1x8x8xbf16>
    "tpu.trace_start"() <{level = 10 : i32, message = "bqe,bke->bqk"}> : () -> ()
    %cst_23 = arith.constant dense<0.000000e+00> : vector<1x8x8xf32>
    %50 = tpu.matmul %45, %47, %cst_23 {dimension_numbers = #tpu.dot_dimension_numbers<[2], [2], [1], [1], [0, 0, 0, 1, 1, 1], [0], [0]>} : vector<1x8x8xbf16>, vector<1x8x8xbf16>, vector<1x8x8xf32> -> vector<1x8x8xf32>
    "tpu.trace_stop"() : () -> ()
    %cst_24 = arith.constant 0.353553385 : f32
    %51 = vector.broadcast %cst_24 : f32 to vector<1x8x8xf32>
    %52 = arith.mulf %50, %51 : vector<1x8x8xf32>
    %cst_25 = arith.constant dense<0xFF800000> : vector<1x8xf32>
    %53 = vector.multi_reduction <maximumf>, %52, %cst_25 [2] : vector<1x8x8xf32> to vector<1x8xf32>
    %54 = vector.shape_cast %53 : vector<1x8xf32> to vector<1x8x1xf32>
    %55 = vector.broadcast %54 : vector<1x8x1xf32> to vector<1x8x8xf32>
    %56 = arith.subf %52, %55 : vector<1x8x8xf32>
    %57 = math.exp %56 : vector<1x8x8xf32>
    %cst_26 = arith.constant dense<0.000000e+00> : vector<1x8xf32>
    %58 = vector.multi_reduction <add>, %57, %cst_26 [2] : vector<1x8x8xf32> to vector<1x8xf32>
    %59 = vector.shape_cast %58 : vector<1x8xf32> to vector<1x8x1xf32>
    %60 = tpu.reciprocal %59 {approx = true} : vector<1x8x1xf32> -> vector<1x8x1xf32>
    %61 = vector.broadcast %60 : vector<1x8x1xf32> to vector<1x8x8xf32>
    %62 = arith.mulf %57, %61 : vector<1x8x8xf32>
    %63 = arith.truncf %62 : vector<1x8x8xf32> to vector<1x8x8xbf16>
    "tpu.trace_start"() <{level = 10 : i32, message = "bqk,bke->bqe"}> : () -> ()
    %cst_27 = arith.constant dense<0.000000e+00> : vector<1x8x8xf32>
    %64 = tpu.matmul %63, %49, %cst_27 {dimension_numbers = #tpu.dot_dimension_numbers<[2], [1], [1], [2], [0, 0, 0, 1, 1, 2], [0], [0]>} : vector<1x8x8xbf16>, vector<1x8x8xbf16>, vector<1x8x8xf32> -> vector<1x8x8xf32>
    "tpu.trace_stop"() : () -> ()
    %65 = vector.extract_strided_slice %18 {offsets = [0, 0, 16], sizes = [1, 8, 8], strides = [1, 1, 1]} : vector<1x8x32xf32> to vector<1x8x8xf32>
    %66 = arith.truncf %65 : vector<1x8x8xf32> to vector<1x8x8xbf16>
    %67 = vector.extract_strided_slice %20 {offsets = [0, 0, 16], sizes = [1, 8, 8], strides = [1, 1, 1]} : vector<1x8x32xf32> to vector<1x8x8xf32>
    %68 = arith.truncf %67 : vector<1x8x8xf32> to vector<1x8x8xbf16>
    %69 = vector.extract_strided_slice %22 {offsets = [0, 0, 16], sizes = [1, 8, 8], strides = [1, 1, 1]} : vector<1x8x32xf32> to vector<1x8x8xf32>
    %70 = arith.truncf %69 : vector<1x8x8xf32> to vector<1x8x8xbf16>
    "tpu.trace_start"() <{level = 10 : i32, message = "bqe,bke->bqk"}> : () -> ()
    %cst_28 = arith.constant dense<0.000000e+00> : vector<1x8x8xf32>
    %71 = tpu.matmul %66, %68, %cst_28 {dimension_numbers = #tpu.dot_dimension_numbers<[2], [2], [1], [1], [0, 0, 0, 1, 1, 1], [0], [0]>} : vector<1x8x8xbf16>, vector<1x8x8xbf16>, vector<1x8x8xf32> -> vector<1x8x8xf32>
    "tpu.trace_stop"() : () -> ()
    %cst_29 = arith.constant 0.353553385 : f32
    %72 = vector.broadcast %cst_29 : f32 to vector<1x8x8xf32>
    %73 = arith.mulf %71, %72 : vector<1x8x8xf32>
    %cst_30 = arith.constant dense<0xFF800000> : vector<1x8xf32>
    %74 = vector.multi_reduction <maximumf>, %73, %cst_30 [2] : vector<1x8x8xf32> to vector<1x8xf32>
    %75 = vector.shape_cast %74 : vector<1x8xf32> to vector<1x8x1xf32>
    %76 = vector.broadcast %75 : vector<1x8x1xf32> to vector<1x8x8xf32>
    %77 = arith.subf %73, %76 : vector<1x8x8xf32>
    %78 = math.exp %77 : vector<1x8x8xf32>
    %cst_31 = arith.constant dense<0.000000e+00> : vector<1x8xf32>
    %79 = vector.multi_reduction <add>, %78, %cst_31 [2] : vector<1x8x8xf32> to vector<1x8xf32>
    %80 = vector.shape_cast %79 : vector<1x8xf32> to vector<1x8x1xf32>
    %81 = tpu.reciprocal %80 {approx = true} : vector<1x8x1xf32> -> vector<1x8x1xf32>
    %82 = vector.broadcast %81 : vector<1x8x1xf32> to vector<1x8x8xf32>
    %83 = arith.mulf %78, %82 : vector<1x8x8xf32>
    %84 = arith.truncf %83 : vector<1x8x8xf32> to vector<1x8x8xbf16>
    "tpu.trace_start"() <{level = 10 : i32, message = "bqk,bke->bqe"}> : () -> ()
    %cst_32 = arith.constant dense<0.000000e+00> : vector<1x8x8xf32>
    %85 = tpu.matmul %84, %70, %cst_32 {dimension_numbers = #tpu.dot_dimension_numbers<[2], [1], [1], [2], [0, 0, 0, 1, 1, 2], [0], [0]>} : vector<1x8x8xbf16>, vector<1x8x8xbf16>, vector<1x8x8xf32> -> vector<1x8x8xf32>
    "tpu.trace_stop"() : () -> ()
    %86 = vector.extract_strided_slice %18 {offsets = [0, 0, 24], sizes = [1, 8, 8], strides = [1, 1, 1]} : vector<1x8x32xf32> to vector<1x8x8xf32>
    %87 = arith.truncf %86 : vector<1x8x8xf32> to vector<1x8x8xbf16>
    %88 = vector.extract_strided_slice %20 {offsets = [0, 0, 24], sizes = [1, 8, 8], strides = [1, 1, 1]} : vector<1x8x32xf32> to vector<1x8x8xf32>
    %89 = arith.truncf %88 : vector<1x8x8xf32> to vector<1x8x8xbf16>
    %90 = vector.extract_strided_slice %22 {offsets = [0, 0, 24], sizes = [1, 8, 8], strides = [1, 1, 1]} : vector<1x8x32xf32> to vector<1x8x8xf32>
    %91 = arith.truncf %90 : vector<1x8x8xf32> to vector<1x8x8xbf16>
    "tpu.trace_start"() <{level = 10 : i32, message = "bqe,bke->bqk"}> : () -> ()
    %cst_33 = arith.constant dense<0.000000e+00> : vector<1x8x8xf32>
    %92 = tpu.matmul %87, %89, %cst_33 {dimension_numbers = #tpu.dot_dimension_numbers<[2], [2], [1], [1], [0, 0, 0, 1, 1, 1], [0], [0]>} : vector<1x8x8xbf16>, vector<1x8x8xbf16>, vector<1x8x8xf32> -> vector<1x8x8xf32>
    "tpu.trace_stop"() : () -> ()
    %cst_34 = arith.constant 0.353553385 : f32
    %93 = vector.broadcast %cst_34 : f32 to vector<1x8x8xf32>
    %94 = arith.mulf %92, %93 : vector<1x8x8xf32>
    %cst_35 = arith.constant dense<0xFF800000> : vector<1x8xf32>
    %95 = vector.multi_reduction <maximumf>, %94, %cst_35 [2] : vector<1x8x8xf32> to vector<1x8xf32>
    %96 = vector.shape_cast %95 : vector<1x8xf32> to vector<1x8x1xf32>
    %97 = vector.broadcast %96 : vector<1x8x1xf32> to vector<1x8x8xf32>
    %98 = arith.subf %94, %97 : vector<1x8x8xf32>
    %99 = math.exp %98 : vector<1x8x8xf32>
    %cst_36 = arith.constant dense<0.000000e+00> : vector<1x8xf32>
    %100 = vector.multi_reduction <add>, %99, %cst_36 [2] : vector<1x8x8xf32> to vector<1x8xf32>
    %101 = vector.shape_cast %100 : vector<1x8xf32> to vector<1x8x1xf32>
    %102 = tpu.reciprocal %101 {approx = true} : vector<1x8x1xf32> -> vector<1x8x1xf32>
    %103 = vector.broadcast %102 : vector<1x8x1xf32> to vector<1x8x8xf32>
    %104 = arith.mulf %99, %103 : vector<1x8x8xf32>
    %105 = arith.truncf %104 : vector<1x8x8xf32> to vector<1x8x8xbf16>
    "tpu.trace_start"() <{level = 10 : i32, message = "bqk,bke->bqe"}> : () -> ()
    %cst_37 = arith.constant dense<0.000000e+00> : vector<1x8x8xf32>
    %106 = tpu.matmul %105, %91, %cst_37 {dimension_numbers = #tpu.dot_dimension_numbers<[2], [1], [1], [2], [0, 0, 0, 1, 1, 2], [0], [0]>} : vector<1x8x8xbf16>, vector<1x8x8xbf16>, vector<1x8x8xf32> -> vector<1x8x8xf32>
    "tpu.trace_stop"() : () -> ()
    %107 = tpu.concatenate %43, %64, %85, %106 in 2 : vector<1x8x8xf32>, vector<1x8x8xf32>, vector<1x8x8xf32>, vector<1x8x8xf32> -> vector<1x8x32xf32>
    %108 = vector.shape_cast %107 : vector<1x8x32xf32> to vector<8x32xf32>
    %109 = arith.truncf %108 : vector<8x32xf32> to vector<8x32xbf16>
    %cst_38 = arith.constant dense<0.000000e+00> : vector<8x32xf32>
    %110 = tpu.matmul %109, %6, %cst_38 {dimension_numbers = #tpu.dot_dimension_numbers<[1], [0], [0], [1], [0, 0, 1, 1], [], []>} : vector<8x32xbf16>, vector<32x32xbf16>, vector<8x32xf32> -> vector<8x32xf32>
    %111 = vector.broadcast %7 : vector<1x32xf32> to vector<8x32xf32>
    %112 = arith.addf %110, %111 : vector<8x32xf32>
    %113 = vector.shape_cast %112 : vector<8x32xf32> to vector<1x8x32xf32>
    %114 = arith.addf %113, %0 : vector<1x8x32xf32>
    %c0_39 = arith.constant 0 : index
    %c0_40 = arith.constant 0 : index
    %115 = vector.load %arg9[%c0_39, %c0_40] : memref<1x32xf32, #tpu.memory_space<vmem>>, vector<1x32xf32>
    %116 = vector.shape_cast %115 : vector<1x32xf32> to vector<1x1x32xf32>
    %c0_41 = arith.constant 0 : index
    %c0_42 = arith.constant 0 : index
    %117 = vector.load %arg10[%c0_41, %c0_42] : memref<1x32xf32, #tpu.memory_space<vmem>>, vector<1x32xf32>
    %118 = vector.shape_cast %117 : vector<1x32xf32> to vector<1x1x32xf32>
    %cst_43 = arith.constant dense<0.000000e+00> : vector<1x8xf32>
    %119 = vector.multi_reduction <add>, %114, %cst_43 [2] : vector<1x8x32xf32> to vector<1x8xf32>
    %120 = vector.shape_cast %119 : vector<1x8xf32> to vector<1x8x1xf32>
    %cst_44 = arith.constant 3.200000e+01 : f32
    %121 = vector.broadcast %cst_44 : f32 to vector<1x8x1xf32>
    %122 = arith.divf %120, %121 : vector<1x8x1xf32>
    %123 = vector.broadcast %122 : vector<1x8x1xf32> to vector<1x8x32xf32>
    %124 = arith.subf %114, %123 : vector<1x8x32xf32>
    %125 = arith.mulf %124, %124 : vector<1x8x32xf32>
    %cst_45 = arith.constant dense<0.000000e+00> : vector<1x8xf32>
    %126 = vector.multi_reduction <add>, %125, %cst_45 [2] : vector<1x8x32xf32> to vector<1x8xf32>
    %127 = vector.shape_cast %126 : vector<1x8xf32> to vector<1x8x1xf32>
    %cst_46 = arith.constant 3.200000e+01 : f32
    %128 = vector.broadcast %cst_46 : f32 to vector<1x8x1xf32>
    %129 = arith.divf %127, %128 : vector<1x8x1xf32>
    %130 = vector.broadcast %122 : vector<1x8x1xf32> to vector<1x8x32xf32>
    %131 = arith.subf %114, %130 : vector<1x8x32xf32>
    %cst_47 = arith.constant 9.99999974E-6 : f32
    %132 = vector.broadcast %cst_47 : f32 to vector<1x8x1xf32>
    %133 = arith.addf %129, %132 : vector<1x8x1xf32>
    %134 = math.rsqrt %133 : vector<1x8x1xf32>
    %135 = vector.broadcast %134 : vector<1x8x1xf32> to vector<1x8x32xf32>
    %136 = arith.mulf %131, %135 : vector<1x8x32xf32>
    %137 = vector.broadcast %116 : vector<1x1x32xf32> to vector<1x8x32xf32>
    %138 = arith.mulf %136, %137 : vector<1x8x32xf32>
    %139 = vector.broadcast %118 : vector<1x1x32xf32> to vector<1x8x32xf32>
    %140 = arith.addf %138, %139 : vector<1x8x32xf32>
    %c0_48 = arith.constant 0 : index
    %c0_49 = arith.constant 0 : index
    %141 = vector.load %arg11[%c0_48, %c0_49] : memref<32x32xbf16, #tpu.memory_space<vmem>>, vector<32x32xbf16>
    %c0_50 = arith.constant 0 : index
    %c0_51 = arith.constant 0 : index
    %142 = vector.load %arg12[%c0_50, %c0_51] : memref<1x32xf32, #tpu.memory_space<vmem>>, vector<1x32xf32>
    %c0_52 = arith.constant 0 : index
    %c0_53 = arith.constant 0 : index
    %143 = vector.load %arg13[%c0_52, %c0_53] : memref<32x64xbf16, #tpu.memory_space<vmem>>, vector<32x64xbf16>
    %c0_54 = arith.constant 0 : index
    %c0_55 = arith.constant 0 : index
    %144 = vector.load %arg14[%c0_54, %c0_55] : memref<1x64xf32, #tpu.memory_space<vmem>>, vector<1x64xf32>
    %c0_56 = arith.constant 0 : index
    %c0_57 = arith.constant 0 : index
    %145 = vector.load %arg15[%c0_56, %c0_57] : memref<32x32xbf16, #tpu.memory_space<vmem>>, vector<32x32xbf16>
    %c0_58 = arith.constant 0 : index
    %c0_59 = arith.constant 0 : index
    %146 = vector.load %arg16[%c0_58, %c0_59] : memref<1x32xf32, #tpu.memory_space<vmem>>, vector<1x32xf32>
    %147 = vector.shape_cast %140 : vector<1x8x32xf32> to vector<8x32xf32>
    %148 = arith.truncf %147 : vector<8x32xf32> to vector<8x32xbf16>
    %149 = vector.shape_cast %1 : vector<1x8x32xf32> to vector<8x32xf32>
    %150 = arith.truncf %149 : vector<8x32xf32> to vector<8x32xbf16>
    %cst_60 = arith.constant dense<0.000000e+00> : vector<8x32xf32>
    %151 = tpu.matmul %148, %141, %cst_60 {dimension_numbers = #tpu.dot_dimension_numbers<[1], [0], [0], [1], [0, 0, 1, 1], [], []>} : vector<8x32xbf16>, vector<32x32xbf16>, vector<8x32xf32> -> vector<8x32xf32>
    %152 = vector.broadcast %142 : vector<1x32xf32> to vector<8x32xf32>
    %153 = arith.addf %151, %152 : vector<8x32xf32>
    %cst_61 = arith.constant dense<0.000000e+00> : vector<8x64xf32>
    %154 = tpu.matmul %150, %143, %cst_61 {dimension_numbers = #tpu.dot_dimension_numbers<[1], [0], [0], [1], [0, 0, 1, 1], [], []>} : vector<8x32xbf16>, vector<32x64xbf16>, vector<8x64xf32> -> vector<8x64xf32>
    %155 = vector.broadcast %144 : vector<1x64xf32> to vector<8x64xf32>
    %156 = arith.addf %154, %155 : vector<8x64xf32>
    %157 = vector.shape_cast %153 : vector<8x32xf32> to vector<1x8x32xf32>
    %158 = vector.extract_strided_slice %156 {offsets = [0, 0], sizes = [8, 32], strides = [1, 1]} : vector<8x64xf32> to vector<8x32xf32>
    %159 = vector.shape_cast %158 : vector<8x32xf32> to vector<1x8x32xf32>
    %160 = vector.extract_strided_slice %156 {offsets = [0, 32], sizes = [8, 32], strides = [1, 1]} : vector<8x64xf32> to vector<8x32xf32>
    %161 = vector.shape_cast %160 : vector<8x32xf32> to vector<1x8x32xf32>
    %162 = vector.extract_strided_slice %157 {offsets = [0, 0, 0], sizes = [1, 8, 8], strides = [1, 1, 1]} : vector<1x8x32xf32> to vector<1x8x8xf32>
    %163 = arith.truncf %162 : vector<1x8x8xf32> to vector<1x8x8xbf16>
    %164 = vector.extract_strided_slice %159 {offsets = [0, 0, 0], sizes = [1, 8, 8], strides = [1, 1, 1]} : vector<1x8x32xf32> to vector<1x8x8xf32>
    %165 = arith.truncf %164 : vector<1x8x8xf32> to vector<1x8x8xbf16>
    %166 = vector.extract_strided_slice %161 {offsets = [0, 0, 0], sizes = [1, 8, 8], strides = [1, 1, 1]} : vector<1x8x32xf32> to vector<1x8x8xf32>
    %167 = arith.truncf %166 : vector<1x8x8xf32> to vector<1x8x8xbf16>
    "tpu.trace_start"() <{level = 10 : i32, message = "bqe,bke->bqk"}> : () -> ()
    %cst_62 = arith.constant dense<0.000000e+00> : vector<1x8x8xf32>
    %168 = tpu.matmul %163, %165, %cst_62 {dimension_numbers = #tpu.dot_dimension_numbers<[2], [2], [1], [1], [0, 0, 0, 1, 1, 1], [0], [0]>} : vector<1x8x8xbf16>, vector<1x8x8xbf16>, vector<1x8x8xf32> -> vector<1x8x8xf32>
    "tpu.trace_stop"() : () -> ()
    %cst_63 = arith.constant 0.353553385 : f32
    %169 = vector.broadcast %cst_63 : f32 to vector<1x8x8xf32>
    %170 = arith.mulf %168, %169 : vector<1x8x8xf32>
    %cst_64 = arith.constant dense<0xFF800000> : vector<1x8xf32>
    %171 = vector.multi_reduction <maximumf>, %170, %cst_64 [2] : vector<1x8x8xf32> to vector<1x8xf32>
    %172 = vector.shape_cast %171 : vector<1x8xf32> to vector<1x8x1xf32>
    %173 = vector.broadcast %172 : vector<1x8x1xf32> to vector<1x8x8xf32>
    %174 = arith.subf %170, %173 : vector<1x8x8xf32>
    %175 = math.exp %174 : vector<1x8x8xf32>
    %cst_65 = arith.constant dense<0.000000e+00> : vector<1x8xf32>
    %176 = vector.multi_reduction <add>, %175, %cst_65 [2] : vector<1x8x8xf32> to vector<1x8xf32>
    %177 = vector.shape_cast %176 : vector<1x8xf32> to vector<1x8x1xf32>
    %178 = tpu.reciprocal %177 {approx = true} : vector<1x8x1xf32> -> vector<1x8x1xf32>
    %179 = vector.broadcast %178 : vector<1x8x1xf32> to vector<1x8x8xf32>
    %180 = arith.mulf %175, %179 : vector<1x8x8xf32>
    %181 = arith.truncf %180 : vector<1x8x8xf32> to vector<1x8x8xbf16>
    "tpu.trace_start"() <{level = 10 : i32, message = "bqk,bke->bqe"}> : () -> ()
    %cst_66 = arith.constant dense<0.000000e+00> : vector<1x8x8xf32>
    %182 = tpu.matmul %181, %167, %cst_66 {dimension_numbers = #tpu.dot_dimension_numbers<[2], [1], [1], [2], [0, 0, 0, 1, 1, 2], [0], [0]>} : vector<1x8x8xbf16>, vector<1x8x8xbf16>, vector<1x8x8xf32> -> vector<1x8x8xf32>
    "tpu.trace_stop"() : () -> ()
    %183 = vector.extract_strided_slice %157 {offsets = [0, 0, 8], sizes = [1, 8, 8], strides = [1, 1, 1]} : vector<1x8x32xf32> to vector<1x8x8xf32>
    %184 = arith.truncf %183 : vector<1x8x8xf32> to vector<1x8x8xbf16>
    %185 = vector.extract_strided_slice %159 {offsets = [0, 0, 8], sizes = [1, 8, 8], strides = [1, 1, 1]} : vector<1x8x32xf32> to vector<1x8x8xf32>
    %186 = arith.truncf %185 : vector<1x8x8xf32> to vector<1x8x8xbf16>
    %187 = vector.extract_strided_slice %161 {offsets = [0, 0, 8], sizes = [1, 8, 8], strides = [1, 1, 1]} : vector<1x8x32xf32> to vector<1x8x8xf32>
    %188 = arith.truncf %187 : vector<1x8x8xf32> to vector<1x8x8xbf16>
    "tpu.trace_start"() <{level = 10 : i32, message = "bqe,bke->bqk"}> : () -> ()
    %cst_67 = arith.constant dense<0.000000e+00> : vector<1x8x8xf32>
    %189 = tpu.matmul %184, %186, %cst_67 {dimension_numbers = #tpu.dot_dimension_numbers<[2], [2], [1], [1], [0, 0, 0, 1, 1, 1], [0], [0]>} : vector<1x8x8xbf16>, vector<1x8x8xbf16>, vector<1x8x8xf32> -> vector<1x8x8xf32>
    "tpu.trace_stop"() : () -> ()
    %cst_68 = arith.constant 0.353553385 : f32
    %190 = vector.broadcast %cst_68 : f32 to vector<1x8x8xf32>
    %191 = arith.mulf %189, %190 : vector<1x8x8xf32>
    %cst_69 = arith.constant dense<0xFF800000> : vector<1x8xf32>
    %192 = vector.multi_reduction <maximumf>, %191, %cst_69 [2] : vector<1x8x8xf32> to vector<1x8xf32>
    %193 = vector.shape_cast %192 : vector<1x8xf32> to vector<1x8x1xf32>
    %194 = vector.broadcast %193 : vector<1x8x1xf32> to vector<1x8x8xf32>
    %195 = arith.subf %191, %194 : vector<1x8x8xf32>
    %196 = math.exp %195 : vector<1x8x8xf32>
    %cst_70 = arith.constant dense<0.000000e+00> : vector<1x8xf32>
    %197 = vector.multi_reduction <add>, %196, %cst_70 [2] : vector<1x8x8xf32> to vector<1x8xf32>
    %198 = vector.shape_cast %197 : vector<1x8xf32> to vector<1x8x1xf32>
    %199 = tpu.reciprocal %198 {approx = true} : vector<1x8x1xf32> -> vector<1x8x1xf32>
    %200 = vector.broadcast %199 : vector<1x8x1xf32> to vector<1x8x8xf32>
    %201 = arith.mulf %196, %200 : vector<1x8x8xf32>
    %202 = arith.truncf %201 : vector<1x8x8xf32> to vector<1x8x8xbf16>
    "tpu.trace_start"() <{level = 10 : i32, message = "bqk,bke->bqe"}> : () -> ()
    %cst_71 = arith.constant dense<0.000000e+00> : vector<1x8x8xf32>
    %203 = tpu.matmul %202, %188, %cst_71 {dimension_numbers = #tpu.dot_dimension_numbers<[2], [1], [1], [2], [0, 0, 0, 1, 1, 2], [0], [0]>} : vector<1x8x8xbf16>, vector<1x8x8xbf16>, vector<1x8x8xf32> -> vector<1x8x8xf32>
    "tpu.trace_stop"() : () -> ()
    %204 = vector.extract_strided_slice %157 {offsets = [0, 0, 16], sizes = [1, 8, 8], strides = [1, 1, 1]} : vector<1x8x32xf32> to vector<1x8x8xf32>
    %205 = arith.truncf %204 : vector<1x8x8xf32> to vector<1x8x8xbf16>
    %206 = vector.extract_strided_slice %159 {offsets = [0, 0, 16], sizes = [1, 8, 8], strides = [1, 1, 1]} : vector<1x8x32xf32> to vector<1x8x8xf32>
    %207 = arith.truncf %206 : vector<1x8x8xf32> to vector<1x8x8xbf16>
    %208 = vector.extract_strided_slice %161 {offsets = [0, 0, 16], sizes = [1, 8, 8], strides = [1, 1, 1]} : vector<1x8x32xf32> to vector<1x8x8xf32>
    %209 = arith.truncf %208 : vector<1x8x8xf32> to vector<1x8x8xbf16>
    "tpu.trace_start"() <{level = 10 : i32, message = "bqe,bke->bqk"}> : () -> ()
    %cst_72 = arith.constant dense<0.000000e+00> : vector<1x8x8xf32>
    %210 = tpu.matmul %205, %207, %cst_72 {dimension_numbers = #tpu.dot_dimension_numbers<[2], [2], [1], [1], [0, 0, 0, 1, 1, 1], [0], [0]>} : vector<1x8x8xbf16>, vector<1x8x8xbf16>, vector<1x8x8xf32> -> vector<1x8x8xf32>
    "tpu.trace_stop"() : () -> ()
    %cst_73 = arith.constant 0.353553385 : f32
    %211 = vector.broadcast %cst_73 : f32 to vector<1x8x8xf32>
    %212 = arith.mulf %210, %211 : vector<1x8x8xf32>
    %cst_74 = arith.constant dense<0xFF800000> : vector<1x8xf32>
    %213 = vector.multi_reduction <maximumf>, %212, %cst_74 [2] : vector<1x8x8xf32> to vector<1x8xf32>
    %214 = vector.shape_cast %213 : vector<1x8xf32> to vector<1x8x1xf32>
    %215 = vector.broadcast %214 : vector<1x8x1xf32> to vector<1x8x8xf32>
    %216 = arith.subf %212, %215 : vector<1x8x8xf32>
    %217 = math.exp %216 : vector<1x8x8xf32>
    %cst_75 = arith.constant dense<0.000000e+00> : vector<1x8xf32>
    %218 = vector.multi_reduction <add>, %217, %cst_75 [2] : vector<1x8x8xf32> to vector<1x8xf32>
    %219 = vector.shape_cast %218 : vector<1x8xf32> to vector<1x8x1xf32>
    %220 = tpu.reciprocal %219 {approx = true} : vector<1x8x1xf32> -> vector<1x8x1xf32>
    %221 = vector.broadcast %220 : vector<1x8x1xf32> to vector<1x8x8xf32>
    %222 = arith.mulf %217, %221 : vector<1x8x8xf32>
    %223 = arith.truncf %222 : vector<1x8x8xf32> to vector<1x8x8xbf16>
    "tpu.trace_start"() <{level = 10 : i32, message = "bqk,bke->bqe"}> : () -> ()
    %cst_76 = arith.constant dense<0.000000e+00> : vector<1x8x8xf32>
    %224 = tpu.matmul %223, %209, %cst_76 {dimension_numbers = #tpu.dot_dimension_numbers<[2], [1], [1], [2], [0, 0, 0, 1, 1, 2], [0], [0]>} : vector<1x8x8xbf16>, vector<1x8x8xbf16>, vector<1x8x8xf32> -> vector<1x8x8xf32>
    "tpu.trace_stop"() : () -> ()
    %225 = vector.extract_strided_slice %157 {offsets = [0, 0, 24], sizes = [1, 8, 8], strides = [1, 1, 1]} : vector<1x8x32xf32> to vector<1x8x8xf32>
    %226 = arith.truncf %225 : vector<1x8x8xf32> to vector<1x8x8xbf16>
    %227 = vector.extract_strided_slice %159 {offsets = [0, 0, 24], sizes = [1, 8, 8], strides = [1, 1, 1]} : vector<1x8x32xf32> to vector<1x8x8xf32>
    %228 = arith.truncf %227 : vector<1x8x8xf32> to vector<1x8x8xbf16>
    %229 = vector.extract_strided_slice %161 {offsets = [0, 0, 24], sizes = [1, 8, 8], strides = [1, 1, 1]} : vector<1x8x32xf32> to vector<1x8x8xf32>
    %230 = arith.truncf %229 : vector<1x8x8xf32> to vector<1x8x8xbf16>
    "tpu.trace_start"() <{level = 10 : i32, message = "bqe,bke->bqk"}> : () -> ()
    %cst_77 = arith.constant dense<0.000000e+00> : vector<1x8x8xf32>
    %231 = tpu.matmul %226, %228, %cst_77 {dimension_numbers = #tpu.dot_dimension_numbers<[2], [2], [1], [1], [0, 0, 0, 1, 1, 1], [0], [0]>} : vector<1x8x8xbf16>, vector<1x8x8xbf16>, vector<1x8x8xf32> -> vector<1x8x8xf32>
    "tpu.trace_stop"() : () -> ()
    %cst_78 = arith.constant 0.353553385 : f32
    %232 = vector.broadcast %cst_78 : f32 to vector<1x8x8xf32>
    %233 = arith.mulf %231, %232 : vector<1x8x8xf32>
    %cst_79 = arith.constant dense<0xFF800000> : vector<1x8xf32>
    %234 = vector.multi_reduction <maximumf>, %233, %cst_79 [2] : vector<1x8x8xf32> to vector<1x8xf32>
    %235 = vector.shape_cast %234 : vector<1x8xf32> to vector<1x8x1xf32>
    %236 = vector.broadcast %235 : vector<1x8x1xf32> to vector<1x8x8xf32>
    %237 = arith.subf %233, %236 : vector<1x8x8xf32>
    %238 = math.exp %237 : vector<1x8x8xf32>
    %cst_80 = arith.constant dense<0.000000e+00> : vector<1x8xf32>
    %239 = vector.multi_reduction <add>, %238, %cst_80 [2] : vector<1x8x8xf32> to vector<1x8xf32>
    %240 = vector.shape_cast %239 : vector<1x8xf32> to vector<1x8x1xf32>
    %241 = tpu.reciprocal %240 {approx = true} : vector<1x8x1xf32> -> vector<1x8x1xf32>
    %242 = vector.broadcast %241 : vector<1x8x1xf32> to vector<1x8x8xf32>
    %243 = arith.mulf %238, %242 : vector<1x8x8xf32>
    %244 = arith.truncf %243 : vector<1x8x8xf32> to vector<1x8x8xbf16>
    "tpu.trace_start"() <{level = 10 : i32, message = "bqk,bke->bqe"}> : () -> ()
    %cst_81 = arith.constant dense<0.000000e+00> : vector<1x8x8xf32>
    %245 = tpu.matmul %244, %230, %cst_81 {dimension_numbers = #tpu.dot_dimension_numbers<[2], [1], [1], [2], [0, 0, 0, 1, 1, 2], [0], [0]>} : vector<1x8x8xbf16>, vector<1x8x8xbf16>, vector<1x8x8xf32> -> vector<1x8x8xf32>
    "tpu.trace_stop"() : () -> ()
    %246 = tpu.concatenate %182, %203, %224, %245 in 2 : vector<1x8x8xf32>, vector<1x8x8xf32>, vector<1x8x8xf32>, vector<1x8x8xf32> -> vector<1x8x32xf32>
    %247 = vector.shape_cast %246 : vector<1x8x32xf32> to vector<8x32xf32>
    %248 = arith.truncf %247 : vector<8x32xf32> to vector<8x32xbf16>
    %cst_82 = arith.constant dense<0.000000e+00> : vector<8x32xf32>
    %249 = tpu.matmul %248, %145, %cst_82 {dimension_numbers = #tpu.dot_dimension_numbers<[1], [0], [0], [1], [0, 0, 1, 1], [], []>} : vector<8x32xbf16>, vector<32x32xbf16>, vector<8x32xf32> -> vector<8x32xf32>
    %250 = vector.broadcast %146 : vector<1x32xf32> to vector<8x32xf32>
    %251 = arith.addf %249, %250 : vector<8x32xf32>
    %252 = vector.shape_cast %251 : vector<8x32xf32> to vector<1x8x32xf32>
    %253 = arith.addf %252, %140 : vector<1x8x32xf32>
    %c0_83 = arith.constant 0 : index
    %c0_84 = arith.constant 0 : index
    %254 = vector.load %arg17[%c0_83, %c0_84] : memref<1x32xf32, #tpu.memory_space<vmem>>, vector<1x32xf32>
    %255 = vector.shape_cast %254 : vector<1x32xf32> to vector<1x1x32xf32>
    %c0_85 = arith.constant 0 : index
    %c0_86 = arith.constant 0 : index
    %256 = vector.load %arg18[%c0_85, %c0_86] : memref<1x32xf32, #tpu.memory_space<vmem>>, vector<1x32xf32>
    %257 = vector.shape_cast %256 : vector<1x32xf32> to vector<1x1x32xf32>
    %cst_87 = arith.constant dense<0.000000e+00> : vector<1x8xf32>
    %258 = vector.multi_reduction <add>, %253, %cst_87 [2] : vector<1x8x32xf32> to vector<1x8xf32>
    %259 = vector.shape_cast %258 : vector<1x8xf32> to vector<1x8x1xf32>
    %cst_88 = arith.constant 3.200000e+01 : f32
    %260 = vector.broadcast %cst_88 : f32 to vector<1x8x1xf32>
    %261 = arith.divf %259, %260 : vector<1x8x1xf32>
    %262 = vector.broadcast %261 : vector<1x8x1xf32> to vector<1x8x32xf32>
    %263 = arith.subf %253, %262 : vector<1x8x32xf32>
    %264 = arith.mulf %263, %263 : vector<1x8x32xf32>
    %cst_89 = arith.constant dense<0.000000e+00> : vector<1x8xf32>
    %265 = vector.multi_reduction <add>, %264, %cst_89 [2] : vector<1x8x32xf32> to vector<1x8xf32>
    %266 = vector.shape_cast %265 : vector<1x8xf32> to vector<1x8x1xf32>
    %cst_90 = arith.constant 3.200000e+01 : f32
    %267 = vector.broadcast %cst_90 : f32 to vector<1x8x1xf32>
    %268 = arith.divf %266, %267 : vector<1x8x1xf32>
    %269 = vector.broadcast %261 : vector<1x8x1xf32> to vector<1x8x32xf32>
    %270 = arith.subf %253, %269 : vector<1x8x32xf32>
    %cst_91 = arith.constant 9.99999974E-6 : f32
    %271 = vector.broadcast %cst_91 : f32 to vector<1x8x1xf32>
    %272 = arith.addf %268, %271 : vector<1x8x1xf32>
    %273 = math.rsqrt %272 : vector<1x8x1xf32>
    %274 = vector.broadcast %273 : vector<1x8x1xf32> to vector<1x8x32xf32>
    %275 = arith.mulf %270, %274 : vector<1x8x32xf32>
    %276 = vector.broadcast %255 : vector<1x1x32xf32> to vector<1x8x32xf32>
    %277 = arith.mulf %275, %276 : vector<1x8x32xf32>
    %278 = vector.broadcast %257 : vector<1x1x32xf32> to vector<1x8x32xf32>
    %279 = arith.addf %277, %278 : vector<1x8x32xf32>
    %280 = vector.shape_cast %279 : vector<1x8x32xf32> to vector<8x32xf32>
    %281 = arith.truncf %280 : vector<8x32xf32> to vector<8x32xbf16>
    %c0_92 = arith.constant 0 : index
    %c0_93 = arith.constant 0 : index
    %282 = vector.load %arg19[%c0_92, %c0_93] : memref<32x128xbf16, #tpu.memory_space<vmem>>, vector<32x128xbf16>
    %cst_94 = arith.constant dense<0.000000e+00> : vector<8x128xf32>
    %283 = tpu.matmul %281, %282, %cst_94 {dimension_numbers = #tpu.dot_dimension_numbers<[1], [0], [0], [1], [0, 0, 1, 1], [], []>} : vector<8x32xbf16>, vector<32x128xbf16>, vector<8x128xf32> -> vector<8x128xf32>
    %c0_95 = arith.constant 0 : index
    %c0_96 = arith.constant 0 : index
    %284 = vector.load %arg20[%c0_95, %c0_96] : memref<1x128xf32, #tpu.memory_space<vmem>>, vector<1x128xf32>
    %285 = vector.broadcast %284 : vector<1x128xf32> to vector<8x128xf32>
    %286 = arith.addf %283, %285 : vector<8x128xf32>
    %cst_97 = arith.constant 5.000000e-01 : f32
    %287 = vector.broadcast %cst_97 : f32 to vector<8x128xf32>
    %288 = arith.mulf %287, %286 : vector<8x128xf32>
    %cst_98 = arith.constant 4.471500e-02 : f32
    %289 = vector.broadcast %cst_98 : f32 to vector<8x128xf32>
    %290 = arith.mulf %289, %286 : vector<8x128xf32>
    %291 = arith.mulf %290, %286 : vector<8x128xf32>
    %292 = arith.mulf %291, %286 : vector<8x128xf32>
    %293 = arith.addf %286, %292 : vector<8x128xf32>
    %cst_99 = arith.constant 0.797884583 : f32
    %294 = vector.broadcast %cst_99 : f32 to vector<8x128xf32>
    %295 = arith.mulf %294, %293 : vector<8x128xf32>
    %296 = math.tanh %295 : vector<8x128xf32>
    %cst_100 = arith.constant 1.000000e+00 : f32
    %297 = vector.broadcast %cst_100 : f32 to vector<8x128xf32>
    %298 = arith.addf %297, %296 : vector<8x128xf32>
    %299 = arith.mulf %288, %298 : vector<8x128xf32>
    %300 = arith.truncf %299 : vector<8x128xf32> to vector<8x128xbf16>
    %c0_101 = arith.constant 0 : index
    %c0_102 = arith.constant 0 : index
    %301 = vector.load %arg21[%c0_101, %c0_102] : memref<128x32xbf16, #tpu.memory_space<vmem>>, vector<128x32xbf16>
    %cst_103 = arith.constant dense<0.000000e+00> : vector<8x32xf32>
    %302 = tpu.matmul %300, %301, %cst_103 {dimension_numbers = #tpu.dot_dimension_numbers<[1], [0], [0], [1], [0, 0, 1, 1], [], []>} : vector<8x128xbf16>, vector<128x32xbf16>, vector<8x32xf32> -> vector<8x32xf32>
    %c0_104 = arith.constant 0 : index
    %c0_105 = arith.constant 0 : index
    %303 = vector.load %arg22[%c0_104, %c0_105] : memref<1x32xf32, #tpu.memory_space<vmem>>, vector<1x32xf32>
    %304 = vector.broadcast %303 : vector<1x32xf32> to vector<8x32xf32>
    %305 = arith.addf %302, %304 : vector<8x32xf32>
    %306 = vector.shape_cast %305 : vector<8x32xf32> to vector<1x8x32xf32>
    %307 = arith.addf %306, %279 : vector<1x8x32xf32>
    %c0_106 = arith.constant 0 : index
    %c0_107 = arith.constant 0 : index
    %308 = vector.load %arg23[%c0_106, %c0_107] : memref<1x32xf32, #tpu.memory_space<vmem>>, vector<1x32xf32>
    %309 = vector.shape_cast %308 : vector<1x32xf32> to vector<1x1x32xf32>
    %c0_108 = arith.constant 0 : index
    %c0_109 = arith.constant 0 : index
    %310 = vector.load %arg24[%c0_108, %c0_109] : memref<1x32xf32, #tpu.memory_space<vmem>>, vector<1x32xf32>
    %311 = vector.shape_cast %310 : vector<1x32xf32> to vector<1x1x32xf32>
    %cst_110 = arith.constant dense<0.000000e+00> : vector<1x8xf32>
    %312 = vector.multi_reduction <add>, %307, %cst_110 [2] : vector<1x8x32xf32> to vector<1x8xf32>
    %313 = vector.shape_cast %312 : vector<1x8xf32> to vector<1x8x1xf32>
    %cst_111 = arith.constant 3.200000e+01 : f32
    %314 = vector.broadcast %cst_111 : f32 to vector<1x8x1xf32>
    %315 = arith.divf %313, %314 : vector<1x8x1xf32>
    %316 = vector.broadcast %315 : vector<1x8x1xf32> to vector<1x8x32xf32>
    %317 = arith.subf %307, %316 : vector<1x8x32xf32>
    %318 = arith.mulf %317, %317 : vector<1x8x32xf32>
    %cst_112 = arith.constant dense<0.000000e+00> : vector<1x8xf32>
    %319 = vector.multi_reduction <add>, %318, %cst_112 [2] : vector<1x8x32xf32> to vector<1x8xf32>
    %320 = vector.shape_cast %319 : vector<1x8xf32> to vector<1x8x1xf32>
    %cst_113 = arith.constant 3.200000e+01 : f32
    %321 = vector.broadcast %cst_113 : f32 to vector<1x8x1xf32>
    %322 = arith.divf %320, %321 : vector<1x8x1xf32>
    %323 = vector.broadcast %315 : vector<1x8x1xf32> to vector<1x8x32xf32>
    %324 = arith.subf %307, %323 : vector<1x8x32xf32>
    %cst_114 = arith.constant 9.99999974E-6 : f32
    %325 = vector.broadcast %cst_114 : f32 to vector<1x8x1xf32>
    %326 = arith.addf %322, %325 : vector<1x8x1xf32>
    %327 = math.rsqrt %326 : vector<1x8x1xf32>
    %328 = vector.broadcast %327 : vector<1x8x1xf32> to vector<1x8x32xf32>
    %329 = arith.mulf %324, %328 : vector<1x8x32xf32>
    %330 = vector.broadcast %309 : vector<1x1x32xf32> to vector<1x8x32xf32>
    %331 = arith.mulf %329, %330 : vector<1x8x32xf32>
    %332 = vector.broadcast %311 : vector<1x1x32xf32> to vector<1x8x32xf32>
    %333 = arith.addf %331, %332 : vector<1x8x32xf32>
    %c0_115 = arith.constant 0 : index
    %c0_116 = arith.constant 0 : index
    %c0_117 = arith.constant 0 : index
    %334 = vector.load %arg25[%c0_115, %c0_116, %c0_117] : memref<1x8x32xf32, #tpu.memory_space<vmem>>, vector<1x8x32xf32>
    tpu.vector_store %arg25[%c0_115, %c0_116, %c0_117], %333 {strides = array<i32>} : memref<1x8x32xf32, #tpu.memory_space<vmem>>, vector<1x8x32xf32>,
    return
  }
  func.func @transform_0(%arg0: i32) -> (i32, i32, i32) {
    %c0_i32 = arith.constant 0 : i32
    %c0_i32_0 = arith.constant 0 : i32
    %c0_i32_1 = arith.constant 0 : i32
    return %arg0, %c0_i32, %c0_i32_0 : i32, i32, i32
  }
  func.func @transform_1(%arg0: i32) -> (i32, i32, i32) {
    %c0_i32 = arith.constant 0 : i32
    %c0_i32_0 = arith.constant 0 : i32
    %c0_i32_1 = arith.constant 0 : i32
    return %arg0, %c0_i32, %c0_i32_0 : i32, i32, i32
  }
  func.func @transform_2(%arg0: i32) -> (i32, i32) {
    %c0_i32 = arith.constant 0 : i32
    %c0_i32_0 = arith.constant 0 : i32
    %c0_i32_1 = arith.constant 0 : i32
    return %c0_i32, %c0_i32_0 : i32, i32
  }
  func.func @transform_3(%arg0: i32) -> (i32, i32) {
    %c0_i32 = arith.constant 0 : i32
    %c0_i32_0 = arith.constant 0 : i32
    %c0_i32_1 = arith.constant 0 : i32
    return %c0_i32, %c0_i32_0 : i32, i32
  }
  func.func @transform_4(%arg0: i32) -> (i32, i32) {
    %c0_i32 = arith.constant 0 : i32
    %c0_i32_0 = arith.constant 0 : i32
    %c0_i32_1 = arith.constant 0 : i32
    return %c0_i32, %c0_i32_0 : i32, i32
  }
  func.func @transform_5(%arg0: i32) -> (i32, i32) {
    %c0_i32 = arith.constant 0 : i32
    %c0_i32_0 = arith.constant 0 : i32
    %c0_i32_1 = arith.constant 0 : i32
    return %c0_i32, %c0_i32_0 : i32, i32
  }
  func.func @transform_6(%arg0: i32) -> (i32, i32) {
    %c0_i32 = arith.constant 0 : i32
    %c0_i32_0 = arith.constant 0 : i32
    %c0_i32_1 = arith.constant 0 : i32
    return %c0_i32, %c0_i32_0 : i32, i32
  }
  func.func @transform_7(%arg0: i32) -> (i32, i32) {
    %c0_i32 = arith.constant 0 : i32
    %c0_i32_0 = arith.constant 0 : i32
    %c0_i32_1 = arith.constant 0 : i32
    return %c0_i32, %c0_i32_0 : i32, i32
  }
  func.func @transform_8(%arg0: i32) -> (i32, i32) {
    %c0_i32 = arith.constant 0 : i32
    %c0_i32_0 = arith.constant 0 : i32
    %c0_i32_1 = arith.constant 0 : i32
    return %c0_i32, %c0_i32_0 : i32, i32
  }
  func.func @transform_9(%arg0: i32) -> (i32, i32) {
    %c0_i32 = arith.constant 0 : i32
    %c0_i32_0 = arith.constant 0 : i32
    %c0_i32_1 = arith.constant 0 : i32
    return %c0_i32, %c0_i32_0 : i32, i32
  }
  func.func @transform_10(%arg0: i32) -> (i32, i32) {
    %c0_i32 = arith.constant 0 : i32
    %c0_i32_0 = arith.constant 0 : i32
    %c0_i32_1 = arith.constant 0 : i32
    return %c0_i32, %c0_i32_0 : i32, i32
  }
  func.func @transform_11(%arg0: i32) -> (i32, i32) {
    %c0_i32 = arith.constant 0 : i32
    %c0_i32_0 = arith.constant 0 : i32
    %c0_i32_1 = arith.constant 0 : i32
    return %c0_i32, %c0_i32_0 : i32, i32
  }
  func.func @transform_12(%arg0: i32) -> (i32, i32) {
    %c0_i32 = arith.constant 0 : i32
    %c0_i32_0 = arith.constant 0 : i32
    %c0_i32_1 = arith.constant 0 : i32
    return %c0_i32, %c0_i32_0 : i32, i32
  }
  func.func @transform_13(%arg0: i32) -> (i32, i32) {
    %c0_i32 = arith.constant 0 : i32
    %c0_i32_0 = arith.constant 0 : i32
    %c0_i32_1 = arith.constant 0 : i32
    return %c0_i32, %c0_i32_0 : i32, i32
  }
  func.func @transform_14(%arg0: i32) -> (i32, i32) {
    %c0_i32 = arith.constant 0 : i32
    %c0_i32_0 = arith.constant 0 : i32
    %c0_i32_1 = arith.constant 0 : i32
    return %c0_i32, %c0_i32_0 : i32, i32
  }
  func.func @transform_15(%arg0: i32) -> (i32, i32) {
    %c0_i32 = arith.constant 0 : i32
    %c0_i32_0 = arith.constant 0 : i32
    %c0_i32_1 = arith.constant 0 : i32
    return %c0_i32, %c0_i32_0 : i32, i32
  }
  func.func @transform_16(%arg0: i32) -> (i32, i32) {
    %c0_i32 = arith.constant 0 : i32
    %c0_i32_0 = arith.constant 0 : i32
    %c0_i32_1 = arith.constant 0 : i32
    return %c0_i32, %c0_i32_0 : i32, i32
  }
  func.func @transform_17(%arg0: i32) -> (i32, i32) {
    %c0_i32 = arith.constant 0 : i32
    %c0_i32_0 = arith.constant 0 : i32
    %c0_i32_1 = arith.constant 0 : i32
    return %c0_i32, %c0_i32_0 : i32, i32
  }
  func.func @transform_18(%arg0: i32) -> (i32, i32) {
    %c0_i32 = arith.constant 0 : i32
    %c0_i32_0 = arith.constant 0 : i32
    %c0_i32_1 = arith.constant 0 : i32
    return %c0_i32, %c0_i32_0 : i32, i32
  }
  func.func @transform_19(%arg0: i32) -> (i32, i32) {
    %c0_i32 = arith.constant 0 : i32
    %c0_i32_0 = arith.constant 0 : i32
    %c0_i32_1 = arith.constant 0 : i32
    return %c0_i32, %c0_i32_0 : i32, i32
  }
  func.func @transform_20(%arg0: i32) -> (i32, i32) {
    %c0_i32 = arith.constant 0 : i32
    %c0_i32_0 = arith.constant 0 : i32
    %c0_i32_1 = arith.constant 0 : i32
    return %c0_i32, %c0_i32_0 : i32, i32
  }
  func.func @transform_21(%arg0: i32) -> (i32, i32) {
    %c0_i32 = arith.constant 0 : i32
    %c0_i32_0 = arith.constant 0 : i32
    %c0_i32_1 = arith.constant 0 : i32
    return %c0_i32, %c0_i32_0 : i32, i32
  }
  func.func @transform_22(%arg0: i32) -> (i32, i32) {
    %c0_i32 = arith.constant 0 : i32
    %c0_i32_0 = arith.constant 0 : i32
    %c0_i32_1 = arith.constant 0 : i32
    return %c0_i32, %c0_i32_0 : i32, i32
  }
  func.func @transform_23(%arg0: i32) -> (i32, i32) {
    %c0_i32 = arith.constant 0 : i32
    %c0_i32_0 = arith.constant 0 : i32
    %c0_i32_1 = arith.constant 0 : i32
    return %c0_i32, %c0_i32_0 : i32, i32
  }
  func.func @transform_24(%arg0: i32) -> (i32, i32, i32) {
    %c0_i32 = arith.constant 0 : i32
    %c0_i32_0 = arith.constant 0 : i32
    %c0_i32_1 = arith.constant 0 : i32
    return %arg0, %c0_i32, %c0_i32_0 : i32, i32, i32
  }
}

module attributes {stable_mosaic.version = 11 : i64} {
  func.func @lm_head_kernel(%arg0: i32, %arg1: memref<16x32xf32, #tpu.memory_space<vmem>>, %arg2: memref<32x64xbf16, #tpu.memory_space<vmem>>, %arg3: memref<1x64xf32, #tpu.memory_space<vmem>>, %arg4: memref<16x64xf32, #tpu.memory_space<vmem>>) attributes {dimension_semantics = [#tpu.dimension_semantics<parallel>], iteration_bounds = array<i64: 1>, scalar_prefetch = 0 : i64, scratch_operands = 0 : i64, tpu.core_type = #tpu.core_type<tc>, window_params = [{pipeline_mode = #tpu.pipeline_mode<synchronous>, transform_indices = @transform_0, window_bounds = array<i64: 16, 32>}, {transform_indices = @transform_1, window_bounds = array<i64: 32, 64>}, {transform_indices = @transform_2, window_bounds = array<i64: 1, 64>}, {transform_indices = @transform_3, window_bounds = array<i64: 16, 64>}]} {
    %c0 = arith.constant 0 : index
    %c0_0 = arith.constant 0 : index
    %0 = vector.load %arg1[%c0, %c0_0] : memref<16x32xf32, #tpu.memory_space<vmem>>, vector<16x32xf32>
    %1 = arith.truncf %0 : vector<16x32xf32> to vector<16x32xbf16>
    %c0_1 = arith.constant 0 : index
    %c0_2 = arith.constant 0 : index
    %2 = vector.load %arg2[%c0_1, %c0_2] : memref<32x64xbf16, #tpu.memory_space<vmem>>, vector<32x64xbf16>
    %cst = arith.constant dense<0.000000e+00> : vector<16x64xf32>
    %3 = tpu.matmul %1, %2, %cst {dimension_numbers = #tpu.dot_dimension_numbers<[1], [0], [0], [1], [0, 0, 1, 1], [], []>} : vector<16x32xbf16>, vector<32x64xbf16>, vector<16x64xf32> -> vector<16x64xf32>
    %c0_3 = arith.constant 0 : index
    %c0_4 = arith.constant 0 : index
    %4 = vector.load %arg3[%c0_3, %c0_4] : memref<1x64xf32, #tpu.memory_space<vmem>>, vector<1x64xf32>
    %5 = vector.broadcast %4 : vector<1x64xf32> to vector<16x64xf32>
    %6 = arith.addf %3, %5 : vector<16x64xf32>
    %c0_5 = arith.constant 0 : index
    %c0_6 = arith.constant 0 : index
    %7 = vector.load %arg4[%c0_5, %c0_6] : memref<16x64xf32, #tpu.memory_space<vmem>>, vector<16x64xf32>
    tpu.vector_store %arg4[%c0_5, %c0_6], %6 {strides = array<i32>} : memref<16x64xf32, #tpu.memory_space<vmem>>, vector<16x64xf32>,
    return
  }
  func.func @transform_0(%arg0: i32) -> (i32, i32) {
    %c0_i32 = arith.constant 0 : i32
    %c0_i32_0 = arith.constant 0 : i32
    %c0_i32_1 = arith.constant 0 : i32
    return %c0_i32, %c0_i32_0 : i32, i32
  }
  func.func @transform_1(%arg0: i32) -> (i32, i32) {
    %c0_i32 = arith.constant 0 : i32
    %c0_i32_0 = arith.constant 0 : i32
    return %c0_i32, %arg0 : i32, i32
  }
  func.func @transform_2(%arg0: i32) -> (i32, i32) {
    %c0_i32 = arith.constant 0 : i32
    %c0_i32_0 = arith.constant 0 : i32
    return %c0_i32, %arg0 : i32, i32
  }
  func.func @transform_3(%arg0: i32) -> (i32, i32) {
    %c0_i32 = arith.constant 0 : i32
    %c0_i32_0 = arith.constant 0 : i32
    return %c0_i32, %arg0 : i32, i32
  }
}

module attributes {stable_mosaic.version = 11 : i64} {
  func.func @decoder_block_kernel(%arg0: i32, %arg1: memref<1x8x32xf32, #tpu.memory_space<vmem>>, %arg2: memref<1x8x32xf32, #tpu.memory_space<vmem>>, %arg3: memref<32x32xbf16, #tpu.memory_space<vmem>>, %arg4: memref<1x32xf32, #tpu.memory_space<vmem>>, %arg5: memref<32x64xbf16, #tpu.memory_space<vmem>>, %arg6: memref<1x64xf32, #tpu.memory_space<vmem>>, %arg7: memref<32x32xbf16, #tpu.memory_space<vmem>>, %arg8: memref<1x32xf32, #tpu.memory_space<vmem>>, %arg9: memref<1x32xf32, #tpu.memory_space<vmem>>, %arg10: memref<1x32xf32, #tpu.memory_space<vmem>>, %arg11: memref<32x32xbf16, #tpu.memory_space<vmem>>, %arg12: memref<1x32xf32, #tpu.memory_space<vmem>>, %arg13: memref<32x64xbf16, #tpu.memory_space<vmem>>, %arg14: memref<1x64xf32, #tpu.memory_space<vmem>>, %arg15: memref<32x32xbf16, #tpu.memory_space<vmem>>, %arg16: memref<1x32xf32, #tpu.memory_space<vmem>>, %arg17: memref<1x32xf32, #tpu.memory_space<vmem>>, %arg18: memref<1x32xf32, #tpu.memory_space<vmem>>, %arg19: memref<32x128xbf16, #tpu.memory_space<vmem>>, %arg20: memref<1x128xf32, #tpu.memory_space<vmem>>, %arg21: memref<128x32xbf16, #tpu.memory_space<vmem>>, %arg22: memref<1x32xf32, #tpu.memory_space<vmem>>, %arg23: memref<1x32xf32, #tpu.memory_space<vmem>>, %arg24: memref<1x32xf32, #tpu.memory_space<vmem>>, %arg25: memref<1x8x32xf32, #tpu.memory_space<vmem>>) attributes {dimension_semantics = [#tpu.dimension_semantics<parallel>], iteration_bounds = array<i64: 2>, scalar_prefetch = 0 : i64, scratch_operands = 0 : i64, tpu.core_type = #tpu.core_type<tc>, window_params = [{transform_indices = @transform_0, window_bounds = array<i64: 1, 8, 32>}, {transform_indices = @transform_1, window_bounds = array<i64: 1, 8, 32>}, {pipeline_mode = #tpu.pipeline_mode<synchronous>, transform_indices = @transform_2, window_bounds = array<i64: 32, 32>}, {pipeline_mode = #tpu.pipeline_mode<synchronous>, transform_indices = @transform_3, window_bounds = array<i64: 1, 32>}, {pipeline_mode = #tpu.pipeline_mode<synchronous>, transform_indices = @transform_4, window_bounds = array<i64: 32, 64>}, {pipeline_mode = #tpu.pipeline_mode<synchronous>, transform_indices = @transform_5, window_bounds = array<i64: 1, 64>}, {pipeline_mode = #tpu.pipeline_mode<synchronous>, transform_indices = @transform_6, window_bounds = array<i64: 32, 32>}, {pipeline_mode = #tpu.pipeline_mode<synchronous>, transform_indices = @transform_7, window_bounds = array<i64: 1, 32>}, {pipeline_mode = #tpu.pipeline_mode<synchronous>, transform_indices = @transform_8, window_bounds = array<i64: 1, 32>}, {pipeline_mode = #tpu.pipeline_mode<synchronous>, transform_indices = @transform_9, window_bounds = array<i64: 1, 32>}, {pipeline_mode = #tpu.pipeline_mode<synchronous>, transform_indices = @transform_10, window_bounds = array<i64: 32, 32>}, {pipeline_mode = #tpu.pipeline_mode<synchronous>, transform_indices = @transform_11, window_bounds = array<i64: 1, 32>}, {pipeline_mode = #tpu.pipeline_mode<synchronous>, transform_indices = @transform_12, window_bounds = array<i64: 32, 64>}, {pipeline_mode = #tpu.pipeline_mode<synchronous>, transform_indices = @transform_13, window_bounds = array<i64: 1, 64>}, {pipeline_mode = #tpu.pipeline_mode<synchronous>, transform_indices = @transform_14, window_bounds = array<i64: 32, 32>}, {pipeline_mode = #tpu.pipeline_mode<synchronous>, transform_indices = @transform_15, window_bounds = array<i64: 1, 32>}, {pipeline_mode = #tpu.pipeline_mode<synchronous>, transform_indices = @transform_16, window_bounds = array<i64: 1, 32>}, {pipeline_mode = #tpu.pipeline_mode<synchronous>, transform_indices = @transform_17, window_bounds = array<i64: 1, 32>}, {pipeline_mode = #tpu.pipeline_mode<synchronous>, transform_indices = @transform_18, window_bounds = array<i64: 32, 128>}, {pipeline_mode = #tpu.pipeline_mode<synchronous>, transform_indices = @transform_19, window_bounds = array<i64: 1, 128>}, {pipeline_mode = #tpu.pipeline_mode<synchronous>, transform_indices = @transform_20, window_bounds = array<i64: 128, 32>}, {pipeline_mode = #tpu.pipeline_mode<synchronous>, transform_indices = @transform_21, window_bounds = array<i64: 1, 32>}, {pipeline_mode = #tpu.pipeline_mode<synchronous>, transform_indices = @transform_22, window_bounds = array<i64: 1, 32>}, {pipeline_mode = #tpu.pipeline_mode<synchronous>, transform_indices = @transform_23, window_bounds = array<i64: 1, 32>}, {transform_indices = @transform_24, window_bounds = array<i64: 1, 8, 32>}]} {
    %c0 = arith.constant 0 : index
    %c0_0 = arith.constant 0 : index
    %c0_1 = arith.constant 0 : index
    %0 = vector.load %arg1[%c0, %c0_0, %c0_1] : memref<1x8x32xf32, #tpu.memory_space<vmem>>, vector<1x8x32xf32>
    %c0_2 = arith.constant 0 : index
    %c0_3 = arith.constant 0 : index
    %c0_4 = arith.constant 0 : index
    %1 = vector.load %arg2[%c0_2, %c0_3, %c0_4] : memref<1x8x32xf32, #tpu.memory_space<vmem>>, vector<1x8x32xf32>
    %c0_5 = arith.constant 0 : index
    %c0_6 = arith.constant 0 : index
    %2 = vector.load %arg3[%c0_5, %c0_6] : memref<32x32xbf16, #tpu.memory_space<vmem>>, vector<32x32xbf16>
    %c0_7 = arith.constant 0 : index
    %c0_8 = arith.constant 0 : index
    %3 = vector.load %arg4[%c0_7, %c0_8] : memref<1x32xf32, #tpu.memory_space<vmem>>, vector<1x32xf32>
    %c0_9 = arith.constant 0 : index
    %c0_10 = arith.constant 0 : index
    %4 = vector.load %arg5[%c0_9, %c0_10] : memref<32x64xbf16, #tpu.memory_space<vmem>>, vector<32x64xbf16>
    %c0_11 = arith.constant 0 : index
    %c0_12 = arith.constant 0 : index
    %5 = vector.load %arg6[%c0_11, %c0_12] : memref<1x64xf32, #tpu.memory_space<vmem>>, vector<1x64xf32>
    %c0_13 = arith.constant 0 : index
    %c0_14 = arith.constant 0 : index
    %6 = vector.load %arg7[%c0_13, %c0_14] : memref<32x32xbf16, #tpu.memory_space<vmem>>, vector<32x32xbf16>
    %c0_15 = arith.constant 0 : index
    %c0_16 = arith.constant 0 : index
    %7 = vector.load %arg8[%c0_15, %c0_16] : memref<1x32xf32, #tpu.memory_space<vmem>>, vector<1x32xf32>
    %8 = vector.shape_cast %0 : vector<1x8x32xf32> to vector<8x32xf32>
    %9 = arith.truncf %8 : vector<8x32xf32> to vector<8x32xbf16>
    %10 = vector.shape_cast %0 : vector<1x8x32xf32> to vector<8x32xf32>
    %11 = arith.truncf %10 : vector<8x32xf32> to vector<8x32xbf16>
    %cst = arith.constant dense<0.000000e+00> : vector<8x32xf32>
    %12 = tpu.matmul %9, %2, %cst {dimension_numbers = #tpu.dot_dimension_numbers<[1], [0], [0], [1], [0, 0, 1, 1], [], []>} : vector<8x32xbf16>, vector<32x32xbf16>, vector<8x32xf32> -> vector<8x32xf32>
    %13 = vector.broadcast %3 : vector<1x32xf32> to vector<8x32xf32>
    %14 = arith.addf %12, %13 : vector<8x32xf32>
    %cst_17 = arith.constant dense<0.000000e+00> : vector<8x64xf32>
    %15 = tpu.matmul %11, %4, %cst_17 {dimension_numbers = #tpu.dot_dimension_numbers<[1], [0], [0], [1], [0, 0, 1, 1], [], []>} : vector<8x32xbf16>, vector<32x64xbf16>, vector<8x64xf32> -> vector<8x64xf32>
    %16 = vector.broadcast %5 : vector<1x64xf32> to vector<8x64xf32>
    %17 = arith.addf %15, %16 : vector<8x64xf32>
    %18 = vector.shape_cast %14 : vector<8x32xf32> to vector<1x8x32xf32>
    %19 = vector.extract_strided_slice %17 {offsets = [0, 0], sizes = [8, 32], strides = [1, 1]} : vector<8x64xf32> to vector<8x32xf32>
    %20 = vector.shape_cast %19 : vector<8x32xf32> to vector<1x8x32xf32>
    %21 = vector.extract_strided_slice %17 {offsets = [0, 32], sizes = [8, 32], strides = [1, 1]} : vector<8x64xf32> to vector<8x32xf32>
    %22 = vector.shape_cast %21 : vector<8x32xf32> to vector<1x8x32xf32>
    %23 = vector.extract_strided_slice %18 {offsets = [0, 0, 0], sizes = [1, 8, 8], strides = [1, 1, 1]} : vector<1x8x32xf32> to vector<1x8x8xf32>
    %24 = arith.truncf %23 : vector<1x8x8xf32> to vector<1x8x8xbf16>
    %25 = vector.extract_strided_slice %20 {offsets = [0, 0, 0], sizes = [1, 8, 8], strides = [1, 1, 1]} : vector<1x8x32xf32> to vector<1x8x8xf32>
    %26 = arith.truncf %25 : vector<1x8x8xf32> to vector<1x8x8xbf16>
    %27 = vector.extract_strided_slice %22 {offsets = [0, 0, 0], sizes = [1, 8, 8], strides = [1, 1, 1]} : vector<1x8x32xf32> to vector<1x8x8xf32>
    %28 = arith.truncf %27 : vector<1x8x8xf32> to vector<1x8x8xbf16>
    "tpu.trace_start"() <{level = 10 : i32, message = "bqe,bke->bqk"}> : () -> ()
    %cst_18 = arith.constant dense<0.000000e+00> : vector<1x8x8xf32>
    %29 = tpu.matmul %24, %26, %cst_18 {dimension_numbers = #tpu.dot_dimension_numbers<[2], [2], [1], [1], [0, 0, 0, 1, 1, 1], [0], [0]>} : vector<1x8x8xbf16>, vector<1x8x8xbf16>, vector<1x8x8xf32> -> vector<1x8x8xf32>
    "tpu.trace_stop"() : () -> ()
    %cst_19 = arith.constant 0.353553385 : f32
    %30 = vector.broadcast %cst_19 : f32 to vector<1x8x8xf32>
    %31 = arith.mulf %29, %30 : vector<1x8x8xf32>
    %cst_20 = arith.constant dense<0xFF800000> : vector<1x8xf32>
    %32 = vector.multi_reduction <maximumf>, %31, %cst_20 [2] : vector<1x8x8xf32> to vector<1x8xf32>
    %33 = vector.shape_cast %32 : vector<1x8xf32> to vector<1x8x1xf32>
    %34 = vector.broadcast %33 : vector<1x8x1xf32> to vector<1x8x8xf32>
    %35 = arith.subf %31, %34 : vector<1x8x8xf32>
    %36 = math.exp %35 : vector<1x8x8xf32>
    %cst_21 = arith.constant dense<0.000000e+00> : vector<1x8xf32>
    %37 = vector.multi_reduction <add>, %36, %cst_21 [2] : vector<1x8x8xf32> to vector<1x8xf32>
    %38 = vector.shape_cast %37 : vector<1x8xf32> to vector<1x8x1xf32>
    %39 = tpu.reciprocal %38 {approx = true} : vector<1x8x1xf32> -> vector<1x8x1xf32>
    %40 = vector.broadcast %39 : vector<1x8x1xf32> to vector<1x8x8xf32>
    %41 = arith.mulf %36, %40 : vector<1x8x8xf32>
    %42 = arith.truncf %41 : vector<1x8x8xf32> to vector<1x8x8xbf16>
    "tpu.trace_start"() <{level = 10 : i32, message = "bqk,bke->bqe"}> : () -> ()
    %cst_22 = arith.constant dense<0.000000e+00> : vector<1x8x8xf32>
    %43 = tpu.matmul %42, %28, %cst_22 {dimension_numbers = #tpu.dot_dimension_numbers<[2], [1], [1], [2], [0, 0, 0, 1, 1, 2], [0], [0]>} : vector<1x8x8xbf16>, vector<1x8x8xbf16>, vector<1x8x8xf32> -> vector<1x8x8xf32>
    "tpu.trace_stop"() : () -> ()
    %44 = vector.extract_strided_slice %18 {offsets = [0, 0, 8], sizes = [1, 8, 8], strides = [1, 1, 1]} : vector<1x8x32xf32> to vector<1x8x8xf32>
    %45 = arith.truncf %44 : vector<1x8x8xf32> to vector<1x8x8xbf16>
    %46 = vector.extract_strided_slice %20 {offsets = [0, 0, 8], sizes = [1, 8, 8], strides = [1, 1, 1]} : vector<1x8x32xf32> to vector<1x8x8xf32>
    %47 = arith.truncf %46 : vector<1x8x8xf32> to vector<1x8x8xbf16>
    %48 = vector.extract_strided_slice %22 {offsets = [0, 0, 8], sizes = [1, 8, 8], strides = [1, 1, 1]} : vector<1x8x32xf32> to vector<1x8x8xf32>
    %49 = arith.truncf %48 : vector<1x8x8xf32> to vector<1x8x8xbf16>
    "tpu.trace_start"() <{level = 10 : i32, message = "bqe,bke->bqk"}> : () -> ()
    %cst_23 = arith.constant dense<0.000000e+00> : vector<1x8x8xf32>
    %50 = tpu.matmul %45, %47, %cst_23 {dimension_numbers = #tpu.dot_dimension_numbers<[2], [2], [1], [1], [0, 0, 0, 1, 1, 1], [0], [0]>} : vector<1x8x8xbf16>, vector<1x8x8xbf16>, vector<1x8x8xf32> -> vector<1x8x8xf32>
    "tpu.trace_stop"() : () -> ()
    %cst_24 = arith.constant 0.353553385 : f32
    %51 = vector.broadcast %cst_24 : f32 to vector<1x8x8xf32>
    %52 = arith.mulf %50, %51 : vector<1x8x8xf32>
    %cst_25 = arith.constant dense<0xFF800000> : vector<1x8xf32>
    %53 = vector.multi_reduction <maximumf>, %52, %cst_25 [2] : vector<1x8x8xf32> to vector<1x8xf32>
    %54 = vector.shape_cast %53 : vector<1x8xf32> to vector<1x8x1xf32>
    %55 = vector.broadcast %54 : vector<1x8x1xf32> to vector<1x8x8xf32>
    %56 = arith.subf %52, %55 : vector<1x8x8xf32>
    %57 = math.exp %56 : vector<1x8x8xf32>
    %cst_26 = arith.constant dense<0.000000e+00> : vector<1x8xf32>
    %58 = vector.multi_reduction <add>, %57, %cst_26 [2] : vector<1x8x8xf32> to vector<1x8xf32>
    %59 = vector.shape_cast %58 : vector<1x8xf32> to vector<1x8x1xf32>
    %60 = tpu.reciprocal %59 {approx = true} : vector<1x8x1xf32> -> vector<1x8x1xf32>
    %61 = vector.broadcast %60 : vector<1x8x1xf32> to vector<1x8x8xf32>
    %62 = arith.mulf %57, %61 : vector<1x8x8xf32>
    %63 = arith.truncf %62 : vector<1x8x8xf32> to vector<1x8x8xbf16>
    "tpu.trace_start"() <{level = 10 : i32, message = "bqk,bke->bqe"}> : () -> ()
    %cst_27 = arith.constant dense<0.000000e+00> : vector<1x8x8xf32>
    %64 = tpu.matmul %63, %49, %cst_27 {dimension_numbers = #tpu.dot_dimension_numbers<[2], [1], [1], [2], [0, 0, 0, 1, 1, 2], [0], [0]>} : vector<1x8x8xbf16>, vector<1x8x8xbf16>, vector<1x8x8xf32> -> vector<1x8x8xf32>
    "tpu.trace_stop"() : () -> ()
    %65 = vector.extract_strided_slice %18 {offsets = [0, 0, 16], sizes = [1, 8, 8], strides = [1, 1, 1]} : vector<1x8x32xf32> to vector<1x8x8xf32>
    %66 = arith.truncf %65 : vector<1x8x8xf32> to vector<1x8x8xbf16>
    %67 = vector.extract_strided_slice %20 {offsets = [0, 0, 16], sizes = [1, 8, 8], strides = [1, 1, 1]} : vector<1x8x32xf32> to vector<1x8x8xf32>
    %68 = arith.truncf %67 : vector<1x8x8xf32> to vector<1x8x8xbf16>
    %69 = vector.extract_strided_slice %22 {offsets = [0, 0, 16], sizes = [1, 8, 8], strides = [1, 1, 1]} : vector<1x8x32xf32> to vector<1x8x8xf32>
    %70 = arith.truncf %69 : vector<1x8x8xf32> to vector<1x8x8xbf16>
    "tpu.trace_start"() <{level = 10 : i32, message = "bqe,bke->bqk"}> : () -> ()
    %cst_28 = arith.constant dense<0.000000e+00> : vector<1x8x8xf32>
    %71 = tpu.matmul %66, %68, %cst_28 {dimension_numbers = #tpu.dot_dimension_numbers<[2], [2], [1], [1], [0, 0, 0, 1, 1, 1], [0], [0]>} : vector<1x8x8xbf16>, vector<1x8x8xbf16>, vector<1x8x8xf32> -> vector<1x8x8xf32>
    "tpu.trace_stop"() : () -> ()
    %cst_29 = arith.constant 0.353553385 : f32
    %72 = vector.broadcast %cst_29 : f32 to vector<1x8x8xf32>
    %73 = arith.mulf %71, %72 : vector<1x8x8xf32>
    %cst_30 = arith.constant dense<0xFF800000> : vector<1x8xf32>
    %74 = vector.multi_reduction <maximumf>, %73, %cst_30 [2] : vector<1x8x8xf32> to vector<1x8xf32>
    %75 = vector.shape_cast %74 : vector<1x8xf32> to vector<1x8x1xf32>
    %76 = vector.broadcast %75 : vector<1x8x1xf32> to vector<1x8x8xf32>
    %77 = arith.subf %73, %76 : vector<1x8x8xf32>
    %78 = math.exp %77 : vector<1x8x8xf32>
    %cst_31 = arith.constant dense<0.000000e+00> : vector<1x8xf32>
    %79 = vector.multi_reduction <add>, %78, %cst_31 [2] : vector<1x8x8xf32> to vector<1x8xf32>
    %80 = vector.shape_cast %79 : vector<1x8xf32> to vector<1x8x1xf32>
    %81 = tpu.reciprocal %80 {approx = true} : vector<1x8x1xf32> -> vector<1x8x1xf32>
    %82 = vector.broadcast %81 : vector<1x8x1xf32> to vector<1x8x8xf32>
    %83 = arith.mulf %78, %82 : vector<1x8x8xf32>
    %84 = arith.truncf %83 : vector<1x8x8xf32> to vector<1x8x8xbf16>
    "tpu.trace_start"() <{level = 10 : i32, message = "bqk,bke->bqe"}> : () -> ()
    %cst_32 = arith.constant dense<0.000000e+00> : vector<1x8x8xf32>
    %85 = tpu.matmul %84, %70, %cst_32 {dimension_numbers = #tpu.dot_dimension_numbers<[2], [1], [1], [2], [0, 0, 0, 1, 1, 2], [0], [0]>} : vector<1x8x8xbf16>, vector<1x8x8xbf16>, vector<1x8x8xf32> -> vector<1x8x8xf32>
    "tpu.trace_stop"() : () -> ()
    %86 = vector.extract_strided_slice %18 {offsets = [0, 0, 24], sizes = [1, 8, 8], strides = [1, 1, 1]} : vector<1x8x32xf32> to vector<1x8x8xf32>
    %87 = arith.truncf %86 : vector<1x8x8xf32> to vector<1x8x8xbf16>
    %88 = vector.extract_strided_slice %20 {offsets = [0, 0, 24], sizes = [1, 8, 8], strides = [1, 1, 1]} : vector<1x8x32xf32> to vector<1x8x8xf32>
    %89 = arith.truncf %88 : vector<1x8x8xf32> to vector<1x8x8xbf16>
    %90 = vector.extract_strided_slice %22 {offsets = [0, 0, 24], sizes = [1, 8, 8], strides = [1, 1, 1]} : vector<1x8x32xf32> to vector<1x8x8xf32>
    %91 = arith.truncf %90 : vector<1x8x8xf32> to vector<1x8x8xbf16>
    "tpu.trace_start"() <{level = 10 : i32, message = "bqe,bke->bqk"}> : () -> ()
    %cst_33 = arith.constant dense<0.000000e+00> : vector<1x8x8xf32>
    %92 = tpu.matmul %87, %89, %cst_33 {dimension_numbers = #tpu.dot_dimension_numbers<[2], [2], [1], [1], [0, 0, 0, 1, 1, 1], [0], [0]>} : vector<1x8x8xbf16>, vector<1x8x8xbf16>, vector<1x8x8xf32> -> vector<1x8x8xf32>
    "tpu.trace_stop"() : () -> ()
    %cst_34 = arith.constant 0.353553385 : f32
    %93 = vector.broadcast %cst_34 : f32 to vector<1x8x8xf32>
    %94 = arith.mulf %92, %93 : vector<1x8x8xf32>
    %cst_35 = arith.constant dense<0xFF800000> : vector<1x8xf32>
    %95 = vector.multi_reduction <maximumf>, %94, %cst_35 [2] : vector<1x8x8xf32> to vector<1x8xf32>
    %96 = vector.shape_cast %95 : vector<1x8xf32> to vector<1x8x1xf32>
    %97 = vector.broadcast %96 : vector<1x8x1xf32> to vector<1x8x8xf32>
    %98 = arith.subf %94, %97 : vector<1x8x8xf32>
    %99 = math.exp %98 : vector<1x8x8xf32>
    %cst_36 = arith.constant dense<0.000000e+00> : vector<1x8xf32>
    %100 = vector.multi_reduction <add>, %99, %cst_36 [2] : vector<1x8x8xf32> to vector<1x8xf32>
    %101 = vector.shape_cast %100 : vector<1x8xf32> to vector<1x8x1xf32>
    %102 = tpu.reciprocal %101 {approx = true} : vector<1x8x1xf32> -> vector<1x8x1xf32>
    %103 = vector.broadcast %102 : vector<1x8x1xf32> to vector<1x8x8xf32>
    %104 = arith.mulf %99, %103 : vector<1x8x8xf32>
    %105 = arith.truncf %104 : vector<1x8x8xf32> to vector<1x8x8xbf16>
    "tpu.trace_start"() <{level = 10 : i32, message = "bqk,bke->bqe"}> : () -> ()
    %cst_37 = arith.constant dense<0.000000e+00> : vector<1x8x8xf32>
    %106 = tpu.matmul %105, %91, %cst_37 {dimension_numbers = #tpu.dot_dimension_numbers<[2], [1], [1], [2], [0, 0, 0, 1, 1, 2], [0], [0]>} : vector<1x8x8xbf16>, vector<1x8x8xbf16>, vector<1x8x8xf32> -> vector<1x8x8xf32>
    "tpu.trace_stop"() : () -> ()
    %107 = tpu.concatenate %43, %64, %85, %106 in 2 : vector<1x8x8xf32>, vector<1x8x8xf32>, vector<1x8x8xf32>, vector<1x8x8xf32> -> vector<1x8x32xf32>
    %108 = vector.shape_cast %107 : vector<1x8x32xf32> to vector<8x32xf32>
    %109 = arith.truncf %108 : vector<8x32xf32> to vector<8x32xbf16>
    %cst_38 = arith.constant dense<0.000000e+00> : vector<8x32xf32>
    %110 = tpu.matmul %109, %6, %cst_38 {dimension_numbers = #tpu.dot_dimension_numbers<[1], [0], [0], [1], [0, 0, 1, 1], [], []>} : vector<8x32xbf16>, vector<32x32xbf16>, vector<8x32xf32> -> vector<8x32xf32>
    %111 = vector.broadcast %7 : vector<1x32xf32> to vector<8x32xf32>
    %112 = arith.addf %110, %111 : vector<8x32xf32>
    %113 = vector.shape_cast %112 : vector<8x32xf32> to vector<1x8x32xf32>
    %114 = arith.addf %113, %0 : vector<1x8x32xf32>
    %c0_39 = arith.constant 0 : index
    %c0_40 = arith.constant 0 : index
    %115 = vector.load %arg9[%c0_39, %c0_40] : memref<1x32xf32, #tpu.memory_space<vmem>>, vector<1x32xf32>
    %116 = vector.shape_cast %115 : vector<1x32xf32> to vector<1x1x32xf32>
    %c0_41 = arith.constant 0 : index
    %c0_42 = arith.constant 0 : index
    %117 = vector.load %arg10[%c0_41, %c0_42] : memref<1x32xf32, #tpu.memory_space<vmem>>, vector<1x32xf32>
    %118 = vector.shape_cast %117 : vector<1x32xf32> to vector<1x1x32xf32>
    %cst_43 = arith.constant dense<0.000000e+00> : vector<1x8xf32>
    %119 = vector.multi_reduction <add>, %114, %cst_43 [2] : vector<1x8x32xf32> to vector<1x8xf32>
    %120 = vector.shape_cast %119 : vector<1x8xf32> to vector<1x8x1xf32>
    %cst_44 = arith.constant 3.200000e+01 : f32
    %121 = vector.broadcast %cst_44 : f32 to vector<1x8x1xf32>
    %122 = arith.divf %120, %121 : vector<1x8x1xf32>
    %123 = vector.broadcast %122 : vector<1x8x1xf32> to vector<1x8x32xf32>
    %124 = arith.subf %114, %123 : vector<1x8x32xf32>
    %125 = arith.mulf %124, %124 : vector<1x8x32xf32>
    %cst_45 = arith.constant dense<0.000000e+00> : vector<1x8xf32>
    %126 = vector.multi_reduction <add>, %125, %cst_45 [2] : vector<1x8x32xf32> to vector<1x8xf32>
    %127 = vector.shape_cast %126 : vector<1x8xf32> to vector<1x8x1xf32>
    %cst_46 = arith.constant 3.200000e+01 : f32
    %128 = vector.broadcast %cst_46 : f32 to vector<1x8x1xf32>
    %129 = arith.divf %127, %128 : vector<1x8x1xf32>
    %130 = vector.broadcast %122 : vector<1x8x1xf32> to vector<1x8x32xf32>
    %131 = arith.subf %114, %130 : vector<1x8x32xf32>
    %cst_47 = arith.constant 9.99999974E-6 : f32
    %132 = vector.broadcast %cst_47 : f32 to vector<1x8x1xf32>
    %133 = arith.addf %129, %132 : vector<1x8x1xf32>
    %134 = math.rsqrt %133 : vector<1x8x1xf32>
    %135 = vector.broadcast %134 : vector<1x8x1xf32> to vector<1x8x32xf32>
    %136 = arith.mulf %131, %135 : vector<1x8x32xf32>
    %137 = vector.broadcast %116 : vector<1x1x32xf32> to vector<1x8x32xf32>
    %138 = arith.mulf %136, %137 : vector<1x8x32xf32>
    %139 = vector.broadcast %118 : vector<1x1x32xf32> to vector<1x8x32xf32>
    %140 = arith.addf %138, %139 : vector<1x8x32xf32>
    %c0_48 = arith.constant 0 : index
    %c0_49 = arith.constant 0 : index
    %141 = vector.load %arg11[%c0_48, %c0_49] : memref<32x32xbf16, #tpu.memory_space<vmem>>, vector<32x32xbf16>
    %c0_50 = arith.constant 0 : index
    %c0_51 = arith.constant 0 : index
    %142 = vector.load %arg12[%c0_50, %c0_51] : memref<1x32xf32, #tpu.memory_space<vmem>>, vector<1x32xf32>
    %c0_52 = arith.constant 0 : index
    %c0_53 = arith.constant 0 : index
    %143 = vector.load %arg13[%c0_52, %c0_53] : memref<32x64xbf16, #tpu.memory_space<vmem>>, vector<32x64xbf16>
    %c0_54 = arith.constant 0 : index
    %c0_55 = arith.constant 0 : index
    %144 = vector.load %arg14[%c0_54, %c0_55] : memref<1x64xf32, #tpu.memory_space<vmem>>, vector<1x64xf32>
    %c0_56 = arith.constant 0 : index
    %c0_57 = arith.constant 0 : index
    %145 = vector.load %arg15[%c0_56, %c0_57] : memref<32x32xbf16, #tpu.memory_space<vmem>>, vector<32x32xbf16>
    %c0_58 = arith.constant 0 : index
    %c0_59 = arith.constant 0 : index
    %146 = vector.load %arg16[%c0_58, %c0_59] : memref<1x32xf32, #tpu.memory_space<vmem>>, vector<1x32xf32>
    %147 = vector.shape_cast %140 : vector<1x8x32xf32> to vector<8x32xf32>
    %148 = arith.truncf %147 : vector<8x32xf32> to vector<8x32xbf16>
    %149 = vector.shape_cast %1 : vector<1x8x32xf32> to vector<8x32xf32>
    %150 = arith.truncf %149 : vector<8x32xf32> to vector<8x32xbf16>
    %cst_60 = arith.constant dense<0.000000e+00> : vector<8x32xf32>
    %151 = tpu.matmul %148, %141, %cst_60 {dimension_numbers = #tpu.dot_dimension_numbers<[1], [0], [0], [1], [0, 0, 1, 1], [], []>} : vector<8x32xbf16>, vector<32x32xbf16>, vector<8x32xf32> -> vector<8x32xf32>
    %152 = vector.broadcast %142 : vector<1x32xf32> to vector<8x32xf32>
    %153 = arith.addf %151, %152 : vector<8x32xf32>
    %cst_61 = arith.constant dense<0.000000e+00> : vector<8x64xf32>
    %154 = tpu.matmul %150, %143, %cst_61 {dimension_numbers = #tpu.dot_dimension_numbers<[1], [0], [0], [1], [0, 0, 1, 1], [], []>} : vector<8x32xbf16>, vector<32x64xbf16>, vector<8x64xf32> -> vector<8x64xf32>
    %155 = vector.broadcast %144 : vector<1x64xf32> to vector<8x64xf32>
    %156 = arith.addf %154, %155 : vector<8x64xf32>
    %157 = vector.shape_cast %153 : vector<8x32xf32> to vector<1x8x32xf32>
    %158 = vector.extract_strided_slice %156 {offsets = [0, 0], sizes = [8, 32], strides = [1, 1]} : vector<8x64xf32> to vector<8x32xf32>
    %159 = vector.shape_cast %158 : vector<8x32xf32> to vector<1x8x32xf32>
    %160 = vector.extract_strided_slice %156 {offsets = [0, 32], sizes = [8, 32], strides = [1, 1]} : vector<8x64xf32> to vector<8x32xf32>
    %161 = vector.shape_cast %160 : vector<8x32xf32> to vector<1x8x32xf32>
    %162 = vector.extract_strided_slice %157 {offsets = [0, 0, 0], sizes = [1, 8, 8], strides = [1, 1, 1]} : vector<1x8x32xf32> to vector<1x8x8xf32>
    %163 = arith.truncf %162 : vector<1x8x8xf32> to vector<1x8x8xbf16>
    %164 = vector.extract_strided_slice %159 {offsets = [0, 0, 0], sizes = [1, 8, 8], strides = [1, 1, 1]} : vector<1x8x32xf32> to vector<1x8x8xf32>
    %165 = arith.truncf %164 : vector<1x8x8xf32> to vector<1x8x8xbf16>
    %166 = vector.extract_strided_slice %161 {offsets = [0, 0, 0], sizes = [1, 8, 8], strides = [1, 1, 1]} : vector<1x8x32xf32> to vector<1x8x8xf32>
    %167 = arith.truncf %166 : vector<1x8x8xf32> to vector<1x8x8xbf16>
    "tpu.trace_start"() <{level = 10 : i32, message = "bqe,bke->bqk"}> : () -> ()
    %cst_62 = arith.constant dense<0.000000e+00> : vector<1x8x8xf32>
    %168 = tpu.matmul %163, %165, %cst_62 {dimension_numbers = #tpu.dot_dimension_numbers<[2], [2], [1], [1], [0, 0, 0, 1, 1, 1], [0], [0]>} : vector<1x8x8xbf16>, vector<1x8x8xbf16>, vector<1x8x8xf32> -> vector<1x8x8xf32>
    "tpu.trace_stop"() : () -> ()
    %cst_63 = arith.constant 0.353553385 : f32
    %169 = vector.broadcast %cst_63 : f32 to vector<1x8x8xf32>
    %170 = arith.mulf %168, %169 : vector<1x8x8xf32>
    %cst_64 = arith.constant dense<0xFF800000> : vector<1x8xf32>
    %171 = vector.multi_reduction <maximumf>, %170, %cst_64 [2] : vector<1x8x8xf32> to vector<1x8xf32>
    %172 = vector.shape_cast %171 : vector<1x8xf32> to vector<1x8x1xf32>
    %173 = vector.broadcast %172 : vector<1x8x1xf32> to vector<1x8x8xf32>
    %174 = arith.subf %170, %173 : vector<1x8x8xf32>
    %175 = math.exp %174 : vector<1x8x8xf32>
    %cst_65 = arith.constant dense<0.000000e+00> : vector<1x8xf32>
    %176 = vector.multi_reduction <add>, %175, %cst_65 [2] : vector<1x8x8xf32> to vector<1x8xf32>
    %177 = vector.shape_cast %176 : vector<1x8xf32> to vector<1x8x1xf32>
    %178 = tpu.reciprocal %177 {approx = true} : vector<1x8x1xf32> -> vector<1x8x1xf32>
    %179 = vector.broadcast %178 : vector<1x8x1xf32> to vector<1x8x8xf32>
    %180 = arith.mulf %175, %179 : vector<1x8x8xf32>
    %181 = arith.truncf %180 : vector<1x8x8xf32> to vector<1x8x8xbf16>
    "tpu.trace_start"() <{level = 10 : i32, message = "bqk,bke->bqe"}> : () -> ()
    %cst_66 = arith.constant dense<0.000000e+00> : vector<1x8x8xf32>
    %182 = tpu.matmul %181, %167, %cst_66 {dimension_numbers = #tpu.dot_dimension_numbers<[2], [1], [1], [2], [0, 0, 0, 1, 1, 2], [0], [0]>} : vector<1x8x8xbf16>, vector<1x8x8xbf16>, vector<1x8x8xf32> -> vector<1x8x8xf32>
    "tpu.trace_stop"() : () -> ()
    %183 = vector.extract_strided_slice %157 {offsets = [0, 0, 8], sizes = [1, 8, 8], strides = [1, 1, 1]} : vector<1x8x32xf32> to vector<1x8x8xf32>
    %184 = arith.truncf %183 : vector<1x8x8xf32> to vector<1x8x8xbf16>
    %185 = vector.extract_strided_slice %159 {offsets = [0, 0, 8], sizes = [1, 8, 8], strides = [1, 1, 1]} : vector<1x8x32xf32> to vector<1x8x8xf32>
    %186 = arith.truncf %185 : vector<1x8x8xf32> to vector<1x8x8xbf16>
    %187 = vector.extract_strided_slice %161 {offsets = [0, 0, 8], sizes = [1, 8, 8], strides = [1, 1, 1]} : vector<1x8x32xf32> to vector<1x8x8xf32>
    %188 = arith.truncf %187 : vector<1x8x8xf32> to vector<1x8x8xbf16>
    "tpu.trace_start"() <{level = 10 : i32, message = "bqe,bke->bqk"}> : () -> ()
    %cst_67 = arith.constant dense<0.000000e+00> : vector<1x8x8xf32>
    %189 = tpu.matmul %184, %186, %cst_67 {dimension_numbers = #tpu.dot_dimension_numbers<[2], [2], [1], [1], [0, 0, 0, 1, 1, 1], [0], [0]>} : vector<1x8x8xbf16>, vector<1x8x8xbf16>, vector<1x8x8xf32> -> vector<1x8x8xf32>
    "tpu.trace_stop"() : () -> ()
    %cst_68 = arith.constant 0.353553385 : f32
    %190 = vector.broadcast %cst_68 : f32 to vector<1x8x8xf32>
    %191 = arith.mulf %189, %190 : vector<1x8x8xf32>
    %cst_69 = arith.constant dense<0xFF800000> : vector<1x8xf32>
    %192 = vector.multi_reduction <maximumf>, %191, %cst_69 [2] : vector<1x8x8xf32> to vector<1x8xf32>
    %193 = vector.shape_cast %192 : vector<1x8xf32> to vector<1x8x1xf32>
    %194 = vector.broadcast %193 : vector<1x8x1xf32> to vector<1x8x8xf32>
    %195 = arith.subf %191, %194 : vector<1x8x8xf32>
    %196 = math.exp %195 : vector<1x8x8xf32>
    %cst_70 = arith.constant dense<0.000000e+00> : vector<1x8xf32>
    %197 = vector.multi_reduction <add>, %196, %cst_70 [2] : vector<1x8x8xf32> to vector<1x8xf32>
    %198 = vector.shape_cast %197 : vector<1x8xf32> to vector<1x8x1xf32>
    %199 = tpu.reciprocal %198 {approx = true} : vector<1x8x1xf32> -> vector<1x8x1xf32>
    %200 = vector.broadcast %199 : vector<1x8x1xf32> to vector<1x8x8xf32>
    %201 = arith.mulf %196, %200 : vector<1x8x8xf32>
    %202 = arith.truncf %201 : vector<1x8x8xf32> to vector<1x8x8xbf16>
    "tpu.trace_start"() <{level = 10 : i32, message = "bqk,bke->bqe"}> : () -> ()
    %cst_71 = arith.constant dense<0.000000e+00> : vector<1x8x8xf32>
    %203 = tpu.matmul %202, %188, %cst_71 {dimension_numbers = #tpu.dot_dimension_numbers<[2], [1], [1], [2], [0, 0, 0, 1, 1, 2], [0], [0]>} : vector<1x8x8xbf16>, vector<1x8x8xbf16>, vector<1x8x8xf32> -> vector<1x8x8xf32>
    "tpu.trace_stop"() : () -> ()
    %204 = vector.extract_strided_slice %157 {offsets = [0, 0, 16], sizes = [1, 8, 8], strides = [1, 1, 1]} : vector<1x8x32xf32> to vector<1x8x8xf32>
    %205 = arith.truncf %204 : vector<1x8x8xf32> to vector<1x8x8xbf16>
    %206 = vector.extract_strided_slice %159 {offsets = [0, 0, 16], sizes = [1, 8, 8], strides = [1, 1, 1]} : vector<1x8x32xf32> to vector<1x8x8xf32>
    %207 = arith.truncf %206 : vector<1x8x8xf32> to vector<1x8x8xbf16>
    %208 = vector.extract_strided_slice %161 {offsets = [0, 0, 16], sizes = [1, 8, 8], strides = [1, 1, 1]} : vector<1x8x32xf32> to vector<1x8x8xf32>
    %209 = arith.truncf %208 : vector<1x8x8xf32> to vector<1x8x8xbf16>
    "tpu.trace_start"() <{level = 10 : i32, message = "bqe,bke->bqk"}> : () -> ()
    %cst_72 = arith.constant dense<0.000000e+00> : vector<1x8x8xf32>
    %210 = tpu.matmul %205, %207, %cst_72 {dimension_numbers = #tpu.dot_dimension_numbers<[2], [2], [1], [1], [0, 0, 0, 1, 1, 1], [0], [0]>} : vector<1x8x8xbf16>, vector<1x8x8xbf16>, vector<1x8x8xf32> -> vector<1x8x8xf32>
    "tpu.trace_stop"() : () -> ()
    %cst_73 = arith.constant 0.353553385 : f32
    %211 = vector.broadcast %cst_73 : f32 to vector<1x8x8xf32>
    %212 = arith.mulf %210, %211 : vector<1x8x8xf32>
    %cst_74 = arith.constant dense<0xFF800000> : vector<1x8xf32>
    %213 = vector.multi_reduction <maximumf>, %212, %cst_74 [2] : vector<1x8x8xf32> to vector<1x8xf32>
    %214 = vector.shape_cast %213 : vector<1x8xf32> to vector<1x8x1xf32>
    %215 = vector.broadcast %214 : vector<1x8x1xf32> to vector<1x8x8xf32>
    %216 = arith.subf %212, %215 : vector<1x8x8xf32>
    %217 = math.exp %216 : vector<1x8x8xf32>
    %cst_75 = arith.constant dense<0.000000e+00> : vector<1x8xf32>
    %218 = vector.multi_reduction <add>, %217, %cst_75 [2] : vector<1x8x8xf32> to vector<1x8xf32>
    %219 = vector.shape_cast %218 : vector<1x8xf32> to vector<1x8x1xf32>
    %220 = tpu.reciprocal %219 {approx = true} : vector<1x8x1xf32> -> vector<1x8x1xf32>
    %221 = vector.broadcast %220 : vector<1x8x1xf32> to vector<1x8x8xf32>
    %222 = arith.mulf %217, %221 : vector<1x8x8xf32>
    %223 = arith.truncf %222 : vector<1x8x8xf32> to vector<1x8x8xbf16>
    "tpu.trace_start"() <{level = 10 : i32, message = "bqk,bke->bqe"}> : () -> ()
    %cst_76 = arith.constant dense<0.000000e+00> : vector<1x8x8xf32>
    %224 = tpu.matmul %223, %209, %cst_76 {dimension_numbers = #tpu.dot_dimension_numbers<[2], [1], [1], [2], [0, 0, 0, 1, 1, 2], [0], [0]>} : vector<1x8x8xbf16>, vector<1x8x8xbf16>, vector<1x8x8xf32> -> vector<1x8x8xf32>
    "tpu.trace_stop"() : () -> ()
    %225 = vector.extract_strided_slice %157 {offsets = [0, 0, 24], sizes = [1, 8, 8], strides = [1, 1, 1]} : vector<1x8x32xf32> to vector<1x8x8xf32>
    %226 = arith.truncf %225 : vector<1x8x8xf32> to vector<1x8x8xbf16>
    %227 = vector.extract_strided_slice %159 {offsets = [0, 0, 24], sizes = [1, 8, 8], strides = [1, 1, 1]} : vector<1x8x32xf32> to vector<1x8x8xf32>
    %228 = arith.truncf %227 : vector<1x8x8xf32> to vector<1x8x8xbf16>
    %229 = vector.extract_strided_slice %161 {offsets = [0, 0, 24], sizes = [1, 8, 8], strides = [1, 1, 1]} : vector<1x8x32xf32> to vector<1x8x8xf32>
    %230 = arith.truncf %229 : vector<1x8x8xf32> to vector<1x8x8xbf16>
    "tpu.trace_start"() <{level = 10 : i32, message = "bqe,bke->bqk"}> : () -> ()
    %cst_77 = arith.constant dense<0.000000e+00> : vector<1x8x8xf32>
    %231 = tpu.matmul %226, %228, %cst_77 {dimension_numbers = #tpu.dot_dimension_numbers<[2], [2], [1], [1], [0, 0, 0, 1, 1, 1], [0], [0]>} : vector<1x8x8xbf16>, vector<1x8x8xbf16>, vector<1x8x8xf32> -> vector<1x8x8xf32>
    "tpu.trace_stop"() : () -> ()
    %cst_78 = arith.constant 0.353553385 : f32
    %232 = vector.broadcast %cst_78 : f32 to vector<1x8x8xf32>
    %233 = arith.mulf %231, %232 : vector<1x8x8xf32>
    %cst_79 = arith.constant dense<0xFF800000> : vector<1x8xf32>
    %234 = vector.multi_reduction <maximumf>, %233, %cst_79 [2] : vector<1x8x8xf32> to vector<1x8xf32>
    %235 = vector.shape_cast %234 : vector<1x8xf32> to vector<1x8x1xf32>
    %236 = vector.broadcast %235 : vector<1x8x1xf32> to vector<1x8x8xf32>
    %237 = arith.subf %233, %236 : vector<1x8x8xf32>
    %238 = math.exp %237 : vector<1x8x8xf32>
    %cst_80 = arith.constant dense<0.000000e+00> : vector<1x8xf32>
    %239 = vector.multi_reduction <add>, %238, %cst_80 [2] : vector<1x8x8xf32> to vector<1x8xf32>
    %240 = vector.shape_cast %239 : vector<1x8xf32> to vector<1x8x1xf32>
    %241 = tpu.reciprocal %240 {approx = true} : vector<1x8x1xf32> -> vector<1x8x1xf32>
    %242 = vector.broadcast %241 : vector<1x8x1xf32> to vector<1x8x8xf32>
    %243 = arith.mulf %238, %242 : vector<1x8x8xf32>
    %244 = arith.truncf %243 : vector<1x8x8xf32> to vector<1x8x8xbf16>
    "tpu.trace_start"() <{level = 10 : i32, message = "bqk,bke->bqe"}> : () -> ()
    %cst_81 = arith.constant dense<0.000000e+00> : vector<1x8x8xf32>
    %245 = tpu.matmul %244, %230, %cst_81 {dimension_numbers = #tpu.dot_dimension_numbers<[2], [1], [1], [2], [0, 0, 0, 1, 1, 2], [0], [0]>} : vector<1x8x8xbf16>, vector<1x8x8xbf16>, vector<1x8x8xf32> -> vector<1x8x8xf32>
    "tpu.trace_stop"() : () -> ()
    %246 = tpu.concatenate %182, %203, %224, %245 in 2 : vector<1x8x8xf32>, vector<1x8x8xf32>, vector<1x8x8xf32>, vector<1x8x8xf32> -> vector<1x8x32xf32>
    %247 = vector.shape_cast %246 : vector<1x8x32xf32> to vector<8x32xf32>
    %248 = arith.truncf %247 : vector<8x32xf32> to vector<8x32xbf16>
    %cst_82 = arith.constant dense<0.000000e+00> : vector<8x32xf32>
    %249 = tpu.matmul %248, %145, %cst_82 {dimension_numbers = #tpu.dot_dimension_numbers<[1], [0], [0], [1], [0, 0, 1, 1], [], []>} : vector<8x32xbf16>, vector<32x32xbf16>, vector<8x32xf32> -> vector<8x32xf32>
    %250 = vector.broadcast %146 : vector<1x32xf32> to vector<8x32xf32>
    %251 = arith.addf %249, %250 : vector<8x32xf32>
    %252 = vector.shape_cast %251 : vector<8x32xf32> to vector<1x8x32xf32>
    %253 = arith.addf %252, %140 : vector<1x8x32xf32>
    %c0_83 = arith.constant 0 : index
    %c0_84 = arith.constant 0 : index
    %254 = vector.load %arg17[%c0_83, %c0_84] : memref<1x32xf32, #tpu.memory_space<vmem>>, vector<1x32xf32>
    %255 = vector.shape_cast %254 : vector<1x32xf32> to vector<1x1x32xf32>
    %c0_85 = arith.constant 0 : index
    %c0_86 = arith.constant 0 : index
    %256 = vector.load %arg18[%c0_85, %c0_86] : memref<1x32xf32, #tpu.memory_space<vmem>>, vector<1x32xf32>
    %257 = vector.shape_cast %256 : vector<1x32xf32> to vector<1x1x32xf32>
    %cst_87 = arith.constant dense<0.000000e+00> : vector<1x8xf32>
    %258 = vector.multi_reduction <add>, %253, %cst_87 [2] : vector<1x8x32xf32> to vector<1x8xf32>
    %259 = vector.shape_cast %258 : vector<1x8xf32> to vector<1x8x1xf32>
    %cst_88 = arith.constant 3.200000e+01 : f32
    %260 = vector.broadcast %cst_88 : f32 to vector<1x8x1xf32>
    %261 = arith.divf %259, %260 : vector<1x8x1xf32>
    %262 = vector.broadcast %261 : vector<1x8x1xf32> to vector<1x8x32xf32>
    %263 = arith.subf %253, %262 : vector<1x8x32xf32>
    %264 = arith.mulf %263, %263 : vector<1x8x32xf32>
    %cst_89 = arith.constant dense<0.000000e+00> : vector<1x8xf32>
    %265 = vector.multi_reduction <add>, %264, %cst_89 [2] : vector<1x8x32xf32> to vector<1x8xf32>
    %266 = vector.shape_cast %265 : vector<1x8xf32> to vector<1x8x1xf32>
    %cst_90 = arith.constant 3.200000e+01 : f32
    %267 = vector.broadcast %cst_90 : f32 to vector<1x8x1xf32>
    %268 = arith.divf %266, %267 : vector<1x8x1xf32>
    %269 = vector.broadcast %261 : vector<1x8x1xf32> to vector<1x8x32xf32>
    %270 = arith.subf %253, %269 : vector<1x8x32xf32>
    %cst_91 = arith.constant 9.99999974E-6 : f32
    %271 = vector.broadcast %cst_91 : f32 to vector<1x8x1xf32>
    %272 = arith.addf %268, %271 : vector<1x8x1xf32>
    %273 = math.rsqrt %272 : vector<1x8x1xf32>
    %274 = vector.broadcast %273 : vector<1x8x1xf32> to vector<1x8x32xf32>
    %275 = arith.mulf %270, %274 : vector<1x8x32xf32>
    %276 = vector.broadcast %255 : vector<1x1x32xf32> to vector<1x8x32xf32>
    %277 = arith.mulf %275, %276 : vector<1x8x32xf32>
    %278 = vector.broadcast %257 : vector<1x1x32xf32> to vector<1x8x32xf32>
    %279 = arith.addf %277, %278 : vector<1x8x32xf32>
    %280 = vector.shape_cast %279 : vector<1x8x32xf32> to vector<8x32xf32>
    %281 = arith.truncf %280 : vector<8x32xf32> to vector<8x32xbf16>
    %c0_92 = arith.constant 0 : index
    %c0_93 = arith.constant 0 : index
    %282 = vector.load %arg19[%c0_92, %c0_93] : memref<32x128xbf16, #tpu.memory_space<vmem>>, vector<32x128xbf16>
    %cst_94 = arith.constant dense<0.000000e+00> : vector<8x128xf32>
    %283 = tpu.matmul %281, %282, %cst_94 {dimension_numbers = #tpu.dot_dimension_numbers<[1], [0], [0], [1], [0, 0, 1, 1], [], []>} : vector<8x32xbf16>, vector<32x128xbf16>, vector<8x128xf32> -> vector<8x128xf32>
    %c0_95 = arith.constant 0 : index
    %c0_96 = arith.constant 0 : index
    %284 = vector.load %arg20[%c0_95, %c0_96] : memref<1x128xf32, #tpu.memory_space<vmem>>, vector<1x128xf32>
    %285 = vector.broadcast %284 : vector<1x128xf32> to vector<8x128xf32>
    %286 = arith.addf %283, %285 : vector<8x128xf32>
    %cst_97 = arith.constant 5.000000e-01 : f32
    %287 = vector.broadcast %cst_97 : f32 to vector<8x128xf32>
    %288 = arith.mulf %287, %286 : vector<8x128xf32>
    %cst_98 = arith.constant 4.471500e-02 : f32
    %289 = vector.broadcast %cst_98 : f32 to vector<8x128xf32>
    %290 = arith.mulf %289, %286 : vector<8x128xf32>
    %291 = arith.mulf %290, %286 : vector<8x128xf32>
    %292 = arith.mulf %291, %286 : vector<8x128xf32>
    %293 = arith.addf %286, %292 : vector<8x128xf32>
    %cst_99 = arith.constant 0.797884583 : f32
    %294 = vector.broadcast %cst_99 : f32 to vector<8x128xf32>
    %295 = arith.mulf %294, %293 : vector<8x128xf32>
    %296 = math.tanh %295 : vector<8x128xf32>
    %cst_100 = arith.constant 1.000000e+00 : f32
    %297 = vector.broadcast %cst_100 : f32 to vector<8x128xf32>
    %298 = arith.addf %297, %296 : vector<8x128xf32>
    %299 = arith.mulf %288, %298 : vector<8x128xf32>
    %300 = arith.truncf %299 : vector<8x128xf32> to vector<8x128xbf16>
    %c0_101 = arith.constant 0 : index
    %c0_102 = arith.constant 0 : index
    %301 = vector.load %arg21[%c0_101, %c0_102] : memref<128x32xbf16, #tpu.memory_space<vmem>>, vector<128x32xbf16>
    %cst_103 = arith.constant dense<0.000000e+00> : vector<8x32xf32>
    %302 = tpu.matmul %300, %301, %cst_103 {dimension_numbers = #tpu.dot_dimension_numbers<[1], [0], [0], [1], [0, 0, 1, 1], [], []>} : vector<8x128xbf16>, vector<128x32xbf16>, vector<8x32xf32> -> vector<8x32xf32>
    %c0_104 = arith.constant 0 : index
    %c0_105 = arith.constant 0 : index
    %303 = vector.load %arg22[%c0_104, %c0_105] : memref<1x32xf32, #tpu.memory_space<vmem>>, vector<1x32xf32>
    %304 = vector.broadcast %303 : vector<1x32xf32> to vector<8x32xf32>
    %305 = arith.addf %302, %304 : vector<8x32xf32>
    %306 = vector.shape_cast %305 : vector<8x32xf32> to vector<1x8x32xf32>
    %307 = arith.addf %306, %279 : vector<1x8x32xf32>
    %c0_106 = arith.constant 0 : index
    %c0_107 = arith.constant 0 : index
    %308 = vector.load %arg23[%c0_106, %c0_107] : memref<1x32xf32, #tpu.memory_space<vmem>>, vector<1x32xf32>
    %309 = vector.shape_cast %308 : vector<1x32xf32> to vector<1x1x32xf32>
    %c0_108 = arith.constant 0 : index
    %c0_109 = arith.constant 0 : index
    %310 = vector.load %arg24[%c0_108, %c0_109] : memref<1x32xf32, #tpu.memory_space<vmem>>, vector<1x32xf32>
    %311 = vector.shape_cast %310 : vector<1x32xf32> to vector<1x1x32xf32>
    %cst_110 = arith.constant dense<0.000000e+00> : vector<1x8xf32>
    %312 = vector.multi_reduction <add>, %307, %cst_110 [2] : vector<1x8x32xf32> to vector<1x8xf32>
    %313 = vector.shape_cast %312 : vector<1x8xf32> to vector<1x8x1xf32>
    %cst_111 = arith.constant 3.200000e+01 : f32
    %314 = vector.broadcast %cst_111 : f32 to vector<1x8x1xf32>
    %315 = arith.divf %313, %314 : vector<1x8x1xf32>
    %316 = vector.broadcast %315 : vector<1x8x1xf32> to vector<1x8x32xf32>
    %317 = arith.subf %307, %316 : vector<1x8x32xf32>
    %318 = arith.mulf %317, %317 : vector<1x8x32xf32>
    %cst_112 = arith.constant dense<0.000000e+00> : vector<1x8xf32>
    %319 = vector.multi_reduction <add>, %318, %cst_112 [2] : vector<1x8x32xf32> to vector<1x8xf32>
    %320 = vector.shape_cast %319 : vector<1x8xf32> to vector<1x8x1xf32>
    %cst_113 = arith.constant 3.200000e+01 : f32
    %321 = vector.broadcast %cst_113 : f32 to vector<1x8x1xf32>
    %322 = arith.divf %320, %321 : vector<1x8x1xf32>
    %323 = vector.broadcast %315 : vector<1x8x1xf32> to vector<1x8x32xf32>
    %324 = arith.subf %307, %323 : vector<1x8x32xf32>
    %cst_114 = arith.constant 9.99999974E-6 : f32
    %325 = vector.broadcast %cst_114 : f32 to vector<1x8x1xf32>
    %326 = arith.addf %322, %325 : vector<1x8x1xf32>
    %327 = math.rsqrt %326 : vector<1x8x1xf32>
    %328 = vector.broadcast %327 : vector<1x8x1xf32> to vector<1x8x32xf32>
    %329 = arith.mulf %324, %328 : vector<1x8x32xf32>
    %330 = vector.broadcast %309 : vector<1x1x32xf32> to vector<1x8x32xf32>
    %331 = arith.mulf %329, %330 : vector<1x8x32xf32>
    %332 = vector.broadcast %311 : vector<1x1x32xf32> to vector<1x8x32xf32>
    %333 = arith.addf %331, %332 : vector<1x8x32xf32>
    %c0_115 = arith.constant 0 : index
    %c0_116 = arith.constant 0 : index
    %c0_117 = arith.constant 0 : index
    %334 = vector.load %arg25[%c0_115, %c0_116, %c0_117] : memref<1x8x32xf32, #tpu.memory_space<vmem>>, vector<1x8x32xf32>
    tpu.vector_store %arg25[%c0_115, %c0_116, %c0_117], %333 {strides = array<i32>} : memref<1x8x32xf32, #tpu.memory_space<vmem>>, vector<1x8x32xf32>,
    return
  }
  func.func @transform_0(%arg0: i32) -> (i32, i32, i32) {
    %c0_i32 = arith.constant 0 : i32
    %c0_i32_0 = arith.constant 0 : i32
    %c0_i32_1 = arith.constant 0 : i32
    return %arg0, %c0_i32, %c0_i32_0 : i32, i32, i32
  }
  func.func @transform_1(%arg0: i32) -> (i32, i32, i32) {
    %c0_i32 = arith.constant 0 : i32
    %c0_i32_0 = arith.constant 0 : i32
    %c0_i32_1 = arith.constant 0 : i32
    return %arg0, %c0_i32, %c0_i32_0 : i32, i32, i32
  }
  func.func @transform_2(%arg0: i32) -> (i32, i32) {
    %c0_i32 = arith.constant 0 : i32
    %c0_i32_0 = arith.constant 0 : i32
    %c0_i32_1 = arith.constant 0 : i32
    return %c0_i32, %c0_i32_0 : i32, i32
  }
  func.func @transform_3(%arg0: i32) -> (i32, i32) {
    %c0_i32 = arith.constant 0 : i32
    %c0_i32_0 = arith.constant 0 : i32
    %c0_i32_1 = arith.constant 0 : i32
    return %c0_i32, %c0_i32_0 : i32, i32
  }
  func.func @transform_4(%arg0: i32) -> (i32, i32) {
    %c0_i32 = arith.constant 0 : i32
    %c0_i32_0 = arith.constant 0 : i32
    %c0_i32_1 = arith.constant 0 : i32
    return %c0_i32, %c0_i32_0 : i32, i32
  }
  func.func @transform_5(%arg0: i32) -> (i32, i32) {
    %c0_i32 = arith.constant 0 : i32
    %c0_i32_0 = arith.constant 0 : i32
    %c0_i32_1 = arith.constant 0 : i32
    return %c0_i32, %c0_i32_0 : i32, i32
  }
  func.func @transform_6(%arg0: i32) -> (i32, i32) {
    %c0_i32 = arith.constant 0 : i32
    %c0_i32_0 = arith.constant 0 : i32
    %c0_i32_1 = arith.constant 0 : i32
    return %c0_i32, %c0_i32_0 : i32, i32
  }
  func.func @transform_7(%arg0: i32) -> (i32, i32) {
    %c0_i32 = arith.constant 0 : i32
    %c0_i32_0 = arith.constant 0 : i32
    %c0_i32_1 = arith.constant 0 : i32
    return %c0_i32, %c0_i32_0 : i32, i32
  }
  func.func @transform_8(%arg0: i32) -> (i32, i32) {
    %c0_i32 = arith.constant 0 : i32
    %c0_i32_0 = arith.constant 0 : i32
    %c0_i32_1 = arith.constant 0 : i32
    return %c0_i32, %c0_i32_0 : i32, i32
  }
  func.func @transform_9(%arg0: i32) -> (i32, i32) {
    %c0_i32 = arith.constant 0 : i32
    %c0_i32_0 = arith.constant 0 : i32
    %c0_i32_1 = arith.constant 0 : i32
    return %c0_i32, %c0_i32_0 : i32, i32
  }
  func.func @transform_10(%arg0: i32) -> (i32, i32) {
    %c0_i32 = arith.constant 0 : i32
    %c0_i32_0 = arith.constant 0 : i32
    %c0_i32_1 = arith.constant 0 : i32
    return %c0_i32, %c0_i32_0 : i32, i32
  }
  func.func @transform_11(%arg0: i32) -> (i32, i32) {
    %c0_i32 = arith.constant 0 : i32
    %c0_i32_0 = arith.constant 0 : i32
    %c0_i32_1 = arith.constant 0 : i32
    return %c0_i32, %c0_i32_0 : i32, i32
  }
  func.func @transform_12(%arg0: i32) -> (i32, i32) {
    %c0_i32 = arith.constant 0 : i32
    %c0_i32_0 = arith.constant 0 : i32
    %c0_i32_1 = arith.constant 0 : i32
    return %c0_i32, %c0_i32_0 : i32, i32
  }
  func.func @transform_13(%arg0: i32) -> (i32, i32) {
    %c0_i32 = arith.constant 0 : i32
    %c0_i32_0 = arith.constant 0 : i32
    %c0_i32_1 = arith.constant 0 : i32
    return %c0_i32, %c0_i32_0 : i32, i32
  }
  func.func @transform_14(%arg0: i32) -> (i32, i32) {
    %c0_i32 = arith.constant 0 : i32
    %c0_i32_0 = arith.constant 0 : i32
    %c0_i32_1 = arith.constant 0 : i32
    return %c0_i32, %c0_i32_0 : i32, i32
  }
  func.func @transform_15(%arg0: i32) -> (i32, i32) {
    %c0_i32 = arith.constant 0 : i32
    %c0_i32_0 = arith.constant 0 : i32
    %c0_i32_1 = arith.constant 0 : i32
    return %c0_i32, %c0_i32_0 : i32, i32
  }
  func.func @transform_16(%arg0: i32) -> (i32, i32) {
    %c0_i32 = arith.constant 0 : i32
    %c0_i32_0 = arith.constant 0 : i32
    %c0_i32_1 = arith.constant 0 : i32
    return %c0_i32, %c0_i32_0 : i32, i32
  }
  func.func @transform_17(%arg0: i32) -> (i32, i32) {
    %c0_i32 = arith.constant 0 : i32
    %c0_i32_0 = arith.constant 0 : i32
    %c0_i32_1 = arith.constant 0 : i32
    return %c0_i32, %c0_i32_0 : i32, i32
  }
  func.func @transform_18(%arg0: i32) -> (i32, i32) {
    %c0_i32 = arith.constant 0 : i32
    %c0_i32_0 = arith.constant 0 : i32
    %c0_i32_1 = arith.constant 0 : i32
    return %c0_i32, %c0_i32_0 : i32, i32
  }
  func.func @transform_19(%arg0: i32) -> (i32, i32) {
    %c0_i32 = arith.constant 0 : i32
    %c0_i32_0 = arith.constant 0 : i32
    %c0_i32_1 = arith.constant 0 : i32
    return %c0_i32, %c0_i32_0 : i32, i32
  }
  func.func @transform_20(%arg0: i32) -> (i32, i32) {
    %c0_i32 = arith.constant 0 : i32
    %c0_i32_0 = arith.constant 0 : i32
    %c0_i32_1 = arith.constant 0 : i32
    return %c0_i32, %c0_i32_0 : i32, i32
  }
  func.func @transform_21(%arg0: i32) -> (i32, i32) {
    %c0_i32 = arith.constant 0 : i32
    %c0_i32_0 = arith.constant 0 : i32
    %c0_i32_1 = arith.constant 0 : i32
    return %c0_i32, %c0_i32_0 : i32, i32
  }
  func.func @transform_22(%arg0: i32) -> (i32, i32) {
    %c0_i32 = arith.constant 0 : i32
    %c0_i32_0 = arith.constant 0 : i32
    %c0_i32_1 = arith.constant 0 : i32
    return %c0_i32, %c0_i32_0 : i32, i32
  }
  func.func @transform_23(%arg0: i32) -> (i32, i32) {
    %c0_i32 = arith.constant 0 : i32
    %c0_i32_0 = arith.constant 0 : i32
    %c0_i32_1 = arith.constant 0 : i32
    return %c0_i32, %c0_i32_0 : i32, i32
  }
  func.func @transform_24(%arg0: i32) -> (i32, i32, i32) {
    %c0_i32 = arith.constant 0 : i32
    %c0_i32_0 = arith.constant 0 : i32
    %c0_i32_1 = arith.constant 0 : i32
    return %arg0, %c0_i32, %c0_i32_0 : i32, i32, i32
  }
}

</mosaic_0001>

<llo_original>
// kernel: decoder_forward.5
$region0: #{decoder_forward.5}
  #allocation0 [shape = 'u32[]', space=smem, size = 0x4, offset = 0x4, fixed_abs, tag = 'smem constant byte address 0x4 - core index']
  #allocation1 [shape = 'u32[144,128]{1,0:T(1,128)}', space=vmem, size = 0x12000, scoped, tag = 'internal scratch']
  %s0 = inlined_call_operand.vmem [shape: f32[16,32], index: 0, kind: input, shape index: {}]
  %s1 = inlined_call_operand.vmem [shape: bf16[32,64], index: 1, kind: input, shape index: {}]
  %s2 = inlined_call_operand.vmem [shape: f32[1,64], index: 2, kind: input, shape index: {}]
  %s3 = inlined_call_operand.hbm [shape: f32[16,64], index: 3, kind: output, shape index: {}]
  %s4 = sld [smem:[#allocation0]]
  $region22: #{decoder_forward.5} parent=0
    _
  %s6 = ssub.s32 1, %s4
  %s7 = scalar_select 0, %s6, %s4
  $region1: #{decoder_forward.5} parent=0
    #allocation2 [shape = 'u8[8192]{0}', space=vmem, size = 0x2000, scoped, tag = 'output window, operand 0, single buffered']
    #allocation3 [shape = 's32[1]{0}', space=sflag, size = 0x4, scoped, tag = 'scoped memory for decoder_forward.5']
    %8 = vsyncpa [#allocation3], 0
    // Predicated region
    $region2: #{decoder_forward.5} parent=1 // pred_check
      _
    $region3: #{decoder_forward.5} parent=1 // pred_check_branch
      %10 = sbr.rel (0) target = $region5
    $region4: #{decoder_forward.5} parent=1 // pred_region
      _
    $region5: #{decoder_forward.5} parent=1 // pred_fallthru
      _
    // Predicated region
    $region6: #{decoder_forward.5} parent=1 // pred_check
      _
    $region7: #{decoder_forward.5} parent=1 // pred_check_branch
      %12 = sbr.rel (0) target = $region9
    $region8: #{decoder_forward.5} parent=1 // pred_region
      _
    $region9: #{decoder_forward.5} parent=1 // pred_fallthru
      _
    // Predicated region
    $region10: #{decoder_forward.5} parent=1 // pred_check
      _
    $region11: #{decoder_forward.5} parent=1 // pred_check_branch
      %14 = sbr.rel (0) target = $region13
    $region12: #{decoder_forward.5} parent=1 // pred_region
      _
    $region13: #{decoder_forward.5} parent=1 // pred_fallthru
      _
    %v16 = vld [vmem:[%s0] sm:$0xff]
    %v17 = vld [vmem:[%s0 + $0x8] sm:$0xff]
    %v18 = vpack.c.bf16 %v17, %v16
    %v19 = vld [vmem:[%s1] sm:$0xf]
    %v20 = vld [vmem:[%s1 + $0x4] sm:$0xf]
    %v21 = vld [vmem:[%s1 + $0x8] sm:$0xf]
    %v22 = vld [vmem:[%s1 + $0xc] sm:$0xf]
    %v23 = vld [vmem:[%s2] sm:$0x1]
    %v25 = vlaneseq
    %v26 = vshrl.u32 %v25, 7
    %v27 = vsub.s32 0, %v26
    %v28 = vrot.slane %v23, %v27
    %v34 = vunpack.c.l.b16 %v19
    %v35 = vunpack.c.l.b16 %v20
    %v36 = vunpack.c.l.b16 %v21
    %v37 = vunpack.c.l.b16 %v22
    %v38 = vpack.c.b16 %v35, %v34
    %v39 = vpack.c.b16 %v37, %v36
    %vm42 = vcmask 261120
    %v44 = vsel %vm42, %v18, 0
    %46 = vmatprep.subr.bf16.mxu0 0
    %47 = vmatpush1.bf16.msra.mxu0 %v38
    %48 = vmatprep.subr.bf16.mxu0 0
    %49 = vmatpush1.bf16.msra.mxu0 %v39
    %50 = vmatprep.subr.bf16.mxu0 0
    %51 = vmatpush1.bf16.msra.mxu0 0
    %52 = vmatprep.subr.bf16.mxu0 0
    %53 = vmatpush1.bf16.msra.mxu0 0
    %54 = vmatprep.subr.bf16.mxu0 0
    %55 = vmatpush1.bf16.msra.mxu0 0
    %56 = vmatprep.subr.bf16.mxu0 0
    %57 = vmatpush1.bf16.msra.mxu0 0
    %58 = vmatprep.subr.bf16.mxu0 0
    %59 = vmatpush1.bf16.msra.mxu0 0
    %60 = vmatprep.subr.bf16.mxu0 0
    %61 = vmatpush1.bf16.msra.mxu0 0
    %62 = vmatprep.subr.bf16.mxu0 0
    %63 = vmatpush1.bf16.msra.mxu0 0
    %64 = vmatprep.subr.bf16.mxu0 0
    %65 = vmatpush1.bf16.msra.mxu0 0
    %66 = vmatprep.subr.bf16.mxu0 0
    %67 = vmatpush1.bf16.msra.mxu0 0
    %68 = vmatprep.subr.bf16.mxu0 0
    %69 = vmatpush1.bf16.msra.mxu0 0
    %70 = vmatprep.subr.bf16.mxu0 0
    %71 = vmatpush1.bf16.msra.mxu0 0
    %72 = vmatprep.subr.bf16.mxu0 0
    %73 = vmatpush1.bf16.msra.mxu0 0
    %74 = vmatprep.subr.bf16.mxu0 0
    %75 = vmatpush1.bf16.msra.mxu0 0
    %76 = vmatprep.subr.bf16.mxu0 0
    %77 = vmatpush1.bf16.msra.mxu0 0
    %78 = vmatprep.mubr.bf16.mxu0 0
    %79 = vmatmul.mubr.bf16.gmra.mrb[0].mxu0 %v44
    %v80 = vpop.f32.mrb[0].mxu0
    %v81 = vadd.f32 %v28, %v80
    %v82 = vpop.f32.mrb[0].mxu0
    %v83 = vpop.f32.mrb[0].mxu0
    %v84 = vadd.f32 %v28, %v83
    %v85 = vpop.f32.mrb[0].mxu0
    %86 = vdwg.mxu0
    %vm87 = vcmask 523264
    %88 = vst.msk [vmem:[#allocation2] sm:$0xff] %vm87, %v81
    %89 = vst.msk [vmem:[#allocation2 + $0x8] sm:$0xff] %vm87, %v84
    // Predicated region
    $region14: #{decoder_forward.5} parent=1 // pred_check
      _
    $region15: #{decoder_forward.5} parent=1 // pred_check_branch
      %91 = sbr.rel (0) target = $region17
    $region16: #{decoder_forward.5} parent=1 // pred_region
      %s93 = ssub.s32 256, 256
      %94 = vsyncadd [#allocation3], %s93
      %s95 = sshll.u32 [#allocation2], 4
      %s96 = int_to_ptr.vmem [resolvable:$true] %s95
      %101 = dma.vmem_to_hbm [thread:$0]  %s96, 256, %s3, [#allocation3], 128, 128, 8
    $region17: #{decoder_forward.5} parent=1 // pred_fallthru
      _
    // Predicated region
    $region18: #{decoder_forward.5} parent=1 // pred_check
      _
    $region19: #{decoder_forward.5} parent=1 // pred_check_branch
      %103 = sbr.rel (0) target = $region21
    $region20: #{decoder_forward.5} parent=1 // pred_region
      %104 = dma.done [#allocation3], 256
    $region21: #{decoder_forward.5} parent=1 // pred_fallthru
      _
    %105 = vsyncpa [#allocation3], 1

// kernel: decoder_forward.4
$region0: #{decoder_forward.4}
  #allocation0 [shape = 'u32[]', space=smem, size = 0x4, offset = 0x4, fixed_abs, tag = 'smem constant byte address 0x4 - core index']
  #allocation1 [shape = 'u32[144,128]{1,0:T(1,128)}', space=vmem, size = 0x12000, scoped, tag = 'internal scratch']
  %s0 = inlined_call_operand.vmem [shape: f32[2,8,32], index: 0, kind: input, shape index: {}]
  %s1 = inlined_call_operand.vmem [shape: f32[2,8,32], index: 1, kind: input, shape index: {}]
  %s2 = inlined_call_operand.vmem [shape: bf16[32,32], index: 2, kind: input, shape index: {}]
  %s3 = inlined_call_operand.vmem [shape: f32[1,32], index: 3, kind: input, shape index: {}]
  %s4 = inlined_call_operand.vmem [shape: bf16[32,64], index: 4, kind: input, shape index: {}]
  %s5 = inlined_call_operand.vmem [shape: f32[1,64], index: 5, kind: input, shape index: {}]
  %s6 = inlined_call_operand.vmem [shape: bf16[32,32], index: 6, kind: input, shape index: {}]
  %s7 = inlined_call_operand.vmem [shape: f32[1,32], index: 7, kind: input, shape index: {}]
  %s8 = inlined_call_operand.vmem [shape: f32[1,32], index: 8, kind: input, shape index: {}]
  %s9 = inlined_call_operand.vmem [shape: f32[1,32], index: 9, kind: input, shape index: {}]
  %s10 = inlined_call_operand.vmem [shape: bf16[32,32], index: 10, kind: input, shape index: {}]
  %s11 = inlined_call_operand.vmem [shape: f32[1,32], index: 11, kind: input, shape index: {}]
  %s12 = inlined_call_operand.vmem [shape: bf16[32,64], index: 12, kind: input, shape index: {}]
  %s13 = inlined_call_operand.vmem [shape: f32[1,64], index: 13, kind: input, shape index: {}]
  %s14 = inlined_call_operand.vmem [shape: bf16[32,32], index: 14, kind: input, shape index: {}]
  %s15 = inlined_call_operand.vmem [shape: f32[1,32], index: 15, kind: input, shape index: {}]
  %s16 = inlined_call_operand.hbm [shape: f32[1,32], index: 16, kind: input, shape index: {}]
  %s17 = inlined_call_operand.hbm [shape: f32[1,32], index: 17, kind: input, shape index: {}]
  %s18 = inlined_call_operand.vmem [shape: bf16[32,128], index: 18, kind: input, shape index: {}]
  %s19 = inlined_call_operand.hbm [shape: f32[1,128], index: 19, kind: input, shape index: {}]
  %s20 = inlined_call_operand.vmem [shape: bf16[128,32], index: 20, kind: input, shape index: {}]
  %s21 = inlined_call_operand.hbm [shape: f32[1,32], index: 21, kind: input, shape index: {}]
  %s22 = inlined_call_operand.hbm [shape: f32[1,32], index: 22, kind: input, shape index: {}]
  %s23 = inlined_call_operand.hbm [shape: f32[1,32], index: 23, kind: input, shape index: {}]
  %s24 = inlined_call_operand.vmem [shape: f32[2,8,32], index: 24, kind: output, shape index: {}]
  %s25 = sld [smem:[#allocation0]]
  $region153: #{decoder_forward.4} parent=0
    _
  %s27 = ssub.s32 1, %s25
  %s28 = scalar_select 0, %s27, %s25
  $region1: #{decoder_forward.4} parent=0
    #allocation2 [shape = 'u8[512]{0}', space=vmem, size = 0x400, scoped, tag = 'input window, operand 16, single buffered']
    #allocation3 [shape = 's32[2]{0}', space=sflag, size = 0x8, scoped, tag = 'scoped memory for decoder_forward.4']
    #allocation4 [shape = 'u8[512]{0}', space=vmem, size = 0x400, scoped, tag = 'input window, operand 17, single buffered']
    #allocation5 [shape = 's32[1]{0}', space=sflag, size = 0x4, scoped, tag = 'scoped memory for decoder_forward.4']
    #allocation6 [shape = 'u8[512]{0}', space=vmem, size = 0x400, scoped, tag = 'input window, operand 19, single buffered']
    #allocation7 [shape = 'u8[512]{0}', space=vmem, size = 0x400, scoped, tag = 'input window, operand 21, single buffered']
    #allocation8 [shape = 's32[1]{0}', space=sflag, size = 0x4, scoped, tag = 'scoped memory for decoder_forward.4']
    #allocation9 [shape = 'u8[512]{0}', space=vmem, size = 0x400, scoped, tag = 'input window, operand 22, single buffered']
    #allocation10 [shape = 'u8[512]{0}', space=vmem, size = 0x400, scoped, tag = 'input window, operand 23, single buffered']
    #allocation11 [shape = 's32[1]{0}', space=sflag, size = 0x4, scoped, tag = 'scoped memory for decoder_forward.4']
    %29 = vsyncpa [#allocation3], 0
    %30 = vsyncpa [#allocation5], 0
    %31 = vsyncpa [#allocation8], 0
    %32 = vsyncpa [#allocation11], 0
    loop: start=0, step=1, limit=4
    $region2: #{decoder_forward.4} parent=1 // loop_pre_header
      _
    $region3: #{decoder_forward.4} parent=1 // loop_header
      %s34 = sphi 0, %s38
      %p35 = scmp.ge.s32.totalorder %s34, 4
      %s44 = sphi 0, %s46
      %s47 = sphi 0, %s44
      %s48 = sphi 0, %s47
      %s64 = sphi 0, %s48
      %s70 = sphi 0, %s72
      %s73 = sphi 0, %s70
      %s74 = sphi 0, %s73
      %s90 = sphi 0, %s74
      %s94 = sphi 0, %s94
      %s96 = sphi 0, %s94
      %s97 = sphi 0, %s96
      %s111 = sphi 0, %s97
      %s115 = sphi 0, %s115
      %s117 = sphi 0, %s115
      %s118 = sphi 0, %s117
      %s132 = sphi 0, %s118
      %s136 = sphi 0, %s136
      %s138 = sphi 0, %s136
      %s139 = sphi 0, %s138
      %s153 = sphi 0, %s139
      %s157 = sphi 0, %s157
      %s159 = sphi 0, %s157
      %s160 = sphi 0, %s159
      %s174 = sphi 0, %s160
      %s178 = sphi 0, %s178
      %s180 = sphi 0, %s178
      %s181 = sphi 0, %s180
      %s195 = sphi 0, %s181
      %s199 = sphi 0, %s199
      %s201 = sphi 0, %s199
      %s202 = sphi 0, %s201
      %s216 = sphi 0, %s202
      %s220 = sphi 0, %s220
      %s222 = sphi 0, %s220
      %s223 = sphi 0, %s222
      %s237 = sphi 0, %s223
      %s241 = sphi 0, %s241
      %s243 = sphi 0, %s241
      %s244 = sphi 0, %s243
      %s258 = sphi 0, %s244
      %s262 = sphi 0, %s262
      %s264 = sphi 0, %s262
      %s265 = sphi 0, %s264
      %s279 = sphi 0, %s265
      %s283 = sphi 0, %s283
      %s285 = sphi 0, %s283
      %s286 = sphi 0, %s285
      %s300 = sphi 0, %s286
      %s304 = sphi 0, %s304
      %s306 = sphi 0, %s304
      %s307 = sphi 0, %s306
      %s321 = sphi 0, %s307
      %s325 = sphi 0, %s325
      %s327 = sphi 0, %s325
      %s328 = sphi 0, %s327
      %s342 = sphi 0, %s328
      %s346 = sphi 0, %s346
      %s348 = sphi 0, %s346
      %s349 = sphi 0, %s348
      %s363 = sphi 0, %s349
      %s367 = sphi 0, %s367
      %s369 = sphi 0, %s367
      %s370 = sphi 0, %s369
      %s384 = sphi 0, %s370
      %s388 = sphi 0, %s388
      %s390 = sphi 0, %s388
      %s391 = sphi 0, %s390
      %s405 = sphi 0, %s391
      %s409 = sphi 0, %s409
      %s411 = sphi 0, %s409
      %s412 = sphi 0, %s411
      %s426 = sphi 0, %s412
      %s430 = sphi 0, %s430
      %s432 = sphi 0, %s430
      %s433 = sphi 0, %s432
      %s447 = sphi 0, %s433
      %s451 = sphi 0, %s451
      %s453 = sphi 0, %s451
      %s454 = sphi 0, %s453
      %s468 = sphi 0, %s454
      %s472 = sphi 0, %s472
      %s474 = sphi 0, %s472
      %s475 = sphi 0, %s474
      %s489 = sphi 0, %s475
      %s493 = sphi 0, %s493
      %s495 = sphi 0, %s493
      %s496 = sphi 0, %s495
      %s510 = sphi 0, %s496
      %s514 = sphi 0, %s514
      %s516 = sphi 0, %s514
      %s517 = sphi 0, %s516
      %s531 = sphi 0, %s517
      %s535 = sphi 0, %s535
      %s537 = sphi 0, %s535
      %s538 = sphi 0, %s537
      %s552 = sphi 0, %s538
      %s558 = sphi 0, %s560
      %s561 = sphi 0, %s558
      %s562 = sphi 0, %s561
      %s578 = sphi 0, %s562
    $region4: #{decoder_forward.4} parent=1 // loop_header_branch
      %37 = sbr.rel (%p35) target = $region8
    $region5: #{decoder_forward.4} parent=1 // loop_body
      %s39 = ssub.s32 %s34, 1
      %s40 = ssub.s32 %s34, 2
      %s41 = sadd.s32 %s34, 1
      %s42 = ssub.s32 %s34, %s41
      %p43 = scmp.eq.s32.totalorder %s42, 0
      %s45 = sadd.s32 %s44, 1
      %s46 = scalar_select %p43, %s44, %s45
      %p49 = pneg %p43
      %p50 = scmp.eq.s32.totalorder %s34, 1
      %p51 = por %p49, %p50
      %p52 = scmp.ne.s32.totalorder %s44, %s47
      %p53 = scmp.eq.s32.totalorder %s34, 0
      %p54 = por %p52, %p53
      %p55 = scmp.ne.s32.totalorder %s44, %s47
      %p56 = scmp.eq.s32.totalorder %s39, 1
      %p57 = por %p55, %p56
      %p58 = scmp.ne.s32.totalorder %s47, %s48
      %p59 = scmp.eq.s32.totalorder %s39, 0
      %p60 = por %p58, %p59
      %p61 = scmp.ne.s32.totalorder %s47, %s48
      %p62 = scmp.eq.s32.totalorder %s40, 1
      %p63 = por %p61, %p62
      %p65 = scmp.ne.s32.totalorder %s48, %s64
      %p66 = scmp.eq.s32.totalorder %s40, 0
      %p67 = por %p65, %p66
      %s68 = ssub.s32 %s34, %s41
      %p69 = scmp.eq.s32.totalorder %s68, 0
      %s71 = sadd.s32 %s70, 1
      %s72 = scalar_select %p69, %s70, %s71
      %p75 = pneg %p69
      %p76 = scmp.eq.s32.totalorder %s34, 1
      %p77 = por %p75, %p76
      %p78 = scmp.ne.s32.totalorder %s70, %s73
      %p79 = scmp.eq.s32.totalorder %s34, 0
      %p80 = por %p78, %p79
      %p81 = scmp.ne.s32.totalorder %s70, %s73
      %p82 = scmp.eq.s32.totalorder %s39, 1
      %p83 = por %p81, %p82
      %p84 = scmp.ne.s32.totalorder %s73, %s74
      %p85 = scmp.eq.s32.totalorder %s39, 0
      %p86 = por %p84, %p85
      %p87 = scmp.ne.s32.totalorder %s73, %s74
      %p88 = scmp.eq.s32.totalorder %s40, 1
      %p89 = por %p87, %p88
      %p91 = scmp.ne.s32.totalorder %s74, %s90
      %p92 = scmp.eq.s32.totalorder %s40, 0
      %p93 = por %p91, %p92
      %s95 = sadd.s32 %s94, 1
      %p98 = scmp.eq.s32.totalorder %s34, 1
      %p99 = scmp.ne.s32.totalorder %s94, %s96
      %p100 = scmp.eq.s32.totalorder %s34, 0
      %p101 = por %p99, %p100
      %p102 = scmp.ne.s32.totalorder %s94, %s96
      %p103 = scmp.eq.s32.totalorder %s39, 1
      %p104 = por %p102, %p103
      %p105 = scmp.ne.s32.totalorder %s96, %s97
      %p106 = scmp.eq.s32.totalorder %s39, 0
      %p107 = por %p105, %p106
      %p108 = scmp.ne.s32.totalorder %s96, %s97
      %p109 = scmp.eq.s32.totalorder %s40, 1
      %p110 = por %p108, %p109
      %p112 = scmp.ne.s32.totalorder %s97, %s111
      %p113 = scmp.eq.s32.totalorder %s40, 0
      %p114 = por %p112, %p113
      %s116 = sadd.s32 %s115, 1
      %p119 = scmp.eq.s32.totalorder %s34, 1
      %p120 = scmp.ne.s32.totalorder %s115, %s117
      %p121 = scmp.eq.s32.totalorder %s34, 0
      %p122 = por %p120, %p121
      %p123 = scmp.ne.s32.totalorder %s115, %s117
      %p124 = scmp.eq.s32.totalorder %s39, 1
      %p125 = por %p123, %p124
      %p126 = scmp.ne.s32.totalorder %s117, %s118
      %p127 = scmp.eq.s32.totalorder %s39, 0
      %p128 = por %p126, %p127
      %p129 = scmp.ne.s32.totalorder %s117, %s118
      %p130 = scmp.eq.s32.totalorder %s40, 1
      %p131 = por %p129, %p130
      %p133 = scmp.ne.s32.totalorder %s118, %s132
      %p134 = scmp.eq.s32.totalorder %s40, 0
      %p135 = por %p133, %p134
      %s137 = sadd.s32 %s136, 1
      %p140 = scmp.eq.s32.totalorder %s34, 1
      %p141 = scmp.ne.s32.totalorder %s136, %s138
      %p142 = scmp.eq.s32.totalorder %s34, 0
      %p143 = por %p141, %p142
      %p144 = scmp.ne.s32.totalorder %s136, %s138
      %p145 = scmp.eq.s32.totalorder %s39, 1
      %p146 = por %p144, %p145
      %p147 = scmp.ne.s32.totalorder %s138, %s139
      %p148 = scmp.eq.s32.totalorder %s39, 0
      %p149 = por %p147, %p148
      %p150 = scmp.ne.s32.totalorder %s138, %s139
      %p151 = scmp.eq.s32.totalorder %s40, 1
      %p152 = por %p150, %p151
      %p154 = scmp.ne.s32.totalorder %s139, %s153
      %p155 = scmp.eq.s32.totalorder %s40, 0
      %p156 = por %p154, %p155
      %s158 = sadd.s32 %s157, 1
      %p161 = scmp.eq.s32.totalorder %s34, 1
      %p162 = scmp.ne.s32.totalorder %s157, %s159
      %p163 = scmp.eq.s32.totalorder %s34, 0
      %p164 = por %p162, %p163
      %p165 = scmp.ne.s32.totalorder %s157, %s159
      %p166 = scmp.eq.s32.totalorder %s39, 1
      %p167 = por %p165, %p166
      %p168 = scmp.ne.s32.totalorder %s159, %s160
      %p169 = scmp.eq.s32.totalorder %s39, 0
      %p170 = por %p168, %p169
      %p171 = scmp.ne.s32.totalorder %s159, %s160
      %p172 = scmp.eq.s32.totalorder %s40, 1
      %p173 = por %p171, %p172
      %p175 = scmp.ne.s32.totalorder %s160, %s174
      %p176 = scmp.eq.s32.totalorder %s40, 0
      %p177 = por %p175, %p176
      %s179 = sadd.s32 %s178, 1
      %p182 = scmp.eq.s32.totalorder %s34, 1
      %p183 = scmp.ne.s32.totalorder %s178, %s180
      %p184 = scmp.eq.s32.totalorder %s34, 0
      %p185 = por %p183, %p184
      %p186 = scmp.ne.s32.totalorder %s178, %s180
      %p187 = scmp.eq.s32.totalorder %s39, 1
      %p188 = por %p186, %p187
      %p189 = scmp.ne.s32.totalorder %s180, %s181
      %p190 = scmp.eq.s32.totalorder %s39, 0
      %p191 = por %p189, %p190
      %p192 = scmp.ne.s32.totalorder %s180, %s181
      %p193 = scmp.eq.s32.totalorder %s40, 1
      %p194 = por %p192, %p193
      %p196 = scmp.ne.s32.totalorder %s181, %s195
      %p197 = scmp.eq.s32.totalorder %s40, 0
      %p198 = por %p196, %p197
      %s200 = sadd.s32 %s199, 1
      %p203 = scmp.eq.s32.totalorder %s34, 1
      %p204 = scmp.ne.s32.totalorder %s199, %s201
      %p205 = scmp.eq.s32.totalorder %s34, 0
      %p206 = por %p204, %p205
      %p207 = scmp.ne.s32.totalorder %s199, %s201
      %p208 = scmp.eq.s32.totalorder %s39, 1
      %p209 = por %p207, %p208
      %p210 = scmp.ne.s32.totalorder %s201, %s202
      %p211 = scmp.eq.s32.totalorder %s39, 0
      %p212 = por %p210, %p211
      %p213 = scmp.ne.s32.totalorder %s201, %s202
      %p214 = scmp.eq.s32.totalorder %s40, 1
      %p215 = por %p213, %p214
      %p217 = scmp.ne.s32.totalorder %s202, %s216
      %p218 = scmp.eq.s32.totalorder %s40, 0
      %p219 = por %p217, %p218
      %s221 = sadd.s32 %s220, 1
      %p224 = scmp.eq.s32.totalorder %s34, 1
      %p225 = scmp.ne.s32.totalorder %s220, %s222
      %p226 = scmp.eq.s32.totalorder %s34, 0
      %p227 = por %p225, %p226
      %p228 = scmp.ne.s32.totalorder %s220, %s222
      %p229 = scmp.eq.s32.totalorder %s39, 1
      %p230 = por %p228, %p229
      %p231 = scmp.ne.s32.totalorder %s222, %s223
      %p232 = scmp.eq.s32.totalorder %s39, 0
      %p233 = por %p231, %p232
      %p234 = scmp.ne.s32.totalorder %s222, %s223
      %p235 = scmp.eq.s32.totalorder %s40, 1
      %p236 = por %p234, %p235
      %p238 = scmp.ne.s32.totalorder %s223, %s237
      %p239 = scmp.eq.s32.totalorder %s40, 0
      %p240 = por %p238, %p239
      %s242 = sadd.s32 %s241, 1
      %p245 = scmp.eq.s32.totalorder %s34, 1
      %p246 = scmp.ne.s32.totalorder %s241, %s243
      %p247 = scmp.eq.s32.totalorder %s34, 0
      %p248 = por %p246, %p247
      %p249 = scmp.ne.s32.totalorder %s241, %s243
      %p250 = scmp.eq.s32.totalorder %s39, 1
      %p251 = por %p249, %p250
      %p252 = scmp.ne.s32.totalorder %s243, %s244
      %p253 = scmp.eq.s32.totalorder %s39, 0
      %p254 = por %p252, %p253
      %p255 = scmp.ne.s32.totalorder %s243, %s244
      %p256 = scmp.eq.s32.totalorder %s40, 1
      %p257 = por %p255, %p256
      %p259 = scmp.ne.s32.totalorder %s244, %s258
      %p260 = scmp.eq.s32.totalorder %s40, 0
      %p261 = por %p259, %p260
      %s263 = sadd.s32 %s262, 1
      %p266 = scmp.eq.s32.totalorder %s34, 1
      %p267 = scmp.ne.s32.totalorder %s262, %s264
      %p268 = scmp.eq.s32.totalorder %s34, 0
      %p269 = por %p267, %p268
      %p270 = scmp.ne.s32.totalorder %s262, %s264
      %p271 = scmp.eq.s32.totalorder %s39, 1
      %p272 = por %p270, %p271
      %p273 = scmp.ne.s32.totalorder %s264, %s265
      %p274 = scmp.eq.s32.totalorder %s39, 0
      %p275 = por %p273, %p274
      %p276 = scmp.ne.s32.totalorder %s264, %s265
      %p277 = scmp.eq.s32.totalorder %s40, 1
      %p278 = por %p276, %p277
      %p280 = scmp.ne.s32.totalorder %s265, %s279
      %p281 = scmp.eq.s32.totalorder %s40, 0
      %p282 = por %p280, %p281
      %s284 = sadd.s32 %s283, 1
      %p287 = scmp.eq.s32.totalorder %s34, 1
      %p288 = scmp.ne.s32.totalorder %s283, %s285
      %p289 = scmp.eq.s32.totalorder %s34, 0
      %p290 = por %p288, %p289
      %p291 = scmp.ne.s32.totalorder %s283, %s285
      %p292 = scmp.eq.s32.totalorder %s39, 1
      %p293 = por %p291, %p292
      %p294 = scmp.ne.s32.totalorder %s285, %s286
      %p295 = scmp.eq.s32.totalorder %s39, 0
      %p296 = por %p294, %p295
      %p297 = scmp.ne.s32.totalorder %s285, %s286
      %p298 = scmp.eq.s32.totalorder %s40, 1
      %p299 = por %p297, %p298
      %p301 = scmp.ne.s32.totalorder %s286, %s300
      %p302 = scmp.eq.s32.totalorder %s40, 0
      %p303 = por %p301, %p302
      %s305 = sadd.s32 %s304, 1
      %p308 = scmp.eq.s32.totalorder %s34, 1
      %p309 = scmp.ne.s32.totalorder %s304, %s306
      %p310 = scmp.eq.s32.totalorder %s34, 0
      %p311 = por %p309, %p310
      %p312 = scmp.ne.s32.totalorder %s304, %s306
      %p313 = scmp.eq.s32.totalorder %s39, 1
      %p314 = por %p312, %p313
      %p315 = scmp.ne.s32.totalorder %s306, %s307
      %p316 = scmp.eq.s32.totalorder %s39, 0
      %p317 = por %p315, %p316
      %p318 = scmp.ne.s32.totalorder %s306, %s307
      %p319 = scmp.eq.s32.totalorder %s40, 1
      %p320 = por %p318, %p319
      %p322 = scmp.ne.s32.totalorder %s307, %s321
      %p323 = scmp.eq.s32.totalorder %s40, 0
      %p324 = por %p322, %p323
      %s326 = sadd.s32 %s325, 1
      %p329 = scmp.eq.s32.totalorder %s34, 1
      %p330 = scmp.ne.s32.totalorder %s325, %s327
      %p331 = scmp.eq.s32.totalorder %s34, 0
      %p332 = por %p330, %p331
      %p333 = scmp.ne.s32.totalorder %s325, %s327
      %p334 = scmp.eq.s32.totalorder %s39, 1
      %p335 = por %p333, %p334
      %p336 = scmp.ne.s32.totalorder %s327, %s328
      %p337 = scmp.eq.s32.totalorder %s39, 0
      %p338 = por %p336, %p337
      %p339 = scmp.ne.s32.totalorder %s327, %s328
      %p340 = scmp.eq.s32.totalorder %s40, 1
      %p341 = por %p339, %p340
      %p343 = scmp.ne.s32.totalorder %s328, %s342
      %p344 = scmp.eq.s32.totalorder %s40, 0
      %p345 = por %p343, %p344
      %s347 = sadd.s32 %s346, 1
      %p350 = scmp.eq.s32.totalorder %s34, 1
      %p351 = scmp.ne.s32.totalorder %s346, %s348
      %p352 = scmp.eq.s32.totalorder %s34, 0
      %p353 = por %p351, %p352
      %p354 = scmp.ne.s32.totalorder %s346, %s348
      %p355 = scmp.eq.s32.totalorder %s39, 1
      %p356 = por %p354, %p355
      %p357 = scmp.ne.s32.totalorder %s348, %s349
      %p358 = scmp.eq.s32.totalorder %s39, 0
      %p359 = por %p357, %p358
      %p360 = scmp.ne.s32.totalorder %s348, %s349
      %p361 = scmp.eq.s32.totalorder %s40, 1
      %p362 = por %p360, %p361
      %p364 = scmp.ne.s32.totalorder %s349, %s363
      %p365 = scmp.eq.s32.totalorder %s40, 0
      %p366 = por %p364, %p365
      %s368 = sadd.s32 %s367, 1
      %p371 = scmp.eq.s32.totalorder %s34, 1
      %p372 = scmp.ne.s32.totalorder %s367, %s369
      %p373 = scmp.eq.s32.totalorder %s34, 0
      %p374 = por %p372, %p373
      %p375 = scmp.ne.s32.totalorder %s367, %s369
      %p376 = scmp.eq.s32.totalorder %s39, 1
      %p377 = por %p375, %p376
      %p378 = scmp.ne.s32.totalorder %s369, %s370
      %p379 = scmp.eq.s32.totalorder %s39, 0
      %p380 = por %p378, %p379
      %p381 = scmp.ne.s32.totalorder %s369, %s370
      %p382 = scmp.eq.s32.totalorder %s40, 1
      %p383 = por %p381, %p382
      %p385 = scmp.ne.s32.totalorder %s370, %s384
      %p386 = scmp.eq.s32.totalorder %s40, 0
      %p387 = por %p385, %p386
      %s389 = sadd.s32 %s388, 1
      %p392 = scmp.eq.s32.totalorder %s34, 1
      %p393 = scmp.ne.s32.totalorder %s388, %s390
      %p394 = scmp.eq.s32.totalorder %s34, 0
      %p395 = por %p393, %p394
      %p396 = scmp.ne.s32.totalorder %s388, %s390
      %p397 = scmp.eq.s32.totalorder %s39, 1
      %p398 = por %p396, %p397
      %p399 = scmp.ne.s32.totalorder %s390, %s391
      %p400 = scmp.eq.s32.totalorder %s39, 0
      %p401 = por %p399, %p400
      %p402 = scmp.ne.s32.totalorder %s390, %s391
      %p403 = scmp.eq.s32.totalorder %s40, 1
      %p404 = por %p402, %p403
      %p406 = scmp.ne.s32.totalorder %s391, %s405
      %p407 = scmp.eq.s32.totalorder %s40, 0
      %p408 = por %p406, %p407
      %s410 = sadd.s32 %s409, 1
      %p413 = scmp.eq.s32.totalorder %s34, 1
      %p414 = scmp.ne.s32.totalorder %s409, %s411
      %p415 = scmp.eq.s32.totalorder %s34, 0
      %p416 = por %p414, %p415
      %p417 = scmp.ne.s32.totalorder %s409, %s411
      %p418 = scmp.eq.s32.totalorder %s39, 1
      %p419 = por %p417, %p418
      %p420 = scmp.ne.s32.totalorder %s411, %s412
      %p421 = scmp.eq.s32.totalorder %s39, 0
      %p422 = por %p420, %p421
      %p423 = scmp.ne.s32.totalorder %s411, %s412
      %p424 = scmp.eq.s32.totalorder %s40, 1
      %p425 = por %p423, %p424
      %p427 = scmp.ne.s32.totalorder %s412, %s426
      %p428 = scmp.eq.s32.totalorder %s40, 0
      %p429 = por %p427, %p428
      %s431 = sadd.s32 %s430, 1
      %p434 = scmp.eq.s32.totalorder %s34, 1
      %p435 = scmp.ne.s32.totalorder %s430, %s432
      %p436 = scmp.eq.s32.totalorder %s34, 0
      %p437 = por %p435, %p436
      %p438 = scmp.ne.s32.totalorder %s430, %s432
      %p439 = scmp.eq.s32.totalorder %s39, 1
      %p440 = por %p438, %p439
      %p441 = scmp.ne.s32.totalorder %s432, %s433
      %p442 = scmp.eq.s32.totalorder %s39, 0
      %p443 = por %p441, %p442
      %p444 = scmp.ne.s32.totalorder %s432, %s433
      %p445 = scmp.eq.s32.totalorder %s40, 1
      %p446 = por %p444, %p445
      %p448 = scmp.ne.s32.totalorder %s433, %s447
      %p449 = scmp.eq.s32.totalorder %s40, 0
      %p450 = por %p448, %p449
      %s452 = sadd.s32 %s451, 1
      %p455 = scmp.eq.s32.totalorder %s34, 1
      %p456 = scmp.ne.s32.totalorder %s451, %s453
      %p457 = scmp.eq.s32.totalorder %s34, 0
      %p458 = por %p456, %p457
      %p459 = scmp.ne.s32.totalorder %s451, %s453
      %p460 = scmp.eq.s32.totalorder %s39, 1
      %p461 = por %p459, %p460
      %p462 = scmp.ne.s32.totalorder %s453, %s454
      %p463 = scmp.eq.s32.totalorder %s39, 0
      %p464 = por %p462, %p463
      %p465 = scmp.ne.s32.totalorder %s453, %s454
      %p466 = scmp.eq.s32.totalorder %s40, 1
      %p467 = por %p465, %p466
      %p469 = scmp.ne.s32.totalorder %s454, %s468
      %p470 = scmp.eq.s32.totalorder %s40, 0
      %p471 = por %p469, %p470
      %s473 = sadd.s32 %s472, 1
      %p476 = scmp.eq.s32.totalorder %s34, 1
      %p477 = scmp.ne.s32.totalorder %s472, %s474
      %p478 = scmp.eq.s32.totalorder %s34, 0
      %p479 = por %p477, %p478
      %p480 = scmp.ne.s32.totalorder %s472, %s474
      %p481 = scmp.eq.s32.totalorder %s39, 1
      %p482 = por %p480, %p481
      %p483 = scmp.ne.s32.totalorder %s474, %s475
      %p484 = scmp.eq.s32.totalorder %s39, 0
      %p485 = por %p483, %p484
      %p486 = scmp.ne.s32.totalorder %s474, %s475
      %p487 = scmp.eq.s32.totalorder %s40, 1
      %p488 = por %p486, %p487
      %p490 = scmp.ne.s32.totalorder %s475, %s489
      %p491 = scmp.eq.s32.totalorder %s40, 0
      %p492 = por %p490, %p491
      %s494 = sadd.s32 %s493, 1
      %p497 = scmp.eq.s32.totalorder %s34, 1
      %p498 = scmp.ne.s32.totalorder %s493, %s495
      %p499 = scmp.eq.s32.totalorder %s34, 0
      %p500 = por %p498, %p499
      %p501 = scmp.ne.s32.totalorder %s493, %s495
      %p502 = scmp.eq.s32.totalorder %s39, 1
      %p503 = por %p501, %p502
      %p504 = scmp.ne.s32.totalorder %s495, %s496
      %p505 = scmp.eq.s32.totalorder %s39, 0
      %p506 = por %p504, %p505
      %p507 = scmp.ne.s32.totalorder %s495, %s496
      %p508 = scmp.eq.s32.totalorder %s40, 1
      %p509 = por %p507, %p508
      %p511 = scmp.ne.s32.totalorder %s496, %s510
      %p512 = scmp.eq.s32.totalorder %s40, 0
      %p513 = por %p511, %p512
      %s515 = sadd.s32 %s514, 1
      %p518 = scmp.eq.s32.totalorder %s34, 1
      %p519 = scmp.ne.s32.totalorder %s514, %s516
      %p520 = scmp.eq.s32.totalorder %s34, 0
      %p521 = por %p519, %p520
      %p522 = scmp.ne.s32.totalorder %s514, %s516
      %p523 = scmp.eq.s32.totalorder %s39, 1
      %p524 = por %p522, %p523
      %p525 = scmp.ne.s32.totalorder %s516, %s517
      %p526 = scmp.eq.s32.totalorder %s39, 0
      %p527 = por %p525, %p526
      %p528 = scmp.ne.s32.totalorder %s516, %s517
      %p529 = scmp.eq.s32.totalorder %s40, 1
      %p530 = por %p528, %p529
      %p532 = scmp.ne.s32.totalorder %s517, %s531
      %p533 = scmp.eq.s32.totalorder %s40, 0
      %p534 = por %p532, %p533
      %s536 = sadd.s32 %s535, 1
      %p539 = scmp.eq.s32.totalorder %s34, 1
      %p540 = scmp.ne.s32.totalorder %s535, %s537
      %p541 = scmp.eq.s32.totalorder %s34, 0
      %p542 = por %p540, %p541
      %p543 = scmp.ne.s32.totalorder %s535, %s537
      %p544 = scmp.eq.s32.totalorder %s39, 1
      %p545 = por %p543, %p544
      %p546 = scmp.ne.s32.totalorder %s537, %s538
      %p547 = scmp.eq.s32.totalorder %s39, 0
      %p548 = por %p546, %p547
      %p549 = scmp.ne.s32.totalorder %s537, %s538
      %p550 = scmp.eq.s32.totalorder %s40, 1
      %p551 = por %p549, %p550
      %p553 = scmp.ne.s32.totalorder %s538, %s552
      %p554 = scmp.eq.s32.totalorder %s40, 0
      %p555 = por %p553, %p554
      %s556 = ssub.s32 %s34, %s41
      %p557 = scmp.eq.s32.totalorder %s556, 0
      %s559 = sadd.s32 %s558, 1
      %s560 = scalar_select %p557, %s558, %s559
      %p563 = pneg %p557
      %p564 = scmp.eq.s32.totalorder %s34, 1
      %p565 = por %p563, %p564
      %p566 = scmp.ne.s32.totalorder %s558, %s561
      %p567 = scmp.eq.s32.totalorder %s34, 0
      %p568 = por %p566, %p567
      %p569 = scmp.ne.s32.totalorder %s558, %s561
      %p570 = scmp.eq.s32.totalorder %s39, 1
      %p571 = por %p569, %p570
      %p572 = scmp.ne.s32.totalorder %s561, %s562
      %p573 = scmp.eq.s32.totalorder %s39, 0
      %p574 = por %p572, %p573
      %p575 = scmp.ne.s32.totalorder %s561, %s562
      %p576 = scmp.eq.s32.totalorder %s40, 1
      %p577 = por %p575, %p576
      %p579 = scmp.ne.s32.totalorder %s562, %s578
      %p580 = scmp.eq.s32.totalorder %s40, 0
      %p581 = por %p579, %p580
      %p582 = scmp.le.s32.totalorder 1, %s34
      %p583 = scmp.lt.s32.totalorder %s34, 3
      %p584 = pnand %p582, %p583
      %p585 = pneg %p584
      // Predicated region
      $region9: #{decoder_forward.4} parent=5 // pred_check
        _
      $region10: #{decoder_forward.4} parent=5 // pred_check_branch
        %587 = sbr.rel (%p584) target = $region12
      $region11: #{decoder_forward.4} parent=5 // pred_region
        %s588 = ssub.s32 %s34, 1
        // Predicated region
        $region13: #{decoder_forward.4} parent=11 // pred_check
          %p589 = pneg %p107
        $region14: #{decoder_forward.4} parent=11 // pred_check_branch
          %591 = sbr.rel (%p589) target = $region16
        $region15: #{decoder_forward.4} parent=11 // pred_region
          _
        $region16: #{decoder_forward.4} parent=11 // pred_fallthru
          _
        // Predicated region
        $region17: #{decoder_forward.4} parent=11 // pred_check
          %p592 = pneg %p128
        $region18: #{decoder_forward.4} parent=11 // pred_check_branch
          %594 = sbr.rel (%p592) target = $region20
        $region19: #{decoder_forward.4} parent=11 // pred_region
          _
        $region20: #{decoder_forward.4} parent=11 // pred_fallthru
          _
        // Predicated region
        $region21: #{decoder_forward.4} parent=11 // pred_check
          %p595 = pneg %p149
        $region22: #{decoder_forward.4} parent=11 // pred_check_branch
          %597 = sbr.rel (%p595) target = $region24
        $region23: #{decoder_forward.4} parent=11 // pred_region
          _
        $region24: #{decoder_forward.4} parent=11 // pred_fallthru
          _
        // Predicated region
        $region25: #{decoder_forward.4} parent=11 // pred_check
          %p598 = pneg %p170
        $region26: #{decoder_forward.4} parent=11 // pred_check_branch
          %600 = sbr.rel (%p598) target = $region28
        $region27: #{decoder_forward.4} parent=11 // pred_region
          _
        $region28: #{decoder_forward.4} parent=11 // pred_fallthru
          _
        // Predicated region
        $region29: #{decoder_forward.4} parent=11 // pred_check
          %p601 = pneg %p191
        $region30: #{decoder_forward.4} parent=11 // pred_check_branch
          %603 = sbr.rel (%p601) target = $region32
        $region31: #{decoder_forward.4} parent=11 // pred_region
          _
        $region32: #{decoder_forward.4} parent=11 // pred_fallthru
          _
        // Predicated region
        $region33: #{decoder_forward.4} parent=11 // pred_check
          %p604 = pneg %p212
        $region34: #{decoder_forward.4} parent=11 // pred_check_branch
          %606 = sbr.rel (%p604) target = $region36
        $region35: #{decoder_forward.4} parent=11 // pred_region
          _
        $region36: #{decoder_forward.4} parent=11 // pred_fallthru
          _
        // Predicated region
        $region37: #{decoder_forward.4} parent=11 // pred_check
          %p607 = pneg %p233
        $region38: #{decoder_forward.4} parent=11 // pred_check_branch
          %609 = sbr.rel (%p607) target = $region40
        $region39: #{decoder_forward.4} parent=11 // pred_region
          _
        $region40: #{decoder_forward.4} parent=11 // pred_fallthru
          _
        // Predicated region
        $region41: #{decoder_forward.4} parent=11 // pred_check
          %p610 = pneg %p254
        $region42: #{decoder_forward.4} parent=11 // pred_check_branch
          %612 = sbr.rel (%p610) target = $region44
        $region43: #{decoder_forward.4} parent=11 // pred_region
          _
        $region44: #{decoder_forward.4} parent=11 // pred_fallthru
          _
        // Predicated region
        $region45: #{decoder_forward.4} parent=11 // pred_check
          %p613 = pneg %p275
        $region46: #{decoder_forward.4} parent=11 // pred_check_branch
          %615 = sbr.rel (%p613) target = $region48
        $region47: #{decoder_forward.4} parent=11 // pred_region
          _
        $region48: #{decoder_forward.4} parent=11 // pred_fallthru
          _
        // Predicated region
        $region49: #{decoder_forward.4} parent=11 // pred_check
          %p616 = pneg %p296
        $region50: #{decoder_forward.4} parent=11 // pred_check_branch
          %618 = sbr.rel (%p616) target = $region52
        $region51: #{decoder_forward.4} parent=11 // pred_region
          _
        $region52: #{decoder_forward.4} parent=11 // pred_fallthru
          _
        // Predicated region
        $region53: #{decoder_forward.4} parent=11 // pred_check
          %p619 = pneg %p317
        $region54: #{decoder_forward.4} parent=11 // pred_check_branch
          %621 = sbr.rel (%p619) target = $region56
        $region55: #{decoder_forward.4} parent=11 // pred_region
          _
        $region56: #{decoder_forward.4} parent=11 // pred_fallthru
          _
        // Predicated region
        $region57: #{decoder_forward.4} parent=11 // pred_check
          %p622 = pneg %p338
        $region58: #{decoder_forward.4} parent=11 // pred_check_branch
          %624 = sbr.rel (%p622) target = $region60
        $region59: #{decoder_forward.4} parent=11 // pred_region
          _
        $region60: #{decoder_forward.4} parent=11 // pred_fallthru
          _
        // Predicated region
        $region61: #{decoder_forward.4} parent=11 // pred_check
          %p625 = pneg %p359
        $region62: #{decoder_forward.4} parent=11 // pred_check_branch
          %627 = sbr.rel (%p625) target = $region64
        $region63: #{decoder_forward.4} parent=11 // pred_region
          _
        $region64: #{decoder_forward.4} parent=11 // pred_fallthru
          _
        // Predicated region
        $region65: #{decoder_forward.4} parent=11 // pred_check
          %p628 = pneg %p380
        $region66: #{decoder_forward.4} parent=11 // pred_check_branch
          %630 = sbr.rel (%p628) target = $region68
        $region67: #{decoder_forward.4} parent=11 // pred_region
          _
        $region68: #{decoder_forward.4} parent=11 // pred_fallthru
          _
        // Predicated region
        $region69: #{decoder_forward.4} parent=11 // pred_check
          %p631 = pneg %p401
        $region70: #{decoder_forward.4} parent=11 // pred_check_branch
          %633 = sbr.rel (%p631) target = $region72
        $region71: #{decoder_forward.4} parent=11 // pred_region
          %s635 = ssub.s32 16, 16
          %636 = vsyncadd [#allocation3], %s635
          %s638 = sshll.u32 [#allocation2], 4
          %s639 = int_to_ptr.vmem [resolvable:$true] %s638
          %641 = dma.hbm_to_vmem [thread:$0]  %s16, 16, %s639, [#allocation3]
        $region72: #{decoder_forward.4} parent=11 // pred_fallthru
          _
        // Predicated region
        $region73: #{decoder_forward.4} parent=11 // pred_check
          %p642 = pneg %p422
        $region74: #{decoder_forward.4} parent=11 // pred_check_branch
          %644 = sbr.rel (%p642) target = $region76
        $region75: #{decoder_forward.4} parent=11 // pred_region
          %s646 = ssub.s32 16, 16
          %647 = vsyncadd [#allocation5], %s646
          %s649 = sshll.u32 [#allocation4], 4
          %s650 = int_to_ptr.vmem [resolvable:$true] %s649
          %652 = dma.hbm_to_vmem [thread:$0]  %s17, 16, %s650, [#allocation5]
        $region76: #{decoder_forward.4} parent=11 // pred_fallthru
          _
        // Predicated region
        $region77: #{decoder_forward.4} parent=11 // pred_check
          %p653 = pneg %p443
        $region78: #{decoder_forward.4} parent=11 // pred_check_branch
          %655 = sbr.rel (%p653) target = $region80
        $region79: #{decoder_forward.4} parent=11 // pred_region
          _
        $region80: #{decoder_forward.4} parent=11 // pred_fallthru
          _
        // Predicated region
        $region81: #{decoder_forward.4} parent=11 // pred_check
          %p656 = pneg %p464
        $region82: #{decoder_forward.4} parent=11 // pred_check_branch
          %658 = sbr.rel (%p656) target = $region84
        $region83: #{decoder_forward.4} parent=11 // pred_region
          %s660 = ssub.s32 16, 16
          %661 = vsyncadd [#allocation5], %s660
          %s663 = sshll.u32 [#allocation6], 4
          %s664 = int_to_ptr.vmem [resolvable:$true] %s663
          %666 = dma.hbm_to_vmem [thread:$0]  %s19, 16, %s664, [#allocation5]
        $region84: #{decoder_forward.4} parent=11 // pred_fallthru
          _
        // Predicated region
        $region85: #{decoder_forward.4} parent=11 // pred_check
          %p667 = pneg %p485
        $region86: #{decoder_forward.4} parent=11 // pred_check_branch
          %669 = sbr.rel (%p667) target = $region88
        $region87: #{decoder_forward.4} parent=11 // pred_region
          _
        $region88: #{decoder_forward.4} parent=11 // pred_fallthru
          _
        // Predicated region
        $region89: #{decoder_forward.4} parent=11 // pred_check
          %p670 = pneg %p506
        $region90: #{decoder_forward.4} parent=11 // pred_check_branch
          %672 = sbr.rel (%p670) target = $region92
        $region91: #{decoder_forward.4} parent=11 // pred_region
          %s674 = ssub.s32 16, 16
          %675 = vsyncadd [#allocation8], %s674
          %s677 = sshll.u32 [#allocation7], 4
          %s678 = int_to_ptr.vmem [resolvable:$true] %s677
          %680 = dma.hbm_to_vmem [thread:$0]  %s21, 16, %s678, [#allocation8]
        $region92: #{decoder_forward.4} parent=11 // pred_fallthru
          _
        // Predicated region
        $region93: #{decoder_forward.4} parent=11 // pred_check
          %p681 = pneg %p527
        $region94: #{decoder_forward.4} parent=11 // pred_check_branch
          %683 = sbr.rel (%p681) target = $region96
        $region95: #{decoder_forward.4} parent=11 // pred_region
          %s685 = ssub.s32 16, 16
          %686 = vsyncadd [#allocation8], %s685
          %s688 = sshll.u32 [#allocation9], 4
          %s689 = int_to_ptr.vmem [resolvable:$true] %s688
          %691 = dma.hbm_to_vmem [thread:$0]  %s22, 16, %s689, [#allocation8]
        $region96: #{decoder_forward.4} parent=11 // pred_fallthru
          _
        // Predicated region
        $region97: #{decoder_forward.4} parent=11 // pred_check
          %p692 = pneg %p548
        $region98: #{decoder_forward.4} parent=11 // pred_check_branch
          %694 = sbr.rel (%p692) target = $region100
        $region99: #{decoder_forward.4} parent=11 // pred_region
          %s696 = ssub.s32 16, 16
          %697 = vsyncadd [#allocation11], %s696
          %s699 = sshll.u32 [#allocation10], 4
          %s700 = int_to_ptr.vmem [resolvable:$true] %s699
          %702 = dma.hbm_to_vmem [thread:$0]  %s23, 16, %s700, [#allocation11]
        $region100: #{decoder_forward.4} parent=11 // pred_fallthru
          _
      $region12: #{decoder_forward.4} parent=5 // pred_fallthru
        _
      %p703 = scmp.lt.s32.totalorder %s34, 2
      // Predicated region
      $region101: #{decoder_forward.4} parent=5 // pred_check
        %p704 = pneg %p703
      $region102: #{decoder_forward.4} parent=5 // pred_check_branch
        %706 = sbr.rel (%p704) target = $region104
      $region103: #{decoder_forward.4} parent=5 // pred_region
        // Predicated region
        $region105: #{decoder_forward.4} parent=103 // pred_check
          %p707 = pneg %p54
        $region106: #{decoder_forward.4} parent=103 // pred_check_branch
          %709 = sbr.rel (%p707) target = $region108
        $region107: #{decoder_forward.4} parent=103 // pred_region
          %p710 = scmp.lt.s32.totalorder %s34, 1
          %s711 = scalar_select %p710, %s34, 1
          %s712 = smul.addr %s711, 8
          %s713 = scalar_lea.vmem %s0, %s712
        $region108: #{decoder_forward.4} parent=103 // pred_fallthru
          _
        // Predicated region
        $region109: #{decoder_forward.4} parent=103 // pred_check
          %p714 = pneg %p80
        $region110: #{decoder_forward.4} parent=103 // pred_check_branch
          %716 = sbr.rel (%p714) target = $region112
        $region111: #{decoder_forward.4} parent=103 // pred_region
          %p717 = scmp.lt.s32.totalorder %s34, 1
          %s718 = scalar_select %p717, %s34, 1
          %s719 = smul.addr %s718, 8
          %s720 = scalar_lea.vmem %s1, %s719
        $region112: #{decoder_forward.4} parent=103 // pred_fallthru
          _
      $region104: #{decoder_forward.4} parent=5 // pred_fallthru
        _
      %p721 = scmp.le.s32.totalorder 1, %s34
      %p722 = scmp.lt.s32.totalorder %s34, 3
      %p723 = pnand %p721, %p722
      %p724 = pneg %p723
      // Predicated region
      $region113: #{decoder_forward.4} parent=5 // pred_check
        _
      $region114: #{decoder_forward.4} parent=5 // pred_check_branch
        %726 = sbr.rel (%p723) target = $region116
      $region115: #{decoder_forward.4} parent=5 // pred_region
        %s727 = ssub.s32 %s34, 1
        // Predicated region
        $region117: #{decoder_forward.4} parent=115 // pred_check
          %p728 = pneg %p401
        $region118: #{decoder_forward.4} parent=115 // pred_check_branch
          %730 = sbr.rel (%p728) target = $region120
        $region119: #{decoder_forward.4} parent=115 // pred_region
          %731 = dma.done [#allocation3], 16
        $region120: #{decoder_forward.4} parent=115 // pred_fallthru
          _
        // Predicated region
        $region121: #{decoder_forward.4} parent=115 // pred_check
          %p732 = pneg %p422
        $region122: #{decoder_forward.4} parent=115 // pred_check_branch
          %734 = sbr.rel (%p732) target = $region124
        $region123: #{decoder_forward.4} parent=115 // pred_region
          %735 = dma.done [#allocation5], 16
        $region124: #{decoder_forward.4} parent=115 // pred_fallthru
          _
        // Predicated region
        $region125: #{decoder_forward.4} parent=115 // pred_check
          %p736 = pneg %p464
        $region126: #{decoder_forward.4} parent=115 // pred_check_branch
          %738 = sbr.rel (%p736) target = $region128
        $region127: #{decoder_forward.4} parent=115 // pred_region
          %739 = dma.done [#allocation5], 16
        $region128: #{decoder_forward.4} parent=115 // pred_fallthru
          _
        // Predicated region
        $region129: #{decoder_forward.4} parent=115 // pred_check
          %p740 = pneg %p506
        $region130: #{decoder_forward.4} parent=115 // pred_check_branch
          %742 = sbr.rel (%p740) target = $region132
        $region131: #{decoder_forward.4} parent=115 // pred_region
          %743 = dma.done [#allocation8], 16
        $region132: #{decoder_forward.4} parent=115 // pred_fallthru
          _
        // Predicated region
        $region133: #{decoder_forward.4} parent=115 // pred_check
          %p744 = pneg %p527
        $region134: #{decoder_forward.4} parent=115 // pred_check_branch
          %746 = sbr.rel (%p744) target = $region136
        $region135: #{decoder_forward.4} parent=115 // pred_region
          %747 = dma.done [#allocation8], 16
        $region136: #{decoder_forward.4} parent=115 // pred_fallthru
          _
        // Predicated region
        $region137: #{decoder_forward.4} parent=115 // pred_check
          %p748 = pneg %p548
        $region138: #{decoder_forward.4} parent=115 // pred_check_branch
          %750 = sbr.rel (%p748) target = $region140
        $region139: #{decoder_forward.4} parent=115 // pred_region
          %751 = dma.done [#allocation11], 16
        $region140: #{decoder_forward.4} parent=115 // pred_fallthru
          _
        %p752 = scmp.lt.s32.totalorder %s39, 1
        %s753 = scalar_select %p752, %s39, 1
        %s754 = smul.addr %s753, 8
        %s755 = scalar_lea.vmem %s0, %s754
        %p756 = pneg %p60
        %p757 = pneg %p57
        %p758 = scmp.lt.s32.totalorder %s39, 1
        %s759 = scalar_select %p758, %s39, 1
        %s760 = smul.addr %s759, 8
        %s761 = scalar_lea.vmem %s1, %s760
        %p762 = pneg %p86
        %p763 = pneg %p83
        %p764 = pneg %p107
        %p765 = pneg %p104
        %p766 = pneg %p128
        %p767 = pneg %p125
        %p768 = pneg %p149
        %p769 = pneg %p146
        %p770 = pneg %p170
        %p771 = pneg %p167
        %p772 = pneg %p191
        %p773 = pneg %p188
        %p774 = pneg %p212
        %p775 = pneg %p209
        %p776 = pneg %p233
        %p777 = pneg %p230
        %p778 = pneg %p254
        %p779 = pneg %p251
        %p780 = pneg %p275
        %p781 = pneg %p272
        %p782 = pneg %p296
        %p783 = pneg %p293
        %p784 = pneg %p317
        %p785 = pneg %p314
        %p786 = pneg %p338
        %p787 = pneg %p335
        %p788 = pneg %p359
        %p789 = pneg %p356
        %p790 = pneg %p380
        %p791 = pneg %p377
        %p792 = pneg %p401
        %p793 = pneg %p398
        %p794 = pneg %p422
        %p795 = pneg %p419
        %p796 = pneg %p443
        %p797 = pneg %p440
        %p798 = pneg %p464
        %p799 = pneg %p461
        %p800 = pneg %p485
        %p801 = pneg %p482
        %p802 = pneg %p506
        %p803 = pneg %p503
        %p804 = pneg %p527
        %p805 = pneg %p524
        %p806 = pneg %p548
        %p807 = pneg %p545
        %p808 = pneg %p574
        %p809 = pneg %p571
        %p810 = scmp.lt.s32.totalorder %s39, 1
        %s811 = scalar_select %p810, %s39, 1
        %s812 = smul.addr %s811, 8
        %s813 = scalar_lea.vmem %s24, %s812
        %p814 = scmp.lt.s32.totalorder %s39, 1
        %s815 = scalar_select %p814, %s39, 1
        %s816 = smul.addr %s815, 8
        %s817 = scalar_lea.vmem %s0, %s816
        %p818 = scmp.lt.s32.totalorder %s39, 1
        %s819 = scalar_select %p818, %s39, 1
        %s820 = smul.addr %s819, 8
        %s821 = scalar_lea.vmem %s1, %s820
        %p822 = scmp.lt.s32.totalorder %s39, 1
        %s823 = scalar_select %p822, %s39, 1
        %s824 = smul.addr %s823, 8
        %s825 = scalar_lea.vmem %s24, %s824
        %v827 = vld [vmem:[%s817] sm:$0xff]
        %v828 = vld [vmem:[%s821] sm:$0xff]
        %v829 = vld [vmem:[%s2] sm:$0xf]
        %v830 = vld [vmem:[%s2 + $0x4] sm:$0xf]
        %v831 = vld [vmem:[%s2 + $0x8] sm:$0xf]
        %v832 = vld [vmem:[%s2 + $0xc] sm:$0xf]
        %v833 = vld [vmem:[%s3] sm:$0x1]
        %v834 = vld [vmem:[%s4] sm:$0xf]
        %v835 = vld [vmem:[%s4 + $0x4] sm:$0xf]
        %v836 = vld [vmem:[%s4 + $0x8] sm:$0xf]
        %v837 = vld [vmem:[%s4 + $0xc] sm:$0xf]
        %v838 = vld [vmem:[%s5] sm:$0x1]
        %v839 = vld [vmem:[%s6] sm:$0xf]
        %v840 = vld [vmem:[%s6 + $0x4] sm:$0xf]
        %v841 = vld [vmem:[%s6 + $0x8] sm:$0xf]
        %v842 = vld [vmem:[%s6 + $0xc] sm:$0xf]
        %v843 = vld [vmem:[%s7] sm:$0x1]
        %v844 = vpack.c.bf16 %v827, %v827
        %v846 = vlaneseq
        %v847 = vshrl.u32 %v846, 7
        %v848 = vsub.s32 0, %v847
        %v849 = vrot.slane %v833, %v848
        %v855 = vunpack.c.l.b16 %v829
        %v856 = vunpack.c.l.b16 %v830
        %v857 = vunpack.c.l.b16 %v831
        %v858 = vunpack.c.l.b16 %v832
        %v859 = vpack.c.b16 %v856, %v855
        %v860 = vpack.c.b16 %v858, %v857
        %vm863 = vcmask 261120
        %v865 = vsel %vm863, %v844, 0
        %867 = vmatprep.subr.bf16.mxu0 0
        %868 = vmatpush1.bf16.msra.mxu0 %v859
        %869 = vmatprep.subr.bf16.mxu0 0
        %870 = vmatpush1.bf16.msra.mxu0 %v860
        %871 = vmatprep.subr.bf16.mxu0 0
        %872 = vmatpush1.bf16.msra.mxu0 0
        %873 = vmatprep.subr.bf16.mxu0 0
        %874 = vmatpush1.bf16.msra.mxu0 0
        %875 = vmatprep.subr.bf16.mxu0 0
        %876 = vmatpush1.bf16.msra.mxu0 0
        %877 = vmatprep.subr.bf16.mxu0 0
        %878 = vmatpush1.bf16.msra.mxu0 0
        %879 = vmatprep.subr.bf16.mxu0 0
        %880 = vmatpush1.bf16.msra.mxu0 0
        %881 = vmatprep.subr.bf16.mxu0 0
        %882 = vmatpush1.bf16.msra.mxu0 0
        %883 = vmatprep.subr.bf16.mxu0 0
        %884 = vmatpush1.bf16.msra.mxu0 0
        %885 = vmatprep.subr.bf16.mxu0 0
        %886 = vmatpush1.bf16.msra.mxu0 0
        %887 = vmatprep.subr.bf16.mxu0 0
        %888 = vmatpush1.bf16.msra.mxu0 0
        %889 = vmatprep.subr.bf16.mxu0 0
        %890 = vmatpush1.bf16.msra.mxu0 0
        %891 = vmatprep.subr.bf16.mxu0 0
        %892 = vmatpush1.bf16.msra.mxu0 0
        %893 = vmatprep.subr.bf16.mxu0 0
        %894 = vmatpush1.bf16.msra.mxu0 0
        %895 = vmatprep.subr.bf16.mxu0 0
        %896 = vmatpush1.bf16.msra.mxu0 0
        %897 = vmatprep.subr.bf16.mxu0 0
        %898 = vmatpush1.bf16.msra.mxu0 0
        %899 = vmatprep.mubr.bf16.mxu0 0
        %900 = vmatmul.mubr.bf16.gmra.mrb[0].mxu0 %v865
        %v901 = vpop.f32.mrb[0].mxu0
        %v902 = vadd.f32 %v849, %v901
        %v903 = vpop.f32.mrb[0].mxu0
        %v904 = vpop.f32.mrb[0].mxu0
        %v905 = vpop.f32.mrb[0].mxu0
        %906 = vdwg.mxu0
        %v908 = vlaneseq
        %v909 = vshrl.u32 %v908, 7
        %v910 = vsub.s32 0, %v909
        %v911 = vrot.slane %v838, %v910
        %v917 = vunpack.c.l.b16 %v834
        %v918 = vunpack.c.l.b16 %v835
        %v919 = vunpack.c.l.b16 %v836
        %v920 = vunpack.c.l.b16 %v837
        %v921 = vpack.c.b16 %v918, %v917
        %v922 = vpack.c.b16 %v920, %v919
        %925 = vmatprep.subr.bf16.mxu0 0
        %926 = vmatpush1.bf16.msra.mxu0 %v921
        %927 = vmatprep.subr.bf16.mxu0 0
        %928 = vmatpush1.bf16.msra.mxu0 %v922
        %929 = vmatprep.subr.bf16.mxu0 0
        %930 = vmatpush1.bf16.msra.mxu0 0
        %931 = vmatprep.subr.bf16.mxu0 0
        %932 = vmatpush1.bf16.msra.mxu0 0
        %933 = vmatprep.subr.bf16.mxu0 0
        %934 = vmatpush1.bf16.msra.mxu0 0
        %935 = vmatprep.subr.bf16.mxu0 0
        %936 = vmatpush1.bf16.msra.mxu0 0
        %937 = vmatprep.subr.bf16.mxu0 0
        %938 = vmatpush1.bf16.msra.mxu0 0
        %939 = vmatprep.subr.bf16.mxu0 0
        %940 = vmatpush1.bf16.msra.mxu0 0
        %941 = vmatprep.subr.bf16.mxu0 0
        %942 = vmatpush1.bf16.msra.mxu0 0
        %943 = vmatprep.subr.bf16.mxu0 0
        %944 = vmatpush1.bf16.msra.mxu0 0
        %945 = vmatprep.subr.bf16.mxu0 0
        %946 = vmatpush1.bf16.msra.mxu0 0
        %947 = vmatprep.subr.bf16.mxu0 0
        %948 = vmatpush1.bf16.msra.mxu0 0
        %949 = vmatprep.subr.bf16.mxu0 0
        %950 = vmatpush1.bf16.msra.mxu0 0
        %951 = vmatprep.subr.bf16.mxu0 0
        %952 = vmatpush1.bf16.msra.mxu0 0
        %953 = vmatprep.subr.bf16.mxu0 0
        %954 = vmatpush1.bf16.msra.mxu0 0
        %955 = vmatprep.subr.bf16.mxu0 0
        %956 = vmatpush1.bf16.msra.mxu0 0
        %957 = vmatprep.mubr.bf16.mxu0 0
        %958 = vmatmul.mubr.bf16.gmra.mrb[0].mxu0 %v865
        %v959 = vpop.f32.mrb[0].mxu0
        %v960 = vadd.f32 %v911, %v959
        %v961 = vpop.f32.mrb[0].mxu0
        %v962 = vpop.f32.mrb[0].mxu0
        %v963 = vpop.f32.mrb[0].mxu0
        %964 = vdwg.mxu0
        %v965 = vpack.c.bf16 %v902, %v902
        %v966 = vpack.c.bf16 %v960, %v960
        %vm967 = vcmask 64512
        %v969 = vsel %vm967, %v965, 0
        %v972 = vsel %vm967, %v966, 0
        %974 = vmatprep.subr.bf16.mxu0 0
        %975 = vmatpush1.bf16.xpose.msra.mxu0 %v972
        %976 = vmatprep.subr.bf16.mxu0 0
        %977 = vmatpush1.bf16.xpose.msra.mxu0 0
        %978 = vmatprep.subr.bf16.mxu0 0
        %979 = vmatpush1.bf16.xpose.msra.mxu0 0
        %980 = vmatprep.subr.bf16.mxu0 0
        %981 = vmatpush1.bf16.xpose.msra.mxu0 0
        %982 = vmatprep.subr.bf16.mxu0 0
        %983 = vmatpush1.bf16.xpose.msra.mxu0 0
        %984 = vmatprep.subr.bf16.mxu0 0
        %985 = vmatpush1.bf16.xpose.msra.mxu0 0
        %986 = vmatprep.subr.bf16.mxu0 0
        %987 = vmatpush1.bf16.xpose.msra.mxu0 0
        %988 = vmatprep.subr.bf16.mxu0 0
        %989 = vmatpush1.bf16.xpose.msra.mxu0 0
        %990 = vmatprep.subr.bf16.mxu0 0
        %991 = vmatpush1.bf16.xpose.msra.mxu0 0
        %992 = vmatprep.subr.bf16.mxu0 0
        %993 = vmatpush1.bf16.xpose.msra.mxu0 0
        %994 = vmatprep.subr.bf16.mxu0 0
        %995 = vmatpush1.bf16.xpose.msra.mxu0 0
        %996 = vmatprep.subr.bf16.mxu0 0
        %997 = vmatpush1.bf16.xpose.msra.mxu0 0
        %998 = vmatprep.subr.bf16.mxu0 0
        %999 = vmatpush1.bf16.xpose.msra.mxu0 0
        %1000 = vmatprep.subr.bf16.mxu0 0
        %1001 = vmatpush1.bf16.xpose.msra.mxu0 0
        %1002 = vmatprep.subr.bf16.mxu0 0
        %1003 = vmatpush1.bf16.xpose.msra.mxu0 0
        %1004 = vmatprep.subr.bf16.mxu0 0
        %1005 = vmatpush1.bf16.xpose.msra.mxu0 0
        %1006 = vmatprep.mubr.bf16.mxu0 0
        %1007 = vmatmul.mubr.bf16.gmra.mrb[0].mxu0 %v969
        %v1008 = vpop.f32.mrb[0].mxu0
        %v1009 = vadd.f32 0.0, %v1008
        %v1010 = vpop.f32.mrb[0].mxu0
        %v1011 = vpop.f32.mrb[0].mxu0
        %v1012 = vpop.f32.mrb[0].mxu0
        %1013 = vdwg.mxu0
        %v1014 = vmul.f32 %v1009, 0.35355338
        %v1015 = vsel %vm967, %v1014, -inf
        %1016 = vmax.xlane.f32.xlu0 %v1015
        %v1017 = vpop.xlane.xlu0 %1016
        %v1018 = vsub.f32 %v1014, %v1017
        %v1019 = vmul.f32 %v1018, 1.442695
        %v1020 = vpow.pop %v1019
        %v1021 = vsel %vm967, %v1020, 0.0
        %1022 = vadd.xlane.f32.xlu0 %v1021
        %v1023 = vpop.xlane.xlu0 %1022
        %v1024 = vrcp.pop %v1023
        %v1025 = vmul.f32 %v1020, %v1024
        %v1026 = vpack.c.bf16 %v1025, %v1025
        %1028 = vrot.lane.b32.xlu0 %v966, 96
        %v1029 = vpop.permute.xlu0 %1028
        %v1031 = vsel %vm967, %v1026, 0
        %vm1033 = vcmask 1043456
        %v1035 = vsel %vm1033, %v1029, 0
        %1037 = vmatprep.subr.bf16.mxu0 0
        %1038 = vmatpush1.bf16.msra.mxu0 %v1035
        %1039 = vmatprep.subr.bf16.mxu0 0
        %1040 = vmatpush1.bf16.msra.mxu0 0
        %1041 = vmatprep.subr.bf16.mxu0 0
        %1042 = vmatpush1.bf16.msra.mxu0 0
        %1043 = vmatprep.subr.bf16.mxu0 0
        %1044 = vmatpush1.bf16.msra.mxu0 0
        %1045 = vmatprep.subr.bf16.mxu0 0
        %1046 = vmatpush1.bf16.msra.mxu0 0
        %1047 = vmatprep.subr.bf16.mxu0 0
        %1048 = vmatpush1.bf16.msra.mxu0 0
        %1049 = vmatprep.subr.bf16.mxu0 0
        %1050 = vmatpush1.bf16.msra.mxu0 0
        %1051 = vmatprep.subr.bf16.mxu0 0
        %1052 = vmatpush1.bf16.msra.mxu0 0
        %1053 = vmatprep.subr.bf16.mxu0 0
        %1054 = vmatpush1.bf16.msra.mxu0 0
        %1055 = vmatprep.subr.bf16.mxu0 0
        %1056 = vmatpush1.bf16.msra.mxu0 0
        %1057 = vmatprep.subr.bf16.mxu0 0
        %1058 = vmatpush1.bf16.msra.mxu0 0
        %1059 = vmatprep.subr.bf16.mxu0 0
        %1060 = vmatpush1.bf16.msra.mxu0 0
        %1061 = vmatprep.subr.bf16.mxu0 0
        %1062 = vmatpush1.bf16.msra.mxu0 0
        %1063 = vmatprep.subr.bf16.mxu0 0
        %1064 = vmatpush1.bf16.msra.mxu0 0
        %1065 = vmatprep.subr.bf16.mxu0 0
        %1066 = vmatpush1.bf16.msra.mxu0 0
        %1067 = vmatprep.subr.bf16.mxu0 0
        %1068 = vmatpush1.bf16.msra.mxu0 0
        %1069 = vmatprep.mubr.bf16.mxu0 0
        %1070 = vmatmul.mubr.bf16.gmra.mrb[0].mxu0 %v1031
        %v1071 = vpop.f32.mrb[0].mxu0
        %v1072 = vadd.f32 0.0, %v1071
        %v1073 = vpop.f32.mrb[0].mxu0
        %v1074 = vpop.f32.mrb[0].mxu0
        %v1075 = vpop.f32.mrb[0].mxu0
        %1076 = vdwg.mxu0
        %1078 = vrot.lane.b32.xlu0 %v965, 120
        %v1079 = vpop.permute.xlu0 %1078
        %1080 = vrot.lane.b32.xlu0 %v966, 120
        %v1081 = vpop.permute.xlu0 %1080
        %v1083 = vsel %vm967, %v1079, 0
        %v1086 = vsel %vm967, %v1081, 0
        %1088 = vmatprep.subr.bf16.mxu0 0
        %1089 = vmatpush1.bf16.xpose.msra.mxu0 %v1086
        %1090 = vmatprep.subr.bf16.mxu0 0
        %1091 = vmatpush1.bf16.xpose.msra.mxu0 0
        %1092 = vmatprep.subr.bf16.mxu0 0
        %1093 = vmatpush1.bf16.xpose.msra.mxu0 0
        %1094 = vmatprep.subr.bf16.mxu0 0
        %1095 = vmatpush1.bf16.xpose.msra.mxu0 0
        %1096 = vmatprep.subr.bf16.mxu0 0
        %1097 = vmatpush1.bf16.xpose.msra.mxu0 0
        %1098 = vmatprep.subr.bf16.mxu0 0
        %1099 = vmatpush1.bf16.xpose.msra.mxu0 0
        %1100 = vmatprep.subr.bf16.mxu0 0
        %1101 = vmatpush1.bf16.xpose.msra.mxu0 0
        %1102 = vmatprep.subr.bf16.mxu0 0
        %1103 = vmatpush1.bf16.xpose.msra.mxu0 0
        %1104 = vmatprep.subr.bf16.mxu0 0
        %1105 = vmatpush1.bf16.xpose.msra.mxu0 0
        %1106 = vmatprep.subr.bf16.mxu0 0
        %1107 = vmatpush1.bf16.xpose.msra.mxu0 0
        %1108 = vmatprep.subr.bf16.mxu0 0
        %1109 = vmatpush1.bf16.xpose.msra.mxu0 0
        %1110 = vmatprep.subr.bf16.mxu0 0
        %1111 = vmatpush1.bf16.xpose.msra.mxu0 0
        %1112 = vmatprep.subr.bf16.mxu0 0
        %1113 = vmatpush1.bf16.xpose.msra.mxu0 0
        %1114 = vmatprep.subr.bf16.mxu0 0
        %1115 = vmatpush1.bf16.xpose.msra.mxu0 0
        %1116 = vmatprep.subr.bf16.mxu0 0
        %1117 = vmatpush1.bf16.xpose.msra.mxu0 0
        %1118 = vmatprep.subr.bf16.mxu0 0
        %1119 = vmatpush1.bf16.xpose.msra.mxu0 0
        %1120 = vmatprep.mubr.bf16.mxu0 0
        %1121 = vmatmul.mubr.bf16.gmra.mrb[0].mxu0 %v1083
        %v1122 = vpop.f32.mrb[0].mxu0
        %v1123 = vadd.f32 0.0, %v1122
        %v1124 = vpop.f32.mrb[0].mxu0
        %v1125 = vpop.f32.mrb[0].mxu0
        %v1126 = vpop.f32.mrb[0].mxu0
        %1127 = vdwg.mxu0
        %v1128 = vmul.f32 %v1123, 0.35355338
        %v1129 = vsel %vm967, %v1128, -inf
        %1130 = vmax.xlane.f32.xlu0 %v1129
        %v1131 = vpop.xlane.xlu0 %1130
        %v1132 = vsub.f32 %v1128, %v1131
        %v1133 = vmul.f32 %v1132, 1.442695
        %v1134 = vpow.pop %v1133
        %v1135 = vsel %vm967, %v1134, 0.0
        %1136 = vadd.xlane.f32.xlu0 %v1135
        %v1137 = vpop.xlane.xlu0 %1136
        %v1138 = vrcp.pop %v1137
        %v1139 = vmul.f32 %v1134, %v1138
        %v1140 = vpack.c.bf16 %v1139, %v1139
        %1141 = vrot.lane.b32.xlu0 %v966, 88
        %v1142 = vpop.permute.xlu0 %1141
        %v1144 = vsel %vm967, %v1140, 0
        %v1147 = vsel %vm1033, %v1142, 0
        %1149 = vmatprep.subr.bf16.mxu0 0
        %1150 = vmatpush1.bf16.msra.mxu0 %v1147
        %1151 = vmatprep.subr.bf16.mxu0 0
        %1152 = vmatpush1.bf16.msra.mxu0 0
        %1153 = vmatprep.subr.bf16.mxu0 0
        %1154 = vmatpush1.bf16.msra.mxu0 0
        %1155 = vmatprep.subr.bf16.mxu0 0
        %1156 = vmatpush1.bf16.msra.mxu0 0
        %1157 = vmatprep.subr.bf16.mxu0 0
        %1158 = vmatpush1.bf16.msra.mxu0 0
        %1159 = vmatprep.subr.bf16.mxu0 0
        %1160 = vmatpush1.bf16.msra.mxu0 0
        %1161 = vmatprep.subr.bf16.mxu0 0
        %1162 = vmatpush1.bf16.msra.mxu0 0
        %1163 = vmatprep.subr.bf16.mxu0 0
        %1164 = vmatpush1.bf16.msra.mxu0 0
        %1165 = vmatprep.subr.bf16.mxu0 0
        %1166 = vmatpush1.bf16.msra.mxu0 0
        %1167 = vmatprep.subr.bf16.mxu0 0
        %1168 = vmatpush1.bf16.msra.mxu0 0
        %1169 = vmatprep.subr.bf16.mxu0 0
        %1170 = vmatpush1.bf16.msra.mxu0 0
        %1171 = vmatprep.subr.bf16.mxu0 0
        %1172 = vmatpush1.bf16.msra.mxu0 0
        %1173 = vmatprep.subr.bf16.mxu0 0
        %1174 = vmatpush1.bf16.msra.mxu0 0
        %1175 = vmatprep.subr.bf16.mxu0 0
        %1176 = vmatpush1.bf16.msra.mxu0 0
        %1177 = vmatprep.subr.bf16.mxu0 0
        %1178 = vmatpush1.bf16.msra.mxu0 0
        %1179 = vmatprep.subr.bf16.mxu0 0
        %1180 = vmatpush1.bf16.msra.mxu0 0
        %1181 = vmatprep.mubr.bf16.mxu0 0
        %1182 = vmatmul.mubr.bf16.gmra.mrb[0].mxu0 %v1144
        %v1183 = vpop.f32.mrb[0].mxu0
        %v1184 = vadd.f32 0.0, %v1183
        %v1185 = vpop.f32.mrb[0].mxu0
        %v1186 = vpop.f32.mrb[0].mxu0
        %v1187 = vpop.f32.mrb[0].mxu0
        %1188 = vdwg.mxu0
        %1189 = vrot.lane.b32.xlu0 %v965, 112
        %v1190 = vpop.permute.xlu0 %1189
        %1191 = vrot.lane.b32.xlu0 %v966, 112
        %v1192 = vpop.permute.xlu0 %1191
        %v1194 = vsel %vm967, %v1190, 0
        %v1197 = vsel %vm967, %v1192, 0
        %1199 = vmatprep.subr.bf16.mxu0 0
        %1200 = vmatpush1.bf16.xpose.msra.mxu0 %v1197
        %1201 = vmatprep.subr.bf16.mxu0 0
        %1202 = vmatpush1.bf16.xpose.msra.mxu0 0
        %1203 = vmatprep.subr.bf16.mxu0 0
        %1204 = vmatpush1.bf16.xpose.msra.mxu0 0
        %1205 = vmatprep.subr.bf16.mxu0 0
        %1206 = vmatpush1.bf16.xpose.msra.mxu0 0
        %1207 = vmatprep.subr.bf16.mxu0 0
        %1208 = vmatpush1.bf16.xpose.msra.mxu0 0
        %1209 = vmatprep.subr.bf16.mxu0 0
        %1210 = vmatpush1.bf16.xpose.msra.mxu0 0
        %1211 = vmatprep.subr.bf16.mxu0 0
        %1212 = vmatpush1.bf16.xpose.msra.mxu0 0
        %1213 = vmatprep.subr.bf16.mxu0 0
        %1214 = vmatpush1.bf16.xpose.msra.mxu0 0
        %1215 = vmatprep.subr.bf16.mxu0 0
        %1216 = vmatpush1.bf16.xpose.msra.mxu0 0
        %1217 = vmatprep.subr.bf16.mxu0 0
        %1218 = vmatpush1.bf16.xpose.msra.mxu0 0
        %1219 = vmatprep.subr.bf16.mxu0 0
        %1220 = vmatpush1.bf16.xpose.msra.mxu0 0
        %1221 = vmatprep.subr.bf16.mxu0 0
        %1222 = vmatpush1.bf16.xpose.msra.mxu0 0
        %1223 = vmatprep.subr.bf16.mxu0 0
        %1224 = vmatpush1.bf16.xpose.msra.mxu0 0
        %1225 = vmatprep.subr.bf16.mxu0 0
        %1226 = vmatpush1.bf16.xpose.msra.mxu0 0
        %1227 = vmatprep.subr.bf16.mxu0 0
        %1228 = vmatpush1.bf16.xpose.msra.mxu0 0
        %1229 = vmatprep.subr.bf16.mxu0 0
        %1230 = vmatpush1.bf16.xpose.msra.mxu0 0
        %1231 = vmatprep.mubr.bf16.mxu0 0
        %1232 = vmatmul.mubr.bf16.gmra.mrb[0].mxu0 %v1194
        %v1233 = vpop.f32.mrb[0].mxu0
        %v1234 = vadd.f32 0.0, %v1233
        %v1235 = vpop.f32.mrb[0].mxu0
        %v1236 = vpop.f32.mrb[0].mxu0
        %v1237 = vpop.f32.mrb[0].mxu0
        %1238 = vdwg.mxu0
        %v1239 = vmul.f32 %v1234, 0.35355338
        %v1240 = vsel %vm967, %v1239, -inf
        %1241 = vmax.xlane.f32.xlu0 %v1240
        %v1242 = vpop.xlane.xlu0 %1241
        %v1243 = vsub.f32 %v1239, %v1242
        %v1244 = vmul.f32 %v1243, 1.442695
        %v1245 = vpow.pop %v1244
        %v1246 = vsel %vm967, %v1245, 0.0
        %1247 = vadd.xlane.f32.xlu0 %v1246
        %v1248 = vpop.xlane.xlu0 %1247
        %v1249 = vrcp.pop %v1248
        %v1250 = vmul.f32 %v1245, %v1249
        %v1251 = vpack.c.bf16 %v1250, %v1250
        %1252 = vrot.lane.b32.xlu0 %v966, 80
        %v1253 = vpop.permute.xlu0 %1252
        %v1255 = vsel %vm967, %v1251, 0
        %v1258 = vsel %vm1033, %v1253, 0
        %1260 = vmatprep.subr.bf16.mxu0 0
        %1261 = vmatpush1.bf16.msra.mxu0 %v1258
        %1262 = vmatprep.subr.bf16.mxu0 0
        %1263 = vmatpush1.bf16.msra.mxu0 0
        %1264 = vmatprep.subr.bf16.mxu0 0
        %1265 = vmatpush1.bf16.msra.mxu0 0
        %1266 = vmatprep.subr.bf16.mxu0 0
        %1267 = vmatpush1.bf16.msra.mxu0 0
        %1268 = vmatprep.subr.bf16.mxu0 0
        %1269 = vmatpush1.bf16.msra.mxu0 0
        %1270 = vmatprep.subr.bf16.mxu0 0
        %1271 = vmatpush1.bf16.msra.mxu0 0
        %1272 = vmatprep.subr.bf16.mxu0 0
        %1273 = vmatpush1.bf16.msra.mxu0 0
        %1274 = vmatprep.subr.bf16.mxu0 0
        %1275 = vmatpush1.bf16.msra.mxu0 0
        %1276 = vmatprep.subr.bf16.mxu0 0
        %1277 = vmatpush1.bf16.msra.mxu0 0
        %1278 = vmatprep.subr.bf16.mxu0 0
        %1279 = vmatpush1.bf16.msra.mxu0 0
        %1280 = vmatprep.subr.bf16.mxu0 0
        %1281 = vmatpush1.bf16.msra.mxu0 0
        %1282 = vmatprep.subr.bf16.mxu0 0
        %1283 = vmatpush1.bf16.msra.mxu0 0
        %1284 = vmatprep.subr.bf16.mxu0 0
        %1285 = vmatpush1.bf16.msra.mxu0 0
        %1286 = vmatprep.subr.bf16.mxu0 0
        %1287 = vmatpush1.bf16.msra.mxu0 0
        %1288 = vmatprep.subr.bf16.mxu0 0
        %1289 = vmatpush1.bf16.msra.mxu0 0
        %1290 = vmatprep.subr.bf16.mxu0 0
        %1291 = vmatpush1.bf16.msra.mxu0 0
        %1292 = vmatprep.mubr.bf16.mxu0 0
        %1293 = vmatmul.mubr.bf16.gmra.mrb[0].mxu0 %v1255
        %v1294 = vpop.f32.mrb[0].mxu0
        %v1295 = vadd.f32 0.0, %v1294
        %v1296 = vpop.f32.mrb[0].mxu0
        %v1297 = vpop.f32.mrb[0].mxu0
        %v1298 = vpop.f32.mrb[0].mxu0
        %1299 = vdwg.mxu0
        %1300 = vrot.lane.b32.xlu0 %v965, 104
        %v1301 = vpop.permute.xlu0 %1300
        %1302 = vrot.lane.b32.xlu0 %v966, 104
        %v1303 = vpop.permute.xlu0 %1302
        %v1305 = vsel %vm967, %v1301, 0
        %v1308 = vsel %vm967, %v1303, 0
        %1310 = vmatprep.subr.bf16.mxu0 0
        %1311 = vmatpush1.bf16.xpose.msra.mxu0 %v1308
        %1312 = vmatprep.subr.bf16.mxu0 0
        %1313 = vmatpush1.bf16.xpose.msra.mxu0 0
        %1314 = vmatprep.subr.bf16.mxu0 0
        %1315 = vmatpush1.bf16.xpose.msra.mxu0 0
        %1316 = vmatprep.subr.bf16.mxu0 0
        %1317 = vmatpush1.bf16.xpose.msra.mxu0 0
        %1318 = vmatprep.subr.bf16.mxu0 0
        %1319 = vmatpush1.bf16.xpose.msra.mxu0 0
        %1320 = vmatprep.subr.bf16.mxu0 0
        %1321 = vmatpush1.bf16.xpose.msra.mxu0 0
        %1322 = vmatprep.subr.bf16.mxu0 0
        %1323 = vmatpush1.bf16.xpose.msra.mxu0 0
        %1324 = vmatprep.subr.bf16.mxu0 0
        %1325 = vmatpush1.bf16.xpose.msra.mxu0 0
        %1326 = vmatprep.subr.bf16.mxu0 0
        %1327 = vmatpush1.bf16.xpose.msra.mxu0 0
        %1328 = vmatprep.subr.bf16.mxu0 0
        %1329 = vmatpush1.bf16.xpose.msra.mxu0 0
        %1330 = vmatprep.subr.bf16.mxu0 0
        %1331 = vmatpush1.bf16.xpose.msra.mxu0 0
        %1332 = vmatprep.subr.bf16.mxu0 0
        %1333 = vmatpush1.bf16.xpose.msra.mxu0 0
        %1334 = vmatprep.subr.bf16.mxu0 0
        %1335 = vmatpush1.bf16.xpose.msra.mxu0 0
        %1336 = vmatprep.subr.bf16.mxu0 0
        %1337 = vmatpush1.bf16.xpose.msra.mxu0 0
        %1338 = vmatprep.subr.bf16.mxu0 0
        %1339 = vmatpush1.bf16.xpose.msra.mxu0 0
        %1340 = vmatprep.subr.bf16.mxu0 0
        %1341 = vmatpush1.bf16.xpose.msra.mxu0 0
        %1342 = vmatprep.mubr.bf16.mxu0 0
        %1343 = vmatmul.mubr.bf16.gmra.mrb[0].mxu0 %v1305
        %v1344 = vpop.f32.mrb[0].mxu0
        %v1345 = vadd.f32 0.0, %v1344
        %v1346 = vpop.f32.mrb[0].mxu0
        %v1347 = vpop.f32.mrb[0].mxu0
        %v1348 = vpop.f32.mrb[0].mxu0
        %1349 = vdwg.mxu0
        %v1350 = vmul.f32 %v1345, 0.35355338
        %v1351 = vsel %vm967, %v1350, -inf
        %1352 = vmax.xlane.f32.xlu0 %v1351
        %v1353 = vpop.xlane.xlu0 %1352
        %v1354 = vsub.f32 %v1350, %v1353
        %v1355 = vmul.f32 %v1354, 1.442695
        %v1356 = vpow.pop %v1355
        %v1357 = vsel %vm967, %v1356, 0.0
        %1358 = vadd.xlane.f32.xlu0 %v1357
        %v1359 = vpop.xlane.xlu0 %1358
        %v1360 = vrcp.pop %v1359
        %v1361 = vmul.f32 %v1356, %v1360
        %v1362 = vpack.c.bf16 %v1361, %v1361
        %1363 = vrot.lane.b32.xlu0 %v966, 72
        %v1364 = vpop.permute.xlu0 %1363
        %v1366 = vsel %vm967, %v1362, 0
        %v1369 = vsel %vm1033, %v1364, 0
        %1371 = vmatprep.subr.bf16.mxu0 0
        %1372 = vmatpush1.bf16.msra.mxu0 %v1369
        %1373 = vmatprep.subr.bf16.mxu0 0
        %1374 = vmatpush1.bf16.msra.mxu0 0
        %1375 = vmatprep.subr.bf16.mxu0 0
        %1376 = vmatpush1.bf16.msra.mxu0 0
        %1377 = vmatprep.subr.bf16.mxu0 0
        %1378 = vmatpush1.bf16.msra.mxu0 0
        %1379 = vmatprep.subr.bf16.mxu0 0
        %1380 = vmatpush1.bf16.msra.mxu0 0
        %1381 = vmatprep.subr.bf16.mxu0 0
        %1382 = vmatpush1.bf16.msra.mxu0 0
        %1383 = vmatprep.subr.bf16.mxu0 0
        %1384 = vmatpush1.bf16.msra.mxu0 0
        %1385 = vmatprep.subr.bf16.mxu0 0
        %1386 = vmatpush1.bf16.msra.mxu0 0
        %1387 = vmatprep.subr.bf16.mxu0 0
        %1388 = vmatpush1.bf16.msra.mxu0 0
        %1389 = vmatprep.subr.bf16.mxu0 0
        %1390 = vmatpush1.bf16.msra.mxu0 0
        %1391 = vmatprep.subr.bf16.mxu0 0
        %1392 = vmatpush1.bf16.msra.mxu0 0
        %1393 = vmatprep.subr.bf16.mxu0 0
        %1394 = vmatpush1.bf16.msra.mxu0 0
        %1395 = vmatprep.subr.bf16.mxu0 0
        %1396 = vmatpush1.bf16.msra.mxu0 0
        %1397 = vmatprep.subr.bf16.mxu0 0
        %1398 = vmatpush1.bf16.msra.mxu0 0
        %1399 = vmatprep.subr.bf16.mxu0 0
        %1400 = vmatpush1.bf16.msra.mxu0 0
        %1401 = vmatprep.subr.bf16.mxu0 0
        %1402 = vmatpush1.bf16.msra.mxu0 0
        %1403 = vmatprep.mubr.bf16.mxu0 0
        %1404 = vmatmul.mubr.bf16.gmra.mrb[0].mxu0 %v1366
        %v1405 = vpop.f32.mrb[0].mxu0
        %v1406 = vadd.f32 0.0, %v1405
        %v1407 = vpop.f32.mrb[0].mxu0
        %v1408 = vpop.f32.mrb[0].mxu0
        %v1409 = vpop.f32.mrb[0].mxu0
        %1410 = vdwg.mxu0
        %1412 = vrot.lane.b32.xlu0 %v1184, 8
        %v1413 = vpop.permute.xlu0 %1412
        %1416 = vrot.lane.b32.xlu0 %v1295, 16
        %v1417 = vpop.permute.xlu0 %1416
        %1420 = vrot.lane.b32.xlu0 %v1406, 24
        %v1421 = vpop.permute.xlu0 %1420
        %v1423 = vsel %vm967, %v1072, %v1413
        %vm1424 = vcmask 130048
        %v1425 = vsel %vm1424, %v1423, %v1417
        %vm1426 = vcmask 195584
        %v1427 = vsel %vm1426, %v1425, %v1421
        %v1428 = vpack.c.bf16 %v1427, %v1427
        %v1430 = vlaneseq
        %v1431 = vshrl.u32 %v1430, 7
        %v1432 = vsub.s32 0, %v1431
        %v1433 = vrot.slane %v843, %v1432
        %v1439 = vunpack.c.l.b16 %v839
        %v1440 = vunpack.c.l.b16 %v840
        %v1441 = vunpack.c.l.b16 %v841
        %v1442 = vunpack.c.l.b16 %v842
        %v1443 = vpack.c.b16 %v1440, %v1439
        %v1444 = vpack.c.b16 %v1442, %v1441
        %v1448 = vsel %vm863, %v1428, 0
        %1450 = vmatprep.subr.bf16.mxu0 0
        %1451 = vmatpush1.bf16.msra.mxu0 %v1443
        %1452 = vmatprep.subr.bf16.mxu0 0
        %1453 = vmatpush1.bf16.msra.mxu0 %v1444
        %1454 = vmatprep.subr.bf16.mxu0 0
        %1455 = vmatpush1.bf16.msra.mxu0 0
        %1456 = vmatprep.subr.bf16.mxu0 0
        %1457 = vmatpush1.bf16.msra.mxu0 0
        %1458 = vmatprep.subr.bf16.mxu0 0
        %1459 = vmatpush1.bf16.msra.mxu0 0
        %1460 = vmatprep.subr.bf16.mxu0 0
        %1461 = vmatpush1.bf16.msra.mxu0 0
        %1462 = vmatprep.subr.bf16.mxu0 0
        %1463 = vmatpush1.bf16.msra.mxu0 0
        %1464 = vmatprep.subr.bf16.mxu0 0
        %1465 = vmatpush1.bf16.msra.mxu0 0
        %1466 = vmatprep.subr.bf16.mxu0 0
        %1467 = vmatpush1.bf16.msra.mxu0 0
        %1468 = vmatprep.subr.bf16.mxu0 0
        %1469 = vmatpush1.bf16.msra.mxu0 0
        %1470 = vmatprep.subr.bf16.mxu0 0
        %1471 = vmatpush1.bf16.msra.mxu0 0
        %1472 = vmatprep.subr.bf16.mxu0 0
        %1473 = vmatpush1.bf16.msra.mxu0 0
        %1474 = vmatprep.subr.bf16.mxu0 0
        %1475 = vmatpush1.bf16.msra.mxu0 0
        %1476 = vmatprep.subr.bf16.mxu0 0
        %1477 = vmatpush1.bf16.msra.mxu0 0
        %1478 = vmatprep.subr.bf16.mxu0 0
        %1479 = vmatpush1.bf16.msra.mxu0 0
        %1480 = vmatprep.subr.bf16.mxu0 0
        %1481 = vmatpush1.bf16.msra.mxu0 0
        %1482 = vmatprep.mubr.bf16.mxu0 0
        %1483 = vmatmul.mubr.bf16.gmra.mrb[0].mxu0 %v1448
        %v1484 = vpop.f32.mrb[0].mxu0
        %v1485 = vadd.f32 %v1433, %v1484
        %v1486 = vpop.f32.mrb[0].mxu0
        %v1487 = vpop.f32.mrb[0].mxu0
        %v1488 = vpop.f32.mrb[0].mxu0
        %1489 = vdwg.mxu0
        %v1490 = vadd.f32 %v1485, %v827
        %v1491 = vld [vmem:[%s8] sm:$0x1]
        %v1492 = vld [vmem:[%s9] sm:$0x1]
        %v1493 = vsel %vm863, %v1490, 0.0
        %1494 = vadd.xlane.f32.xlu0 %v1493
        %v1495 = vpop.xlane.xlu0 %1494
        %v1496 = vrcp.pop 32.0
        %v1497 = vmul.f32 %v1495, %v1496
        %v1498 = vsub.f32 %v1490, %v1497
        %v1499 = vmul.f32 %v1498, %v1498
        %v1500 = vsel %vm863, %v1499, 0.0
        %1501 = vadd.xlane.f32.xlu0 %v1500
        %v1502 = vpop.xlane.xlu0 %1501
        %v1503 = vmul.f32 %v1502, %v1496
        %v1504 = vadd.f32 %v1503, 1e-05
        %v1505 = vrsqrt.pop %v1504
        %v1506 = vmul.f32 %v1498, %v1505
        %v1508 = vlaneseq
        %v1509 = vshrl.u32 %v1508, 7
        %v1510 = vsub.s32 0, %v1509
        %v1511 = vrot.slane %v1491, %v1510
        %v1513 = vmul.f32 %v1506, %v1511
        %v1515 = vlaneseq
        %v1516 = vshrl.u32 %v1515, 7
        %v1517 = vsub.s32 0, %v1516
        %v1518 = vrot.slane %v1492, %v1517
        %v1520 = vadd.f32 %v1513, %v1518
        %v1521 = vld [vmem:[%s10] sm:$0xf]
        %v1522 = vld [vmem:[%s10 + $0x4] sm:$0xf]
        %v1523 = vld [vmem:[%s10 + $0x8] sm:$0xf]
        %v1524 = vld [vmem:[%s10 + $0xc] sm:$0xf]
        %v1525 = vld [vmem:[%s11] sm:$0x1]
        %v1526 = vld [vmem:[%s12] sm:$0xf]
        %v1527 = vld [vmem:[%s12 + $0x4] sm:$0xf]
        %v1528 = vld [vmem:[%s12 + $0x8] sm:$0xf]
        %v1529 = vld [vmem:[%s12 + $0xc] sm:$0xf]
        %v1530 = vld [vmem:[%s13] sm:$0x1]
        %v1531 = vld [vmem:[%s14] sm:$0xf]
        %v1532 = vld [vmem:[%s14 + $0x4] sm:$0xf]
        %v1533 = vld [vmem:[%s14 + $0x8] sm:$0xf]
        %v1534 = vld [vmem:[%s14 + $0xc] sm:$0xf]
        %v1535 = vld [vmem:[%s15] sm:$0x1]
        %v1536 = vpack.c.bf16 %v1520, %v1520
        %v1537 = vpack.c.bf16 %v828, %v828
        %v1539 = vlaneseq
        %v1540 = vshrl.u32 %v1539, 7
        %v1541 = vsub.s32 0, %v1540
        %v1542 = vrot.slane %v1525, %v1541
        %v1548 = vunpack.c.l.b16 %v1521
        %v1549 = vunpack.c.l.b16 %v1522
        %v1550 = vunpack.c.l.b16 %v1523
        %v1551 = vunpack.c.l.b16 %v1524
        %v1552 = vpack.c.b16 %v1549, %v1548
        %v1553 = vpack.c.b16 %v1551, %v1550
        %v1557 = vsel %vm863, %v1536, 0
        %1559 = vmatprep.subr.bf16.mxu0 0
        %1560 = vmatpush1.bf16.msra.mxu0 %v1552
        %1561 = vmatprep.subr.bf16.mxu0 0
        %1562 = vmatpush1.bf16.msra.mxu0 %v1553
        %1563 = vmatprep.subr.bf16.mxu0 0
        %1564 = vmatpush1.bf16.msra.mxu0 0
        %1565 = vmatprep.subr.bf16.mxu0 0
        %1566 = vmatpush1.bf16.msra.mxu0 0
        %1567 = vmatprep.subr.bf16.mxu0 0
        %1568 = vmatpush1.bf16.msra.mxu0 0
        %1569 = vmatprep.subr.bf16.mxu0 0
        %1570 = vmatpush1.bf16.msra.mxu0 0
        %1571 = vmatprep.subr.bf16.mxu0 0
        %1572 = vmatpush1.bf16.msra.mxu0 0
        %1573 = vmatprep.subr.bf16.mxu0 0
        %1574 = vmatpush1.bf16.msra.mxu0 0
        %1575 = vmatprep.subr.bf16.mxu0 0
        %1576 = vmatpush1.bf16.msra.mxu0 0
        %1577 = vmatprep.subr.bf16.mxu0 0
        %1578 = vmatpush1.bf16.msra.mxu0 0
        %1579 = vmatprep.subr.bf16.mxu0 0
        %1580 = vmatpush1.bf16.msra.mxu0 0
        %1581 = vmatprep.subr.bf16.mxu0 0
        %1582 = vmatpush1.bf16.msra.mxu0 0
        %1583 = vmatprep.subr.bf16.mxu0 0
        %1584 = vmatpush1.bf16.msra.mxu0 0
        %1585 = vmatprep.subr.bf16.mxu0 0
        %1586 = vmatpush1.bf16.msra.mxu0 0
        %1587 = vmatprep.subr.bf16.mxu0 0
        %1588 = vmatpush1.bf16.msra.mxu0 0
        %1589 = vmatprep.subr.bf16.mxu0 0
        %1590 = vmatpush1.bf16.msra.mxu0 0
        %1591 = vmatprep.mubr.bf16.mxu0 0
        %1592 = vmatmul.mubr.bf16.gmra.mrb[0].mxu0 %v1557
        %v1593 = vpop.f32.mrb[0].mxu0
        %v1594 = vadd.f32 %v1542, %v1593
        %v1595 = vpop.f32.mrb[0].mxu0
        %v1596 = vpop.f32.mrb[0].mxu0
        %v1597 = vpop.f32.mrb[0].mxu0
        %1598 = vdwg.mxu0
        %v1600 = vlaneseq
        %v1601 = vshrl.u32 %v1600, 7
        %v1602 = vsub.s32 0, %v1601
        %v1603 = vrot.slane %v1530, %v1602
        %v1609 = vunpack.c.l.b16 %v1526
        %v1610 = vunpack.c.l.b16 %v1527
        %v1611 = vunpack.c.l.b16 %v1528
        %v1612 = vunpack.c.l.b16 %v1529
        %v1613 = vpack.c.b16 %v1610, %v1609
        %v1614 = vpack.c.b16 %v1612, %v1611
        %v1618 = vsel %vm863, %v1537, 0
        %1620 = vmatprep.subr.bf16.mxu0 0
        %1621 = vmatpush1.bf16.msra.mxu0 %v1613
        %1622 = vmatprep.subr.bf16.mxu0 0
        %1623 = vmatpush1.bf16.msra.mxu0 %v1614
        %1624 = vmatprep.subr.bf16.mxu0 0
        %1625 = vmatpush1.bf16.msra.mxu0 0
        %1626 = vmatprep.subr.bf16.mxu0 0
        %1627 = vmatpush1.bf16.msra.mxu0 0
        %1628 = vmatprep.subr.bf16.mxu0 0
        %1629 = vmatpush1.bf16.msra.mxu0 0
        %1630 = vmatprep.subr.bf16.mxu0 0
        %1631 = vmatpush1.bf16.msra.mxu0 0
        %1632 = vmatprep.subr.bf16.mxu0 0
        %1633 = vmatpush1.bf16.msra.mxu0 0
        %1634 = vmatprep.subr.bf16.mxu0 0
        %1635 = vmatpush1.bf16.msra.mxu0 0
        %1636 = vmatprep.subr.bf16.mxu0 0
        %1637 = vmatpush1.bf16.msra.mxu0 0
        %1638 = vmatprep.subr.bf16.mxu0 0
        %1639 = vmatpush1.bf16.msra.mxu0 0
        %1640 = vmatprep.subr.bf16.mxu0 0
        %1641 = vmatpush1.bf16.msra.mxu0 0
        %1642 = vmatprep.subr.bf16.mxu0 0
        %1643 = vmatpush1.bf16.msra.mxu0 0
        %1644 = vmatprep.subr.bf16.mxu0 0
        %1645 = vmatpush1.bf16.msra.mxu0 0
        %1646 = vmatprep.subr.bf16.mxu0 0
        %1647 = vmatpush1.bf16.msra.mxu0 0
        %1648 = vmatprep.subr.bf16.mxu0 0
        %1649 = vmatpush1.bf16.msra.mxu0 0
        %1650 = vmatprep.subr.bf16.mxu0 0
        %1651 = vmatpush1.bf16.msra.mxu0 0
        %1652 = vmatprep.mubr.bf16.mxu0 0
        %1653 = vmatmul.mubr.bf16.gmra.mrb[0].mxu0 %v1618
        %v1654 = vpop.f32.mrb[0].mxu0
        %v1655 = vadd.f32 %v1603, %v1654
        %v1656 = vpop.f32.mrb[0].mxu0
        %v1657 = vpop.f32.mrb[0].mxu0
        %v1658 = vpop.f32.mrb[0].mxu0
        %1659 = vdwg.mxu0
        %v1660 = vpack.c.bf16 %v1594, %v1594
        %v1661 = vpack.c.bf16 %v1655, %v1655
        %v1663 = vsel %vm967, %v1660, 0
        %v1666 = vsel %vm967, %v1661, 0
        %1668 = vmatprep.subr.bf16.mxu0 0
        %1669 = vmatpush1.bf16.xpose.msra.mxu0 %v1666
        %1670 = vmatprep.subr.bf16.mxu0 0
        %1671 = vmatpush1.bf16.xpose.msra.mxu0 0
        %1672 = vmatprep.subr.bf16.mxu0 0
        %1673 = vmatpush1.bf16.xpose.msra.mxu0 0
        %1674 = vmatprep.subr.bf16.mxu0 0
        %1675 = vmatpush1.bf16.xpose.msra.mxu0 0
        %1676 = vmatprep.subr.bf16.mxu0 0
        %1677 = vmatpush1.bf16.xpose.msra.mxu0 0
        %1678 = vmatprep.subr.bf16.mxu0 0
        %1679 = vmatpush1.bf16.xpose.msra.mxu0 0
        %1680 = vmatprep.subr.bf16.mxu0 0
        %1681 = vmatpush1.bf16.xpose.msra.mxu0 0
        %1682 = vmatprep.subr.bf16.mxu0 0
        %1683 = vmatpush1.bf16.xpose.msra.mxu0 0
        %1684 = vmatprep.subr.bf16.mxu0 0
        %1685 = vmatpush1.bf16.xpose.msra.mxu0 0
        %1686 = vmatprep.subr.bf16.mxu0 0
        %1687 = vmatpush1.bf16.xpose.msra.mxu0 0
        %1688 = vmatprep.subr.bf16.mxu0 0
        %1689 = vmatpush1.bf16.xpose.msra.mxu0 0
        %1690 = vmatprep.subr.bf16.mxu0 0
        %1691 = vmatpush1.bf16.xpose.msra.mxu0 0
        %1692 = vmatprep.subr.bf16.mxu0 0
        %1693 = vmatpush1.bf16.xpose.msra.mxu0 0
        %1694 = vmatprep.subr.bf16.mxu0 0
        %1695 = vmatpush1.bf16.xpose.msra.mxu0 0
        %1696 = vmatprep.subr.bf16.mxu0 0
        %1697 = vmatpush1.bf16.xpose.msra.mxu0 0
        %1698 = vmatprep.subr.bf16.mxu0 0
        %1699 = vmatpush1.bf16.xpose.msra.mxu0 0
        %1700 = vmatprep.mubr.bf16.mxu0 0
        %1701 = vmatmul.mubr.bf16.gmra.mrb[0].mxu0 %v1663
        %v1702 = vpop.f32.mrb[0].mxu0
        %v1703 = vadd.f32 0.0, %v1702
        %v1704 = vpop.f32.mrb[0].mxu0
        %v1705 = vpop.f32.mrb[0].mxu0
        %v1706 = vpop.f32.mrb[0].mxu0
        %1707 = vdwg.mxu0
        %v1708 = vmul.f32 %v1703, 0.35355338
        %v1709 = vsel %vm967, %v1708, -inf
        %1710 = vmax.xlane.f32.xlu0 %v1709
        %v1711 = vpop.xlane.xlu0 %1710
        %v1712 = vsub.f32 %v1708, %v1711
        %v1713 = vmul.f32 %v1712, 1.442695
        %v1714 = vpow.pop %v1713
        %v1715 = vsel %vm967, %v1714, 0.0
        %1716 = vadd.xlane.f32.xlu0 %v1715
        %v1717 = vpop.xlane.xlu0 %1716
        %v1718 = vrcp.pop %v1717
        %v1719 = vmul.f32 %v1714, %v1718
        %v1720 = vpack.c.bf16 %v1719, %v1719
        %1722 = vrot.lane.b32.xlu0 %v1661, 96
        %v1723 = vpop.permute.xlu0 %1722
        %v1725 = vsel %vm967, %v1720, 0
        %v1728 = vsel %vm1033, %v1723, 0
        %1730 = vmatprep.subr.bf16.mxu0 0
        %1731 = vmatpush1.bf16.msra.mxu0 %v1728
        %1732 = vmatprep.subr.bf16.mxu0 0
        %1733 = vmatpush1.bf16.msra.mxu0 0
        %1734 = vmatprep.subr.bf16.mxu0 0
        %1735 = vmatpush1.bf16.msra.mxu0 0
        %1736 = vmatprep.subr.bf16.mxu0 0
        %1737 = vmatpush1.bf16.msra.mxu0 0
        %1738 = vmatprep.subr.bf16.mxu0 0
        %1739 = vmatpush1.bf16.msra.mxu0 0
        %1740 = vmatprep.subr.bf16.mxu0 0
        %1741 = vmatpush1.bf16.msra.mxu0 0
        %1742 = vmatprep.subr.bf16.mxu0 0
        %1743 = vmatpush1.bf16.msra.mxu0 0
        %1744 = vmatprep.subr.bf16.mxu0 0
        %1745 = vmatpush1.bf16.msra.mxu0 0
        %1746 = vmatprep.subr.bf16.mxu0 0
        %1747 = vmatpush1.bf16.msra.mxu0 0
        %1748 = vmatprep.subr.bf16.mxu0 0
        %1749 = vmatpush1.bf16.msra.mxu0 0
        %1750 = vmatprep.subr.bf16.mxu0 0
        %1751 = vmatpush1.bf16.msra.mxu0 0
        %1752 = vmatprep.subr.bf16.mxu0 0
        %1753 = vmatpush1.bf16.msra.mxu0 0
        %1754 = vmatprep.subr.bf16.mxu0 0
        %1755 = vmatpush1.bf16.msra.mxu0 0
        %1756 = vmatprep.subr.bf16.mxu0 0
        %1757 = vmatpush1.bf16.msra.mxu0 0
        %1758 = vmatprep.subr.bf16.mxu0 0
        %1759 = vmatpush1.bf16.msra.mxu0 0
        %1760 = vmatprep.subr.bf16.mxu0 0
        %1761 = vmatpush1.bf16.msra.mxu0 0
        %1762 = vmatprep.mubr.bf16.mxu0 0
        %1763 = vmatmul.mubr.bf16.gmra.mrb[0].mxu0 %v1725
        %v1764 = vpop.f32.mrb[0].mxu0
        %v1765 = vadd.f32 0.0, %v1764
        %v1766 = vpop.f32.mrb[0].mxu0
        %v1767 = vpop.f32.mrb[0].mxu0
        %v1768 = vpop.f32.mrb[0].mxu0
        %1769 = vdwg.mxu0
        %1771 = vrot.lane.b32.xlu0 %v1660, 120
        %v1772 = vpop.permute.xlu0 %1771
        %1773 = vrot.lane.b32.xlu0 %v1661, 120
        %v1774 = vpop.permute.xlu0 %1773
        %v1776 = vsel %vm967, %v1772, 0
        %v1779 = vsel %vm967, %v1774, 0
        %1781 = vmatprep.subr.bf16.mxu0 0
        %1782 = vmatpush1.bf16.xpose.msra.mxu0 %v1779
        %1783 = vmatprep.subr.bf16.mxu0 0
        %1784 = vmatpush1.bf16.xpose.msra.mxu0 0
        %1785 = vmatprep.subr.bf16.mxu0 0
        %1786 = vmatpush1.bf16.xpose.msra.mxu0 0
        %1787 = vmatprep.subr.bf16.mxu0 0
        %1788 = vmatpush1.bf16.xpose.msra.mxu0 0
        %1789 = vmatprep.subr.bf16.mxu0 0
        %1790 = vmatpush1.bf16.xpose.msra.mxu0 0
        %1791 = vmatprep.subr.bf16.mxu0 0
        %1792 = vmatpush1.bf16.xpose.msra.mxu0 0
        %1793 = vmatprep.subr.bf16.mxu0 0
        %1794 = vmatpush1.bf16.xpose.msra.mxu0 0
        %1795 = vmatprep.subr.bf16.mxu0 0
        %1796 = vmatpush1.bf16.xpose.msra.mxu0 0
        %1797 = vmatprep.subr.bf16.mxu0 0
        %1798 = vmatpush1.bf16.xpose.msra.mxu0 0
        %1799 = vmatprep.subr.bf16.mxu0 0
        %1800 = vmatpush1.bf16.xpose.msra.mxu0 0
        %1801 = vmatprep.subr.bf16.mxu0 0
        %1802 = vmatpush1.bf16.xpose.msra.mxu0 0
        %1803 = vmatprep.subr.bf16.mxu0 0
        %1804 = vmatpush1.bf16.xpose.msra.mxu0 0
        %1805 = vmatprep.subr.bf16.mxu0 0
        %1806 = vmatpush1.bf16.xpose.msra.mxu0 0
        %1807 = vmatprep.subr.bf16.mxu0 0
        %1808 = vmatpush1.bf16.xpose.msra.mxu0 0
        %1809 = vmatprep.subr.bf16.mxu0 0
        %1810 = vmatpush1.bf16.xpose.msra.mxu0 0
        %1811 = vmatprep.subr.bf16.mxu0 0
        %1812 = vmatpush1.bf16.xpose.msra.mxu0 0
        %1813 = vmatprep.mubr.bf16.mxu0 0
        %1814 = vmatmul.mubr.bf16.gmra.mrb[0].mxu0 %v1776
        %v1815 = vpop.f32.mrb[0].mxu0
        %v1816 = vadd.f32 0.0, %v1815
        %v1817 = vpop.f32.mrb[0].mxu0
        %v1818 = vpop.f32.mrb[0].mxu0
        %v1819 = vpop.f32.mrb[0].mxu0
        %1820 = vdwg.mxu0
        %v1821 = vmul.f32 %v1816, 0.35355338
        %v1822 = vsel %vm967, %v1821, -inf
        %1823 = vmax.xlane.f32.xlu0 %v1822
        %v1824 = vpop.xlane.xlu0 %1823
        %v1825 = vsub.f32 %v1821, %v1824
        %v1826 = vmul.f32 %v1825, 1.442695
        %v1827 = vpow.pop %v1826
        %v1828 = vsel %vm967, %v1827, 0.0
        %1829 = vadd.xlane.f32.xlu0 %v1828
        %v1830 = vpop.xlane.xlu0 %1829
        %v1831 = vrcp.pop %v1830
        %v1832 = vmul.f32 %v1827, %v1831
        %v1833 = vpack.c.bf16 %v1832, %v1832
        %1834 = vrot.lane.b32.xlu0 %v1661, 88
        %v1835 = vpop.permute.xlu0 %1834
        %v1837 = vsel %vm967, %v1833, 0
        %v1840 = vsel %vm1033, %v1835, 0
        %1842 = vmatprep.subr.bf16.mxu0 0
        %1843 = vmatpush1.bf16.msra.mxu0 %v1840
        %1844 = vmatprep.subr.bf16.mxu0 0
        %1845 = vmatpush1.bf16.msra.mxu0 0
        %1846 = vmatprep.subr.bf16.mxu0 0
        %1847 = vmatpush1.bf16.msra.mxu0 0
        %1848 = vmatprep.subr.bf16.mxu0 0
        %1849 = vmatpush1.bf16.msra.mxu0 0
        %1850 = vmatprep.subr.bf16.mxu0 0
        %1851 = vmatpush1.bf16.msra.mxu0 0
        %1852 = vmatprep.subr.bf16.mxu0 0
        %1853 = vmatpush1.bf16.msra.mxu0 0
        %1854 = vmatprep.subr.bf16.mxu0 0
        %1855 = vmatpush1.bf16.msra.mxu0 0
        %1856 = vmatprep.subr.bf16.mxu0 0
        %1857 = vmatpush1.bf16.msra.mxu0 0
        %1858 = vmatprep.subr.bf16.mxu0 0
        %1859 = vmatpush1.bf16.msra.mxu0 0
        %1860 = vmatprep.subr.bf16.mxu0 0
        %1861 = vmatpush1.bf16.msra.mxu0 0
        %1862 = vmatprep.subr.bf16.mxu0 0
        %1863 = vmatpush1.bf16.msra.mxu0 0
        %1864 = vmatprep.subr.bf16.mxu0 0
        %1865 = vmatpush1.bf16.msra.mxu0 0
        %1866 = vmatprep.subr.bf16.mxu0 0
        %1867 = vmatpush1.bf16.msra.mxu0 0
        %1868 = vmatprep.subr.bf16.mxu0 0
        %1869 = vmatpush1.bf16.msra.mxu0 0
        %1870 = vmatprep.subr.bf16.mxu0 0
        %1871 = vmatpush1.bf16.msra.mxu0 0
        %1872 = vmatprep.subr.bf16.mxu0 0
        %1873 = vmatpush1.bf16.msra.mxu0 0
        %1874 = vmatprep.mubr.bf16.mxu0 0
        %1875 = vmatmul.mubr.bf16.gmra.mrb[0].mxu0 %v1837
        %v1876 = vpop.f32.mrb[0].mxu0
        %v1877 = vadd.f32 0.0, %v1876
        %v1878 = vpop.f32.mrb[0].mxu0
        %v1879 = vpop.f32.mrb[0].mxu0
        %v1880 = vpop.f32.mrb[0].mxu0
        %1881 = vdwg.mxu0
        %1882 = vrot.lane.b32.xlu0 %v1660, 112
        %v1883 = vpop.permute.xlu0 %1882
        %1884 = vrot.lane.b32.xlu0 %v1661, 112
        %v1885 = vpop.permute.xlu0 %1884
        %v1887 = vsel %vm967, %v1883, 0
        %v1890 = vsel %vm967, %v1885, 0
        %1892 = vmatprep.subr.bf16.mxu0 0
        %1893 = vmatpush1.bf16.xpose.msra.mxu0 %v1890
        %1894 = vmatprep.subr.bf16.mxu0 0
        %1895 = vmatpush1.bf16.xpose.msra.mxu0 0
        %1896 = vmatprep.subr.bf16.mxu0 0
        %1897 = vmatpush1.bf16.xpose.msra.mxu0 0
        %1898 = vmatprep.subr.bf16.mxu0 0
        %1899 = vmatpush1.bf16.xpose.msra.mxu0 0
        %1900 = vmatprep.subr.bf16.mxu0 0
        %1901 = vmatpush1.bf16.xpose.msra.mxu0 0
        %1902 = vmatprep.subr.bf16.mxu0 0
        %1903 = vmatpush1.bf16.xpose.msra.mxu0 0
        %1904 = vmatprep.subr.bf16.mxu0 0
        %1905 = vmatpush1.bf16.xpose.msra.mxu0 0
        %1906 = vmatprep.subr.bf16.mxu0 0
        %1907 = vmatpush1.bf16.xpose.msra.mxu0 0
        %1908 = vmatprep.subr.bf16.mxu0 0
        %1909 = vmatpush1.bf16.xpose.msra.mxu0 0
        %1910 = vmatprep.subr.bf16.mxu0 0
        %1911 = vmatpush1.bf16.xpose.msra.mxu0 0
        %1912 = vmatprep.subr.bf16.mxu0 0
        %1913 = vmatpush1.bf16.xpose.msra.mxu0 0
        %1914 = vmatprep.subr.bf16.mxu0 0
        %1915 = vmatpush1.bf16.xpose.msra.mxu0 0
        %1916 = vmatprep.subr.bf16.mxu0 0
        %1917 = vmatpush1.bf16.xpose.msra.mxu0 0
        %1918 = vmatprep.subr.bf16.mxu0 0
        %1919 = vmatpush1.bf16.xpose.msra.mxu0 0
        %1920 = vmatprep.subr.bf16.mxu0 0
        %1921 = vmatpush1.bf16.xpose.msra.mxu0 0
        %1922 = vmatprep.subr.bf16.mxu0 0
        %1923 = vmatpush1.bf16.xpose.msra.mxu0 0
        %1924 = vmatprep.mubr.bf16.mxu0 0
        %1925 = vmatmul.mubr.bf16.gmra.mrb[0].mxu0 %v1887
        %v1926 = vpop.f32.mrb[0].mxu0
        %v1927 = vadd.f32 0.0, %v1926
        %v1928 = vpop.f32.mrb[0].mxu0
        %v1929 = vpop.f32.mrb[0].mxu0
        %v1930 = vpop.f32.mrb[0].mxu0
        %1931 = vdwg.mxu0
        %v1932 = vmul.f32 %v1927, 0.35355338
        %v1933 = vsel %vm967, %v1932, -inf
        %1934 = vmax.xlane.f32.xlu0 %v1933
        %v1935 = vpop.xlane.xlu0 %1934
        %v1936 = vsub.f32 %v1932, %v1935
        %v1937 = vmul.f32 %v1936, 1.442695
        %v1938 = vpow.pop %v1937
        %v1939 = vsel %vm967, %v1938, 0.0
        %1940 = vadd.xlane.f32.xlu0 %v1939
        %v1941 = vpop.xlane.xlu0 %1940
        %v1942 = vrcp.pop %v1941
        %v1943 = vmul.f32 %v1938, %v1942
        %v1944 = vpack.c.bf16 %v1943, %v1943
        %1945 = vrot.lane.b32.xlu0 %v1661, 80
        %v1946 = vpop.permute.xlu0 %1945
        %v1948 = vsel %vm967, %v1944, 0
        %v1951 = vsel %vm1033, %v1946, 0
        %1953 = vmatprep.subr.bf16.mxu0 0
        %1954 = vmatpush1.bf16.msra.mxu0 %v1951
        %1955 = vmatprep.subr.bf16.mxu0 0
        %1956 = vmatpush1.bf16.msra.mxu0 0
        %1957 = vmatprep.subr.bf16.mxu0 0
        %1958 = vmatpush1.bf16.msra.mxu0 0
        %1959 = vmatprep.subr.bf16.mxu0 0
        %1960 = vmatpush1.bf16.msra.mxu0 0
        %1961 = vmatprep.subr.bf16.mxu0 0
        %1962 = vmatpush1.bf16.msra.mxu0 0
        %1963 = vmatprep.subr.bf16.mxu0 0
        %1964 = vmatpush1.bf16.msra.mxu0 0
        %1965 = vmatprep.subr.bf16.mxu0 0
        %1966 = vmatpush1.bf16.msra.mxu0 0
        %1967 = vmatprep.subr.bf16.mxu0 0
        %1968 = vmatpush1.bf16.msra.mxu0 0
        %1969 = vmatprep.subr.bf16.mxu0 0
        %1970 = vmatpush1.bf16.msra.mxu0 0
        %1971 = vmatprep.subr.bf16.mxu0 0
        %1972 = vmatpush1.bf16.msra.mxu0 0
        %1973 = vmatprep.subr.bf16.mxu0 0
        %1974 = vmatpush1.bf16.msra.mxu0 0
        %1975 = vmatprep.subr.bf16.mxu0 0
        %1976 = vmatpush1.bf16.msra.mxu0 0
        %1977 = vmatprep.subr.bf16.mxu0 0
        %1978 = vmatpush1.bf16.msra.mxu0 0
        %1979 = vmatprep.subr.bf16.mxu0 0
        %1980 = vmatpush1.bf16.msra.mxu0 0
        %1981 = vmatprep.subr.bf16.mxu0 0
        %1982 = vmatpush1.bf16.msra.mxu0 0
        %1983 = vmatprep.subr.bf16.mxu0 0
        %1984 = vmatpush1.bf16.msra.mxu0 0
        %1985 = vmatprep.mubr.bf16.mxu0 0
        %1986 = vmatmul.mubr.bf16.gmra.mrb[0].mxu0 %v1948
        %v1987 = vpop.f32.mrb[0].mxu0
        %v1988 = vadd.f32 0.0, %v1987
        %v1989 = vpop.f32.mrb[0].mxu0
        %v1990 = vpop.f32.mrb[0].mxu0
        %v1991 = vpop.f32.mrb[0].mxu0
        %1992 = vdwg.mxu0
        %1993 = vrot.lane.b32.xlu0 %v1660, 104
        %v1994 = vpop.permute.xlu0 %1993
        %1995 = vrot.lane.b32.xlu0 %v1661, 104
        %v1996 = vpop.permute.xlu0 %1995
        %v1998 = vsel %vm967, %v1994, 0
        %v2001 = vsel %vm967, %v1996, 0
        %2003 = vmatprep.subr.bf16.mxu0 0
        %2004 = vmatpush1.bf16.xpose.msra.mxu0 %v2001
        %2005 = vmatprep.subr.bf16.mxu0 0
        %2006 = vmatpush1.bf16.xpose.msra.mxu0 0
        %2007 = vmatprep.subr.bf16.mxu0 0
        %2008 = vmatpush1.bf16.xpose.msra.mxu0 0
        %2009 = vmatprep.subr.bf16.mxu0 0
        %2010 = vmatpush1.bf16.xpose.msra.mxu0 0
        %2011 = vmatprep.subr.bf16.mxu0 0
        %2012 = vmatpush1.bf16.xpose.msra.mxu0 0
        %2013 = vmatprep.subr.bf16.mxu0 0
        %2014 = vmatpush1.bf16.xpose.msra.mxu0 0
        %2015 = vmatprep.subr.bf16.mxu0 0
        %2016 = vmatpush1.bf16.xpose.msra.mxu0 0
        %2017 = vmatprep.subr.bf16.mxu0 0
        %2018 = vmatpush1.bf16.xpose.msra.mxu0 0
        %2019 = vmatprep.subr.bf16.mxu0 0
        %2020 = vmatpush1.bf16.xpose.msra.mxu0 0
        %2021 = vmatprep.subr.bf16.mxu0 0
        %2022 = vmatpush1.bf16.xpose.msra.mxu0 0
        %2023 = vmatprep.subr.bf16.mxu0 0
        %2024 = vmatpush1.bf16.xpose.msra.mxu0 0
        %2025 = vmatprep.subr.bf16.mxu0 0
        %2026 = vmatpush1.bf16.xpose.msra.mxu0 0
        %2027 = vmatprep.subr.bf16.mxu0 0
        %2028 = vmatpush1.bf16.xpose.msra.mxu0 0
        %2029 = vmatprep.subr.bf16.mxu0 0
        %2030 = vmatpush1.bf16.xpose.msra.mxu0 0
        %2031 = vmatprep.subr.bf16.mxu0 0
        %2032 = vmatpush1.bf16.xpose.msra.mxu0 0
        %2033 = vmatprep.subr.bf16.mxu0 0
        %2034 = vmatpush1.bf16.xpose.msra.mxu0 0
        %2035 = vmatprep.mubr.bf16.mxu0 0
        %2036 = vmatmul.mubr.bf16.gmra.mrb[0].mxu0 %v1998
        %v2037 = vpop.f32.mrb[0].mxu0
        %v2038 = vadd.f32 0.0, %v2037
        %v2039 = vpop.f32.mrb[0].mxu0
        %v2040 = vpop.f32.mrb[0].mxu0
        %v2041 = vpop.f32.mrb[0].mxu0
        %2042 = vdwg.mxu0
        %v2043 = vmul.f32 %v2038, 0.35355338
        %v2044 = vsel %vm967, %v2043, -inf
        %2045 = vmax.xlane.f32.xlu0 %v2044
        %v2046 = vpop.xlane.xlu0 %2045
        %v2047 = vsub.f32 %v2043, %v2046
        %v2048 = vmul.f32 %v2047, 1.442695
        %v2049 = vpow.pop %v2048
        %v2050 = vsel %vm967, %v2049, 0.0
        %2051 = vadd.xlane.f32.xlu0 %v2050
        %v2052 = vpop.xlane.xlu0 %2051
        %v2053 = vrcp.pop %v2052
        %v2054 = vmul.f32 %v2049, %v2053
        %v2055 = vpack.c.bf16 %v2054, %v2054
        %2056 = vrot.lane.b32.xlu0 %v1661, 72
        %v2057 = vpop.permute.xlu0 %2056
        %v2059 = vsel %vm967, %v2055, 0
        %v2062 = vsel %vm1033, %v2057, 0
        %2064 = vmatprep.subr.bf16.mxu0 0
        %2065 = vmatpush1.bf16.msra.mxu0 %v2062
        %2066 = vmatprep.subr.bf16.mxu0 0
        %2067 = vmatpush1.bf16.msra.mxu0 0
        %2068 = vmatprep.subr.bf16.mxu0 0
        %2069 = vmatpush1.bf16.msra.mxu0 0
        %2070 = vmatprep.subr.bf16.mxu0 0
        %2071 = vmatpush1.bf16.msra.mxu0 0
        %2072 = vmatprep.subr.bf16.mxu0 0
        %2073 = vmatpush1.bf16.msra.mxu0 0
        %2074 = vmatprep.subr.bf16.mxu0 0
        %2075 = vmatpush1.bf16.msra.mxu0 0
        %2076 = vmatprep.subr.bf16.mxu0 0
        %2077 = vmatpush1.bf16.msra.mxu0 0
        %2078 = vmatprep.subr.bf16.mxu0 0
        %2079 = vmatpush1.bf16.msra.mxu0 0
        %2080 = vmatprep.subr.bf16.mxu0 0
        %2081 = vmatpush1.bf16.msra.mxu0 0
        %2082 = vmatprep.subr.bf16.mxu0 0
        %2083 = vmatpush1.bf16.msra.mxu0 0
        %2084 = vmatprep.subr.bf16.mxu0 0
        %2085 = vmatpush1.bf16.msra.mxu0 0
        %2086 = vmatprep.subr.bf16.mxu0 0
        %2087 = vmatpush1.bf16.msra.mxu0 0
        %2088 = vmatprep.subr.bf16.mxu0 0
        %2089 = vmatpush1.bf16.msra.mxu0 0
        %2090 = vmatprep.subr.bf16.mxu0 0
        %2091 = vmatpush1.bf16.msra.mxu0 0
        %2092 = vmatprep.subr.bf16.mxu0 0
        %2093 = vmatpush1.bf16.msra.mxu0 0
        %2094 = vmatprep.subr.bf16.mxu0 0
        %2095 = vmatpush1.bf16.msra.mxu0 0
        %2096 = vmatprep.mubr.bf16.mxu0 0
        %2097 = vmatmul.mubr.bf16.gmra.mrb[0].mxu0 %v2059
        %v2098 = vpop.f32.mrb[0].mxu0
        %v2099 = vadd.f32 0.0, %v2098
        %v2100 = vpop.f32.mrb[0].mxu0
        %v2101 = vpop.f32.mrb[0].mxu0
        %v2102 = vpop.f32.mrb[0].mxu0
        %2103 = vdwg.mxu0
        %2105 = vrot.lane.b32.xlu0 %v1877, 8
        %v2106 = vpop.permute.xlu0 %2105
        %2109 = vrot.lane.b32.xlu0 %v1988, 16
        %v2110 = vpop.permute.xlu0 %2109
        %2113 = vrot.lane.b32.xlu0 %v2099, 24
        %v2114 = vpop.permute.xlu0 %2113
        %v2116 = vsel %vm967, %v1765, %v2106
        %v2117 = vsel %vm1424, %v2116, %v2110
        %v2118 = vsel %vm1426, %v2117, %v2114
        %v2119 = vpack.c.bf16 %v2118, %v2118
        %v2121 = vlaneseq
        %v2122 = vshrl.u32 %v2121, 7
        %v2123 = vsub.s32 0, %v2122
        %v2124 = vrot.slane %v1535, %v2123
        %v2130 = vunpack.c.l.b16 %v1531
        %v2131 = vunpack.c.l.b16 %v1532
        %v2132 = vunpack.c.l.b16 %v1533
        %v2133 = vunpack.c.l.b16 %v1534
        %v2134 = vpack.c.b16 %v2131, %v2130
        %v2135 = vpack.c.b16 %v2133, %v2132
        %v2139 = vsel %vm863, %v2119, 0
        %2141 = vmatprep.subr.bf16.mxu0 0
        %2142 = vmatpush1.bf16.msra.mxu0 %v2134
        %2143 = vmatprep.subr.bf16.mxu0 0
        %2144 = vmatpush1.bf16.msra.mxu0 %v2135
        %2145 = vmatprep.subr.bf16.mxu0 0
        %2146 = vmatpush1.bf16.msra.mxu0 0
        %2147 = vmatprep.subr.bf16.mxu0 0
        %2148 = vmatpush1.bf16.msra.mxu0 0
        %2149 = vmatprep.subr.bf16.mxu0 0
        %2150 = vmatpush1.bf16.msra.mxu0 0
        %2151 = vmatprep.subr.bf16.mxu0 0
        %2152 = vmatpush1.bf16.msra.mxu0 0
        %2153 = vmatprep.subr.bf16.mxu0 0
        %2154 = vmatpush1.bf16.msra.mxu0 0
        %2155 = vmatprep.subr.bf16.mxu0 0
        %2156 = vmatpush1.bf16.msra.mxu0 0
        %2157 = vmatprep.subr.bf16.mxu0 0
        %2158 = vmatpush1.bf16.msra.mxu0 0
        %2159 = vmatprep.subr.bf16.mxu0 0
        %2160 = vmatpush1.bf16.msra.mxu0 0
        %2161 = vmatprep.subr.bf16.mxu0 0
        %2162 = vmatpush1.bf16.msra.mxu0 0
        %2163 = vmatprep.subr.bf16.mxu0 0
        %2164 = vmatpush1.bf16.msra.mxu0 0
        %2165 = vmatprep.subr.bf16.mxu0 0
        %2166 = vmatpush1.bf16.msra.mxu0 0
        %2167 = vmatprep.subr.bf16.mxu0 0
        %2168 = vmatpush1.bf16.msra.mxu0 0
        %2169 = vmatprep.subr.bf16.mxu0 0
        %2170 = vmatpush1.bf16.msra.mxu0 0
        %2171 = vmatprep.subr.bf16.mxu0 0
        %2172 = vmatpush1.bf16.msra.mxu0 0
        %2173 = vmatprep.mubr.bf16.mxu0 0
        %2174 = vmatmul.mubr.bf16.gmra.mrb[0].mxu0 %v2139
        %v2175 = vpop.f32.mrb[0].mxu0
        %v2176 = vadd.f32 %v2124, %v2175
        %v2177 = vpop.f32.mrb[0].mxu0
        %v2178 = vpop.f32.mrb[0].mxu0
        %v2179 = vpop.f32.mrb[0].mxu0
        %2180 = vdwg.mxu0
        %v2181 = vadd.f32 %v2176, %v1520
        %v2182 = vld [vmem:[#allocation2] sm:$0x1]
        %v2183 = vld [vmem:[#allocation4] sm:$0x1]
        %v2184 = vsel %vm863, %v2181, 0.0
        %2185 = vadd.xlane.f32.xlu0 %v2184
        %v2186 = vpop.xlane.xlu0 %2185
        %v2187 = vmul.f32 %v2186, %v1496
        %v2188 = vsub.f32 %v2181, %v2187
        %v2189 = vmul.f32 %v2188, %v2188
        %v2190 = vsel %vm863, %v2189, 0.0
        %2191 = vadd.xlane.f32.xlu0 %v2190
        %v2192 = vpop.xlane.xlu0 %2191
        %v2193 = vmul.f32 %v2192, %v1496
        %v2194 = vadd.f32 %v2193, 1e-05
        %v2195 = vrsqrt.pop %v2194
        %v2196 = vmul.f32 %v2188, %v2195
        %v2198 = vlaneseq
        %v2199 = vshrl.u32 %v2198, 7
        %v2200 = vsub.s32 0, %v2199
        %v2201 = vrot.slane %v2182, %v2200
        %v2203 = vmul.f32 %v2196, %v2201
        %v2205 = vlaneseq
        %v2206 = vshrl.u32 %v2205, 7
        %v2207 = vsub.s32 0, %v2206
        %v2208 = vrot.slane %v2183, %v2207
        %v2210 = vadd.f32 %v2203, %v2208
        %v2211 = vpack.c.bf16 %v2210, %v2210
        %v2212 = vld [vmem:[%s18] sm:$0xf]
        %v2213 = vld [vmem:[%s18 + $0x4] sm:$0xf]
        %v2214 = vld [vmem:[%s18 + $0x8] sm:$0xf]
        %v2215 = vld [vmem:[%s18 + $0xc] sm:$0xf]
        %v2216 = vld [vmem:[#allocation6] sm:$0x1]
        %v2218 = vlaneseq
        %v2219 = vshrl.u32 %v2218, 7
        %v2220 = vsub.s32 0, %v2219
        %v2221 = vrot.slane %v2216, %v2220
        %v2227 = vunpack.c.l.b16 %v2212
        %v2228 = vunpack.c.l.b16 %v2213
        %v2229 = vunpack.c.l.b16 %v2214
        %v2230 = vunpack.c.l.b16 %v2215
        %v2231 = vpack.c.b16 %v2228, %v2227
        %v2232 = vpack.c.b16 %v2230, %v2229
        %v2236 = vsel %vm863, %v2211, 0
        %2238 = vmatprep.subr.bf16.mxu0 0
        %2239 = vmatpush1.bf16.msra.mxu0 %v2231
        %2240 = vmatprep.subr.bf16.mxu0 0
        %2241 = vmatpush1.bf16.msra.mxu0 %v2232
        %2242 = vmatprep.subr.bf16.mxu0 0
        %2243 = vmatpush1.bf16.msra.mxu0 0
        %2244 = vmatprep.subr.bf16.mxu0 0
        %2245 = vmatpush1.bf16.msra.mxu0 0
        %2246 = vmatprep.subr.bf16.mxu0 0
        %2247 = vmatpush1.bf16.msra.mxu0 0
        %2248 = vmatprep.subr.bf16.mxu0 0
        %2249 = vmatpush1.bf16.msra.mxu0 0
        %2250 = vmatprep.subr.bf16.mxu0 0
        %2251 = vmatpush1.bf16.msra.mxu0 0
        %2252 = vmatprep.subr.bf16.mxu0 0
        %2253 = vmatpush1.bf16.msra.mxu0 0
        %2254 = vmatprep.subr.bf16.mxu0 0
        %2255 = vmatpush1.bf16.msra.mxu0 0
        %2256 = vmatprep.subr.bf16.mxu0 0
        %2257 = vmatpush1.bf16.msra.mxu0 0
        %2258 = vmatprep.subr.bf16.mxu0 0
        %2259 = vmatpush1.bf16.msra.mxu0 0
        %2260 = vmatprep.subr.bf16.mxu0 0
        %2261 = vmatpush1.bf16.msra.mxu0 0
        %2262 = vmatprep.subr.bf16.mxu0 0
        %2263 = vmatpush1.bf16.msra.mxu0 0
        %2264 = vmatprep.subr.bf16.mxu0 0
        %2265 = vmatpush1.bf16.msra.mxu0 0
        %2266 = vmatprep.subr.bf16.mxu0 0
        %2267 = vmatpush1.bf16.msra.mxu0 0
        %2268 = vmatprep.subr.bf16.mxu0 0
        %2269 = vmatpush1.bf16.msra.mxu0 0
        %2270 = vmatprep.mubr.bf16.mxu0 0
        %2271 = vmatmul.mubr.bf16.gmra.mrb[0].mxu0 %v2236
        %v2272 = vpop.f32.mrb[0].mxu0
        %v2273 = vadd.f32 %v2221, %v2272
        %v2274 = vpop.f32.mrb[0].mxu0
        %v2275 = vpop.f32.mrb[0].mxu0
        %v2276 = vpop.f32.mrb[0].mxu0
        %2277 = vdwg.mxu0
        %v2278 = vmul.f32 %v2273, 0.5
        %v2279 = vmul.f32 %v2273, 0.044715
        %v2280 = vmul.f32 %v2279, %v2273
        %v2281 = vmul.f32 %v2280, %v2273
        %v2282 = vadd.f32 %v2273, %v2281
        %v2283 = vmul.f32 %v2282, 0.7978846
        %v2284 = vtanh.pop %v2283
        %v2285 = vadd.f32 %v2284, 1.0
        %v2286 = vmul.f32 %v2278, %v2285
        %v2287 = vpack.c.bf16 %v2286, %v2286
        %v2288 = vld [vmem:[%s20] sm:$0xf]
        %v2289 = vld [vmem:[%s20 + $0x4] sm:$0xf]
        %v2290 = vld [vmem:[%s20 + $0x8] sm:$0xf]
        %v2291 = vld [vmem:[%s20 + $0xc] sm:$0xf]
        %v2292 = vld [vmem:[%s20 + $0x10] sm:$0xf]
        %v2293 = vld [vmem:[%s20 + $0x14] sm:$0xf]
        %v2294 = vld [vmem:[%s20 + $0x18] sm:$0xf]
        %v2295 = vld [vmem:[%s20 + $0x1c] sm:$0xf]
        %v2296 = vld [vmem:[%s20 + $0x20] sm:$0xf]
        %v2297 = vld [vmem:[%s20 + $0x24] sm:$0xf]
        %v2298 = vld [vmem:[%s20 + $0x28] sm:$0xf]
        %v2299 = vld [vmem:[%s20 + $0x2c] sm:$0xf]
        %v2300 = vld [vmem:[%s20 + $0x30] sm:$0xf]
        %v2301 = vld [vmem:[%s20 + $0x34] sm:$0xf]
        %v2302 = vld [vmem:[%s20 + $0x38] sm:$0xf]
        %v2303 = vld [vmem:[%s20 + $0x3c] sm:$0xf]
        %v2304 = vld [vmem:[#allocation7] sm:$0x1]
        %v2306 = vlaneseq
        %v2307 = vshrl.u32 %v2306, 7
        %v2308 = vsub.s32 0, %v2307
        %v2309 = vrot.slane %v2304, %v2308
        %v2327 = vunpack.c.l.b16 %v2288
        %v2328 = vunpack.c.l.b16 %v2289
        %v2329 = vunpack.c.l.b16 %v2290
        %v2330 = vunpack.c.l.b16 %v2291
        %v2331 = vunpack.c.l.b16 %v2292
        %v2332 = vunpack.c.l.b16 %v2293
        %v2333 = vunpack.c.l.b16 %v2294
        %v2334 = vunpack.c.l.b16 %v2295
        %v2335 = vunpack.c.l.b16 %v2296
        %v2336 = vunpack.c.l.b16 %v2297
        %v2337 = vunpack.c.l.b16 %v2298
        %v2338 = vunpack.c.l.b16 %v2299
        %v2339 = vunpack.c.l.b16 %v2300
        %v2340 = vunpack.c.l.b16 %v2301
        %v2341 = vunpack.c.l.b16 %v2302
        %v2342 = vunpack.c.l.b16 %v2303
        %v2343 = vpack.c.b16 %v2328, %v2327
        %v2344 = vpack.c.b16 %v2330, %v2329
        %v2345 = vpack.c.b16 %v2332, %v2331
        %v2346 = vpack.c.b16 %v2334, %v2333
        %v2347 = vpack.c.b16 %v2336, %v2335
        %v2348 = vpack.c.b16 %v2338, %v2337
        %v2349 = vpack.c.b16 %v2340, %v2339
        %v2350 = vpack.c.b16 %v2342, %v2341
        %2359 = vmatprep.subr.bf16.mxu0 0
        %2360 = vmatpush1.bf16.msra.mxu0 %v2343
        %2361 = vmatprep.subr.bf16.mxu0 0
        %2362 = vmatpush1.bf16.msra.mxu0 %v2344
        %2363 = vmatprep.subr.bf16.mxu0 0
        %2364 = vmatpush1.bf16.msra.mxu0 %v2345
        %2365 = vmatprep.subr.bf16.mxu0 0
        %2366 = vmatpush1.bf16.msra.mxu0 %v2346
        %2367 = vmatprep.subr.bf16.mxu0 0
        %2368 = vmatpush1.bf16.msra.mxu0 %v2347
        %2369 = vmatprep.subr.bf16.mxu0 0
        %2370 = vmatpush1.bf16.msra.mxu0 %v2348
        %2371 = vmatprep.subr.bf16.mxu0 0
        %2372 = vmatpush1.bf16.msra.mxu0 %v2349
        %2373 = vmatprep.subr.bf16.mxu0 0
        %2374 = vmatpush1.bf16.msra.mxu0 %v2350
        %2375 = vmatprep.subr.bf16.mxu0 0
        %2376 = vmatpush1.bf16.msra.mxu0 0
        %2377 = vmatprep.subr.bf16.mxu0 0
        %2378 = vmatpush1.bf16.msra.mxu0 0
        %2379 = vmatprep.subr.bf16.mxu0 0
        %2380 = vmatpush1.bf16.msra.mxu0 0
        %2381 = vmatprep.subr.bf16.mxu0 0
        %2382 = vmatpush1.bf16.msra.mxu0 0
        %2383 = vmatprep.subr.bf16.mxu0 0
        %2384 = vmatpush1.bf16.msra.mxu0 0
        %2385 = vmatprep.subr.bf16.mxu0 0
        %2386 = vmatpush1.bf16.msra.mxu0 0
        %2387 = vmatprep.subr.bf16.mxu0 0
        %2388 = vmatpush1.bf16.msra.mxu0 0
        %2389 = vmatprep.subr.bf16.mxu0 0
        %2390 = vmatpush1.bf16.msra.mxu0 0
        %2391 = vmatprep.mubr.bf16.mxu0 0
        %2392 = vmatmul.mubr.bf16.gmra.mrb[0].mxu0 %v2287
        %v2393 = vpop.f32.mrb[0].mxu0
        %v2394 = vadd.f32 %v2309, %v2393
        %v2395 = vpop.f32.mrb[0].mxu0
        %v2396 = vpop.f32.mrb[0].mxu0
        %v2397 = vpop.f32.mrb[0].mxu0
        %2398 = vdwg.mxu0
        %v2399 = vadd.f32 %v2394, %v2210
        %v2400 = vld [vmem:[#allocation9] sm:$0x1]
        %v2401 = vld [vmem:[#allocation10] sm:$0x1]
        %v2402 = vsel %vm863, %v2399, 0.0
        %2403 = vadd.xlane.f32.xlu0 %v2402
        %v2404 = vpop.xlane.xlu0 %2403
        %v2405 = vmul.f32 %v2404, %v1496
        %v2406 = vsub.f32 %v2399, %v2405
        %v2407 = vmul.f32 %v2406, %v2406
        %v2408 = vsel %vm863, %v2407, 0.0
        %2409 = vadd.xlane.f32.xlu0 %v2408
        %v2410 = vpop.xlane.xlu0 %2409
        %v2411 = vmul.f32 %v2410, %v1496
        %v2412 = vadd.f32 %v2411, 1e-05
        %v2413 = vrsqrt.pop %v2412
        %v2414 = vmul.f32 %v2406, %v2413
        %v2416 = vlaneseq
        %v2417 = vshrl.u32 %v2416, 7
        %v2418 = vsub.s32 0, %v2417
        %v2419 = vrot.slane %v2400, %v2418
        %v2421 = vmul.f32 %v2414, %v2419
        %v2423 = vlaneseq
        %v2424 = vshrl.u32 %v2423, 7
        %v2425 = vsub.s32 0, %v2424
        %v2426 = vrot.slane %v2401, %v2425
        %v2428 = vadd.f32 %v2421, %v2426
        %2429 = vst.msk [vmem:[%s825] sm:$0xff] %vm863, %v2428
        %p2430 = scmp.lt.s32.totalorder %s39, 1
        %s2431 = scalar_select %p2430, %s39, 1
        %s2432 = smul.addr %s2431, 8
        %s2433 = scalar_lea.vmem %s24, %s2432
        // Predicated region
        $region141: #{decoder_forward.4} parent=115 // pred_check
          %p2434 = pneg %p571
        $region142: #{decoder_forward.4} parent=115 // pred_check_branch
          %2436 = sbr.rel (%p2434) target = $region144
        $region143: #{decoder_forward.4} parent=115 // pred_region
          _
        $region144: #{decoder_forward.4} parent=115 // pred_fallthru
          _
      $region116: #{decoder_forward.4} parent=5 // pred_fallthru
        _
      %p2437 = scmp.le.s32.totalorder 2, %s34
      // Predicated region
      $region145: #{decoder_forward.4} parent=5 // pred_check
        %p2438 = pneg %p2437
      $region146: #{decoder_forward.4} parent=5 // pred_check_branch
        %2440 = sbr.rel (%p2438) target = $region148
      $region147: #{decoder_forward.4} parent=5 // pred_region
        %s2441 = ssub.s32 %s34, 2
        // Predicated region
        $region149: #{decoder_forward.4} parent=147 // pred_check
          %p2442 = pneg %p577
        $region150: #{decoder_forward.4} parent=147 // pred_check_branch
          %2444 = sbr.rel (%p2442) target = $region152
        $region151: #{decoder_forward.4} parent=147 // pred_region
          %p2445 = scmp.lt.s32.totalorder %s40, 1
          %s2446 = scalar_select %p2445, %s40, 1
          %s2447 = smul.addr %s2446, 8
          %s2448 = scalar_lea.vmem %s24, %s2447
        $region152: #{decoder_forward.4} parent=147 // pred_fallthru
          _
      $region148: #{decoder_forward.4} parent=5 // pred_fallthru
        _
    $region6: #{decoder_forward.4} parent=1 // loop_footer
      %s38 = sadd.s32 1, %s34
    $region7: #{decoder_forward.4} parent=1 // loop_footer_branch
      %33 = sbr.rel target = $region3
    $region8: #{decoder_forward.4} parent=1 // loop_exit
      _
    %2449 = vsyncpa [#allocation3], 1
    %s2450 = scalar_lea.sflag [#allocation3], 1
    %2451 = vsyncpa %s2450, 1
    %2452 = vsyncpa [#allocation5], 1
    %2453 = vsyncpa [#allocation8], 1
    %2454 = vsyncpa [#allocation11], 1

// kernel: decoder_forward.3
$region0: #{decoder_forward.3}
  #allocation0 [shape = 'u32[]', space=smem, size = 0x4, offset = 0x4, fixed_abs, tag = 'smem constant byte address 0x4 - core index']
  #allocation1 [shape = 'u32[144,128]{1,0:T(1,128)}', space=vmem, size = 0x12000, scoped, tag = 'internal scratch']
  %s0 = inlined_call_operand.vmem [shape: f32[2,8,32], index: 0, kind: input, shape index: {}]
  %s1 = inlined_call_operand.vmem [shape: f32[2,8,32], index: 1, kind: input, shape index: {}]
  %s2 = inlined_call_operand.vmem [shape: bf16[32,32], index: 2, kind: input, shape index: {}]
  %s3 = inlined_call_operand.vmem [shape: f32[1,32], index: 3, kind: input, shape index: {}]
  %s4 = inlined_call_operand.vmem [shape: bf16[32,64], index: 4, kind: input, shape index: {}]
  %s5 = inlined_call_operand.vmem [shape: f32[1,64], index: 5, kind: input, shape index: {}]
  %s6 = inlined_call_operand.vmem [shape: bf16[32,32], index: 6, kind: input, shape index: {}]
  %s7 = inlined_call_operand.vmem [shape: f32[1,32], index: 7, kind: input, shape index: {}]
  %s8 = inlined_call_operand.vmem [shape: f32[1,32], index: 8, kind: input, shape index: {}]
  %s9 = inlined_call_operand.vmem [shape: f32[1,32], index: 9, kind: input, shape index: {}]
  %s10 = inlined_call_operand.vmem [shape: bf16[32,32], index: 10, kind: input, shape index: {}]
  %s11 = inlined_call_operand.vmem [shape: f32[1,32], index: 11, kind: input, shape index: {}]
  %s12 = inlined_call_operand.vmem [shape: bf16[32,64], index: 12, kind: input, shape index: {}]
  %s13 = inlined_call_operand.vmem [shape: f32[1,64], index: 13, kind: input, shape index: {}]
  %s14 = inlined_call_operand.vmem [shape: bf16[32,32], index: 14, kind: input, shape index: {}]
  %s15 = inlined_call_operand.vmem [shape: f32[1,32], index: 15, kind: input, shape index: {}]
  %s16 = inlined_call_operand.vmem [shape: f32[1,32], index: 16, kind: input, shape index: {}]
  %s17 = inlined_call_operand.vmem [shape: f32[1,32], index: 17, kind: input, shape index: {}]
  %s18 = inlined_call_operand.vmem [shape: bf16[32,128], index: 18, kind: input, shape index: {}]
  %s19 = inlined_call_operand.vmem [shape: f32[1,128], index: 19, kind: input, shape index: {}]
  %s20 = inlined_call_operand.vmem [shape: bf16[128,32], index: 20, kind: input, shape index: {}]
  %s21 = inlined_call_operand.vmem [shape: f32[1,32], index: 21, kind: input, shape index: {}]
  %s22 = inlined_call_operand.vmem [shape: f32[1,32], index: 22, kind: input, shape index: {}]
  %s23 = inlined_call_operand.vmem [shape: f32[1,32], index: 23, kind: input, shape index: {}]
  %s24 = inlined_call_operand.vmem [shape: f32[2,8,32], index: 24, kind: output, shape index: {}]
  %s25 = sld [smem:[#allocation0]]
  $region129: #{decoder_forward.3} parent=0
    _
  %s27 = ssub.s32 1, %s25
  %s28 = scalar_select 0, %s27, %s25
  loop: start=0, step=1, limit=4
  $region2: #{decoder_forward.3} parent=0 // loop_pre_header
    _
  $region3: #{decoder_forward.3} parent=0 // loop_header
    %s30 = sphi 0, %s34
    %p31 = scmp.ge.s32.totalorder %s30, 4
    %s40 = sphi 0, %s42
    %s43 = sphi 0, %s40
    %s44 = sphi 0, %s43
    %s60 = sphi 0, %s44
    %s66 = sphi 0, %s68
    %s69 = sphi 0, %s66
    %s70 = sphi 0, %s69
    %s86 = sphi 0, %s70
    %s90 = sphi 0, %s90
    %s92 = sphi 0, %s90
    %s93 = sphi 0, %s92
    %s107 = sphi 0, %s93
    %s111 = sphi 0, %s111
    %s113 = sphi 0, %s111
    %s114 = sphi 0, %s113
    %s128 = sphi 0, %s114
    %s132 = sphi 0, %s132
    %s134 = sphi 0, %s132
    %s135 = sphi 0, %s134
    %s149 = sphi 0, %s135
    %s153 = sphi 0, %s153
    %s155 = sphi 0, %s153
    %s156 = sphi 0, %s155
    %s170 = sphi 0, %s156
    %s174 = sphi 0, %s174
    %s176 = sphi 0, %s174
    %s177 = sphi 0, %s176
    %s191 = sphi 0, %s177
    %s195 = sphi 0, %s195
    %s197 = sphi 0, %s195
    %s198 = sphi 0, %s197
    %s212 = sphi 0, %s198
    %s216 = sphi 0, %s216
    %s218 = sphi 0, %s216
    %s219 = sphi 0, %s218
    %s233 = sphi 0, %s219
    %s237 = sphi 0, %s237
    %s239 = sphi 0, %s237
    %s240 = sphi 0, %s239
    %s254 = sphi 0, %s240
    %s258 = sphi 0, %s258
    %s260 = sphi 0, %s258
    %s261 = sphi 0, %s260
    %s275 = sphi 0, %s261
    %s279 = sphi 0, %s279
    %s281 = sphi 0, %s279
    %s282 = sphi 0, %s281
    %s296 = sphi 0, %s282
    %s300 = sphi 0, %s300
    %s302 = sphi 0, %s300
    %s303 = sphi 0, %s302
    %s317 = sphi 0, %s303
    %s321 = sphi 0, %s321
    %s323 = sphi 0, %s321
    %s324 = sphi 0, %s323
    %s338 = sphi 0, %s324
    %s342 = sphi 0, %s342
    %s344 = sphi 0, %s342
    %s345 = sphi 0, %s344
    %s359 = sphi 0, %s345
    %s363 = sphi 0, %s363
    %s365 = sphi 0, %s363
    %s366 = sphi 0, %s365
    %s380 = sphi 0, %s366
    %s384 = sphi 0, %s384
    %s386 = sphi 0, %s384
    %s387 = sphi 0, %s386
    %s401 = sphi 0, %s387
    %s405 = sphi 0, %s405
    %s407 = sphi 0, %s405
    %s408 = sphi 0, %s407
    %s422 = sphi 0, %s408
    %s426 = sphi 0, %s426
    %s428 = sphi 0, %s426
    %s429 = sphi 0, %s428
    %s443 = sphi 0, %s429
    %s447 = sphi 0, %s447
    %s449 = sphi 0, %s447
    %s450 = sphi 0, %s449
    %s464 = sphi 0, %s450
    %s468 = sphi 0, %s468
    %s470 = sphi 0, %s468
    %s471 = sphi 0, %s470
    %s485 = sphi 0, %s471
    %s489 = sphi 0, %s489
    %s491 = sphi 0, %s489
    %s492 = sphi 0, %s491
    %s506 = sphi 0, %s492
    %s510 = sphi 0, %s510
    %s512 = sphi 0, %s510
    %s513 = sphi 0, %s512
    %s527 = sphi 0, %s513
    %s531 = sphi 0, %s531
    %s533 = sphi 0, %s531
    %s534 = sphi 0, %s533
    %s548 = sphi 0, %s534
    %s554 = sphi 0, %s556
    %s557 = sphi 0, %s554
    %s558 = sphi 0, %s557
    %s574 = sphi 0, %s558
  $region4: #{decoder_forward.3} parent=0 // loop_header_branch
    %33 = sbr.rel (%p31) target = $region8
  $region5: #{decoder_forward.3} parent=0 // loop_body
    %s35 = ssub.s32 %s30, 1
    %s36 = ssub.s32 %s30, 2
    %s37 = sadd.s32 %s30, 1
    %s38 = ssub.s32 %s30, %s37
    %p39 = scmp.eq.s32.totalorder %s38, 0
    %s41 = sadd.s32 %s40, 1
    %s42 = scalar_select %p39, %s40, %s41
    %p45 = pneg %p39
    %p46 = scmp.eq.s32.totalorder %s30, 1
    %p47 = por %p45, %p46
    %p48 = scmp.ne.s32.totalorder %s40, %s43
    %p49 = scmp.eq.s32.totalorder %s30, 0
    %p50 = por %p48, %p49
    %p51 = scmp.ne.s32.totalorder %s40, %s43
    %p52 = scmp.eq.s32.totalorder %s35, 1
    %p53 = por %p51, %p52
    %p54 = scmp.ne.s32.totalorder %s43, %s44
    %p55 = scmp.eq.s32.totalorder %s35, 0
    %p56 = por %p54, %p55
    %p57 = scmp.ne.s32.totalorder %s43, %s44
    %p58 = scmp.eq.s32.totalorder %s36, 1
    %p59 = por %p57, %p58
    %p61 = scmp.ne.s32.totalorder %s44, %s60
    %p62 = scmp.eq.s32.totalorder %s36, 0
    %p63 = por %p61, %p62
    %s64 = ssub.s32 %s30, %s37
    %p65 = scmp.eq.s32.totalorder %s64, 0
    %s67 = sadd.s32 %s66, 1
    %s68 = scalar_select %p65, %s66, %s67
    %p71 = pneg %p65
    %p72 = scmp.eq.s32.totalorder %s30, 1
    %p73 = por %p71, %p72
    %p74 = scmp.ne.s32.totalorder %s66, %s69
    %p75 = scmp.eq.s32.totalorder %s30, 0
    %p76 = por %p74, %p75
    %p77 = scmp.ne.s32.totalorder %s66, %s69
    %p78 = scmp.eq.s32.totalorder %s35, 1
    %p79 = por %p77, %p78
    %p80 = scmp.ne.s32.totalorder %s69, %s70
    %p81 = scmp.eq.s32.totalorder %s35, 0
    %p82 = por %p80, %p81
    %p83 = scmp.ne.s32.totalorder %s69, %s70
    %p84 = scmp.eq.s32.totalorder %s36, 1
    %p85 = por %p83, %p84
    %p87 = scmp.ne.s32.totalorder %s70, %s86
    %p88 = scmp.eq.s32.totalorder %s36, 0
    %p89 = por %p87, %p88
    %s91 = sadd.s32 %s90, 1
    %p94 = scmp.eq.s32.totalorder %s30, 1
    %p95 = scmp.ne.s32.totalorder %s90, %s92
    %p96 = scmp.eq.s32.totalorder %s30, 0
    %p97 = por %p95, %p96
    %p98 = scmp.ne.s32.totalorder %s90, %s92
    %p99 = scmp.eq.s32.totalorder %s35, 1
    %p100 = por %p98, %p99
    %p101 = scmp.ne.s32.totalorder %s92, %s93
    %p102 = scmp.eq.s32.totalorder %s35, 0
    %p103 = por %p101, %p102
    %p104 = scmp.ne.s32.totalorder %s92, %s93
    %p105 = scmp.eq.s32.totalorder %s36, 1
    %p106 = por %p104, %p105
    %p108 = scmp.ne.s32.totalorder %s93, %s107
    %p109 = scmp.eq.s32.totalorder %s36, 0
    %p110 = por %p108, %p109
    %s112 = sadd.s32 %s111, 1
    %p115 = scmp.eq.s32.totalorder %s30, 1
    %p116 = scmp.ne.s32.totalorder %s111, %s113
    %p117 = scmp.eq.s32.totalorder %s30, 0
    %p118 = por %p116, %p117
    %p119 = scmp.ne.s32.totalorder %s111, %s113
    %p120 = scmp.eq.s32.totalorder %s35, 1
    %p121 = por %p119, %p120
    %p122 = scmp.ne.s32.totalorder %s113, %s114
    %p123 = scmp.eq.s32.totalorder %s35, 0
    %p124 = por %p122, %p123
    %p125 = scmp.ne.s32.totalorder %s113, %s114
    %p126 = scmp.eq.s32.totalorder %s36, 1
    %p127 = por %p125, %p126
    %p129 = scmp.ne.s32.totalorder %s114, %s128
    %p130 = scmp.eq.s32.totalorder %s36, 0
    %p131 = por %p129, %p130
    %s133 = sadd.s32 %s132, 1
    %p136 = scmp.eq.s32.totalorder %s30, 1
    %p137 = scmp.ne.s32.totalorder %s132, %s134
    %p138 = scmp.eq.s32.totalorder %s30, 0
    %p139 = por %p137, %p138
    %p140 = scmp.ne.s32.totalorder %s132, %s134
    %p141 = scmp.eq.s32.totalorder %s35, 1
    %p142 = por %p140, %p141
    %p143 = scmp.ne.s32.totalorder %s134, %s135
    %p144 = scmp.eq.s32.totalorder %s35, 0
    %p145 = por %p143, %p144
    %p146 = scmp.ne.s32.totalorder %s134, %s135
    %p147 = scmp.eq.s32.totalorder %s36, 1
    %p148 = por %p146, %p147
    %p150 = scmp.ne.s32.totalorder %s135, %s149
    %p151 = scmp.eq.s32.totalorder %s36, 0
    %p152 = por %p150, %p151
    %s154 = sadd.s32 %s153, 1
    %p157 = scmp.eq.s32.totalorder %s30, 1
    %p158 = scmp.ne.s32.totalorder %s153, %s155
    %p159 = scmp.eq.s32.totalorder %s30, 0
    %p160 = por %p158, %p159
    %p161 = scmp.ne.s32.totalorder %s153, %s155
    %p162 = scmp.eq.s32.totalorder %s35, 1
    %p163 = por %p161, %p162
    %p164 = scmp.ne.s32.totalorder %s155, %s156
    %p165 = scmp.eq.s32.totalorder %s35, 0
    %p166 = por %p164, %p165
    %p167 = scmp.ne.s32.totalorder %s155, %s156
    %p168 = scmp.eq.s32.totalorder %s36, 1
    %p169 = por %p167, %p168
    %p171 = scmp.ne.s32.totalorder %s156, %s170
    %p172 = scmp.eq.s32.totalorder %s36, 0
    %p173 = por %p171, %p172
    %s175 = sadd.s32 %s174, 1
    %p178 = scmp.eq.s32.totalorder %s30, 1
    %p179 = scmp.ne.s32.totalorder %s174, %s176
    %p180 = scmp.eq.s32.totalorder %s30, 0
    %p181 = por %p179, %p180
    %p182 = scmp.ne.s32.totalorder %s174, %s176
    %p183 = scmp.eq.s32.totalorder %s35, 1
    %p184 = por %p182, %p183
    %p185 = scmp.ne.s32.totalorder %s176, %s177
    %p186 = scmp.eq.s32.totalorder %s35, 0
    %p187 = por %p185, %p186
    %p188 = scmp.ne.s32.totalorder %s176, %s177
    %p189 = scmp.eq.s32.totalorder %s36, 1
    %p190 = por %p188, %p189
    %p192 = scmp.ne.s32.totalorder %s177, %s191
    %p193 = scmp.eq.s32.totalorder %s36, 0
    %p194 = por %p192, %p193
    %s196 = sadd.s32 %s195, 1
    %p199 = scmp.eq.s32.totalorder %s30, 1
    %p200 = scmp.ne.s32.totalorder %s195, %s197
    %p201 = scmp.eq.s32.totalorder %s30, 0
    %p202 = por %p200, %p201
    %p203 = scmp.ne.s32.totalorder %s195, %s197
    %p204 = scmp.eq.s32.totalorder %s35, 1
    %p205 = por %p203, %p204
    %p206 = scmp.ne.s32.totalorder %s197, %s198
    %p207 = scmp.eq.s32.totalorder %s35, 0
    %p208 = por %p206, %p207
    %p209 = scmp.ne.s32.totalorder %s197, %s198
    %p210 = scmp.eq.s32.totalorder %s36, 1
    %p211 = por %p209, %p210
    %p213 = scmp.ne.s32.totalorder %s198, %s212
    %p214 = scmp.eq.s32.totalorder %s36, 0
    %p215 = por %p213, %p214
    %s217 = sadd.s32 %s216, 1
    %p220 = scmp.eq.s32.totalorder %s30, 1
    %p221 = scmp.ne.s32.totalorder %s216, %s218
    %p222 = scmp.eq.s32.totalorder %s30, 0
    %p223 = por %p221, %p222
    %p224 = scmp.ne.s32.totalorder %s216, %s218
    %p225 = scmp.eq.s32.totalorder %s35, 1
    %p226 = por %p224, %p225
    %p227 = scmp.ne.s32.totalorder %s218, %s219
    %p228 = scmp.eq.s32.totalorder %s35, 0
    %p229 = por %p227, %p228
    %p230 = scmp.ne.s32.totalorder %s218, %s219
    %p231 = scmp.eq.s32.totalorder %s36, 1
    %p232 = por %p230, %p231
    %p234 = scmp.ne.s32.totalorder %s219, %s233
    %p235 = scmp.eq.s32.totalorder %s36, 0
    %p236 = por %p234, %p235
    %s238 = sadd.s32 %s237, 1
    %p241 = scmp.eq.s32.totalorder %s30, 1
    %p242 = scmp.ne.s32.totalorder %s237, %s239
    %p243 = scmp.eq.s32.totalorder %s30, 0
    %p244 = por %p242, %p243
    %p245 = scmp.ne.s32.totalorder %s237, %s239
    %p246 = scmp.eq.s32.totalorder %s35, 1
    %p247 = por %p245, %p246
    %p248 = scmp.ne.s32.totalorder %s239, %s240
    %p249 = scmp.eq.s32.totalorder %s35, 0
    %p250 = por %p248, %p249
    %p251 = scmp.ne.s32.totalorder %s239, %s240
    %p252 = scmp.eq.s32.totalorder %s36, 1
    %p253 = por %p251, %p252
    %p255 = scmp.ne.s32.totalorder %s240, %s254
    %p256 = scmp.eq.s32.totalorder %s36, 0
    %p257 = por %p255, %p256
    %s259 = sadd.s32 %s258, 1
    %p262 = scmp.eq.s32.totalorder %s30, 1
    %p263 = scmp.ne.s32.totalorder %s258, %s260
    %p264 = scmp.eq.s32.totalorder %s30, 0
    %p265 = por %p263, %p264
    %p266 = scmp.ne.s32.totalorder %s258, %s260
    %p267 = scmp.eq.s32.totalorder %s35, 1
    %p268 = por %p266, %p267
    %p269 = scmp.ne.s32.totalorder %s260, %s261
    %p270 = scmp.eq.s32.totalorder %s35, 0
    %p271 = por %p269, %p270
    %p272 = scmp.ne.s32.totalorder %s260, %s261
    %p273 = scmp.eq.s32.totalorder %s36, 1
    %p274 = por %p272, %p273
    %p276 = scmp.ne.s32.totalorder %s261, %s275
    %p277 = scmp.eq.s32.totalorder %s36, 0
    %p278 = por %p276, %p277
    %s280 = sadd.s32 %s279, 1
    %p283 = scmp.eq.s32.totalorder %s30, 1
    %p284 = scmp.ne.s32.totalorder %s279, %s281
    %p285 = scmp.eq.s32.totalorder %s30, 0
    %p286 = por %p284, %p285
    %p287 = scmp.ne.s32.totalorder %s279, %s281
    %p288 = scmp.eq.s32.totalorder %s35, 1
    %p289 = por %p287, %p288
    %p290 = scmp.ne.s32.totalorder %s281, %s282
    %p291 = scmp.eq.s32.totalorder %s35, 0
    %p292 = por %p290, %p291
    %p293 = scmp.ne.s32.totalorder %s281, %s282
    %p294 = scmp.eq.s32.totalorder %s36, 1
    %p295 = por %p293, %p294
    %p297 = scmp.ne.s32.totalorder %s282, %s296
    %p298 = scmp.eq.s32.totalorder %s36, 0
    %p299 = por %p297, %p298
    %s301 = sadd.s32 %s300, 1
    %p304 = scmp.eq.s32.totalorder %s30, 1
    %p305 = scmp.ne.s32.totalorder %s300, %s302
    %p306 = scmp.eq.s32.totalorder %s30, 0
    %p307 = por %p305, %p306
    %p308 = scmp.ne.s32.totalorder %s300, %s302
    %p309 = scmp.eq.s32.totalorder %s35, 1
    %p310 = por %p308, %p309
    %p311 = scmp.ne.s32.totalorder %s302, %s303
    %p312 = scmp.eq.s32.totalorder %s35, 0
    %p313 = por %p311, %p312
    %p314 = scmp.ne.s32.totalorder %s302, %s303
    %p315 = scmp.eq.s32.totalorder %s36, 1
    %p316 = por %p314, %p315
    %p318 = scmp.ne.s32.totalorder %s303, %s317
    %p319 = scmp.eq.s32.totalorder %s36, 0
    %p320 = por %p318, %p319
    %s322 = sadd.s32 %s321, 1
    %p325 = scmp.eq.s32.totalorder %s30, 1
    %p326 = scmp.ne.s32.totalorder %s321, %s323
    %p327 = scmp.eq.s32.totalorder %s30, 0
    %p328 = por %p326, %p327
    %p329 = scmp.ne.s32.totalorder %s321, %s323
    %p330 = scmp.eq.s32.totalorder %s35, 1
    %p331 = por %p329, %p330
    %p332 = scmp.ne.s32.totalorder %s323, %s324
    %p333 = scmp.eq.s32.totalorder %s35, 0
    %p334 = por %p332, %p333
    %p335 = scmp.ne.s32.totalorder %s323, %s324
    %p336 = scmp.eq.s32.totalorder %s36, 1
    %p337 = por %p335, %p336
    %p339 = scmp.ne.s32.totalorder %s324, %s338
    %p340 = scmp.eq.s32.totalorder %s36, 0
    %p341 = por %p339, %p340
    %s343 = sadd.s32 %s342, 1
    %p346 = scmp.eq.s32.totalorder %s30, 1
    %p347 = scmp.ne.s32.totalorder %s342, %s344
    %p348 = scmp.eq.s32.totalorder %s30, 0
    %p349 = por %p347, %p348
    %p350 = scmp.ne.s32.totalorder %s342, %s344
    %p351 = scmp.eq.s32.totalorder %s35, 1
    %p352 = por %p350, %p351
    %p353 = scmp.ne.s32.totalorder %s344, %s345
    %p354 = scmp.eq.s32.totalorder %s35, 0
    %p355 = por %p353, %p354
    %p356 = scmp.ne.s32.totalorder %s344, %s345
    %p357 = scmp.eq.s32.totalorder %s36, 1
    %p358 = por %p356, %p357
    %p360 = scmp.ne.s32.totalorder %s345, %s359
    %p361 = scmp.eq.s32.totalorder %s36, 0
    %p362 = por %p360, %p361
    %s364 = sadd.s32 %s363, 1
    %p367 = scmp.eq.s32.totalorder %s30, 1
    %p368 = scmp.ne.s32.totalorder %s363, %s365
    %p369 = scmp.eq.s32.totalorder %s30, 0
    %p370 = por %p368, %p369
    %p371 = scmp.ne.s32.totalorder %s363, %s365
    %p372 = scmp.eq.s32.totalorder %s35, 1
    %p373 = por %p371, %p372
    %p374 = scmp.ne.s32.totalorder %s365, %s366
    %p375 = scmp.eq.s32.totalorder %s35, 0
    %p376 = por %p374, %p375
    %p377 = scmp.ne.s32.totalorder %s365, %s366
    %p378 = scmp.eq.s32.totalorder %s36, 1
    %p379 = por %p377, %p378
    %p381 = scmp.ne.s32.totalorder %s366, %s380
    %p382 = scmp.eq.s32.totalorder %s36, 0
    %p383 = por %p381, %p382
    %s385 = sadd.s32 %s384, 1
    %p388 = scmp.eq.s32.totalorder %s30, 1
    %p389 = scmp.ne.s32.totalorder %s384, %s386
    %p390 = scmp.eq.s32.totalorder %s30, 0
    %p391 = por %p389, %p390
    %p392 = scmp.ne.s32.totalorder %s384, %s386
    %p393 = scmp.eq.s32.totalorder %s35, 1
    %p394 = por %p392, %p393
    %p395 = scmp.ne.s32.totalorder %s386, %s387
    %p396 = scmp.eq.s32.totalorder %s35, 0
    %p397 = por %p395, %p396
    %p398 = scmp.ne.s32.totalorder %s386, %s387
    %p399 = scmp.eq.s32.totalorder %s36, 1
    %p400 = por %p398, %p399
    %p402 = scmp.ne.s32.totalorder %s387, %s401
    %p403 = scmp.eq.s32.totalorder %s36, 0
    %p404 = por %p402, %p403
    %s406 = sadd.s32 %s405, 1
    %p409 = scmp.eq.s32.totalorder %s30, 1
    %p410 = scmp.ne.s32.totalorder %s405, %s407
    %p411 = scmp.eq.s32.totalorder %s30, 0
    %p412 = por %p410, %p411
    %p413 = scmp.ne.s32.totalorder %s405, %s407
    %p414 = scmp.eq.s32.totalorder %s35, 1
    %p415 = por %p413, %p414
    %p416 = scmp.ne.s32.totalorder %s407, %s408
    %p417 = scmp.eq.s32.totalorder %s35, 0
    %p418 = por %p416, %p417
    %p419 = scmp.ne.s32.totalorder %s407, %s408
    %p420 = scmp.eq.s32.totalorder %s36, 1
    %p421 = por %p419, %p420
    %p423 = scmp.ne.s32.totalorder %s408, %s422
    %p424 = scmp.eq.s32.totalorder %s36, 0
    %p425 = por %p423, %p424
    %s427 = sadd.s32 %s426, 1
    %p430 = scmp.eq.s32.totalorder %s30, 1
    %p431 = scmp.ne.s32.totalorder %s426, %s428
    %p432 = scmp.eq.s32.totalorder %s30, 0
    %p433 = por %p431, %p432
    %p434 = scmp.ne.s32.totalorder %s426, %s428
    %p435 = scmp.eq.s32.totalorder %s35, 1
    %p436 = por %p434, %p435
    %p437 = scmp.ne.s32.totalorder %s428, %s429
    %p438 = scmp.eq.s32.totalorder %s35, 0
    %p439 = por %p437, %p438
    %p440 = scmp.ne.s32.totalorder %s428, %s429
    %p441 = scmp.eq.s32.totalorder %s36, 1
    %p442 = por %p440, %p441
    %p444 = scmp.ne.s32.totalorder %s429, %s443
    %p445 = scmp.eq.s32.totalorder %s36, 0
    %p446 = por %p444, %p445
    %s448 = sadd.s32 %s447, 1
    %p451 = scmp.eq.s32.totalorder %s30, 1
    %p452 = scmp.ne.s32.totalorder %s447, %s449
    %p453 = scmp.eq.s32.totalorder %s30, 0
    %p454 = por %p452, %p453
    %p455 = scmp.ne.s32.totalorder %s447, %s449
    %p456 = scmp.eq.s32.totalorder %s35, 1
    %p457 = por %p455, %p456
    %p458 = scmp.ne.s32.totalorder %s449, %s450
    %p459 = scmp.eq.s32.totalorder %s35, 0
    %p460 = por %p458, %p459
    %p461 = scmp.ne.s32.totalorder %s449, %s450
    %p462 = scmp.eq.s32.totalorder %s36, 1
    %p463 = por %p461, %p462
    %p465 = scmp.ne.s32.totalorder %s450, %s464
    %p466 = scmp.eq.s32.totalorder %s36, 0
    %p467 = por %p465, %p466
    %s469 = sadd.s32 %s468, 1
    %p472 = scmp.eq.s32.totalorder %s30, 1
    %p473 = scmp.ne.s32.totalorder %s468, %s470
    %p474 = scmp.eq.s32.totalorder %s30, 0
    %p475 = por %p473, %p474
    %p476 = scmp.ne.s32.totalorder %s468, %s470
    %p477 = scmp.eq.s32.totalorder %s35, 1
    %p478 = por %p476, %p477
    %p479 = scmp.ne.s32.totalorder %s470, %s471
    %p480 = scmp.eq.s32.totalorder %s35, 0
    %p481 = por %p479, %p480
    %p482 = scmp.ne.s32.totalorder %s470, %s471
    %p483 = scmp.eq.s32.totalorder %s36, 1
    %p484 = por %p482, %p483
    %p486 = scmp.ne.s32.totalorder %s471, %s485
    %p487 = scmp.eq.s32.totalorder %s36, 0
    %p488 = por %p486, %p487
    %s490 = sadd.s32 %s489, 1
    %p493 = scmp.eq.s32.totalorder %s30, 1
    %p494 = scmp.ne.s32.totalorder %s489, %s491
    %p495 = scmp.eq.s32.totalorder %s30, 0
    %p496 = por %p494, %p495
    %p497 = scmp.ne.s32.totalorder %s489, %s491
    %p498 = scmp.eq.s32.totalorder %s35, 1
    %p499 = por %p497, %p498
    %p500 = scmp.ne.s32.totalorder %s491, %s492
    %p501 = scmp.eq.s32.totalorder %s35, 0
    %p502 = por %p500, %p501
    %p503 = scmp.ne.s32.totalorder %s491, %s492
    %p504 = scmp.eq.s32.totalorder %s36, 1
    %p505 = por %p503, %p504
    %p507 = scmp.ne.s32.totalorder %s492, %s506
    %p508 = scmp.eq.s32.totalorder %s36, 0
    %p509 = por %p507, %p508
    %s511 = sadd.s32 %s510, 1
    %p514 = scmp.eq.s32.totalorder %s30, 1
    %p515 = scmp.ne.s32.totalorder %s510, %s512
    %p516 = scmp.eq.s32.totalorder %s30, 0
    %p517 = por %p515, %p516
    %p518 = scmp.ne.s32.totalorder %s510, %s512
    %p519 = scmp.eq.s32.totalorder %s35, 1
    %p520 = por %p518, %p519
    %p521 = scmp.ne.s32.totalorder %s512, %s513
    %p522 = scmp.eq.s32.totalorder %s35, 0
    %p523 = por %p521, %p522
    %p524 = scmp.ne.s32.totalorder %s512, %s513
    %p525 = scmp.eq.s32.totalorder %s36, 1
    %p526 = por %p524, %p525
    %p528 = scmp.ne.s32.totalorder %s513, %s527
    %p529 = scmp.eq.s32.totalorder %s36, 0
    %p530 = por %p528, %p529
    %s532 = sadd.s32 %s531, 1
    %p535 = scmp.eq.s32.totalorder %s30, 1
    %p536 = scmp.ne.s32.totalorder %s531, %s533
    %p537 = scmp.eq.s32.totalorder %s30, 0
    %p538 = por %p536, %p537
    %p539 = scmp.ne.s32.totalorder %s531, %s533
    %p540 = scmp.eq.s32.totalorder %s35, 1
    %p541 = por %p539, %p540
    %p542 = scmp.ne.s32.totalorder %s533, %s534
    %p543 = scmp.eq.s32.totalorder %s35, 0
    %p544 = por %p542, %p543
    %p545 = scmp.ne.s32.totalorder %s533, %s534
    %p546 = scmp.eq.s32.totalorder %s36, 1
    %p547 = por %p545, %p546
    %p549 = scmp.ne.s32.totalorder %s534, %s548
    %p550 = scmp.eq.s32.totalorder %s36, 0
    %p551 = por %p549, %p550
    %s552 = ssub.s32 %s30, %s37
    %p553 = scmp.eq.s32.totalorder %s552, 0
    %s555 = sadd.s32 %s554, 1
    %s556 = scalar_select %p553, %s554, %s555
    %p559 = pneg %p553
    %p560 = scmp.eq.s32.totalorder %s30, 1
    %p561 = por %p559, %p560
    %p562 = scmp.ne.s32.totalorder %s554, %s557
    %p563 = scmp.eq.s32.totalorder %s30, 0
    %p564 = por %p562, %p563
    %p565 = scmp.ne.s32.totalorder %s554, %s557
    %p566 = scmp.eq.s32.totalorder %s35, 1
    %p567 = por %p565, %p566
    %p568 = scmp.ne.s32.totalorder %s557, %s558
    %p569 = scmp.eq.s32.totalorder %s35, 0
    %p570 = por %p568, %p569
    %p571 = scmp.ne.s32.totalorder %s557, %s558
    %p572 = scmp.eq.s32.totalorder %s36, 1
    %p573 = por %p571, %p572
    %p575 = scmp.ne.s32.totalorder %s558, %s574
    %p576 = scmp.eq.s32.totalorder %s36, 0
    %p577 = por %p575, %p576
    %p578 = scmp.le.s32.totalorder 1, %s30
    %p579 = scmp.lt.s32.totalorder %s30, 3
    %p580 = pnand %p578, %p579
    %p581 = pneg %p580
    // Predicated region
    $region9: #{decoder_forward.3} parent=5 // pred_check
      _
    $region10: #{decoder_forward.3} parent=5 // pred_check_branch
      %583 = sbr.rel (%p580) target = $region12
    $region11: #{decoder_forward.3} parent=5 // pred_region
      %s584 = ssub.s32 %s30, 1
      // Predicated region
      $region13: #{decoder_forward.3} parent=11 // pred_check
        %p585 = pneg %p103
      $region14: #{decoder_forward.3} parent=11 // pred_check_branch
        %587 = sbr.rel (%p585) target = $region16
      $region15: #{decoder_forward.3} parent=11 // pred_region
        _
      $region16: #{decoder_forward.3} parent=11 // pred_fallthru
        _
      // Predicated region
      $region17: #{decoder_forward.3} parent=11 // pred_check
        %p588 = pneg %p124
      $region18: #{decoder_forward.3} parent=11 // pred_check_branch
        %590 = sbr.rel (%p588) target = $region20
      $region19: #{decoder_forward.3} parent=11 // pred_region
        _
      $region20: #{decoder_forward.3} parent=11 // pred_fallthru
        _
      // Predicated region
      $region21: #{decoder_forward.3} parent=11 // pred_check
        %p591 = pneg %p145
      $region22: #{decoder_forward.3} parent=11 // pred_check_branch
        %593 = sbr.rel (%p591) target = $region24
      $region23: #{decoder_forward.3} parent=11 // pred_region
        _
      $region24: #{decoder_forward.3} parent=11 // pred_fallthru
        _
      // Predicated region
      $region25: #{decoder_forward.3} parent=11 // pred_check
        %p594 = pneg %p166
      $region26: #{decoder_forward.3} parent=11 // pred_check_branch
        %596 = sbr.rel (%p594) target = $region28
      $region27: #{decoder_forward.3} parent=11 // pred_region
        _
      $region28: #{decoder_forward.3} parent=11 // pred_fallthru
        _
      // Predicated region
      $region29: #{decoder_forward.3} parent=11 // pred_check
        %p597 = pneg %p187
      $region30: #{decoder_forward.3} parent=11 // pred_check_branch
        %599 = sbr.rel (%p597) target = $region32
      $region31: #{decoder_forward.3} parent=11 // pred_region
        _
      $region32: #{decoder_forward.3} parent=11 // pred_fallthru
        _
      // Predicated region
      $region33: #{decoder_forward.3} parent=11 // pred_check
        %p600 = pneg %p208
      $region34: #{decoder_forward.3} parent=11 // pred_check_branch
        %602 = sbr.rel (%p600) target = $region36
      $region35: #{decoder_forward.3} parent=11 // pred_region
        _
      $region36: #{decoder_forward.3} parent=11 // pred_fallthru
        _
      // Predicated region
      $region37: #{decoder_forward.3} parent=11 // pred_check
        %p603 = pneg %p229
      $region38: #{decoder_forward.3} parent=11 // pred_check_branch
        %605 = sbr.rel (%p603) target = $region40
      $region39: #{decoder_forward.3} parent=11 // pred_region
        _
      $region40: #{decoder_forward.3} parent=11 // pred_fallthru
        _
      // Predicated region
      $region41: #{decoder_forward.3} parent=11 // pred_check
        %p606 = pneg %p250
      $region42: #{decoder_forward.3} parent=11 // pred_check_branch
        %608 = sbr.rel (%p606) target = $region44
      $region43: #{decoder_forward.3} parent=11 // pred_region
        _
      $region44: #{decoder_forward.3} parent=11 // pred_fallthru
        _
      // Predicated region
      $region45: #{decoder_forward.3} parent=11 // pred_check
        %p609 = pneg %p271
      $region46: #{decoder_forward.3} parent=11 // pred_check_branch
        %611 = sbr.rel (%p609) target = $region48
      $region47: #{decoder_forward.3} parent=11 // pred_region
        _
      $region48: #{decoder_forward.3} parent=11 // pred_fallthru
        _
      // Predicated region
      $region49: #{decoder_forward.3} parent=11 // pred_check
        %p612 = pneg %p292
      $region50: #{decoder_forward.3} parent=11 // pred_check_branch
        %614 = sbr.rel (%p612) target = $region52
      $region51: #{decoder_forward.3} parent=11 // pred_region
        _
      $region52: #{decoder_forward.3} parent=11 // pred_fallthru
        _
      // Predicated region
      $region53: #{decoder_forward.3} parent=11 // pred_check
        %p615 = pneg %p313
      $region54: #{decoder_forward.3} parent=11 // pred_check_branch
        %617 = sbr.rel (%p615) target = $region56
      $region55: #{decoder_forward.3} parent=11 // pred_region
        _
      $region56: #{decoder_forward.3} parent=11 // pred_fallthru
        _
      // Predicated region
      $region57: #{decoder_forward.3} parent=11 // pred_check
        %p618 = pneg %p334
      $region58: #{decoder_forward.3} parent=11 // pred_check_branch
        %620 = sbr.rel (%p618) target = $region60
      $region59: #{decoder_forward.3} parent=11 // pred_region
        _
      $region60: #{decoder_forward.3} parent=11 // pred_fallthru
        _
      // Predicated region
      $region61: #{decoder_forward.3} parent=11 // pred_check
        %p621 = pneg %p355
      $region62: #{decoder_forward.3} parent=11 // pred_check_branch
        %623 = sbr.rel (%p621) target = $region64
      $region63: #{decoder_forward.3} parent=11 // pred_region
        _
      $region64: #{decoder_forward.3} parent=11 // pred_fallthru
        _
      // Predicated region
      $region65: #{decoder_forward.3} parent=11 // pred_check
        %p624 = pneg %p376
      $region66: #{decoder_forward.3} parent=11 // pred_check_branch
        %626 = sbr.rel (%p624) target = $region68
      $region67: #{decoder_forward.3} parent=11 // pred_region
        _
      $region68: #{decoder_forward.3} parent=11 // pred_fallthru
        _
      // Predicated region
      $region69: #{decoder_forward.3} parent=11 // pred_check
        %p627 = pneg %p397
      $region70: #{decoder_forward.3} parent=11 // pred_check_branch
        %629 = sbr.rel (%p627) target = $region72
      $region71: #{decoder_forward.3} parent=11 // pred_region
        _
      $region72: #{decoder_forward.3} parent=11 // pred_fallthru
        _
      // Predicated region
      $region73: #{decoder_forward.3} parent=11 // pred_check
        %p630 = pneg %p418
      $region74: #{decoder_forward.3} parent=11 // pred_check_branch
        %632 = sbr.rel (%p630) target = $region76
      $region75: #{decoder_forward.3} parent=11 // pred_region
        _
      $region76: #{decoder_forward.3} parent=11 // pred_fallthru
        _
      // Predicated region
      $region77: #{decoder_forward.3} parent=11 // pred_check
        %p633 = pneg %p439
      $region78: #{decoder_forward.3} parent=11 // pred_check_branch
        %635 = sbr.rel (%p633) target = $region80
      $region79: #{decoder_forward.3} parent=11 // pred_region
        _
      $region80: #{decoder_forward.3} parent=11 // pred_fallthru
        _
      // Predicated region
      $region81: #{decoder_forward.3} parent=11 // pred_check
        %p636 = pneg %p460
      $region82: #{decoder_forward.3} parent=11 // pred_check_branch
        %638 = sbr.rel (%p636) target = $region84
      $region83: #{decoder_forward.3} parent=11 // pred_region
        _
      $region84: #{decoder_forward.3} parent=11 // pred_fallthru
        _
      // Predicated region
      $region85: #{decoder_forward.3} parent=11 // pred_check
        %p639 = pneg %p481
      $region86: #{decoder_forward.3} parent=11 // pred_check_branch
        %641 = sbr.rel (%p639) target = $region88
      $region87: #{decoder_forward.3} parent=11 // pred_region
        _
      $region88: #{decoder_forward.3} parent=11 // pred_fallthru
        _
      // Predicated region
      $region89: #{decoder_forward.3} parent=11 // pred_check
        %p642 = pneg %p502
      $region90: #{decoder_forward.3} parent=11 // pred_check_branch
        %644 = sbr.rel (%p642) target = $region92
      $region91: #{decoder_forward.3} parent=11 // pred_region
        _
      $region92: #{decoder_forward.3} parent=11 // pred_fallthru
        _
      // Predicated region
      $region93: #{decoder_forward.3} parent=11 // pred_check
        %p645 = pneg %p523
      $region94: #{decoder_forward.3} parent=11 // pred_check_branch
        %647 = sbr.rel (%p645) target = $region96
      $region95: #{decoder_forward.3} parent=11 // pred_region
        _
      $region96: #{decoder_forward.3} parent=11 // pred_fallthru
        _
      // Predicated region
      $region97: #{decoder_forward.3} parent=11 // pred_check
        %p648 = pneg %p544
      $region98: #{decoder_forward.3} parent=11 // pred_check_branch
        %650 = sbr.rel (%p648) target = $region100
      $region99: #{decoder_forward.3} parent=11 // pred_region
        _
      $region100: #{decoder_forward.3} parent=11 // pred_fallthru
        _
    $region12: #{decoder_forward.3} parent=5 // pred_fallthru
      _
    %p651 = scmp.lt.s32.totalorder %s30, 2
    // Predicated region
    $region101: #{decoder_forward.3} parent=5 // pred_check
      %p652 = pneg %p651
    $region102: #{decoder_forward.3} parent=5 // pred_check_branch
      %654 = sbr.rel (%p652) target = $region104
    $region103: #{decoder_forward.3} parent=5 // pred_region
      // Predicated region
      $region105: #{decoder_forward.3} parent=103 // pred_check
        %p655 = pneg %p50
      $region106: #{decoder_forward.3} parent=103 // pred_check_branch
        %657 = sbr.rel (%p655) target = $region108
      $region107: #{decoder_forward.3} parent=103 // pred_region
        %p658 = scmp.lt.s32.totalorder %s30, 1
        %s659 = scalar_select %p658, %s30, 1
        %s660 = smul.addr %s659, 8
        %s661 = scalar_lea.vmem %s0, %s660
      $region108: #{decoder_forward.3} parent=103 // pred_fallthru
        _
      // Predicated region
      $region109: #{decoder_forward.3} parent=103 // pred_check
        %p662 = pneg %p76
      $region110: #{decoder_forward.3} parent=103 // pred_check_branch
        %664 = sbr.rel (%p662) target = $region112
      $region111: #{decoder_forward.3} parent=103 // pred_region
        %p665 = scmp.lt.s32.totalorder %s30, 1
        %s666 = scalar_select %p665, %s30, 1
        %s667 = smul.addr %s666, 8
        %s668 = scalar_lea.vmem %s1, %s667
      $region112: #{decoder_forward.3} parent=103 // pred_fallthru
        _
    $region104: #{decoder_forward.3} parent=5 // pred_fallthru
      _
    %p669 = scmp.le.s32.totalorder 1, %s30
    %p670 = scmp.lt.s32.totalorder %s30, 3
    %p671 = pnand %p669, %p670
    %p672 = pneg %p671
    // Predicated region
    $region113: #{decoder_forward.3} parent=5 // pred_check
      _
    $region114: #{decoder_forward.3} parent=5 // pred_check_branch
      %674 = sbr.rel (%p671) target = $region116
    $region115: #{decoder_forward.3} parent=5 // pred_region
      %s675 = ssub.s32 %s30, 1
      %p676 = scmp.lt.s32.totalorder %s35, 1
      %s677 = scalar_select %p676, %s35, 1
      %s678 = smul.addr %s677, 8
      %s679 = scalar_lea.vmem %s0, %s678
      %p680 = pneg %p56
      %p681 = pneg %p53
      %p682 = scmp.lt.s32.totalorder %s35, 1
      %s683 = scalar_select %p682, %s35, 1
      %s684 = smul.addr %s683, 8
      %s685 = scalar_lea.vmem %s1, %s684
      %p686 = pneg %p82
      %p687 = pneg %p79
      %p688 = pneg %p103
      %p689 = pneg %p100
      %p690 = pneg %p124
      %p691 = pneg %p121
      %p692 = pneg %p145
      %p693 = pneg %p142
      %p694 = pneg %p166
      %p695 = pneg %p163
      %p696 = pneg %p187
      %p697 = pneg %p184
      %p698 = pneg %p208
      %p699 = pneg %p205
      %p700 = pneg %p229
      %p701 = pneg %p226
      %p702 = pneg %p250
      %p703 = pneg %p247
      %p704 = pneg %p271
      %p705 = pneg %p268
      %p706 = pneg %p292
      %p707 = pneg %p289
      %p708 = pneg %p313
      %p709 = pneg %p310
      %p710 = pneg %p334
      %p711 = pneg %p331
      %p712 = pneg %p355
      %p713 = pneg %p352
      %p714 = pneg %p376
      %p715 = pneg %p373
      %p716 = pneg %p397
      %p717 = pneg %p394
      %p718 = pneg %p418
      %p719 = pneg %p415
      %p720 = pneg %p439
      %p721 = pneg %p436
      %p722 = pneg %p460
      %p723 = pneg %p457
      %p724 = pneg %p481
      %p725 = pneg %p478
      %p726 = pneg %p502
      %p727 = pneg %p499
      %p728 = pneg %p523
      %p729 = pneg %p520
      %p730 = pneg %p544
      %p731 = pneg %p541
      %p732 = pneg %p570
      %p733 = pneg %p567
      %p734 = scmp.lt.s32.totalorder %s35, 1
      %s735 = scalar_select %p734, %s35, 1
      %s736 = smul.addr %s735, 8
      %s737 = scalar_lea.vmem %s24, %s736
      %p738 = scmp.lt.s32.totalorder %s35, 1
      %s739 = scalar_select %p738, %s35, 1
      %s740 = smul.addr %s739, 8
      %s741 = scalar_lea.vmem %s0, %s740
      %p742 = scmp.lt.s32.totalorder %s35, 1
      %s743 = scalar_select %p742, %s35, 1
      %s744 = smul.addr %s743, 8
      %s745 = scalar_lea.vmem %s1, %s744
      %p746 = scmp.lt.s32.totalorder %s35, 1
      %s747 = scalar_select %p746, %s35, 1
      %s748 = smul.addr %s747, 8
      %s749 = scalar_lea.vmem %s24, %s748
      %v751 = vld [vmem:[%s741] sm:$0xff]
      %v752 = vld [vmem:[%s745] sm:$0xff]
      %v753 = vld [vmem:[%s2] sm:$0xf]
      %v754 = vld [vmem:[%s2 + $0x4] sm:$0xf]
      %v755 = vld [vmem:[%s2 + $0x8] sm:$0xf]
      %v756 = vld [vmem:[%s2 + $0xc] sm:$0xf]
      %v757 = vld [vmem:[%s3] sm:$0x1]
      %v758 = vld [vmem:[%s4] sm:$0xf]
      %v759 = vld [vmem:[%s4 + $0x4] sm:$0xf]
      %v760 = vld [vmem:[%s4 + $0x8] sm:$0xf]
      %v761 = vld [vmem:[%s4 + $0xc] sm:$0xf]
      %v762 = vld [vmem:[%s5] sm:$0x1]
      %v763 = vld [vmem:[%s6] sm:$0xf]
      %v764 = vld [vmem:[%s6 + $0x4] sm:$0xf]
      %v765 = vld [vmem:[%s6 + $0x8] sm:$0xf]
      %v766 = vld [vmem:[%s6 + $0xc] sm:$0xf]
      %v767 = vld [vmem:[%s7] sm:$0x1]
      %v768 = vpack.c.bf16 %v751, %v751
      %v770 = vlaneseq
      %v771 = vshrl.u32 %v770, 7
      %v772 = vsub.s32 0, %v771
      %v773 = vrot.slane %v757, %v772
      %v779 = vunpack.c.l.b16 %v753
      %v780 = vunpack.c.l.b16 %v754
      %v781 = vunpack.c.l.b16 %v755
      %v782 = vunpack.c.l.b16 %v756
      %v783 = vpack.c.b16 %v780, %v779
      %v784 = vpack.c.b16 %v782, %v781
      %vm787 = vcmask 261120
      %v789 = vsel %vm787, %v768, 0
      %791 = vmatprep.subr.bf16.mxu0 0
      %792 = vmatpush1.bf16.msra.mxu0 %v783
      %793 = vmatprep.subr.bf16.mxu0 0
      %794 = vmatpush1.bf16.msra.mxu0 %v784
      %795 = vmatprep.subr.bf16.mxu0 0
      %796 = vmatpush1.bf16.msra.mxu0 0
      %797 = vmatprep.subr.bf16.mxu0 0
      %798 = vmatpush1.bf16.msra.mxu0 0
      %799 = vmatprep.subr.bf16.mxu0 0
      %800 = vmatpush1.bf16.msra.mxu0 0
      %801 = vmatprep.subr.bf16.mxu0 0
      %802 = vmatpush1.bf16.msra.mxu0 0
      %803 = vmatprep.subr.bf16.mxu0 0
      %804 = vmatpush1.bf16.msra.mxu0 0
      %805 = vmatprep.subr.bf16.mxu0 0
      %806 = vmatpush1.bf16.msra.mxu0 0
      %807 = vmatprep.subr.bf16.mxu0 0
      %808 = vmatpush1.bf16.msra.mxu0 0
      %809 = vmatprep.subr.bf16.mxu0 0
      %810 = vmatpush1.bf16.msra.mxu0 0
      %811 = vmatprep.subr.bf16.mxu0 0
      %812 = vmatpush1.bf16.msra.mxu0 0
      %813 = vmatprep.subr.bf16.mxu0 0
      %814 = vmatpush1.bf16.msra.mxu0 0
      %815 = vmatprep.subr.bf16.mxu0 0
      %816 = vmatpush1.bf16.msra.mxu0 0
      %817 = vmatprep.subr.bf16.mxu0 0
      %818 = vmatpush1.bf16.msra.mxu0 0
      %819 = vmatprep.subr.bf16.mxu0 0
      %820 = vmatpush1.bf16.msra.mxu0 0
      %821 = vmatprep.subr.bf16.mxu0 0
      %822 = vmatpush1.bf16.msra.mxu0 0
      %823 = vmatprep.mubr.bf16.mxu0 0
      %824 = vmatmul.mubr.bf16.gmra.mrb[0].mxu0 %v789
      %v825 = vpop.f32.mrb[0].mxu0
      %v826 = vadd.f32 %v773, %v825
      %v827 = vpop.f32.mrb[0].mxu0
      %v828 = vpop.f32.mrb[0].mxu0
      %v829 = vpop.f32.mrb[0].mxu0
      %830 = vdwg.mxu0
      %v832 = vlaneseq
      %v833 = vshrl.u32 %v832, 7
      %v834 = vsub.s32 0, %v833
      %v835 = vrot.slane %v762, %v834
      %v841 = vunpack.c.l.b16 %v758
      %v842 = vunpack.c.l.b16 %v759
      %v843 = vunpack.c.l.b16 %v760
      %v844 = vunpack.c.l.b16 %v761
      %v845 = vpack.c.b16 %v842, %v841
      %v846 = vpack.c.b16 %v844, %v843
      %849 = vmatprep.subr.bf16.mxu0 0
      %850 = vmatpush1.bf16.msra.mxu0 %v845
      %851 = vmatprep.subr.bf16.mxu0 0
      %852 = vmatpush1.bf16.msra.mxu0 %v846
      %853 = vmatprep.subr.bf16.mxu0 0
      %854 = vmatpush1.bf16.msra.mxu0 0
      %855 = vmatprep.subr.bf16.mxu0 0
      %856 = vmatpush1.bf16.msra.mxu0 0
      %857 = vmatprep.subr.bf16.mxu0 0
      %858 = vmatpush1.bf16.msra.mxu0 0
      %859 = vmatprep.subr.bf16.mxu0 0
      %860 = vmatpush1.bf16.msra.mxu0 0
      %861 = vmatprep.subr.bf16.mxu0 0
      %862 = vmatpush1.bf16.msra.mxu0 0
      %863 = vmatprep.subr.bf16.mxu0 0
      %864 = vmatpush1.bf16.msra.mxu0 0
      %865 = vmatprep.subr.bf16.mxu0 0
      %866 = vmatpush1.bf16.msra.mxu0 0
      %867 = vmatprep.subr.bf16.mxu0 0
      %868 = vmatpush1.bf16.msra.mxu0 0
      %869 = vmatprep.subr.bf16.mxu0 0
      %870 = vmatpush1.bf16.msra.mxu0 0
      %871 = vmatprep.subr.bf16.mxu0 0
      %872 = vmatpush1.bf16.msra.mxu0 0
      %873 = vmatprep.subr.bf16.mxu0 0
      %874 = vmatpush1.bf16.msra.mxu0 0
      %875 = vmatprep.subr.bf16.mxu0 0
      %876 = vmatpush1.bf16.msra.mxu0 0
      %877 = vmatprep.subr.bf16.mxu0 0
      %878 = vmatpush1.bf16.msra.mxu0 0
      %879 = vmatprep.subr.bf16.mxu0 0
      %880 = vmatpush1.bf16.msra.mxu0 0
      %881 = vmatprep.mubr.bf16.mxu0 0
      %882 = vmatmul.mubr.bf16.gmra.mrb[0].mxu0 %v789
      %v883 = vpop.f32.mrb[0].mxu0
      %v884 = vadd.f32 %v835, %v883
      %v885 = vpop.f32.mrb[0].mxu0
      %v886 = vpop.f32.mrb[0].mxu0
      %v887 = vpop.f32.mrb[0].mxu0
      %888 = vdwg.mxu0
      %v889 = vpack.c.bf16 %v826, %v826
      %v890 = vpack.c.bf16 %v884, %v884
      %vm891 = vcmask 64512
      %v893 = vsel %vm891, %v889, 0
      %v896 = vsel %vm891, %v890, 0
      %898 = vmatprep.subr.bf16.mxu0 0
      %899 = vmatpush1.bf16.xpose.msra.mxu0 %v896
      %900 = vmatprep.subr.bf16.mxu0 0
      %901 = vmatpush1.bf16.xpose.msra.mxu0 0
      %902 = vmatprep.subr.bf16.mxu0 0
      %903 = vmatpush1.bf16.xpose.msra.mxu0 0
      %904 = vmatprep.subr.bf16.mxu0 0
      %905 = vmatpush1.bf16.xpose.msra.mxu0 0
      %906 = vmatprep.subr.bf16.mxu0 0
      %907 = vmatpush1.bf16.xpose.msra.mxu0 0
      %908 = vmatprep.subr.bf16.mxu0 0
      %909 = vmatpush1.bf16.xpose.msra.mxu0 0
      %910 = vmatprep.subr.bf16.mxu0 0
      %911 = vmatpush1.bf16.xpose.msra.mxu0 0
      %912 = vmatprep.subr.bf16.mxu0 0
      %913 = vmatpush1.bf16.xpose.msra.mxu0 0
      %914 = vmatprep.subr.bf16.mxu0 0
      %915 = vmatpush1.bf16.xpose.msra.mxu0 0
      %916 = vmatprep.subr.bf16.mxu0 0
      %917 = vmatpush1.bf16.xpose.msra.mxu0 0
      %918 = vmatprep.subr.bf16.mxu0 0
      %919 = vmatpush1.bf16.xpose.msra.mxu0 0
      %920 = vmatprep.subr.bf16.mxu0 0
      %921 = vmatpush1.bf16.xpose.msra.mxu0 0
      %922 = vmatprep.subr.bf16.mxu0 0
      %923 = vmatpush1.bf16.xpose.msra.mxu0 0
      %924 = vmatprep.subr.bf16.mxu0 0
      %925 = vmatpush1.bf16.xpose.msra.mxu0 0
      %926 = vmatprep.subr.bf16.mxu0 0
      %927 = vmatpush1.bf16.xpose.msra.mxu0 0
      %928 = vmatprep.subr.bf16.mxu0 0
      %929 = vmatpush1.bf16.xpose.msra.mxu0 0
      %930 = vmatprep.mubr.bf16.mxu0 0
      %931 = vmatmul.mubr.bf16.gmra.mrb[0].mxu0 %v893
      %v932 = vpop.f32.mrb[0].mxu0
      %v933 = vadd.f32 0.0, %v932
      %v934 = vpop.f32.mrb[0].mxu0
      %v935 = vpop.f32.mrb[0].mxu0
      %v936 = vpop.f32.mrb[0].mxu0
      %937 = vdwg.mxu0
      %v938 = vmul.f32 %v933, 0.35355338
      %v939 = vsel %vm891, %v938, -inf
      %940 = vmax.xlane.f32.xlu0 %v939
      %v941 = vpop.xlane.xlu0 %940
      %v942 = vsub.f32 %v938, %v941
      %v943 = vmul.f32 %v942, 1.442695
      %v944 = vpow.pop %v943
      %v945 = vsel %vm891, %v944, 0.0
      %946 = vadd.xlane.f32.xlu0 %v945
      %v947 = vpop.xlane.xlu0 %946
      %v948 = vrcp.pop %v947
      %v949 = vmul.f32 %v944, %v948
      %v950 = vpack.c.bf16 %v949, %v949
      %952 = vrot.lane.b32.xlu0 %v890, 96
      %v953 = vpop.permute.xlu0 %952
      %v955 = vsel %vm891, %v950, 0
      %vm957 = vcmask 1043456
      %v959 = vsel %vm957, %v953, 0
      %961 = vmatprep.subr.bf16.mxu0 0
      %962 = vmatpush1.bf16.msra.mxu0 %v959
      %963 = vmatprep.subr.bf16.mxu0 0
      %964 = vmatpush1.bf16.msra.mxu0 0
      %965 = vmatprep.subr.bf16.mxu0 0
      %966 = vmatpush1.bf16.msra.mxu0 0
      %967 = vmatprep.subr.bf16.mxu0 0
      %968 = vmatpush1.bf16.msra.mxu0 0
      %969 = vmatprep.subr.bf16.mxu0 0
      %970 = vmatpush1.bf16.msra.mxu0 0
      %971 = vmatprep.subr.bf16.mxu0 0
      %972 = vmatpush1.bf16.msra.mxu0 0
      %973 = vmatprep.subr.bf16.mxu0 0
      %974 = vmatpush1.bf16.msra.mxu0 0
      %975 = vmatprep.subr.bf16.mxu0 0
      %976 = vmatpush1.bf16.msra.mxu0 0
      %977 = vmatprep.subr.bf16.mxu0 0
      %978 = vmatpush1.bf16.msra.mxu0 0
      %979 = vmatprep.subr.bf16.mxu0 0
      %980 = vmatpush1.bf16.msra.mxu0 0
      %981 = vmatprep.subr.bf16.mxu0 0
      %982 = vmatpush1.bf16.msra.mxu0 0
      %983 = vmatprep.subr.bf16.mxu0 0
      %984 = vmatpush1.bf16.msra.mxu0 0
      %985 = vmatprep.subr.bf16.mxu0 0
      %986 = vmatpush1.bf16.msra.mxu0 0
      %987 = vmatprep.subr.bf16.mxu0 0
      %988 = vmatpush1.bf16.msra.mxu0 0
      %989 = vmatprep.subr.bf16.mxu0 0
      %990 = vmatpush1.bf16.msra.mxu0 0
      %991 = vmatprep.subr.bf16.mxu0 0
      %992 = vmatpush1.bf16.msra.mxu0 0
      %993 = vmatprep.mubr.bf16.mxu0 0
      %994 = vmatmul.mubr.bf16.gmra.mrb[0].mxu0 %v955
      %v995 = vpop.f32.mrb[0].mxu0
      %v996 = vadd.f32 0.0, %v995
      %v997 = vpop.f32.mrb[0].mxu0
      %v998 = vpop.f32.mrb[0].mxu0
      %v999 = vpop.f32.mrb[0].mxu0
      %1000 = vdwg.mxu0
      %1002 = vrot.lane.b32.xlu0 %v889, 120
      %v1003 = vpop.permute.xlu0 %1002
      %1004 = vrot.lane.b32.xlu0 %v890, 120
      %v1005 = vpop.permute.xlu0 %1004
      %v1007 = vsel %vm891, %v1003, 0
      %v1010 = vsel %vm891, %v1005, 0
      %1012 = vmatprep.subr.bf16.mxu0 0
      %1013 = vmatpush1.bf16.xpose.msra.mxu0 %v1010
      %1014 = vmatprep.subr.bf16.mxu0 0
      %1015 = vmatpush1.bf16.xpose.msra.mxu0 0
      %1016 = vmatprep.subr.bf16.mxu0 0
      %1017 = vmatpush1.bf16.xpose.msra.mxu0 0
      %1018 = vmatprep.subr.bf16.mxu0 0
      %1019 = vmatpush1.bf16.xpose.msra.mxu0 0
      %1020 = vmatprep.subr.bf16.mxu0 0
      %1021 = vmatpush1.bf16.xpose.msra.mxu0 0
      %1022 = vmatprep.subr.bf16.mxu0 0
      %1023 = vmatpush1.bf16.xpose.msra.mxu0 0
      %1024 = vmatprep.subr.bf16.mxu0 0
      %1025 = vmatpush1.bf16.xpose.msra.mxu0 0
      %1026 = vmatprep.subr.bf16.mxu0 0
      %1027 = vmatpush1.bf16.xpose.msra.mxu0 0
      %1028 = vmatprep.subr.bf16.mxu0 0
      %1029 = vmatpush1.bf16.xpose.msra.mxu0 0
      %1030 = vmatprep.subr.bf16.mxu0 0
      %1031 = vmatpush1.bf16.xpose.msra.mxu0 0
      %1032 = vmatprep.subr.bf16.mxu0 0
      %1033 = vmatpush1.bf16.xpose.msra.mxu0 0
      %1034 = vmatprep.subr.bf16.mxu0 0
      %1035 = vmatpush1.bf16.xpose.msra.mxu0 0
      %1036 = vmatprep.subr.bf16.mxu0 0
      %1037 = vmatpush1.bf16.xpose.msra.mxu0 0
      %1038 = vmatprep.subr.bf16.mxu0 0
      %1039 = vmatpush1.bf16.xpose.msra.mxu0 0
      %1040 = vmatprep.subr.bf16.mxu0 0
      %1041 = vmatpush1.bf16.xpose.msra.mxu0 0
      %1042 = vmatprep.subr.bf16.mxu0 0
      %1043 = vmatpush1.bf16.xpose.msra.mxu0 0
      %1044 = vmatprep.mubr.bf16.mxu0 0
      %1045 = vmatmul.mubr.bf16.gmra.mrb[0].mxu0 %v1007
      %v1046 = vpop.f32.mrb[0].mxu0
      %v1047 = vadd.f32 0.0, %v1046
      %v1048 = vpop.f32.mrb[0].mxu0
      %v1049 = vpop.f32.mrb[0].mxu0
      %v1050 = vpop.f32.mrb[0].mxu0
      %1051 = vdwg.mxu0
      %v1052 = vmul.f32 %v1047, 0.35355338
      %v1053 = vsel %vm891, %v1052, -inf
      %1054 = vmax.xlane.f32.xlu0 %v1053
      %v1055 = vpop.xlane.xlu0 %1054
      %v1056 = vsub.f32 %v1052, %v1055
      %v1057 = vmul.f32 %v1056, 1.442695
      %v1058 = vpow.pop %v1057
      %v1059 = vsel %vm891, %v1058, 0.0
      %1060 = vadd.xlane.f32.xlu0 %v1059
      %v1061 = vpop.xlane.xlu0 %1060
      %v1062 = vrcp.pop %v1061
      %v1063 = vmul.f32 %v1058, %v1062
      %v1064 = vpack.c.bf16 %v1063, %v1063
      %1065 = vrot.lane.b32.xlu0 %v890, 88
      %v1066 = vpop.permute.xlu0 %1065
      %v1068 = vsel %vm891, %v1064, 0
      %v1071 = vsel %vm957, %v1066, 0
      %1073 = vmatprep.subr.bf16.mxu0 0
      %1074 = vmatpush1.bf16.msra.mxu0 %v1071
      %1075 = vmatprep.subr.bf16.mxu0 0
      %1076 = vmatpush1.bf16.msra.mxu0 0
      %1077 = vmatprep.subr.bf16.mxu0 0
      %1078 = vmatpush1.bf16.msra.mxu0 0
      %1079 = vmatprep.subr.bf16.mxu0 0
      %1080 = vmatpush1.bf16.msra.mxu0 0
      %1081 = vmatprep.subr.bf16.mxu0 0
      %1082 = vmatpush1.bf16.msra.mxu0 0
      %1083 = vmatprep.subr.bf16.mxu0 0
      %1084 = vmatpush1.bf16.msra.mxu0 0
      %1085 = vmatprep.subr.bf16.mxu0 0
      %1086 = vmatpush1.bf16.msra.mxu0 0
      %1087 = vmatprep.subr.bf16.mxu0 0
      %1088 = vmatpush1.bf16.msra.mxu0 0
      %1089 = vmatprep.subr.bf16.mxu0 0
      %1090 = vmatpush1.bf16.msra.mxu0 0
      %1091 = vmatprep.subr.bf16.mxu0 0
      %1092 = vmatpush1.bf16.msra.mxu0 0
      %1093 = vmatprep.subr.bf16.mxu0 0
      %1094 = vmatpush1.bf16.msra.mxu0 0
      %1095 = vmatprep.subr.bf16.mxu0 0
      %1096 = vmatpush1.bf16.msra.mxu0 0
      %1097 = vmatprep.subr.bf16.mxu0 0
      %1098 = vmatpush1.bf16.msra.mxu0 0
      %1099 = vmatprep.subr.bf16.mxu0 0
      %1100 = vmatpush1.bf16.msra.mxu0 0
      %1101 = vmatprep.subr.bf16.mxu0 0
      %1102 = vmatpush1.bf16.msra.mxu0 0
      %1103 = vmatprep.subr.bf16.mxu0 0
      %1104 = vmatpush1.bf16.msra.mxu0 0
      %1105 = vmatprep.mubr.bf16.mxu0 0
      %1106 = vmatmul.mubr.bf16.gmra.mrb[0].mxu0 %v1068
      %v1107 = vpop.f32.mrb[0].mxu0
      %v1108 = vadd.f32 0.0, %v1107
      %v1109 = vpop.f32.mrb[0].mxu0
      %v1110 = vpop.f32.mrb[0].mxu0
      %v1111 = vpop.f32.mrb[0].mxu0
      %1112 = vdwg.mxu0
      %1113 = vrot.lane.b32.xlu0 %v889, 112
      %v1114 = vpop.permute.xlu0 %1113
      %1115 = vrot.lane.b32.xlu0 %v890, 112
      %v1116 = vpop.permute.xlu0 %1115
      %v1118 = vsel %vm891, %v1114, 0
      %v1121 = vsel %vm891, %v1116, 0
      %1123 = vmatprep.subr.bf16.mxu0 0
      %1124 = vmatpush1.bf16.xpose.msra.mxu0 %v1121
      %1125 = vmatprep.subr.bf16.mxu0 0
      %1126 = vmatpush1.bf16.xpose.msra.mxu0 0
      %1127 = vmatprep.subr.bf16.mxu0 0
      %1128 = vmatpush1.bf16.xpose.msra.mxu0 0
      %1129 = vmatprep.subr.bf16.mxu0 0
      %1130 = vmatpush1.bf16.xpose.msra.mxu0 0
      %1131 = vmatprep.subr.bf16.mxu0 0
      %1132 = vmatpush1.bf16.xpose.msra.mxu0 0
      %1133 = vmatprep.subr.bf16.mxu0 0
      %1134 = vmatpush1.bf16.xpose.msra.mxu0 0
      %1135 = vmatprep.subr.bf16.mxu0 0
      %1136 = vmatpush1.bf16.xpose.msra.mxu0 0
      %1137 = vmatprep.subr.bf16.mxu0 0
      %1138 = vmatpush1.bf16.xpose.msra.mxu0 0
      %1139 = vmatprep.subr.bf16.mxu0 0
      %1140 = vmatpush1.bf16.xpose.msra.mxu0 0
      %1141 = vmatprep.subr.bf16.mxu0 0
      %1142 = vmatpush1.bf16.xpose.msra.mxu0 0
      %1143 = vmatprep.subr.bf16.mxu0 0
      %1144 = vmatpush1.bf16.xpose.msra.mxu0 0
      %1145 = vmatprep.subr.bf16.mxu0 0
      %1146 = vmatpush1.bf16.xpose.msra.mxu0 0
      %1147 = vmatprep.subr.bf16.mxu0 0
      %1148 = vmatpush1.bf16.xpose.msra.mxu0 0
      %1149 = vmatprep.subr.bf16.mxu0 0
      %1150 = vmatpush1.bf16.xpose.msra.mxu0 0
      %1151 = vmatprep.subr.bf16.mxu0 0
      %1152 = vmatpush1.bf16.xpose.msra.mxu0 0
      %1153 = vmatprep.subr.bf16.mxu0 0
      %1154 = vmatpush1.bf16.xpose.msra.mxu0 0
      %1155 = vmatprep.mubr.bf16.mxu0 0
      %1156 = vmatmul.mubr.bf16.gmra.mrb[0].mxu0 %v1118
      %v1157 = vpop.f32.mrb[0].mxu0
      %v1158 = vadd.f32 0.0, %v1157
      %v1159 = vpop.f32.mrb[0].mxu0
      %v1160 = vpop.f32.mrb[0].mxu0
      %v1161 = vpop.f32.mrb[0].mxu0
      %1162 = vdwg.mxu0
      %v1163 = vmul.f32 %v1158, 0.35355338
      %v1164 = vsel %vm891, %v1163, -inf
      %1165 = vmax.xlane.f32.xlu0 %v1164
      %v1166 = vpop.xlane.xlu0 %1165
      %v1167 = vsub.f32 %v1163, %v1166
      %v1168 = vmul.f32 %v1167, 1.442695
      %v1169 = vpow.pop %v1168
      %v1170 = vsel %vm891, %v1169, 0.0
      %1171 = vadd.xlane.f32.xlu0 %v1170
      %v1172 = vpop.xlane.xlu0 %1171
      %v1173 = vrcp.pop %v1172
      %v1174 = vmul.f32 %v1169, %v1173
      %v1175 = vpack.c.bf16 %v1174, %v1174
      %1176 = vrot.lane.b32.xlu0 %v890, 80
      %v1177 = vpop.permute.xlu0 %1176
      %v1179 = vsel %vm891, %v1175, 0
      %v1182 = vsel %vm957, %v1177, 0
      %1184 = vmatprep.subr.bf16.mxu0 0
      %1185 = vmatpush1.bf16.msra.mxu0 %v1182
      %1186 = vmatprep.subr.bf16.mxu0 0
      %1187 = vmatpush1.bf16.msra.mxu0 0
      %1188 = vmatprep.subr.bf16.mxu0 0
      %1189 = vmatpush1.bf16.msra.mxu0 0
      %1190 = vmatprep.subr.bf16.mxu0 0
      %1191 = vmatpush1.bf16.msra.mxu0 0
      %1192 = vmatprep.subr.bf16.mxu0 0
      %1193 = vmatpush1.bf16.msra.mxu0 0
      %1194 = vmatprep.subr.bf16.mxu0 0
      %1195 = vmatpush1.bf16.msra.mxu0 0
      %1196 = vmatprep.subr.bf16.mxu0 0
      %1197 = vmatpush1.bf16.msra.mxu0 0
      %1198 = vmatprep.subr.bf16.mxu0 0
      %1199 = vmatpush1.bf16.msra.mxu0 0
      %1200 = vmatprep.subr.bf16.mxu0 0
      %1201 = vmatpush1.bf16.msra.mxu0 0
      %1202 = vmatprep.subr.bf16.mxu0 0
      %1203 = vmatpush1.bf16.msra.mxu0 0
      %1204 = vmatprep.subr.bf16.mxu0 0
      %1205 = vmatpush1.bf16.msra.mxu0 0
      %1206 = vmatprep.subr.bf16.mxu0 0
      %1207 = vmatpush1.bf16.msra.mxu0 0
      %1208 = vmatprep.subr.bf16.mxu0 0
      %1209 = vmatpush1.bf16.msra.mxu0 0
      %1210 = vmatprep.subr.bf16.mxu0 0
      %1211 = vmatpush1.bf16.msra.mxu0 0
      %1212 = vmatprep.subr.bf16.mxu0 0
      %1213 = vmatpush1.bf16.msra.mxu0 0
      %1214 = vmatprep.subr.bf16.mxu0 0
      %1215 = vmatpush1.bf16.msra.mxu0 0
      %1216 = vmatprep.mubr.bf16.mxu0 0
      %1217 = vmatmul.mubr.bf16.gmra.mrb[0].mxu0 %v1179
      %v1218 = vpop.f32.mrb[0].mxu0
      %v1219 = vadd.f32 0.0, %v1218
      %v1220 = vpop.f32.mrb[0].mxu0
      %v1221 = vpop.f32.mrb[0].mxu0
      %v1222 = vpop.f32.mrb[0].mxu0
      %1223 = vdwg.mxu0
      %1224 = vrot.lane.b32.xlu0 %v889, 104
      %v1225 = vpop.permute.xlu0 %1224
      %1226 = vrot.lane.b32.xlu0 %v890, 104
      %v1227 = vpop.permute.xlu0 %1226
      %v1229 = vsel %vm891, %v1225, 0
      %v1232 = vsel %vm891, %v1227, 0
      %1234 = vmatprep.subr.bf16.mxu0 0
      %1235 = vmatpush1.bf16.xpose.msra.mxu0 %v1232
      %1236 = vmatprep.subr.bf16.mxu0 0
      %1237 = vmatpush1.bf16.xpose.msra.mxu0 0
      %1238 = vmatprep.subr.bf16.mxu0 0
      %1239 = vmatpush1.bf16.xpose.msra.mxu0 0
      %1240 = vmatprep.subr.bf16.mxu0 0
      %1241 = vmatpush1.bf16.xpose.msra.mxu0 0
      %1242 = vmatprep.subr.bf16.mxu0 0
      %1243 = vmatpush1.bf16.xpose.msra.mxu0 0
      %1244 = vmatprep.subr.bf16.mxu0 0
      %1245 = vmatpush1.bf16.xpose.msra.mxu0 0
      %1246 = vmatprep.subr.bf16.mxu0 0
      %1247 = vmatpush1.bf16.xpose.msra.mxu0 0
      %1248 = vmatprep.subr.bf16.mxu0 0
      %1249 = vmatpush1.bf16.xpose.msra.mxu0 0
      %1250 = vmatprep.subr.bf16.mxu0 0
      %1251 = vmatpush1.bf16.xpose.msra.mxu0 0
      %1252 = vmatprep.subr.bf16.mxu0 0
      %1253 = vmatpush1.bf16.xpose.msra.mxu0 0
      %1254 = vmatprep.subr.bf16.mxu0 0
      %1255 = vmatpush1.bf16.xpose.msra.mxu0 0
      %1256 = vmatprep.subr.bf16.mxu0 0
      %1257 = vmatpush1.bf16.xpose.msra.mxu0 0
      %1258 = vmatprep.subr.bf16.mxu0 0
      %1259 = vmatpush1.bf16.xpose.msra.mxu0 0
      %1260 = vmatprep.subr.bf16.mxu0 0
      %1261 = vmatpush1.bf16.xpose.msra.mxu0 0
      %1262 = vmatprep.subr.bf16.mxu0 0
      %1263 = vmatpush1.bf16.xpose.msra.mxu0 0
      %1264 = vmatprep.subr.bf16.mxu0 0
      %1265 = vmatpush1.bf16.xpose.msra.mxu0 0
      %1266 = vmatprep.mubr.bf16.mxu0 0
      %1267 = vmatmul.mubr.bf16.gmra.mrb[0].mxu0 %v1229
      %v1268 = vpop.f32.mrb[0].mxu0
      %v1269 = vadd.f32 0.0, %v1268
      %v1270 = vpop.f32.mrb[0].mxu0
      %v1271 = vpop.f32.mrb[0].mxu0
      %v1272 = vpop.f32.mrb[0].mxu0
      %1273 = vdwg.mxu0
      %v1274 = vmul.f32 %v1269, 0.35355338
      %v1275 = vsel %vm891, %v1274, -inf
      %1276 = vmax.xlane.f32.xlu0 %v1275
      %v1277 = vpop.xlane.xlu0 %1276
      %v1278 = vsub.f32 %v1274, %v1277
      %v1279 = vmul.f32 %v1278, 1.442695
      %v1280 = vpow.pop %v1279
      %v1281 = vsel %vm891, %v1280, 0.0
      %1282 = vadd.xlane.f32.xlu0 %v1281
      %v1283 = vpop.xlane.xlu0 %1282
      %v1284 = vrcp.pop %v1283
      %v1285 = vmul.f32 %v1280, %v1284
      %v1286 = vpack.c.bf16 %v1285, %v1285
      %1287 = vrot.lane.b32.xlu0 %v890, 72
      %v1288 = vpop.permute.xlu0 %1287
      %v1290 = vsel %vm891, %v1286, 0
      %v1293 = vsel %vm957, %v1288, 0
      %1295 = vmatprep.subr.bf16.mxu0 0
      %1296 = vmatpush1.bf16.msra.mxu0 %v1293
      %1297 = vmatprep.subr.bf16.mxu0 0
      %1298 = vmatpush1.bf16.msra.mxu0 0
      %1299 = vmatprep.subr.bf16.mxu0 0
      %1300 = vmatpush1.bf16.msra.mxu0 0
      %1301 = vmatprep.subr.bf16.mxu0 0
      %1302 = vmatpush1.bf16.msra.mxu0 0
      %1303 = vmatprep.subr.bf16.mxu0 0
      %1304 = vmatpush1.bf16.msra.mxu0 0
      %1305 = vmatprep.subr.bf16.mxu0 0
      %1306 = vmatpush1.bf16.msra.mxu0 0
      %1307 = vmatprep.subr.bf16.mxu0 0
      %1308 = vmatpush1.bf16.msra.mxu0 0
      %1309 = vmatprep.subr.bf16.mxu0 0
      %1310 = vmatpush1.bf16.msra.mxu0 0
      %1311 = vmatprep.subr.bf16.mxu0 0
      %1312 = vmatpush1.bf16.msra.mxu0 0
      %1313 = vmatprep.subr.bf16.mxu0 0
      %1314 = vmatpush1.bf16.msra.mxu0 0
      %1315 = vmatprep.subr.bf16.mxu0 0
      %1316 = vmatpush1.bf16.msra.mxu0 0
      %1317 = vmatprep.subr.bf16.mxu0 0
      %1318 = vmatpush1.bf16.msra.mxu0 0
      %1319 = vmatprep.subr.bf16.mxu0 0
      %1320 = vmatpush1.bf16.msra.mxu0 0
      %1321 = vmatprep.subr.bf16.mxu0 0
      %1322 = vmatpush1.bf16.msra.mxu0 0
      %1323 = vmatprep.subr.bf16.mxu0 0
      %1324 = vmatpush1.bf16.msra.mxu0 0
      %1325 = vmatprep.subr.bf16.mxu0 0
      %1326 = vmatpush1.bf16.msra.mxu0 0
      %1327 = vmatprep.mubr.bf16.mxu0 0
      %1328 = vmatmul.mubr.bf16.gmra.mrb[0].mxu0 %v1290
      %v1329 = vpop.f32.mrb[0].mxu0
      %v1330 = vadd.f32 0.0, %v1329
      %v1331 = vpop.f32.mrb[0].mxu0
      %v1332 = vpop.f32.mrb[0].mxu0
      %v1333 = vpop.f32.mrb[0].mxu0
      %1334 = vdwg.mxu0
      %1336 = vrot.lane.b32.xlu0 %v1108, 8
      %v1337 = vpop.permute.xlu0 %1336
      %1340 = vrot.lane.b32.xlu0 %v1219, 16
      %v1341 = vpop.permute.xlu0 %1340
      %1344 = vrot.lane.b32.xlu0 %v1330, 24
      %v1345 = vpop.permute.xlu0 %1344
      %v1347 = vsel %vm891, %v996, %v1337
      %vm1348 = vcmask 130048
      %v1349 = vsel %vm1348, %v1347, %v1341
      %vm1350 = vcmask 195584
      %v1351 = vsel %vm1350, %v1349, %v1345
      %v1352 = vpack.c.bf16 %v1351, %v1351
      %v1354 = vlaneseq
      %v1355 = vshrl.u32 %v1354, 7
      %v1356 = vsub.s32 0, %v1355
      %v1357 = vrot.slane %v767, %v1356
      %v1363 = vunpack.c.l.b16 %v763
      %v1364 = vunpack.c.l.b16 %v764
      %v1365 = vunpack.c.l.b16 %v765
      %v1366 = vunpack.c.l.b16 %v766
      %v1367 = vpack.c.b16 %v1364, %v1363
      %v1368 = vpack.c.b16 %v1366, %v1365
      %v1372 = vsel %vm787, %v1352, 0
      %1374 = vmatprep.subr.bf16.mxu0 0
      %1375 = vmatpush1.bf16.msra.mxu0 %v1367
      %1376 = vmatprep.subr.bf16.mxu0 0
      %1377 = vmatpush1.bf16.msra.mxu0 %v1368
      %1378 = vmatprep.subr.bf16.mxu0 0
      %1379 = vmatpush1.bf16.msra.mxu0 0
      %1380 = vmatprep.subr.bf16.mxu0 0
      %1381 = vmatpush1.bf16.msra.mxu0 0
      %1382 = vmatprep.subr.bf16.mxu0 0
      %1383 = vmatpush1.bf16.msra.mxu0 0
      %1384 = vmatprep.subr.bf16.mxu0 0
      %1385 = vmatpush1.bf16.msra.mxu0 0
      %1386 = vmatprep.subr.bf16.mxu0 0
      %1387 = vmatpush1.bf16.msra.mxu0 0
      %1388 = vmatprep.subr.bf16.mxu0 0
      %1389 = vmatpush1.bf16.msra.mxu0 0
      %1390 = vmatprep.subr.bf16.mxu0 0
      %1391 = vmatpush1.bf16.msra.mxu0 0
      %1392 = vmatprep.subr.bf16.mxu0 0
      %1393 = vmatpush1.bf16.msra.mxu0 0
      %1394 = vmatprep.subr.bf16.mxu0 0
      %1395 = vmatpush1.bf16.msra.mxu0 0
      %1396 = vmatprep.subr.bf16.mxu0 0
      %1397 = vmatpush1.bf16.msra.mxu0 0
      %1398 = vmatprep.subr.bf16.mxu0 0
      %1399 = vmatpush1.bf16.msra.mxu0 0
      %1400 = vmatprep.subr.bf16.mxu0 0
      %1401 = vmatpush1.bf16.msra.mxu0 0
      %1402 = vmatprep.subr.bf16.mxu0 0
      %1403 = vmatpush1.bf16.msra.mxu0 0
      %1404 = vmatprep.subr.bf16.mxu0 0
      %1405 = vmatpush1.bf16.msra.mxu0 0
      %1406 = vmatprep.mubr.bf16.mxu0 0
      %1407 = vmatmul.mubr.bf16.gmra.mrb[0].mxu0 %v1372
      %v1408 = vpop.f32.mrb[0].mxu0
      %v1409 = vadd.f32 %v1357, %v1408
      %v1410 = vpop.f32.mrb[0].mxu0
      %v1411 = vpop.f32.mrb[0].mxu0
      %v1412 = vpop.f32.mrb[0].mxu0
      %1413 = vdwg.mxu0
      %v1414 = vadd.f32 %v1409, %v751
      %v1415 = vld [vmem:[%s8] sm:$0x1]
      %v1416 = vld [vmem:[%s9] sm:$0x1]
      %v1417 = vsel %vm787, %v1414, 0.0
      %1418 = vadd.xlane.f32.xlu0 %v1417
      %v1419 = vpop.xlane.xlu0 %1418
      %v1420 = vrcp.pop 32.0
      %v1421 = vmul.f32 %v1419, %v1420
      %v1422 = vsub.f32 %v1414, %v1421
      %v1423 = vmul.f32 %v1422, %v1422
      %v1424 = vsel %vm787, %v1423, 0.0
      %1425 = vadd.xlane.f32.xlu0 %v1424
      %v1426 = vpop.xlane.xlu0 %1425
      %v1427 = vmul.f32 %v1426, %v1420
      %v1428 = vadd.f32 %v1427, 1e-05
      %v1429 = vrsqrt.pop %v1428
      %v1430 = vmul.f32 %v1422, %v1429
      %v1432 = vlaneseq
      %v1433 = vshrl.u32 %v1432, 7
      %v1434 = vsub.s32 0, %v1433
      %v1435 = vrot.slane %v1415, %v1434
      %v1437 = vmul.f32 %v1430, %v1435
      %v1439 = vlaneseq
      %v1440 = vshrl.u32 %v1439, 7
      %v1441 = vsub.s32 0, %v1440
      %v1442 = vrot.slane %v1416, %v1441
      %v1444 = vadd.f32 %v1437, %v1442
      %v1445 = vld [vmem:[%s10] sm:$0xf]
      %v1446 = vld [vmem:[%s10 + $0x4] sm:$0xf]
      %v1447 = vld [vmem:[%s10 + $0x8] sm:$0xf]
      %v1448 = vld [vmem:[%s10 + $0xc] sm:$0xf]
      %v1449 = vld [vmem:[%s11] sm:$0x1]
      %v1450 = vld [vmem:[%s12] sm:$0xf]
      %v1451 = vld [vmem:[%s12 + $0x4] sm:$0xf]
      %v1452 = vld [vmem:[%s12 + $0x8] sm:$0xf]
      %v1453 = vld [vmem:[%s12 + $0xc] sm:$0xf]
      %v1454 = vld [vmem:[%s13] sm:$0x1]
      %v1455 = vld [vmem:[%s14] sm:$0xf]
      %v1456 = vld [vmem:[%s14 + $0x4] sm:$0xf]
      %v1457 = vld [vmem:[%s14 + $0x8] sm:$0xf]
      %v1458 = vld [vmem:[%s14 + $0xc] sm:$0xf]
      %v1459 = vld [vmem:[%s15] sm:$0x1]
      %v1460 = vpack.c.bf16 %v1444, %v1444
      %v1461 = vpack.c.bf16 %v752, %v752
      %v1463 = vlaneseq
      %v1464 = vshrl.u32 %v1463, 7
      %v1465 = vsub.s32 0, %v1464
      %v1466 = vrot.slane %v1449, %v1465
      %v1472 = vunpack.c.l.b16 %v1445
      %v1473 = vunpack.c.l.b16 %v1446
      %v1474 = vunpack.c.l.b16 %v1447
      %v1475 = vunpack.c.l.b16 %v1448
      %v1476 = vpack.c.b16 %v1473, %v1472
      %v1477 = vpack.c.b16 %v1475, %v1474
      %v1481 = vsel %vm787, %v1460, 0
      %1483 = vmatprep.subr.bf16.mxu0 0
      %1484 = vmatpush1.bf16.msra.mxu0 %v1476
      %1485 = vmatprep.subr.bf16.mxu0 0
      %1486 = vmatpush1.bf16.msra.mxu0 %v1477
      %1487 = vmatprep.subr.bf16.mxu0 0
      %1488 = vmatpush1.bf16.msra.mxu0 0
      %1489 = vmatprep.subr.bf16.mxu0 0
      %1490 = vmatpush1.bf16.msra.mxu0 0
      %1491 = vmatprep.subr.bf16.mxu0 0
      %1492 = vmatpush1.bf16.msra.mxu0 0
      %1493 = vmatprep.subr.bf16.mxu0 0
      %1494 = vmatpush1.bf16.msra.mxu0 0
      %1495 = vmatprep.subr.bf16.mxu0 0
      %1496 = vmatpush1.bf16.msra.mxu0 0
      %1497 = vmatprep.subr.bf16.mxu0 0
      %1498 = vmatpush1.bf16.msra.mxu0 0
      %1499 = vmatprep.subr.bf16.mxu0 0
      %1500 = vmatpush1.bf16.msra.mxu0 0
      %1501 = vmatprep.subr.bf16.mxu0 0
      %1502 = vmatpush1.bf16.msra.mxu0 0
      %1503 = vmatprep.subr.bf16.mxu0 0
      %1504 = vmatpush1.bf16.msra.mxu0 0
      %1505 = vmatprep.subr.bf16.mxu0 0
      %1506 = vmatpush1.bf16.msra.mxu0 0
      %1507 = vmatprep.subr.bf16.mxu0 0
      %1508 = vmatpush1.bf16.msra.mxu0 0
      %1509 = vmatprep.subr.bf16.mxu0 0
      %1510 = vmatpush1.bf16.msra.mxu0 0
      %1511 = vmatprep.subr.bf16.mxu0 0
      %1512 = vmatpush1.bf16.msra.mxu0 0
      %1513 = vmatprep.subr.bf16.mxu0 0
      %1514 = vmatpush1.bf16.msra.mxu0 0
      %1515 = vmatprep.mubr.bf16.mxu0 0
      %1516 = vmatmul.mubr.bf16.gmra.mrb[0].mxu0 %v1481
      %v1517 = vpop.f32.mrb[0].mxu0
      %v1518 = vadd.f32 %v1466, %v1517
      %v1519 = vpop.f32.mrb[0].mxu0
      %v1520 = vpop.f32.mrb[0].mxu0
      %v1521 = vpop.f32.mrb[0].mxu0
      %1522 = vdwg.mxu0
      %v1524 = vlaneseq
      %v1525 = vshrl.u32 %v1524, 7
      %v1526 = vsub.s32 0, %v1525
      %v1527 = vrot.slane %v1454, %v1526
      %v1533 = vunpack.c.l.b16 %v1450
      %v1534 = vunpack.c.l.b16 %v1451
      %v1535 = vunpack.c.l.b16 %v1452
      %v1536 = vunpack.c.l.b16 %v1453
      %v1537 = vpack.c.b16 %v1534, %v1533
      %v1538 = vpack.c.b16 %v1536, %v1535
      %v1542 = vsel %vm787, %v1461, 0
      %1544 = vmatprep.subr.bf16.mxu0 0
      %1545 = vmatpush1.bf16.msra.mxu0 %v1537
      %1546 = vmatprep.subr.bf16.mxu0 0
      %1547 = vmatpush1.bf16.msra.mxu0 %v1538
      %1548 = vmatprep.subr.bf16.mxu0 0
      %1549 = vmatpush1.bf16.msra.mxu0 0
      %1550 = vmatprep.subr.bf16.mxu0 0
      %1551 = vmatpush1.bf16.msra.mxu0 0
      %1552 = vmatprep.subr.bf16.mxu0 0
      %1553 = vmatpush1.bf16.msra.mxu0 0
      %1554 = vmatprep.subr.bf16.mxu0 0
      %1555 = vmatpush1.bf16.msra.mxu0 0
      %1556 = vmatprep.subr.bf16.mxu0 0
      %1557 = vmatpush1.bf16.msra.mxu0 0
      %1558 = vmatprep.subr.bf16.mxu0 0
      %1559 = vmatpush1.bf16.msra.mxu0 0
      %1560 = vmatprep.subr.bf16.mxu0 0
      %1561 = vmatpush1.bf16.msra.mxu0 0
      %1562 = vmatprep.subr.bf16.mxu0 0
      %1563 = vmatpush1.bf16.msra.mxu0 0
      %1564 = vmatprep.subr.bf16.mxu0 0
      %1565 = vmatpush1.bf16.msra.mxu0 0
      %1566 = vmatprep.subr.bf16.mxu0 0
      %1567 = vmatpush1.bf16.msra.mxu0 0
      %1568 = vmatprep.subr.bf16.mxu0 0
      %1569 = vmatpush1.bf16.msra.mxu0 0
      %1570 = vmatprep.subr.bf16.mxu0 0
      %1571 = vmatpush1.bf16.msra.mxu0 0
      %1572 = vmatprep.subr.bf16.mxu0 0
      %1573 = vmatpush1.bf16.msra.mxu0 0
      %1574 = vmatprep.subr.bf16.mxu0 0
      %1575 = vmatpush1.bf16.msra.mxu0 0
      %1576 = vmatprep.mubr.bf16.mxu0 0
      %1577 = vmatmul.mubr.bf16.gmra.mrb[0].mxu0 %v1542
      %v1578 = vpop.f32.mrb[0].mxu0
      %v1579 = vadd.f32 %v1527, %v1578
      %v1580 = vpop.f32.mrb[0].mxu0
      %v1581 = vpop.f32.mrb[0].mxu0
      %v1582 = vpop.f32.mrb[0].mxu0
      %1583 = vdwg.mxu0
      %v1584 = vpack.c.bf16 %v1518, %v1518
      %v1585 = vpack.c.bf16 %v1579, %v1579
      %v1587 = vsel %vm891, %v1584, 0
      %v1590 = vsel %vm891, %v1585, 0
      %1592 = vmatprep.subr.bf16.mxu0 0
      %1593 = vmatpush1.bf16.xpose.msra.mxu0 %v1590
      %1594 = vmatprep.subr.bf16.mxu0 0
      %1595 = vmatpush1.bf16.xpose.msra.mxu0 0
      %1596 = vmatprep.subr.bf16.mxu0 0
      %1597 = vmatpush1.bf16.xpose.msra.mxu0 0
      %1598 = vmatprep.subr.bf16.mxu0 0
      %1599 = vmatpush1.bf16.xpose.msra.mxu0 0
      %1600 = vmatprep.subr.bf16.mxu0 0
      %1601 = vmatpush1.bf16.xpose.msra.mxu0 0
      %1602 = vmatprep.subr.bf16.mxu0 0
      %1603 = vmatpush1.bf16.xpose.msra.mxu0 0
      %1604 = vmatprep.subr.bf16.mxu0 0
      %1605 = vmatpush1.bf16.xpose.msra.mxu0 0
      %1606 = vmatprep.subr.bf16.mxu0 0
      %1607 = vmatpush1.bf16.xpose.msra.mxu0 0
      %1608 = vmatprep.subr.bf16.mxu0 0
      %1609 = vmatpush1.bf16.xpose.msra.mxu0 0
      %1610 = vmatprep.subr.bf16.mxu0 0
      %1611 = vmatpush1.bf16.xpose.msra.mxu0 0
      %1612 = vmatprep.subr.bf16.mxu0 0
      %1613 = vmatpush1.bf16.xpose.msra.mxu0 0
      %1614 = vmatprep.subr.bf16.mxu0 0
      %1615 = vmatpush1.bf16.xpose.msra.mxu0 0
      %1616 = vmatprep.subr.bf16.mxu0 0
      %1617 = vmatpush1.bf16.xpose.msra.mxu0 0
      %1618 = vmatprep.subr.bf16.mxu0 0
      %1619 = vmatpush1.bf16.xpose.msra.mxu0 0
      %1620 = vmatprep.subr.bf16.mxu0 0
      %1621 = vmatpush1.bf16.xpose.msra.mxu0 0
      %1622 = vmatprep.subr.bf16.mxu0 0
      %1623 = vmatpush1.bf16.xpose.msra.mxu0 0
      %1624 = vmatprep.mubr.bf16.mxu0 0
      %1625 = vmatmul.mubr.bf16.gmra.mrb[0].mxu0 %v1587
      %v1626 = vpop.f32.mrb[0].mxu0
      %v1627 = vadd.f32 0.0, %v1626
      %v1628 = vpop.f32.mrb[0].mxu0
      %v1629 = vpop.f32.mrb[0].mxu0
      %v1630 = vpop.f32.mrb[0].mxu0
      %1631 = vdwg.mxu0
      %v1632 = vmul.f32 %v1627, 0.35355338
      %v1633 = vsel %vm891, %v1632, -inf
      %1634 = vmax.xlane.f32.xlu0 %v1633
      %v1635 = vpop.xlane.xlu0 %1634
      %v1636 = vsub.f32 %v1632, %v1635
      %v1637 = vmul.f32 %v1636, 1.442695
      %v1638 = vpow.pop %v1637
      %v1639 = vsel %vm891, %v1638, 0.0
      %1640 = vadd.xlane.f32.xlu0 %v1639
      %v1641 = vpop.xlane.xlu0 %1640
      %v1642 = vrcp.pop %v1641
      %v1643 = vmul.f32 %v1638, %v1642
      %v1644 = vpack.c.bf16 %v1643, %v1643
      %1646 = vrot.lane.b32.xlu0 %v1585, 96
      %v1647 = vpop.permute.xlu0 %1646
      %v1649 = vsel %vm891, %v1644, 0
      %v1652 = vsel %vm957, %v1647, 0
      %1654 = vmatprep.subr.bf16.mxu0 0
      %1655 = vmatpush1.bf16.msra.mxu0 %v1652
      %1656 = vmatprep.subr.bf16.mxu0 0
      %1657 = vmatpush1.bf16.msra.mxu0 0
      %1658 = vmatprep.subr.bf16.mxu0 0
      %1659 = vmatpush1.bf16.msra.mxu0 0
      %1660 = vmatprep.subr.bf16.mxu0 0
      %1661 = vmatpush1.bf16.msra.mxu0 0
      %1662 = vmatprep.subr.bf16.mxu0 0
      %1663 = vmatpush1.bf16.msra.mxu0 0
      %1664 = vmatprep.subr.bf16.mxu0 0
      %1665 = vmatpush1.bf16.msra.mxu0 0
      %1666 = vmatprep.subr.bf16.mxu0 0
      %1667 = vmatpush1.bf16.msra.mxu0 0
      %1668 = vmatprep.subr.bf16.mxu0 0
      %1669 = vmatpush1.bf16.msra.mxu0 0
      %1670 = vmatprep.subr.bf16.mxu0 0
      %1671 = vmatpush1.bf16.msra.mxu0 0
      %1672 = vmatprep.subr.bf16.mxu0 0
      %1673 = vmatpush1.bf16.msra.mxu0 0
      %1674 = vmatprep.subr.bf16.mxu0 0
      %1675 = vmatpush1.bf16.msra.mxu0 0
      %1676 = vmatprep.subr.bf16.mxu0 0
      %1677 = vmatpush1.bf16.msra.mxu0 0
      %1678 = vmatprep.subr.bf16.mxu0 0
      %1679 = vmatpush1.bf16.msra.mxu0 0
      %1680 = vmatprep.subr.bf16.mxu0 0
      %1681 = vmatpush1.bf16.msra.mxu0 0
      %1682 = vmatprep.subr.bf16.mxu0 0
      %1683 = vmatpush1.bf16.msra.mxu0 0
      %1684 = vmatprep.subr.bf16.mxu0 0
      %1685 = vmatpush1.bf16.msra.mxu0 0
      %1686 = vmatprep.mubr.bf16.mxu0 0
      %1687 = vmatmul.mubr.bf16.gmra.mrb[0].mxu0 %v1649
      %v1688 = vpop.f32.mrb[0].mxu0
      %v1689 = vadd.f32 0.0, %v1688
      %v1690 = vpop.f32.mrb[0].mxu0
      %v1691 = vpop.f32.mrb[0].mxu0
      %v1692 = vpop.f32.mrb[0].mxu0
      %1693 = vdwg.mxu0
      %1695 = vrot.lane.b32.xlu0 %v1584, 120
      %v1696 = vpop.permute.xlu0 %1695
      %1697 = vrot.lane.b32.xlu0 %v1585, 120
      %v1698 = vpop.permute.xlu0 %1697
      %v1700 = vsel %vm891, %v1696, 0
      %v1703 = vsel %vm891, %v1698, 0
      %1705 = vmatprep.subr.bf16.mxu0 0
      %1706 = vmatpush1.bf16.xpose.msra.mxu0 %v1703
      %1707 = vmatprep.subr.bf16.mxu0 0
      %1708 = vmatpush1.bf16.xpose.msra.mxu0 0
      %1709 = vmatprep.subr.bf16.mxu0 0
      %1710 = vmatpush1.bf16.xpose.msra.mxu0 0
      %1711 = vmatprep.subr.bf16.mxu0 0
      %1712 = vmatpush1.bf16.xpose.msra.mxu0 0
      %1713 = vmatprep.subr.bf16.mxu0 0
      %1714 = vmatpush1.bf16.xpose.msra.mxu0 0
      %1715 = vmatprep.subr.bf16.mxu0 0
      %1716 = vmatpush1.bf16.xpose.msra.mxu0 0
      %1717 = vmatprep.subr.bf16.mxu0 0
      %1718 = vmatpush1.bf16.xpose.msra.mxu0 0
      %1719 = vmatprep.subr.bf16.mxu0 0
      %1720 = vmatpush1.bf16.xpose.msra.mxu0 0
      %1721 = vmatprep.subr.bf16.mxu0 0
      %1722 = vmatpush1.bf16.xpose.msra.mxu0 0
      %1723 = vmatprep.subr.bf16.mxu0 0
      %1724 = vmatpush1.bf16.xpose.msra.mxu0 0
      %1725 = vmatprep.subr.bf16.mxu0 0
      %1726 = vmatpush1.bf16.xpose.msra.mxu0 0
      %1727 = vmatprep.subr.bf16.mxu0 0
      %1728 = vmatpush1.bf16.xpose.msra.mxu0 0
      %1729 = vmatprep.subr.bf16.mxu0 0
      %1730 = vmatpush1.bf16.xpose.msra.mxu0 0
      %1731 = vmatprep.subr.bf16.mxu0 0
      %1732 = vmatpush1.bf16.xpose.msra.mxu0 0
      %1733 = vmatprep.subr.bf16.mxu0 0
      %1734 = vmatpush1.bf16.xpose.msra.mxu0 0
      %1735 = vmatprep.subr.bf16.mxu0 0
      %1736 = vmatpush1.bf16.xpose.msra.mxu0 0
      %1737 = vmatprep.mubr.bf16.mxu0 0
      %1738 = vmatmul.mubr.bf16.gmra.mrb[0].mxu0 %v1700
      %v1739 = vpop.f32.mrb[0].mxu0
      %v1740 = vadd.f32 0.0, %v1739
      %v1741 = vpop.f32.mrb[0].mxu0
      %v1742 = vpop.f32.mrb[0].mxu0
      %v1743 = vpop.f32.mrb[0].mxu0
      %1744 = vdwg.mxu0
      %v1745 = vmul.f32 %v1740, 0.35355338
      %v1746 = vsel %vm891, %v1745, -inf
      %1747 = vmax.xlane.f32.xlu0 %v1746
      %v1748 = vpop.xlane.xlu0 %1747
      %v1749 = vsub.f32 %v1745, %v1748
      %v1750 = vmul.f32 %v1749, 1.442695
      %v1751 = vpow.pop %v1750
      %v1752 = vsel %vm891, %v1751, 0.0
      %1753 = vadd.xlane.f32.xlu0 %v1752
      %v1754 = vpop.xlane.xlu0 %1753
      %v1755 = vrcp.pop %v1754
      %v1756 = vmul.f32 %v1751, %v1755
      %v1757 = vpack.c.bf16 %v1756, %v1756
      %1758 = vrot.lane.b32.xlu0 %v1585, 88
      %v1759 = vpop.permute.xlu0 %1758
      %v1761 = vsel %vm891, %v1757, 0
      %v1764 = vsel %vm957, %v1759, 0
      %1766 = vmatprep.subr.bf16.mxu0 0
      %1767 = vmatpush1.bf16.msra.mxu0 %v1764
      %1768 = vmatprep.subr.bf16.mxu0 0
      %1769 = vmatpush1.bf16.msra.mxu0 0
      %1770 = vmatprep.subr.bf16.mxu0 0
      %1771 = vmatpush1.bf16.msra.mxu0 0
      %1772 = vmatprep.subr.bf16.mxu0 0
      %1773 = vmatpush1.bf16.msra.mxu0 0
      %1774 = vmatprep.subr.bf16.mxu0 0
      %1775 = vmatpush1.bf16.msra.mxu0 0
      %1776 = vmatprep.subr.bf16.mxu0 0
      %1777 = vmatpush1.bf16.msra.mxu0 0
      %1778 = vmatprep.subr.bf16.mxu0 0
      %1779 = vmatpush1.bf16.msra.mxu0 0
      %1780 = vmatprep.subr.bf16.mxu0 0
      %1781 = vmatpush1.bf16.msra.mxu0 0
      %1782 = vmatprep.subr.bf16.mxu0 0
      %1783 = vmatpush1.bf16.msra.mxu0 0
      %1784 = vmatprep.subr.bf16.mxu0 0
      %1785 = vmatpush1.bf16.msra.mxu0 0
      %1786 = vmatprep.subr.bf16.mxu0 0
      %1787 = vmatpush1.bf16.msra.mxu0 0
      %1788 = vmatprep.subr.bf16.mxu0 0
      %1789 = vmatpush1.bf16.msra.mxu0 0
      %1790 = vmatprep.subr.bf16.mxu0 0
      %1791 = vmatpush1.bf16.msra.mxu0 0
      %1792 = vmatprep.subr.bf16.mxu0 0
      %1793 = vmatpush1.bf16.msra.mxu0 0
      %1794 = vmatprep.subr.bf16.mxu0 0
      %1795 = vmatpush1.bf16.msra.mxu0 0
      %1796 = vmatprep.subr.bf16.mxu0 0
      %1797 = vmatpush1.bf16.msra.mxu0 0
      %1798 = vmatprep.mubr.bf16.mxu0 0
      %1799 = vmatmul.mubr.bf16.gmra.mrb[0].mxu0 %v1761
      %v1800 = vpop.f32.mrb[0].mxu0
      %v1801 = vadd.f32 0.0, %v1800
      %v1802 = vpop.f32.mrb[0].mxu0
      %v1803 = vpop.f32.mrb[0].mxu0
      %v1804 = vpop.f32.mrb[0].mxu0
      %1805 = vdwg.mxu0
      %1806 = vrot.lane.b32.xlu0 %v1584, 112
      %v1807 = vpop.permute.xlu0 %1806
      %1808 = vrot.lane.b32.xlu0 %v1585, 112
      %v1809 = vpop.permute.xlu0 %1808
      %v1811 = vsel %vm891, %v1807, 0
      %v1814 = vsel %vm891, %v1809, 0
      %1816 = vmatprep.subr.bf16.mxu0 0
      %1817 = vmatpush1.bf16.xpose.msra.mxu0 %v1814
      %1818 = vmatprep.subr.bf16.mxu0 0
      %1819 = vmatpush1.bf16.xpose.msra.mxu0 0
      %1820 = vmatprep.subr.bf16.mxu0 0
      %1821 = vmatpush1.bf16.xpose.msra.mxu0 0
      %1822 = vmatprep.subr.bf16.mxu0 0
      %1823 = vmatpush1.bf16.xpose.msra.mxu0 0
      %1824 = vmatprep.subr.bf16.mxu0 0
      %1825 = vmatpush1.bf16.xpose.msra.mxu0 0
      %1826 = vmatprep.subr.bf16.mxu0 0
      %1827 = vmatpush1.bf16.xpose.msra.mxu0 0
      %1828 = vmatprep.subr.bf16.mxu0 0
      %1829 = vmatpush1.bf16.xpose.msra.mxu0 0
      %1830 = vmatprep.subr.bf16.mxu0 0
      %1831 = vmatpush1.bf16.xpose.msra.mxu0 0
      %1832 = vmatprep.subr.bf16.mxu0 0
      %1833 = vmatpush1.bf16.xpose.msra.mxu0 0
      %1834 = vmatprep.subr.bf16.mxu0 0
      %1835 = vmatpush1.bf16.xpose.msra.mxu0 0
      %1836 = vmatprep.subr.bf16.mxu0 0
      %1837 = vmatpush1.bf16.xpose.msra.mxu0 0
      %1838 = vmatprep.subr.bf16.mxu0 0
      %1839 = vmatpush1.bf16.xpose.msra.mxu0 0
      %1840 = vmatprep.subr.bf16.mxu0 0
      %1841 = vmatpush1.bf16.xpose.msra.mxu0 0
      %1842 = vmatprep.subr.bf16.mxu0 0
      %1843 = vmatpush1.bf16.xpose.msra.mxu0 0
      %1844 = vmatprep.subr.bf16.mxu0 0
      %1845 = vmatpush1.bf16.xpose.msra.mxu0 0
      %1846 = vmatprep.subr.bf16.mxu0 0
      %1847 = vmatpush1.bf16.xpose.msra.mxu0 0
      %1848 = vmatprep.mubr.bf16.mxu0 0
      %1849 = vmatmul.mubr.bf16.gmra.mrb[0].mxu0 %v1811
      %v1850 = vpop.f32.mrb[0].mxu0
      %v1851 = vadd.f32 0.0, %v1850
      %v1852 = vpop.f32.mrb[0].mxu0
      %v1853 = vpop.f32.mrb[0].mxu0
      %v1854 = vpop.f32.mrb[0].mxu0
      %1855 = vdwg.mxu0
      %v1856 = vmul.f32 %v1851, 0.35355338
      %v1857 = vsel %vm891, %v1856, -inf
      %1858 = vmax.xlane.f32.xlu0 %v1857
      %v1859 = vpop.xlane.xlu0 %1858
      %v1860 = vsub.f32 %v1856, %v1859
      %v1861 = vmul.f32 %v1860, 1.442695
      %v1862 = vpow.pop %v1861
      %v1863 = vsel %vm891, %v1862, 0.0
      %1864 = vadd.xlane.f32.xlu0 %v1863
      %v1865 = vpop.xlane.xlu0 %1864
      %v1866 = vrcp.pop %v1865
      %v1867 = vmul.f32 %v1862, %v1866
      %v1868 = vpack.c.bf16 %v1867, %v1867
      %1869 = vrot.lane.b32.xlu0 %v1585, 80
      %v1870 = vpop.permute.xlu0 %1869
      %v1872 = vsel %vm891, %v1868, 0
      %v1875 = vsel %vm957, %v1870, 0
      %1877 = vmatprep.subr.bf16.mxu0 0
      %1878 = vmatpush1.bf16.msra.mxu0 %v1875
      %1879 = vmatprep.subr.bf16.mxu0 0
      %1880 = vmatpush1.bf16.msra.mxu0 0
      %1881 = vmatprep.subr.bf16.mxu0 0
      %1882 = vmatpush1.bf16.msra.mxu0 0
      %1883 = vmatprep.subr.bf16.mxu0 0
      %1884 = vmatpush1.bf16.msra.mxu0 0
      %1885 = vmatprep.subr.bf16.mxu0 0
      %1886 = vmatpush1.bf16.msra.mxu0 0
      %1887 = vmatprep.subr.bf16.mxu0 0
      %1888 = vmatpush1.bf16.msra.mxu0 0
      %1889 = vmatprep.subr.bf16.mxu0 0
      %1890 = vmatpush1.bf16.msra.mxu0 0
      %1891 = vmatprep.subr.bf16.mxu0 0
      %1892 = vmatpush1.bf16.msra.mxu0 0
      %1893 = vmatprep.subr.bf16.mxu0 0
      %1894 = vmatpush1.bf16.msra.mxu0 0
      %1895 = vmatprep.subr.bf16.mxu0 0
      %1896 = vmatpush1.bf16.msra.mxu0 0
      %1897 = vmatprep.subr.bf16.mxu0 0
      %1898 = vmatpush1.bf16.msra.mxu0 0
      %1899 = vmatprep.subr.bf16.mxu0 0
      %1900 = vmatpush1.bf16.msra.mxu0 0
      %1901 = vmatprep.subr.bf16.mxu0 0
      %1902 = vmatpush1.bf16.msra.mxu0 0
      %1903 = vmatprep.subr.bf16.mxu0 0
      %1904 = vmatpush1.bf16.msra.mxu0 0
      %1905 = vmatprep.subr.bf16.mxu0 0
      %1906 = vmatpush1.bf16.msra.mxu0 0
      %1907 = vmatprep.subr.bf16.mxu0 0
      %1908 = vmatpush1.bf16.msra.mxu0 0
      %1909 = vmatprep.mubr.bf16.mxu0 0
      %1910 = vmatmul.mubr.bf16.gmra.mrb[0].mxu0 %v1872
      %v1911 = vpop.f32.mrb[0].mxu0
      %v1912 = vadd.f32 0.0, %v1911
      %v1913 = vpop.f32.mrb[0].mxu0
      %v1914 = vpop.f32.mrb[0].mxu0
      %v1915 = vpop.f32.mrb[0].mxu0
      %1916 = vdwg.mxu0
      %1917 = vrot.lane.b32.xlu0 %v1584, 104
      %v1918 = vpop.permute.xlu0 %1917
      %1919 = vrot.lane.b32.xlu0 %v1585, 104
      %v1920 = vpop.permute.xlu0 %1919
      %v1922 = vsel %vm891, %v1918, 0
      %v1925 = vsel %vm891, %v1920, 0
      %1927 = vmatprep.subr.bf16.mxu0 0
      %1928 = vmatpush1.bf16.xpose.msra.mxu0 %v1925
      %1929 = vmatprep.subr.bf16.mxu0 0
      %1930 = vmatpush1.bf16.xpose.msra.mxu0 0
      %1931 = vmatprep.subr.bf16.mxu0 0
      %1932 = vmatpush1.bf16.xpose.msra.mxu0 0
      %1933 = vmatprep.subr.bf16.mxu0 0
      %1934 = vmatpush1.bf16.xpose.msra.mxu0 0
      %1935 = vmatprep.subr.bf16.mxu0 0
      %1936 = vmatpush1.bf16.xpose.msra.mxu0 0
      %1937 = vmatprep.subr.bf16.mxu0 0
      %1938 = vmatpush1.bf16.xpose.msra.mxu0 0
      %1939 = vmatprep.subr.bf16.mxu0 0
      %1940 = vmatpush1.bf16.xpose.msra.mxu0 0
      %1941 = vmatprep.subr.bf16.mxu0 0
      %1942 = vmatpush1.bf16.xpose.msra.mxu0 0
      %1943 = vmatprep.subr.bf16.mxu0 0
      %1944 = vmatpush1.bf16.xpose.msra.mxu0 0
      %1945 = vmatprep.subr.bf16.mxu0 0
      %1946 = vmatpush1.bf16.xpose.msra.mxu0 0
      %1947 = vmatprep.subr.bf16.mxu0 0
      %1948 = vmatpush1.bf16.xpose.msra.mxu0 0
      %1949 = vmatprep.subr.bf16.mxu0 0
      %1950 = vmatpush1.bf16.xpose.msra.mxu0 0
      %1951 = vmatprep.subr.bf16.mxu0 0
      %1952 = vmatpush1.bf16.xpose.msra.mxu0 0
      %1953 = vmatprep.subr.bf16.mxu0 0
      %1954 = vmatpush1.bf16.xpose.msra.mxu0 0
      %1955 = vmatprep.subr.bf16.mxu0 0
      %1956 = vmatpush1.bf16.xpose.msra.mxu0 0
      %1957 = vmatprep.subr.bf16.mxu0 0
      %1958 = vmatpush1.bf16.xpose.msra.mxu0 0
      %1959 = vmatprep.mubr.bf16.mxu0 0
      %1960 = vmatmul.mubr.bf16.gmra.mrb[0].mxu0 %v1922
      %v1961 = vpop.f32.mrb[0].mxu0
      %v1962 = vadd.f32 0.0, %v1961
      %v1963 = vpop.f32.mrb[0].mxu0
      %v1964 = vpop.f32.mrb[0].mxu0
      %v1965 = vpop.f32.mrb[0].mxu0
      %1966 = vdwg.mxu0
      %v1967 = vmul.f32 %v1962, 0.35355338
      %v1968 = vsel %vm891, %v1967, -inf
      %1969 = vmax.xlane.f32.xlu0 %v1968
      %v1970 = vpop.xlane.xlu0 %1969
      %v1971 = vsub.f32 %v1967, %v1970
      %v1972 = vmul.f32 %v1971, 1.442695
      %v1973 = vpow.pop %v1972
      %v1974 = vsel %vm891, %v1973, 0.0
      %1975 = vadd.xlane.f32.xlu0 %v1974
      %v1976 = vpop.xlane.xlu0 %1975
      %v1977 = vrcp.pop %v1976
      %v1978 = vmul.f32 %v1973, %v1977
      %v1979 = vpack.c.bf16 %v1978, %v1978
      %1980 = vrot.lane.b32.xlu0 %v1585, 72
      %v1981 = vpop.permute.xlu0 %1980
      %v1983 = vsel %vm891, %v1979, 0
      %v1986 = vsel %vm957, %v1981, 0
      %1988 = vmatprep.subr.bf16.mxu0 0
      %1989 = vmatpush1.bf16.msra.mxu0 %v1986
      %1990 = vmatprep.subr.bf16.mxu0 0
      %1991 = vmatpush1.bf16.msra.mxu0 0
      %1992 = vmatprep.subr.bf16.mxu0 0
      %1993 = vmatpush1.bf16.msra.mxu0 0
      %1994 = vmatprep.subr.bf16.mxu0 0
      %1995 = vmatpush1.bf16.msra.mxu0 0
      %1996 = vmatprep.subr.bf16.mxu0 0
      %1997 = vmatpush1.bf16.msra.mxu0 0
      %1998 = vmatprep.subr.bf16.mxu0 0
      %1999 = vmatpush1.bf16.msra.mxu0 0
      %2000 = vmatprep.subr.bf16.mxu0 0
      %2001 = vmatpush1.bf16.msra.mxu0 0
      %2002 = vmatprep.subr.bf16.mxu0 0
      %2003 = vmatpush1.bf16.msra.mxu0 0
      %2004 = vmatprep.subr.bf16.mxu0 0
      %2005 = vmatpush1.bf16.msra.mxu0 0
      %2006 = vmatprep.subr.bf16.mxu0 0
      %2007 = vmatpush1.bf16.msra.mxu0 0
      %2008 = vmatprep.subr.bf16.mxu0 0
      %2009 = vmatpush1.bf16.msra.mxu0 0
      %2010 = vmatprep.subr.bf16.mxu0 0
      %2011 = vmatpush1.bf16.msra.mxu0 0
      %2012 = vmatprep.subr.bf16.mxu0 0
      %2013 = vmatpush1.bf16.msra.mxu0 0
      %2014 = vmatprep.subr.bf16.mxu0 0
      %2015 = vmatpush1.bf16.msra.mxu0 0
      %2016 = vmatprep.subr.bf16.mxu0 0
      %2017 = vmatpush1.bf16.msra.mxu0 0
      %2018 = vmatprep.subr.bf16.mxu0 0
      %2019 = vmatpush1.bf16.msra.mxu0 0
      %2020 = vmatprep.mubr.bf16.mxu0 0
      %2021 = vmatmul.mubr.bf16.gmra.mrb[0].mxu0 %v1983
      %v2022 = vpop.f32.mrb[0].mxu0
      %v2023 = vadd.f32 0.0, %v2022
      %v2024 = vpop.f32.mrb[0].mxu0
      %v2025 = vpop.f32.mrb[0].mxu0
      %v2026 = vpop.f32.mrb[0].mxu0
      %2027 = vdwg.mxu0
      %2029 = vrot.lane.b32.xlu0 %v1801, 8
      %v2030 = vpop.permute.xlu0 %2029
      %2033 = vrot.lane.b32.xlu0 %v1912, 16
      %v2034 = vpop.permute.xlu0 %2033
      %2037 = vrot.lane.b32.xlu0 %v2023, 24
      %v2038 = vpop.permute.xlu0 %2037
      %v2040 = vsel %vm891, %v1689, %v2030
      %v2041 = vsel %vm1348, %v2040, %v2034
      %v2042 = vsel %vm1350, %v2041, %v2038
      %v2043 = vpack.c.bf16 %v2042, %v2042
      %v2045 = vlaneseq
      %v2046 = vshrl.u32 %v2045, 7
      %v2047 = vsub.s32 0, %v2046
      %v2048 = vrot.slane %v1459, %v2047
      %v2054 = vunpack.c.l.b16 %v1455
      %v2055 = vunpack.c.l.b16 %v1456
      %v2056 = vunpack.c.l.b16 %v1457
      %v2057 = vunpack.c.l.b16 %v1458
      %v2058 = vpack.c.b16 %v2055, %v2054
      %v2059 = vpack.c.b16 %v2057, %v2056
      %v2063 = vsel %vm787, %v2043, 0
      %2065 = vmatprep.subr.bf16.mxu0 0
      %2066 = vmatpush1.bf16.msra.mxu0 %v2058
      %2067 = vmatprep.subr.bf16.mxu0 0
      %2068 = vmatpush1.bf16.msra.mxu0 %v2059
      %2069 = vmatprep.subr.bf16.mxu0 0
      %2070 = vmatpush1.bf16.msra.mxu0 0
      %2071 = vmatprep.subr.bf16.mxu0 0
      %2072 = vmatpush1.bf16.msra.mxu0 0
      %2073 = vmatprep.subr.bf16.mxu0 0
      %2074 = vmatpush1.bf16.msra.mxu0 0
      %2075 = vmatprep.subr.bf16.mxu0 0
      %2076 = vmatpush1.bf16.msra.mxu0 0
      %2077 = vmatprep.subr.bf16.mxu0 0
      %2078 = vmatpush1.bf16.msra.mxu0 0
      %2079 = vmatprep.subr.bf16.mxu0 0
      %2080 = vmatpush1.bf16.msra.mxu0 0
      %2081 = vmatprep.subr.bf16.mxu0 0
      %2082 = vmatpush1.bf16.msra.mxu0 0
      %2083 = vmatprep.subr.bf16.mxu0 0
      %2084 = vmatpush1.bf16.msra.mxu0 0
      %2085 = vmatprep.subr.bf16.mxu0 0
      %2086 = vmatpush1.bf16.msra.mxu0 0
      %2087 = vmatprep.subr.bf16.mxu0 0
      %2088 = vmatpush1.bf16.msra.mxu0 0
      %2089 = vmatprep.subr.bf16.mxu0 0
      %2090 = vmatpush1.bf16.msra.mxu0 0
      %2091 = vmatprep.subr.bf16.mxu0 0
      %2092 = vmatpush1.bf16.msra.mxu0 0
      %2093 = vmatprep.subr.bf16.mxu0 0
      %2094 = vmatpush1.bf16.msra.mxu0 0
      %2095 = vmatprep.subr.bf16.mxu0 0
      %2096 = vmatpush1.bf16.msra.mxu0 0
      %2097 = vmatprep.mubr.bf16.mxu0 0
      %2098 = vmatmul.mubr.bf16.gmra.mrb[0].mxu0 %v2063
      %v2099 = vpop.f32.mrb[0].mxu0
      %v2100 = vadd.f32 %v2048, %v2099
      %v2101 = vpop.f32.mrb[0].mxu0
      %v2102 = vpop.f32.mrb[0].mxu0
      %v2103 = vpop.f32.mrb[0].mxu0
      %2104 = vdwg.mxu0
      %v2105 = vadd.f32 %v2100, %v1444
      %v2106 = vld [vmem:[%s16] sm:$0x1]
      %v2107 = vld [vmem:[%s17] sm:$0x1]
      %v2108 = vsel %vm787, %v2105, 0.0
      %2109 = vadd.xlane.f32.xlu0 %v2108
      %v2110 = vpop.xlane.xlu0 %2109
      %v2111 = vmul.f32 %v2110, %v1420
      %v2112 = vsub.f32 %v2105, %v2111
      %v2113 = vmul.f32 %v2112, %v2112
      %v2114 = vsel %vm787, %v2113, 0.0
      %2115 = vadd.xlane.f32.xlu0 %v2114
      %v2116 = vpop.xlane.xlu0 %2115
      %v2117 = vmul.f32 %v2116, %v1420
      %v2118 = vadd.f32 %v2117, 1e-05
      %v2119 = vrsqrt.pop %v2118
      %v2120 = vmul.f32 %v2112, %v2119
      %v2122 = vlaneseq
      %v2123 = vshrl.u32 %v2122, 7
      %v2124 = vsub.s32 0, %v2123
      %v2125 = vrot.slane %v2106, %v2124
      %v2127 = vmul.f32 %v2120, %v2125
      %v2129 = vlaneseq
      %v2130 = vshrl.u32 %v2129, 7
      %v2131 = vsub.s32 0, %v2130
      %v2132 = vrot.slane %v2107, %v2131
      %v2134 = vadd.f32 %v2127, %v2132
      %v2135 = vpack.c.bf16 %v2134, %v2134
      %v2136 = vld [vmem:[%s18] sm:$0xf]
      %v2137 = vld [vmem:[%s18 + $0x4] sm:$0xf]
      %v2138 = vld [vmem:[%s18 + $0x8] sm:$0xf]
      %v2139 = vld [vmem:[%s18 + $0xc] sm:$0xf]
      %v2140 = vld [vmem:[%s19] sm:$0x1]
      %v2142 = vlaneseq
      %v2143 = vshrl.u32 %v2142, 7
      %v2144 = vsub.s32 0, %v2143
      %v2145 = vrot.slane %v2140, %v2144
      %v2151 = vunpack.c.l.b16 %v2136
      %v2152 = vunpack.c.l.b16 %v2137
      %v2153 = vunpack.c.l.b16 %v2138
      %v2154 = vunpack.c.l.b16 %v2139
      %v2155 = vpack.c.b16 %v2152, %v2151
      %v2156 = vpack.c.b16 %v2154, %v2153
      %v2160 = vsel %vm787, %v2135, 0
      %2162 = vmatprep.subr.bf16.mxu0 0
      %2163 = vmatpush1.bf16.msra.mxu0 %v2155
      %2164 = vmatprep.subr.bf16.mxu0 0
      %2165 = vmatpush1.bf16.msra.mxu0 %v2156
      %2166 = vmatprep.subr.bf16.mxu0 0
      %2167 = vmatpush1.bf16.msra.mxu0 0
      %2168 = vmatprep.subr.bf16.mxu0 0
      %2169 = vmatpush1.bf16.msra.mxu0 0
      %2170 = vmatprep.subr.bf16.mxu0 0
      %2171 = vmatpush1.bf16.msra.mxu0 0
      %2172 = vmatprep.subr.bf16.mxu0 0
      %2173 = vmatpush1.bf16.msra.mxu0 0
      %2174 = vmatprep.subr.bf16.mxu0 0
      %2175 = vmatpush1.bf16.msra.mxu0 0
      %2176 = vmatprep.subr.bf16.mxu0 0
      %2177 = vmatpush1.bf16.msra.mxu0 0
      %2178 = vmatprep.subr.bf16.mxu0 0
      %2179 = vmatpush1.bf16.msra.mxu0 0
      %2180 = vmatprep.subr.bf16.mxu0 0
      %2181 = vmatpush1.bf16.msra.mxu0 0
      %2182 = vmatprep.subr.bf16.mxu0 0
      %2183 = vmatpush1.bf16.msra.mxu0 0
      %2184 = vmatprep.subr.bf16.mxu0 0
      %2185 = vmatpush1.bf16.msra.mxu0 0
      %2186 = vmatprep.subr.bf16.mxu0 0
      %2187 = vmatpush1.bf16.msra.mxu0 0
      %2188 = vmatprep.subr.bf16.mxu0 0
      %2189 = vmatpush1.bf16.msra.mxu0 0
      %2190 = vmatprep.subr.bf16.mxu0 0
      %2191 = vmatpush1.bf16.msra.mxu0 0
      %2192 = vmatprep.subr.bf16.mxu0 0
      %2193 = vmatpush1.bf16.msra.mxu0 0
      %2194 = vmatprep.mubr.bf16.mxu0 0
      %2195 = vmatmul.mubr.bf16.gmra.mrb[0].mxu0 %v2160
      %v2196 = vpop.f32.mrb[0].mxu0
      %v2197 = vadd.f32 %v2145, %v2196
      %v2198 = vpop.f32.mrb[0].mxu0
      %v2199 = vpop.f32.mrb[0].mxu0
      %v2200 = vpop.f32.mrb[0].mxu0
      %2201 = vdwg.mxu0
      %v2202 = vmul.f32 %v2197, 0.5
      %v2203 = vmul.f32 %v2197, 0.044715
      %v2204 = vmul.f32 %v2203, %v2197
      %v2205 = vmul.f32 %v2204, %v2197
      %v2206 = vadd.f32 %v2197, %v2205
      %v2207 = vmul.f32 %v2206, 0.7978846
      %v2208 = vtanh.pop %v2207
      %v2209 = vadd.f32 %v2208, 1.0
      %v2210 = vmul.f32 %v2202, %v2209
      %v2211 = vpack.c.bf16 %v2210, %v2210
      %v2212 = vld [vmem:[%s20] sm:$0xf]
      %v2213 = vld [vmem:[%s20 + $0x4] sm:$0xf]
      %v2214 = vld [vmem:[%s20 + $0x8] sm:$0xf]
      %v2215 = vld [vmem:[%s20 + $0xc] sm:$0xf]
      %v2216 = vld [vmem:[%s20 + $0x10] sm:$0xf]
      %v2217 = vld [vmem:[%s20 + $0x14] sm:$0xf]
      %v2218 = vld [vmem:[%s20 + $0x18] sm:$0xf]
      %v2219 = vld [vmem:[%s20 + $0x1c] sm:$0xf]
      %v2220 = vld [vmem:[%s20 + $0x20] sm:$0xf]
      %v2221 = vld [vmem:[%s20 + $0x24] sm:$0xf]
      %v2222 = vld [vmem:[%s20 + $0x28] sm:$0xf]
      %v2223 = vld [vmem:[%s20 + $0x2c] sm:$0xf]
      %v2224 = vld [vmem:[%s20 + $0x30] sm:$0xf]
      %v2225 = vld [vmem:[%s20 + $0x34] sm:$0xf]
      %v2226 = vld [vmem:[%s20 + $0x38] sm:$0xf]
      %v2227 = vld [vmem:[%s20 + $0x3c] sm:$0xf]
      %v2228 = vld [vmem:[%s21] sm:$0x1]
      %v2230 = vlaneseq
      %v2231 = vshrl.u32 %v2230, 7
      %v2232 = vsub.s32 0, %v2231
      %v2233 = vrot.slane %v2228, %v2232
      %v2251 = vunpack.c.l.b16 %v2212
      %v2252 = vunpack.c.l.b16 %v2213
      %v2253 = vunpack.c.l.b16 %v2214
      %v2254 = vunpack.c.l.b16 %v2215
      %v2255 = vunpack.c.l.b16 %v2216
      %v2256 = vunpack.c.l.b16 %v2217
      %v2257 = vunpack.c.l.b16 %v2218
      %v2258 = vunpack.c.l.b16 %v2219
      %v2259 = vunpack.c.l.b16 %v2220
      %v2260 = vunpack.c.l.b16 %v2221
      %v2261 = vunpack.c.l.b16 %v2222
      %v2262 = vunpack.c.l.b16 %v2223
      %v2263 = vunpack.c.l.b16 %v2224
      %v2264 = vunpack.c.l.b16 %v2225
      %v2265 = vunpack.c.l.b16 %v2226
      %v2266 = vunpack.c.l.b16 %v2227
      %v2267 = vpack.c.b16 %v2252, %v2251
      %v2268 = vpack.c.b16 %v2254, %v2253
      %v2269 = vpack.c.b16 %v2256, %v2255
      %v2270 = vpack.c.b16 %v2258, %v2257
      %v2271 = vpack.c.b16 %v2260, %v2259
      %v2272 = vpack.c.b16 %v2262, %v2261
      %v2273 = vpack.c.b16 %v2264, %v2263
      %v2274 = vpack.c.b16 %v2266, %v2265
      %2283 = vmatprep.subr.bf16.mxu0 0
      %2284 = vmatpush1.bf16.msra.mxu0 %v2267
      %2285 = vmatprep.subr.bf16.mxu0 0
      %2286 = vmatpush1.bf16.msra.mxu0 %v2268
      %2287 = vmatprep.subr.bf16.mxu0 0
      %2288 = vmatpush1.bf16.msra.mxu0 %v2269
      %2289 = vmatprep.subr.bf16.mxu0 0
      %2290 = vmatpush1.bf16.msra.mxu0 %v2270
      %2291 = vmatprep.subr.bf16.mxu0 0
      %2292 = vmatpush1.bf16.msra.mxu0 %v2271
      %2293 = vmatprep.subr.bf16.mxu0 0
      %2294 = vmatpush1.bf16.msra.mxu0 %v2272
      %2295 = vmatprep.subr.bf16.mxu0 0
      %2296 = vmatpush1.bf16.msra.mxu0 %v2273
      %2297 = vmatprep.subr.bf16.mxu0 0
      %2298 = vmatpush1.bf16.msra.mxu0 %v2274
      %2299 = vmatprep.subr.bf16.mxu0 0
      %2300 = vmatpush1.bf16.msra.mxu0 0
      %2301 = vmatprep.subr.bf16.mxu0 0
      %2302 = vmatpush1.bf16.msra.mxu0 0
      %2303 = vmatprep.subr.bf16.mxu0 0
      %2304 = vmatpush1.bf16.msra.mxu0 0
      %2305 = vmatprep.subr.bf16.mxu0 0
      %2306 = vmatpush1.bf16.msra.mxu0 0
      %2307 = vmatprep.subr.bf16.mxu0 0
      %2308 = vmatpush1.bf16.msra.mxu0 0
      %2309 = vmatprep.subr.bf16.mxu0 0
      %2310 = vmatpush1.bf16.msra.mxu0 0
      %2311 = vmatprep.subr.bf16.mxu0 0
      %2312 = vmatpush1.bf16.msra.mxu0 0
      %2313 = vmatprep.subr.bf16.mxu0 0
      %2314 = vmatpush1.bf16.msra.mxu0 0
      %2315 = vmatprep.mubr.bf16.mxu0 0
      %2316 = vmatmul.mubr.bf16.gmra.mrb[0].mxu0 %v2211
      %v2317 = vpop.f32.mrb[0].mxu0
      %v2318 = vadd.f32 %v2233, %v2317
      %v2319 = vpop.f32.mrb[0].mxu0
      %v2320 = vpop.f32.mrb[0].mxu0
      %v2321 = vpop.f32.mrb[0].mxu0
      %2322 = vdwg.mxu0
      %v2323 = vadd.f32 %v2318, %v2134
      %v2324 = vld [vmem:[%s22] sm:$0x1]
      %v2325 = vld [vmem:[%s23] sm:$0x1]
      %v2326 = vsel %vm787, %v2323, 0.0
      %2327 = vadd.xlane.f32.xlu0 %v2326
      %v2328 = vpop.xlane.xlu0 %2327
      %v2329 = vmul.f32 %v2328, %v1420
      %v2330 = vsub.f32 %v2323, %v2329
      %v2331 = vmul.f32 %v2330, %v2330
      %v2332 = vsel %vm787, %v2331, 0.0
      %2333 = vadd.xlane.f32.xlu0 %v2332
      %v2334 = vpop.xlane.xlu0 %2333
      %v2335 = vmul.f32 %v2334, %v1420
      %v2336 = vadd.f32 %v2335, 1e-05
      %v2337 = vrsqrt.pop %v2336
      %v2338 = vmul.f32 %v2330, %v2337
      %v2340 = vlaneseq
      %v2341 = vshrl.u32 %v2340, 7
      %v2342 = vsub.s32 0, %v2341
      %v2343 = vrot.slane %v2324, %v2342
      %v2345 = vmul.f32 %v2338, %v2343
      %v2347 = vlaneseq
      %v2348 = vshrl.u32 %v2347, 7
      %v2349 = vsub.s32 0, %v2348
      %v2350 = vrot.slane %v2325, %v2349
      %v2352 = vadd.f32 %v2345, %v2350
      %2353 = vst.msk [vmem:[%s749] sm:$0xff] %vm787, %v2352
      %p2354 = scmp.lt.s32.totalorder %s35, 1
      %s2355 = scalar_select %p2354, %s35, 1
      %s2356 = smul.addr %s2355, 8
      %s2357 = scalar_lea.vmem %s24, %s2356
      // Predicated region
      $region117: #{decoder_forward.3} parent=115 // pred_check
        %p2358 = pneg %p567
      $region118: #{decoder_forward.3} parent=115 // pred_check_branch
        %2360 = sbr.rel (%p2358) target = $region120
      $region119: #{decoder_forward.3} parent=115 // pred_region
        _
      $region120: #{decoder_forward.3} parent=115 // pred_fallthru
        _
    $region116: #{decoder_forward.3} parent=5 // pred_fallthru
      _
    %p2361 = scmp.le.s32.totalorder 2, %s30
    // Predicated region
    $region121: #{decoder_forward.3} parent=5 // pred_check
      %p2362 = pneg %p2361
    $region122: #{decoder_forward.3} parent=5 // pred_check_branch
      %2364 = sbr.rel (%p2362) target = $region124
    $region123: #{decoder_forward.3} parent=5 // pred_region
      %s2365 = ssub.s32 %s30, 2
      // Predicated region
      $region125: #{decoder_forward.3} parent=123 // pred_check
        %p2366 = pneg %p573
      $region126: #{decoder_forward.3} parent=123 // pred_check_branch
        %2368 = sbr.rel (%p2366) target = $region128
      $region127: #{decoder_forward.3} parent=123 // pred_region
        %p2369 = scmp.lt.s32.totalorder %s36, 1
        %s2370 = scalar_select %p2369, %s36, 1
        %s2371 = smul.addr %s2370, 8
        %s2372 = scalar_lea.vmem %s24, %s2371
      $region128: #{decoder_forward.3} parent=123 // pred_fallthru
        _
    $region124: #{decoder_forward.3} parent=5 // pred_fallthru
      _
  $region6: #{decoder_forward.3} parent=0 // loop_footer
    %s34 = sadd.s32 1, %s30
  $region7: #{decoder_forward.3} parent=0 // loop_footer_branch
    %29 = sbr.rel target = $region3
  $region8: #{decoder_forward.3} parent=0 // loop_exit
    _

</llo_original>
